<compile_context>
chip_gen: v7x
topology: tpu7x:2x2x1
jax: 0.10.0
libtpu: 0.0.40
codegen_flags: <defaults>
</compile_context>

<pallas_src>
import jax
import jax.numpy as jnp
from jax.experimental import pallas as pl
from jax.experimental.pallas import tpu as pltpu


def _conv2x2_relu_layer(in_ref, out_ref, w_ref, b_ref):
    """One Conv2d(k=2, stride=1, VALID) + ReLU, channels-first, on the VPU.

    in_ref : (N, Cin,  H,   W)    VMEM
    out_ref: (N, Cout, H-1, W-1)  VMEM
    w_ref  : (Cout*Cin*4,)        SMEM, torch (Cout, Cin, kh, kw) flattened row-major
    b_ref  : (Cout,)              SMEM
    """
    nb, cin, h, w = in_ref.shape
    cout = b_ref.shape[0]
    ho, wo = h - 1, w - 1

    accs = [jnp.zeros((nb, ho, wo), jnp.float32) for _ in range(cout)]
    for ci in range(cin):
        chan = in_ref[:, ci, :, :]                      # (nb, h, w) aligned load
        for dh in range(2):
            for dw in range(2):
                tap = chan[:, dh:dh + ho, dw:dw + wo]   # shifted window (nb, ho, wo)
                for co in range(cout):
                    wv = w_ref[((co * cin + ci) * 2 + dh) * 2 + dw]  # scalar from SMEM
                    accs[co] = accs[co] + wv * tap
    for co in range(cout):
        out_ref[:, co, :, :] = jnp.maximum(accs[co] + b_ref[co], 0.0)


def _net_conv2d_kernel(x_ref, w1_ref, b1_ref, w2_ref, b2_ref, w3_ref, b3_ref,
                       o_ref, s1_ref, s2_ref):
    _conv2x2_relu_layer(x_ref, s1_ref, w1_ref, b1_ref)    # conv1 + ReLU
    _conv2x2_relu_layer(s1_ref, s2_ref, w2_ref, b2_ref)   # conv2 + ReLU
    _conv2x2_relu_layer(s2_ref, o_ref, w3_ref, b3_ref)    # conv3 + ReLU


@jax.jit
def net_conv2d_forward(x_nchw, params):
    n, _, h, w = x_nchw.shape
    c1 = params["b1"].shape[0]
    c2 = params["b2"].shape[0]
    c3 = params["b3"].shape[0]

    vmem = pl.BlockSpec(memory_space=pltpu.MemorySpace.VMEM)
    smem = pl.BlockSpec(memory_space=pltpu.MemorySpace.SMEM)

    out = pl.pallas_call(
        _net_conv2d_kernel,
        out_shape=jax.ShapeDtypeStruct((n, c3, h - 3, w - 3), jnp.float32),
        in_specs=[vmem, smem, smem, smem, smem, smem, smem],
        out_specs=vmem,
        scratch_shapes=[
            pltpu.VMEM((n, c1, h - 1, w - 1), jnp.float32),   # conv1 output
            pltpu.VMEM((n, c2, h - 2, w - 2), jnp.float32),   # conv2 output
        ],
    )(x_nchw,
      params["w1"].reshape(-1), params["b1"],
      params["w2"].reshape(-1), params["b2"],
      params["w3"].reshape(-1), params["b3"])

    # QuantStub / DeQuantStub (unprepared, fp32 eager) are identities.
    # TODO(synk): SubNet is referenced but not defined in the provided source; treated as identity.
    # NCHW-contiguous metadata-only reshape: identical to torch's x.reshape(2, 2, 4, -1).
    return out.reshape(2, 2, 4, -1)


def _init_conv_params(kw_key, kb_key, cin, cout, k=2):
    """Deterministic init mimicking torch.nn.Conv2d default (uniform +/- 1/sqrt(fan_in)).

    Weights are kept in torch OIHW layout (Cout, Cin, kh, kw)."""
    fan_in = cin * k * k
    bound = 1.0 / (fan_in ** 0.5)
    w = jax.random.uniform(kw_key, (cout, cin, k, k), jnp.float32,
                           minval=-bound, maxval=bound)
    b = jax.random.uniform(kb_key, (cout,), jnp.float32,
                           minval=-bound, maxval=bound)
    return w, b


def _reference_forward(x_nchw, params):
    """Pure-XLA reference for numerical verification."""
    def conv_relu(x, w, b):
        y = jax.lax.conv_general_dilated(
            x, w, window_strides=(1, 1), padding="VALID",
            dimension_numbers=("NCHW", "OIHW", "NCHW"))
        return jnp.maximum(y + b[None, :, None, None], 0.0)
    y = conv_relu(x_nchw, params["w1"], params["b1"])
    y = conv_relu(y, params["w2"], params["b2"])
    y = conv_relu(y, params["w3"], params["b3"])
    return y.reshape(2, 2, 4, -1)


if __name__ == "__main__":
    key = jax.random.PRNGKey(0)
    kx, kw1, kb1, kw2, kb2, kw3, kb3 = jax.random.split(key, 7)

    # Input: batch=2, channels=2 (conv1 expects 2 in-channels), spatial=16.
    x = jax.random.normal(kx, (2, 2, 16, 16), jnp.float32)

    w1, b1 = _init_conv_params(kw1, kb1, 2, 4)
    w2, b2 = _init_conv_params(kw2, kb2, 4, 8)
    w3, b3 = _init_conv_params(kw3, kb3, 8, 8)
    params = {"w1": w1, "b1": b1, "w2": w2, "b2": b2, "w3": w3, "b3": b3}

    out = jax.block_until_ready(net_conv2d_forward(x, params))

    # After three VALID 2x2 convs: 16 -> 15 -> 14 -> 13 spatial.
    assert out.shape == (2, 2, 4, 13 * 13), out.shape
    assert out.dtype == jnp.float32

    ref = jax.block_until_ready(_reference_forward(x, params))
    assert jnp.allclose(out, ref, rtol=1e-4, atol=1e-5), \
        float(jnp.max(jnp.abs(out - ref)))

    print("KERNEL_OK")
</pallas_src>

<mosaic_0001>
module attributes {stable_mosaic.version = 11 : i64} {
  func.func @_net_conv2d_kernel(%arg0: memref<2x2x16x16xf32, #tpu.memory_space<vmem>>, %arg1: memref<32xf32, #tpu.memory_space<smem>>, %arg2: memref<4xf32, #tpu.memory_space<smem>>, %arg3: memref<128xf32, #tpu.memory_space<smem>>, %arg4: memref<8xf32, #tpu.memory_space<smem>>, %arg5: memref<256xf32, #tpu.memory_space<smem>>, %arg6: memref<8xf32, #tpu.memory_space<smem>>, %arg7: memref<2x8x13x13xf32, #tpu.memory_space<vmem>>, %arg8: memref<2x4x15x15xf32, #tpu.memory_space<vmem>>, %arg9: memref<2x8x14x14xf32, #tpu.memory_space<vmem>>) attributes {dimension_semantics = [], scalar_prefetch = 0 : i64, scratch_operands = 2 : i64, tpu.core_type = #tpu.core_type<tc>} {
    %cst = arith.constant 0.000000e+00 : f32
    %0 = vector.broadcast %cst : f32 to vector<2x15x15xf32>
    %cst_0 = arith.constant 0.000000e+00 : f32
    %1 = vector.broadcast %cst_0 : f32 to vector<2x15x15xf32>
    %cst_1 = arith.constant 0.000000e+00 : f32
    %2 = vector.broadcast %cst_1 : f32 to vector<2x15x15xf32>
    %cst_2 = arith.constant 0.000000e+00 : f32
    %3 = vector.broadcast %cst_2 : f32 to vector<2x15x15xf32>
    %c0 = arith.constant 0 : index
    %c0_3 = arith.constant 0 : index
    %c0_4 = arith.constant 0 : index
    %c0_5 = arith.constant 0 : index
    %4 = vector.load %arg0[%c0, %c0_3, %c0_4, %c0_5] : memref<2x2x16x16xf32, #tpu.memory_space<vmem>>, vector<2x1x16x16xf32>
    %5 = vector.shape_cast %4 : vector<2x1x16x16xf32> to vector<2x16x16xf32>
    %6 = vector.extract_strided_slice %5 {offsets = [0, 0, 0], sizes = [2, 15, 15], strides = [1, 1, 1]} : vector<2x16x16xf32> to vector<2x15x15xf32>
    %c0_6 = arith.constant 0 : index
    %7 = memref.load %arg1[%c0_6] : memref<32xf32, #tpu.memory_space<smem>>
    %8 = vector.broadcast %7 : f32 to vector<2x15x15xf32>
    %9 = arith.mulf %8, %6 : vector<2x15x15xf32>
    %10 = arith.addf %0, %9 : vector<2x15x15xf32>
    %c8 = arith.constant 8 : index
    %11 = memref.load %arg1[%c8] : memref<32xf32, #tpu.memory_space<smem>>
    %12 = vector.broadcast %11 : f32 to vector<2x15x15xf32>
    %13 = arith.mulf %12, %6 : vector<2x15x15xf32>
    %14 = arith.addf %1, %13 : vector<2x15x15xf32>
    %c16 = arith.constant 16 : index
    %15 = memref.load %arg1[%c16] : memref<32xf32, #tpu.memory_space<smem>>
    %16 = vector.broadcast %15 : f32 to vector<2x15x15xf32>
    %17 = arith.mulf %16, %6 : vector<2x15x15xf32>
    %18 = arith.addf %2, %17 : vector<2x15x15xf32>
    %c24 = arith.constant 24 : index
    %19 = memref.load %arg1[%c24] : memref<32xf32, #tpu.memory_space<smem>>
    %20 = vector.broadcast %19 : f32 to vector<2x15x15xf32>
    %21 = arith.mulf %20, %6 : vector<2x15x15xf32>
    %22 = arith.addf %3, %21 : vector<2x15x15xf32>
    %23 = vector.extract_strided_slice %5 {offsets = [0, 0, 1], sizes = [2, 15, 15], strides = [1, 1, 1]} : vector<2x16x16xf32> to vector<2x15x15xf32>
    %c1 = arith.constant 1 : index
    %24 = memref.load %arg1[%c1] : memref<32xf32, #tpu.memory_space<smem>>
    %25 = vector.broadcast %24 : f32 to vector<2x15x15xf32>
    %26 = arith.mulf %25, %23 : vector<2x15x15xf32>
    %27 = arith.addf %10, %26 : vector<2x15x15xf32>
    %c9 = arith.constant 9 : index
    %28 = memref.load %arg1[%c9] : memref<32xf32, #tpu.memory_space<smem>>
    %29 = vector.broadcast %28 : f32 to vector<2x15x15xf32>
    %30 = arith.mulf %29, %23 : vector<2x15x15xf32>
    %31 = arith.addf %14, %30 : vector<2x15x15xf32>
    %c17 = arith.constant 17 : index
    %32 = memref.load %arg1[%c17] : memref<32xf32, #tpu.memory_space<smem>>
    %33 = vector.broadcast %32 : f32 to vector<2x15x15xf32>
    %34 = arith.mulf %33, %23 : vector<2x15x15xf32>
    %35 = arith.addf %18, %34 : vector<2x15x15xf32>
    %c25 = arith.constant 25 : index
    %36 = memref.load %arg1[%c25] : memref<32xf32, #tpu.memory_space<smem>>
    %37 = vector.broadcast %36 : f32 to vector<2x15x15xf32>
    %38 = arith.mulf %37, %23 : vector<2x15x15xf32>
    %39 = arith.addf %22, %38 : vector<2x15x15xf32>
    %40 = vector.extract_strided_slice %5 {offsets = [0, 1, 0], sizes = [2, 15, 15], strides = [1, 1, 1]} : vector<2x16x16xf32> to vector<2x15x15xf32>
    %c2 = arith.constant 2 : index
    %41 = memref.load %arg1[%c2] : memref<32xf32, #tpu.memory_space<smem>>
    %42 = vector.broadcast %41 : f32 to vector<2x15x15xf32>
    %43 = arith.mulf %42, %40 : vector<2x15x15xf32>
    %44 = arith.addf %27, %43 : vector<2x15x15xf32>
    %c10 = arith.constant 10 : index
    %45 = memref.load %arg1[%c10] : memref<32xf32, #tpu.memory_space<smem>>
    %46 = vector.broadcast %45 : f32 to vector<2x15x15xf32>
    %47 = arith.mulf %46, %40 : vector<2x15x15xf32>
    %48 = arith.addf %31, %47 : vector<2x15x15xf32>
    %c18 = arith.constant 18 : index
    %49 = memref.load %arg1[%c18] : memref<32xf32, #tpu.memory_space<smem>>
    %50 = vector.broadcast %49 : f32 to vector<2x15x15xf32>
    %51 = arith.mulf %50, %40 : vector<2x15x15xf32>
    %52 = arith.addf %35, %51 : vector<2x15x15xf32>
    %c26 = arith.constant 26 : index
    %53 = memref.load %arg1[%c26] : memref<32xf32, #tpu.memory_space<smem>>
    %54 = vector.broadcast %53 : f32 to vector<2x15x15xf32>
    %55 = arith.mulf %54, %40 : vector<2x15x15xf32>
    %56 = arith.addf %39, %55 : vector<2x15x15xf32>
    %57 = vector.extract_strided_slice %5 {offsets = [0, 1, 1], sizes = [2, 15, 15], strides = [1, 1, 1]} : vector<2x16x16xf32> to vector<2x15x15xf32>
    %c3 = arith.constant 3 : index
    %58 = memref.load %arg1[%c3] : memref<32xf32, #tpu.memory_space<smem>>
    %59 = vector.broadcast %58 : f32 to vector<2x15x15xf32>
    %60 = arith.mulf %59, %57 : vector<2x15x15xf32>
    %61 = arith.addf %44, %60 : vector<2x15x15xf32>
    %c11 = arith.constant 11 : index
    %62 = memref.load %arg1[%c11] : memref<32xf32, #tpu.memory_space<smem>>
    %63 = vector.broadcast %62 : f32 to vector<2x15x15xf32>
    %64 = arith.mulf %63, %57 : vector<2x15x15xf32>
    %65 = arith.addf %48, %64 : vector<2x15x15xf32>
    %c19 = arith.constant 19 : index
    %66 = memref.load %arg1[%c19] : memref<32xf32, #tpu.memory_space<smem>>
    %67 = vector.broadcast %66 : f32 to vector<2x15x15xf32>
    %68 = arith.mulf %67, %57 : vector<2x15x15xf32>
    %69 = arith.addf %52, %68 : vector<2x15x15xf32>
    %c27 = arith.constant 27 : index
    %70 = memref.load %arg1[%c27] : memref<32xf32, #tpu.memory_space<smem>>
    %71 = vector.broadcast %70 : f32 to vector<2x15x15xf32>
    %72 = arith.mulf %71, %57 : vector<2x15x15xf32>
    %73 = arith.addf %56, %72 : vector<2x15x15xf32>
    %c0_7 = arith.constant 0 : index
    %c1_8 = arith.constant 1 : index
    %c0_9 = arith.constant 0 : index
    %c0_10 = arith.constant 0 : index
    %74 = vector.load %arg0[%c0_7, %c1_8, %c0_9, %c0_10] : memref<2x2x16x16xf32, #tpu.memory_space<vmem>>, vector<2x1x16x16xf32>
    %75 = vector.shape_cast %74 : vector<2x1x16x16xf32> to vector<2x16x16xf32>
    %76 = vector.extract_strided_slice %75 {offsets = [0, 0, 0], sizes = [2, 15, 15], strides = [1, 1, 1]} : vector<2x16x16xf32> to vector<2x15x15xf32>
    %c4 = arith.constant 4 : index
    %77 = memref.load %arg1[%c4] : memref<32xf32, #tpu.memory_space<smem>>
    %78 = vector.broadcast %77 : f32 to vector<2x15x15xf32>
    %79 = arith.mulf %78, %76 : vector<2x15x15xf32>
    %80 = arith.addf %61, %79 : vector<2x15x15xf32>
    %c12 = arith.constant 12 : index
    %81 = memref.load %arg1[%c12] : memref<32xf32, #tpu.memory_space<smem>>
    %82 = vector.broadcast %81 : f32 to vector<2x15x15xf32>
    %83 = arith.mulf %82, %76 : vector<2x15x15xf32>
    %84 = arith.addf %65, %83 : vector<2x15x15xf32>
    %c20 = arith.constant 20 : index
    %85 = memref.load %arg1[%c20] : memref<32xf32, #tpu.memory_space<smem>>
    %86 = vector.broadcast %85 : f32 to vector<2x15x15xf32>
    %87 = arith.mulf %86, %76 : vector<2x15x15xf32>
    %88 = arith.addf %69, %87 : vector<2x15x15xf32>
    %c28 = arith.constant 28 : index
    %89 = memref.load %arg1[%c28] : memref<32xf32, #tpu.memory_space<smem>>
    %90 = vector.broadcast %89 : f32 to vector<2x15x15xf32>
    %91 = arith.mulf %90, %76 : vector<2x15x15xf32>
    %92 = arith.addf %73, %91 : vector<2x15x15xf32>
    %93 = vector.extract_strided_slice %75 {offsets = [0, 0, 1], sizes = [2, 15, 15], strides = [1, 1, 1]} : vector<2x16x16xf32> to vector<2x15x15xf32>
    %c5 = arith.constant 5 : index
    %94 = memref.load %arg1[%c5] : memref<32xf32, #tpu.memory_space<smem>>
    %95 = vector.broadcast %94 : f32 to vector<2x15x15xf32>
    %96 = arith.mulf %95, %93 : vector<2x15x15xf32>
    %97 = arith.addf %80, %96 : vector<2x15x15xf32>
    %c13 = arith.constant 13 : index
    %98 = memref.load %arg1[%c13] : memref<32xf32, #tpu.memory_space<smem>>
    %99 = vector.broadcast %98 : f32 to vector<2x15x15xf32>
    %100 = arith.mulf %99, %93 : vector<2x15x15xf32>
    %101 = arith.addf %84, %100 : vector<2x15x15xf32>
    %c21 = arith.constant 21 : index
    %102 = memref.load %arg1[%c21] : memref<32xf32, #tpu.memory_space<smem>>
    %103 = vector.broadcast %102 : f32 to vector<2x15x15xf32>
    %104 = arith.mulf %103, %93 : vector<2x15x15xf32>
    %105 = arith.addf %88, %104 : vector<2x15x15xf32>
    %c29 = arith.constant 29 : index
    %106 = memref.load %arg1[%c29] : memref<32xf32, #tpu.memory_space<smem>>
    %107 = vector.broadcast %106 : f32 to vector<2x15x15xf32>
    %108 = arith.mulf %107, %93 : vector<2x15x15xf32>
    %109 = arith.addf %92, %108 : vector<2x15x15xf32>
    %110 = vector.extract_strided_slice %75 {offsets = [0, 1, 0], sizes = [2, 15, 15], strides = [1, 1, 1]} : vector<2x16x16xf32> to vector<2x15x15xf32>
    %c6 = arith.constant 6 : index
    %111 = memref.load %arg1[%c6] : memref<32xf32, #tpu.memory_space<smem>>
    %112 = vector.broadcast %111 : f32 to vector<2x15x15xf32>
    %113 = arith.mulf %112, %110 : vector<2x15x15xf32>
    %114 = arith.addf %97, %113 : vector<2x15x15xf32>
    %c14 = arith.constant 14 : index
    %115 = memref.load %arg1[%c14] : memref<32xf32, #tpu.memory_space<smem>>
    %116 = vector.broadcast %115 : f32 to vector<2x15x15xf32>
    %117 = arith.mulf %116, %110 : vector<2x15x15xf32>
    %118 = arith.addf %101, %117 : vector<2x15x15xf32>
    %c22 = arith.constant 22 : index
    %119 = memref.load %arg1[%c22] : memref<32xf32, #tpu.memory_space<smem>>
    %120 = vector.broadcast %119 : f32 to vector<2x15x15xf32>
    %121 = arith.mulf %120, %110 : vector<2x15x15xf32>
    %122 = arith.addf %105, %121 : vector<2x15x15xf32>
    %c30 = arith.constant 30 : index
    %123 = memref.load %arg1[%c30] : memref<32xf32, #tpu.memory_space<smem>>
    %124 = vector.broadcast %123 : f32 to vector<2x15x15xf32>
    %125 = arith.mulf %124, %110 : vector<2x15x15xf32>
    %126 = arith.addf %109, %125 : vector<2x15x15xf32>
    %127 = vector.extract_strided_slice %75 {offsets = [0, 1, 1], sizes = [2, 15, 15], strides = [1, 1, 1]} : vector<2x16x16xf32> to vector<2x15x15xf32>
    %c7 = arith.constant 7 : index
    %128 = memref.load %arg1[%c7] : memref<32xf32, #tpu.memory_space<smem>>
    %129 = vector.broadcast %128 : f32 to vector<2x15x15xf32>
    %130 = arith.mulf %129, %127 : vector<2x15x15xf32>
    %131 = arith.addf %114, %130 : vector<2x15x15xf32>
    %c15 = arith.constant 15 : index
    %132 = memref.load %arg1[%c15] : memref<32xf32, #tpu.memory_space<smem>>
    %133 = vector.broadcast %132 : f32 to vector<2x15x15xf32>
    %134 = arith.mulf %133, %127 : vector<2x15x15xf32>
    %135 = arith.addf %118, %134 : vector<2x15x15xf32>
    %c23 = arith.constant 23 : index
    %136 = memref.load %arg1[%c23] : memref<32xf32, #tpu.memory_space<smem>>
    %137 = vector.broadcast %136 : f32 to vector<2x15x15xf32>
    %138 = arith.mulf %137, %127 : vector<2x15x15xf32>
    %139 = arith.addf %122, %138 : vector<2x15x15xf32>
    %c31 = arith.constant 31 : index
    %140 = memref.load %arg1[%c31] : memref<32xf32, #tpu.memory_space<smem>>
    %141 = vector.broadcast %140 : f32 to vector<2x15x15xf32>
    %142 = arith.mulf %141, %127 : vector<2x15x15xf32>
    %143 = arith.addf %126, %142 : vector<2x15x15xf32>
    %c0_11 = arith.constant 0 : index
    %144 = memref.load %arg2[%c0_11] : memref<4xf32, #tpu.memory_space<smem>>
    %145 = vector.broadcast %144 : f32 to vector<2x15x15xf32>
    %146 = arith.addf %131, %145 : vector<2x15x15xf32>
    %cst_12 = arith.constant 0.000000e+00 : f32
    %147 = vector.broadcast %cst_12 : f32 to vector<2x15x15xf32>
    %148 = arith.maximumf %146, %147 : vector<2x15x15xf32>
    %c0_13 = arith.constant 0 : index
    %c0_14 = arith.constant 0 : index
    %c0_15 = arith.constant 0 : index
    %c0_16 = arith.constant 0 : index
    %149 = vector.load %arg8[%c0_13, %c0_14, %c0_15, %c0_16] : memref<2x4x15x15xf32, #tpu.memory_space<vmem>>, vector<2x1x15x15xf32>
    %150 = vector.shape_cast %149 : vector<2x1x15x15xf32> to vector<2x15x15xf32>
    %151 = vector.shape_cast %148 : vector<2x15x15xf32> to vector<2x1x15x15xf32>
    tpu.vector_store %arg8[%c0_13, %c0_14, %c0_15, %c0_16], %151 {strides = array<i32>} : memref<2x4x15x15xf32, #tpu.memory_space<vmem>>, vector<2x1x15x15xf32>,
    %c1_17 = arith.constant 1 : index
    %152 = memref.load %arg2[%c1_17] : memref<4xf32, #tpu.memory_space<smem>>
    %153 = vector.broadcast %152 : f32 to vector<2x15x15xf32>
    %154 = arith.addf %135, %153 : vector<2x15x15xf32>
    %cst_18 = arith.constant 0.000000e+00 : f32
    %155 = vector.broadcast %cst_18 : f32 to vector<2x15x15xf32>
    %156 = arith.maximumf %154, %155 : vector<2x15x15xf32>
    %c0_19 = arith.constant 0 : index
    %c1_20 = arith.constant 1 : index
    %c0_21 = arith.constant 0 : index
    %c0_22 = arith.constant 0 : index
    %157 = vector.load %arg8[%c0_19, %c1_20, %c0_21, %c0_22] : memref<2x4x15x15xf32, #tpu.memory_space<vmem>>, vector<2x1x15x15xf32>
    %158 = vector.shape_cast %157 : vector<2x1x15x15xf32> to vector<2x15x15xf32>
    %159 = vector.shape_cast %156 : vector<2x15x15xf32> to vector<2x1x15x15xf32>
    tpu.vector_store %arg8[%c0_19, %c1_20, %c0_21, %c0_22], %159 {strides = array<i32>} : memref<2x4x15x15xf32, #tpu.memory_space<vmem>>, vector<2x1x15x15xf32>,
    %c2_23 = arith.constant 2 : index
    %160 = memref.load %arg2[%c2_23] : memref<4xf32, #tpu.memory_space<smem>>
    %161 = vector.broadcast %160 : f32 to vector<2x15x15xf32>
    %162 = arith.addf %139, %161 : vector<2x15x15xf32>
    %cst_24 = arith.constant 0.000000e+00 : f32
    %163 = vector.broadcast %cst_24 : f32 to vector<2x15x15xf32>
    %164 = arith.maximumf %162, %163 : vector<2x15x15xf32>
    %c0_25 = arith.constant 0 : index
    %c2_26 = arith.constant 2 : index
    %c0_27 = arith.constant 0 : index
    %c0_28 = arith.constant 0 : index
    %165 = vector.load %arg8[%c0_25, %c2_26, %c0_27, %c0_28] : memref<2x4x15x15xf32, #tpu.memory_space<vmem>>, vector<2x1x15x15xf32>
    %166 = vector.shape_cast %165 : vector<2x1x15x15xf32> to vector<2x15x15xf32>
    %167 = vector.shape_cast %164 : vector<2x15x15xf32> to vector<2x1x15x15xf32>
    tpu.vector_store %arg8[%c0_25, %c2_26, %c0_27, %c0_28], %167 {strides = array<i32>} : memref<2x4x15x15xf32, #tpu.memory_space<vmem>>, vector<2x1x15x15xf32>,
    %c3_29 = arith.constant 3 : index
    %168 = memref.load %arg2[%c3_29] : memref<4xf32, #tpu.memory_space<smem>>
    %169 = vector.broadcast %168 : f32 to vector<2x15x15xf32>
    %170 = arith.addf %143, %169 : vector<2x15x15xf32>
    %cst_30 = arith.constant 0.000000e+00 : f32
    %171 = vector.broadcast %cst_30 : f32 to vector<2x15x15xf32>
    %172 = arith.maximumf %170, %171 : vector<2x15x15xf32>
    %c0_31 = arith.constant 0 : index
    %c3_32 = arith.constant 3 : index
    %c0_33 = arith.constant 0 : index
    %c0_34 = arith.constant 0 : index
    %173 = vector.load %arg8[%c0_31, %c3_32, %c0_33, %c0_34] : memref<2x4x15x15xf32, #tpu.memory_space<vmem>>, vector<2x1x15x15xf32>
    %174 = vector.shape_cast %173 : vector<2x1x15x15xf32> to vector<2x15x15xf32>
    %175 = vector.shape_cast %172 : vector<2x15x15xf32> to vector<2x1x15x15xf32>
    tpu.vector_store %arg8[%c0_31, %c3_32, %c0_33, %c0_34], %175 {strides = array<i32>} : memref<2x4x15x15xf32, #tpu.memory_space<vmem>>, vector<2x1x15x15xf32>,
    %cst_35 = arith.constant 0.000000e+00 : f32
    %176 = vector.broadcast %cst_35 : f32 to vector<2x14x14xf32>
    %cst_36 = arith.constant 0.000000e+00 : f32
    %177 = vector.broadcast %cst_36 : f32 to vector<2x14x14xf32>
    %cst_37 = arith.constant 0.000000e+00 : f32
    %178 = vector.broadcast %cst_37 : f32 to vector<2x14x14xf32>
    %cst_38 = arith.constant 0.000000e+00 : f32
    %179 = vector.broadcast %cst_38 : f32 to vector<2x14x14xf32>
    %cst_39 = arith.constant 0.000000e+00 : f32
    %180 = vector.broadcast %cst_39 : f32 to vector<2x14x14xf32>
    %cst_40 = arith.constant 0.000000e+00 : f32
    %181 = vector.broadcast %cst_40 : f32 to vector<2x14x14xf32>
    %cst_41 = arith.constant 0.000000e+00 : f32
    %182 = vector.broadcast %cst_41 : f32 to vector<2x14x14xf32>
    %cst_42 = arith.constant 0.000000e+00 : f32
    %183 = vector.broadcast %cst_42 : f32 to vector<2x14x14xf32>
    %c0_43 = arith.constant 0 : index
    %c0_44 = arith.constant 0 : index
    %c0_45 = arith.constant 0 : index
    %c0_46 = arith.constant 0 : index
    %184 = vector.load %arg8[%c0_43, %c0_44, %c0_45, %c0_46] : memref<2x4x15x15xf32, #tpu.memory_space<vmem>>, vector<2x1x15x15xf32>
    %185 = vector.shape_cast %184 : vector<2x1x15x15xf32> to vector<2x15x15xf32>
    %186 = vector.extract_strided_slice %185 {offsets = [0, 0, 0], sizes = [2, 14, 14], strides = [1, 1, 1]} : vector<2x15x15xf32> to vector<2x14x14xf32>
    %c0_47 = arith.constant 0 : index
    %187 = memref.load %arg3[%c0_47] : memref<128xf32, #tpu.memory_space<smem>>
    %188 = vector.broadcast %187 : f32 to vector<2x14x14xf32>
    %189 = arith.mulf %188, %186 : vector<2x14x14xf32>
    %190 = arith.addf %176, %189 : vector<2x14x14xf32>
    %c16_48 = arith.constant 16 : index
    %191 = memref.load %arg3[%c16_48] : memref<128xf32, #tpu.memory_space<smem>>
    %192 = vector.broadcast %191 : f32 to vector<2x14x14xf32>
    %193 = arith.mulf %192, %186 : vector<2x14x14xf32>
    %194 = arith.addf %177, %193 : vector<2x14x14xf32>
    %c32 = arith.constant 32 : index
    %195 = memref.load %arg3[%c32] : memref<128xf32, #tpu.memory_space<smem>>
    %196 = vector.broadcast %195 : f32 to vector<2x14x14xf32>
    %197 = arith.mulf %196, %186 : vector<2x14x14xf32>
    %198 = arith.addf %178, %197 : vector<2x14x14xf32>
    %c48 = arith.constant 48 : index
    %199 = memref.load %arg3[%c48] : memref<128xf32, #tpu.memory_space<smem>>
    %200 = vector.broadcast %199 : f32 to vector<2x14x14xf32>
    %201 = arith.mulf %200, %186 : vector<2x14x14xf32>
    %202 = arith.addf %179, %201 : vector<2x14x14xf32>
    %c64 = arith.constant 64 : index
    %203 = memref.load %arg3[%c64] : memref<128xf32, #tpu.memory_space<smem>>
    %204 = vector.broadcast %203 : f32 to vector<2x14x14xf32>
    %205 = arith.mulf %204, %186 : vector<2x14x14xf32>
    %206 = arith.addf %180, %205 : vector<2x14x14xf32>
    %c80 = arith.constant 80 : index
    %207 = memref.load %arg3[%c80] : memref<128xf32, #tpu.memory_space<smem>>
    %208 = vector.broadcast %207 : f32 to vector<2x14x14xf32>
    %209 = arith.mulf %208, %186 : vector<2x14x14xf32>
    %210 = arith.addf %181, %209 : vector<2x14x14xf32>
    %c96 = arith.constant 96 : index
    %211 = memref.load %arg3[%c96] : memref<128xf32, #tpu.memory_space<smem>>
    %212 = vector.broadcast %211 : f32 to vector<2x14x14xf32>
    %213 = arith.mulf %212, %186 : vector<2x14x14xf32>
    %214 = arith.addf %182, %213 : vector<2x14x14xf32>
    %c112 = arith.constant 112 : index
    %215 = memref.load %arg3[%c112] : memref<128xf32, #tpu.memory_space<smem>>
    %216 = vector.broadcast %215 : f32 to vector<2x14x14xf32>
    %217 = arith.mulf %216, %186 : vector<2x14x14xf32>
    %218 = arith.addf %183, %217 : vector<2x14x14xf32>
    %219 = vector.extract_strided_slice %185 {offsets = [0, 0, 1], sizes = [2, 14, 14], strides = [1, 1, 1]} : vector<2x15x15xf32> to vector<2x14x14xf32>
    %c1_49 = arith.constant 1 : index
    %220 = memref.load %arg3[%c1_49] : memref<128xf32, #tpu.memory_space<smem>>
    %221 = vector.broadcast %220 : f32 to vector<2x14x14xf32>
    %222 = arith.mulf %221, %219 : vector<2x14x14xf32>
    %223 = arith.addf %190, %222 : vector<2x14x14xf32>
    %c17_50 = arith.constant 17 : index
    %224 = memref.load %arg3[%c17_50] : memref<128xf32, #tpu.memory_space<smem>>
    %225 = vector.broadcast %224 : f32 to vector<2x14x14xf32>
    %226 = arith.mulf %225, %219 : vector<2x14x14xf32>
    %227 = arith.addf %194, %226 : vector<2x14x14xf32>
    %c33 = arith.constant 33 : index
    %228 = memref.load %arg3[%c33] : memref<128xf32, #tpu.memory_space<smem>>
    %229 = vector.broadcast %228 : f32 to vector<2x14x14xf32>
    %230 = arith.mulf %229, %219 : vector<2x14x14xf32>
    %231 = arith.addf %198, %230 : vector<2x14x14xf32>
    %c49 = arith.constant 49 : index
    %232 = memref.load %arg3[%c49] : memref<128xf32, #tpu.memory_space<smem>>
    %233 = vector.broadcast %232 : f32 to vector<2x14x14xf32>
    %234 = arith.mulf %233, %219 : vector<2x14x14xf32>
    %235 = arith.addf %202, %234 : vector<2x14x14xf32>
    %c65 = arith.constant 65 : index
    %236 = memref.load %arg3[%c65] : memref<128xf32, #tpu.memory_space<smem>>
    %237 = vector.broadcast %236 : f32 to vector<2x14x14xf32>
    %238 = arith.mulf %237, %219 : vector<2x14x14xf32>
    %239 = arith.addf %206, %238 : vector<2x14x14xf32>
    %c81 = arith.constant 81 : index
    %240 = memref.load %arg3[%c81] : memref<128xf32, #tpu.memory_space<smem>>
    %241 = vector.broadcast %240 : f32 to vector<2x14x14xf32>
    %242 = arith.mulf %241, %219 : vector<2x14x14xf32>
    %243 = arith.addf %210, %242 : vector<2x14x14xf32>
    %c97 = arith.constant 97 : index
    %244 = memref.load %arg3[%c97] : memref<128xf32, #tpu.memory_space<smem>>
    %245 = vector.broadcast %244 : f32 to vector<2x14x14xf32>
    %246 = arith.mulf %245, %219 : vector<2x14x14xf32>
    %247 = arith.addf %214, %246 : vector<2x14x14xf32>
    %c113 = arith.constant 113 : index
    %248 = memref.load %arg3[%c113] : memref<128xf32, #tpu.memory_space<smem>>
    %249 = vector.broadcast %248 : f32 to vector<2x14x14xf32>
    %250 = arith.mulf %249, %219 : vector<2x14x14xf32>
    %251 = arith.addf %218, %250 : vector<2x14x14xf32>
    %252 = vector.extract_strided_slice %185 {offsets = [0, 1, 0], sizes = [2, 14, 14], strides = [1, 1, 1]} : vector<2x15x15xf32> to vector<2x14x14xf32>
    %c2_51 = arith.constant 2 : index
    %253 = memref.load %arg3[%c2_51] : memref<128xf32, #tpu.memory_space<smem>>
    %254 = vector.broadcast %253 : f32 to vector<2x14x14xf32>
    %255 = arith.mulf %254, %252 : vector<2x14x14xf32>
    %256 = arith.addf %223, %255 : vector<2x14x14xf32>
    %c18_52 = arith.constant 18 : index
    %257 = memref.load %arg3[%c18_52] : memref<128xf32, #tpu.memory_space<smem>>
    %258 = vector.broadcast %257 : f32 to vector<2x14x14xf32>
    %259 = arith.mulf %258, %252 : vector<2x14x14xf32>
    %260 = arith.addf %227, %259 : vector<2x14x14xf32>
    %c34 = arith.constant 34 : index
    %261 = memref.load %arg3[%c34] : memref<128xf32, #tpu.memory_space<smem>>
    %262 = vector.broadcast %261 : f32 to vector<2x14x14xf32>
    %263 = arith.mulf %262, %252 : vector<2x14x14xf32>
    %264 = arith.addf %231, %263 : vector<2x14x14xf32>
    %c50 = arith.constant 50 : index
    %265 = memref.load %arg3[%c50] : memref<128xf32, #tpu.memory_space<smem>>
    %266 = vector.broadcast %265 : f32 to vector<2x14x14xf32>
    %267 = arith.mulf %266, %252 : vector<2x14x14xf32>
    %268 = arith.addf %235, %267 : vector<2x14x14xf32>
    %c66 = arith.constant 66 : index
    %269 = memref.load %arg3[%c66] : memref<128xf32, #tpu.memory_space<smem>>
    %270 = vector.broadcast %269 : f32 to vector<2x14x14xf32>
    %271 = arith.mulf %270, %252 : vector<2x14x14xf32>
    %272 = arith.addf %239, %271 : vector<2x14x14xf32>
    %c82 = arith.constant 82 : index
    %273 = memref.load %arg3[%c82] : memref<128xf32, #tpu.memory_space<smem>>
    %274 = vector.broadcast %273 : f32 to vector<2x14x14xf32>
    %275 = arith.mulf %274, %252 : vector<2x14x14xf32>
    %276 = arith.addf %243, %275 : vector<2x14x14xf32>
    %c98 = arith.constant 98 : index
    %277 = memref.load %arg3[%c98] : memref<128xf32, #tpu.memory_space<smem>>
    %278 = vector.broadcast %277 : f32 to vector<2x14x14xf32>
    %279 = arith.mulf %278, %252 : vector<2x14x14xf32>
    %280 = arith.addf %247, %279 : vector<2x14x14xf32>
    %c114 = arith.constant 114 : index
    %281 = memref.load %arg3[%c114] : memref<128xf32, #tpu.memory_space<smem>>
    %282 = vector.broadcast %281 : f32 to vector<2x14x14xf32>
    %283 = arith.mulf %282, %252 : vector<2x14x14xf32>
    %284 = arith.addf %251, %283 : vector<2x14x14xf32>
    %285 = vector.extract_strided_slice %185 {offsets = [0, 1, 1], sizes = [2, 14, 14], strides = [1, 1, 1]} : vector<2x15x15xf32> to vector<2x14x14xf32>
    %c3_53 = arith.constant 3 : index
    %286 = memref.load %arg3[%c3_53] : memref<128xf32, #tpu.memory_space<smem>>
    %287 = vector.broadcast %286 : f32 to vector<2x14x14xf32>
    %288 = arith.mulf %287, %285 : vector<2x14x14xf32>
    %289 = arith.addf %256, %288 : vector<2x14x14xf32>
    %c19_54 = arith.constant 19 : index
    %290 = memref.load %arg3[%c19_54] : memref<128xf32, #tpu.memory_space<smem>>
    %291 = vector.broadcast %290 : f32 to vector<2x14x14xf32>
    %292 = arith.mulf %291, %285 : vector<2x14x14xf32>
    %293 = arith.addf %260, %292 : vector<2x14x14xf32>
    %c35 = arith.constant 35 : index
    %294 = memref.load %arg3[%c35] : memref<128xf32, #tpu.memory_space<smem>>
    %295 = vector.broadcast %294 : f32 to vector<2x14x14xf32>
    %296 = arith.mulf %295, %285 : vector<2x14x14xf32>
    %297 = arith.addf %264, %296 : vector<2x14x14xf32>
    %c51 = arith.constant 51 : index
    %298 = memref.load %arg3[%c51] : memref<128xf32, #tpu.memory_space<smem>>
    %299 = vector.broadcast %298 : f32 to vector<2x14x14xf32>
    %300 = arith.mulf %299, %285 : vector<2x14x14xf32>
    %301 = arith.addf %268, %300 : vector<2x14x14xf32>
    %c67 = arith.constant 67 : index
    %302 = memref.load %arg3[%c67] : memref<128xf32, #tpu.memory_space<smem>>
    %303 = vector.broadcast %302 : f32 to vector<2x14x14xf32>
    %304 = arith.mulf %303, %285 : vector<2x14x14xf32>
    %305 = arith.addf %272, %304 : vector<2x14x14xf32>
    %c83 = arith.constant 83 : index
    %306 = memref.load %arg3[%c83] : memref<128xf32, #tpu.memory_space<smem>>
    %307 = vector.broadcast %306 : f32 to vector<2x14x14xf32>
    %308 = arith.mulf %307, %285 : vector<2x14x14xf32>
    %309 = arith.addf %276, %308 : vector<2x14x14xf32>
    %c99 = arith.constant 99 : index
    %310 = memref.load %arg3[%c99] : memref<128xf32, #tpu.memory_space<smem>>
    %311 = vector.broadcast %310 : f32 to vector<2x14x14xf32>
    %312 = arith.mulf %311, %285 : vector<2x14x14xf32>
    %313 = arith.addf %280, %312 : vector<2x14x14xf32>
    %c115 = arith.constant 115 : index
    %314 = memref.load %arg3[%c115] : memref<128xf32, #tpu.memory_space<smem>>
    %315 = vector.broadcast %314 : f32 to vector<2x14x14xf32>
    %316 = arith.mulf %315, %285 : vector<2x14x14xf32>
    %317 = arith.addf %284, %316 : vector<2x14x14xf32>
    %c0_55 = arith.constant 0 : index
    %c1_56 = arith.constant 1 : index
    %c0_57 = arith.constant 0 : index
    %c0_58 = arith.constant 0 : index
    %318 = vector.load %arg8[%c0_55, %c1_56, %c0_57, %c0_58] : memref<2x4x15x15xf32, #tpu.memory_space<vmem>>, vector<2x1x15x15xf32>
    %319 = vector.shape_cast %318 : vector<2x1x15x15xf32> to vector<2x15x15xf32>
    %320 = vector.extract_strided_slice %319 {offsets = [0, 0, 0], sizes = [2, 14, 14], strides = [1, 1, 1]} : vector<2x15x15xf32> to vector<2x14x14xf32>
    %c4_59 = arith.constant 4 : index
    %321 = memref.load %arg3[%c4_59] : memref<128xf32, #tpu.memory_space<smem>>
    %322 = vector.broadcast %321 : f32 to vector<2x14x14xf32>
    %323 = arith.mulf %322, %320 : vector<2x14x14xf32>
    %324 = arith.addf %289, %323 : vector<2x14x14xf32>
    %c20_60 = arith.constant 20 : index
    %325 = memref.load %arg3[%c20_60] : memref<128xf32, #tpu.memory_space<smem>>
    %326 = vector.broadcast %325 : f32 to vector<2x14x14xf32>
    %327 = arith.mulf %326, %320 : vector<2x14x14xf32>
    %328 = arith.addf %293, %327 : vector<2x14x14xf32>
    %c36 = arith.constant 36 : index
    %329 = memref.load %arg3[%c36] : memref<128xf32, #tpu.memory_space<smem>>
    %330 = vector.broadcast %329 : f32 to vector<2x14x14xf32>
    %331 = arith.mulf %330, %320 : vector<2x14x14xf32>
    %332 = arith.addf %297, %331 : vector<2x14x14xf32>
    %c52 = arith.constant 52 : index
    %333 = memref.load %arg3[%c52] : memref<128xf32, #tpu.memory_space<smem>>
    %334 = vector.broadcast %333 : f32 to vector<2x14x14xf32>
    %335 = arith.mulf %334, %320 : vector<2x14x14xf32>
    %336 = arith.addf %301, %335 : vector<2x14x14xf32>
    %c68 = arith.constant 68 : index
    %337 = memref.load %arg3[%c68] : memref<128xf32, #tpu.memory_space<smem>>
    %338 = vector.broadcast %337 : f32 to vector<2x14x14xf32>
    %339 = arith.mulf %338, %320 : vector<2x14x14xf32>
    %340 = arith.addf %305, %339 : vector<2x14x14xf32>
    %c84 = arith.constant 84 : index
    %341 = memref.load %arg3[%c84] : memref<128xf32, #tpu.memory_space<smem>>
    %342 = vector.broadcast %341 : f32 to vector<2x14x14xf32>
    %343 = arith.mulf %342, %320 : vector<2x14x14xf32>
    %344 = arith.addf %309, %343 : vector<2x14x14xf32>
    %c100 = arith.constant 100 : index
    %345 = memref.load %arg3[%c100] : memref<128xf32, #tpu.memory_space<smem>>
    %346 = vector.broadcast %345 : f32 to vector<2x14x14xf32>
    %347 = arith.mulf %346, %320 : vector<2x14x14xf32>
    %348 = arith.addf %313, %347 : vector<2x14x14xf32>
    %c116 = arith.constant 116 : index
    %349 = memref.load %arg3[%c116] : memref<128xf32, #tpu.memory_space<smem>>
    %350 = vector.broadcast %349 : f32 to vector<2x14x14xf32>
    %351 = arith.mulf %350, %320 : vector<2x14x14xf32>
    %352 = arith.addf %317, %351 : vector<2x14x14xf32>
    %353 = vector.extract_strided_slice %319 {offsets = [0, 0, 1], sizes = [2, 14, 14], strides = [1, 1, 1]} : vector<2x15x15xf32> to vector<2x14x14xf32>
    %c5_61 = arith.constant 5 : index
    %354 = memref.load %arg3[%c5_61] : memref<128xf32, #tpu.memory_space<smem>>
    %355 = vector.broadcast %354 : f32 to vector<2x14x14xf32>
    %356 = arith.mulf %355, %353 : vector<2x14x14xf32>
    %357 = arith.addf %324, %356 : vector<2x14x14xf32>
    %c21_62 = arith.constant 21 : index
    %358 = memref.load %arg3[%c21_62] : memref<128xf32, #tpu.memory_space<smem>>
    %359 = vector.broadcast %358 : f32 to vector<2x14x14xf32>
    %360 = arith.mulf %359, %353 : vector<2x14x14xf32>
    %361 = arith.addf %328, %360 : vector<2x14x14xf32>
    %c37 = arith.constant 37 : index
    %362 = memref.load %arg3[%c37] : memref<128xf32, #tpu.memory_space<smem>>
    %363 = vector.broadcast %362 : f32 to vector<2x14x14xf32>
    %364 = arith.mulf %363, %353 : vector<2x14x14xf32>
    %365 = arith.addf %332, %364 : vector<2x14x14xf32>
    %c53 = arith.constant 53 : index
    %366 = memref.load %arg3[%c53] : memref<128xf32, #tpu.memory_space<smem>>
    %367 = vector.broadcast %366 : f32 to vector<2x14x14xf32>
    %368 = arith.mulf %367, %353 : vector<2x14x14xf32>
    %369 = arith.addf %336, %368 : vector<2x14x14xf32>
    %c69 = arith.constant 69 : index
    %370 = memref.load %arg3[%c69] : memref<128xf32, #tpu.memory_space<smem>>
    %371 = vector.broadcast %370 : f32 to vector<2x14x14xf32>
    %372 = arith.mulf %371, %353 : vector<2x14x14xf32>
    %373 = arith.addf %340, %372 : vector<2x14x14xf32>
    %c85 = arith.constant 85 : index
    %374 = memref.load %arg3[%c85] : memref<128xf32, #tpu.memory_space<smem>>
    %375 = vector.broadcast %374 : f32 to vector<2x14x14xf32>
    %376 = arith.mulf %375, %353 : vector<2x14x14xf32>
    %377 = arith.addf %344, %376 : vector<2x14x14xf32>
    %c101 = arith.constant 101 : index
    %378 = memref.load %arg3[%c101] : memref<128xf32, #tpu.memory_space<smem>>
    %379 = vector.broadcast %378 : f32 to vector<2x14x14xf32>
    %380 = arith.mulf %379, %353 : vector<2x14x14xf32>
    %381 = arith.addf %348, %380 : vector<2x14x14xf32>
    %c117 = arith.constant 117 : index
    %382 = memref.load %arg3[%c117] : memref<128xf32, #tpu.memory_space<smem>>
    %383 = vector.broadcast %382 : f32 to vector<2x14x14xf32>
    %384 = arith.mulf %383, %353 : vector<2x14x14xf32>
    %385 = arith.addf %352, %384 : vector<2x14x14xf32>
    %386 = vector.extract_strided_slice %319 {offsets = [0, 1, 0], sizes = [2, 14, 14], strides = [1, 1, 1]} : vector<2x15x15xf32> to vector<2x14x14xf32>
    %c6_63 = arith.constant 6 : index
    %387 = memref.load %arg3[%c6_63] : memref<128xf32, #tpu.memory_space<smem>>
    %388 = vector.broadcast %387 : f32 to vector<2x14x14xf32>
    %389 = arith.mulf %388, %386 : vector<2x14x14xf32>
    %390 = arith.addf %357, %389 : vector<2x14x14xf32>
    %c22_64 = arith.constant 22 : index
    %391 = memref.load %arg3[%c22_64] : memref<128xf32, #tpu.memory_space<smem>>
    %392 = vector.broadcast %391 : f32 to vector<2x14x14xf32>
    %393 = arith.mulf %392, %386 : vector<2x14x14xf32>
    %394 = arith.addf %361, %393 : vector<2x14x14xf32>
    %c38 = arith.constant 38 : index
    %395 = memref.load %arg3[%c38] : memref<128xf32, #tpu.memory_space<smem>>
    %396 = vector.broadcast %395 : f32 to vector<2x14x14xf32>
    %397 = arith.mulf %396, %386 : vector<2x14x14xf32>
    %398 = arith.addf %365, %397 : vector<2x14x14xf32>
    %c54 = arith.constant 54 : index
    %399 = memref.load %arg3[%c54] : memref<128xf32, #tpu.memory_space<smem>>
    %400 = vector.broadcast %399 : f32 to vector<2x14x14xf32>
    %401 = arith.mulf %400, %386 : vector<2x14x14xf32>
    %402 = arith.addf %369, %401 : vector<2x14x14xf32>
    %c70 = arith.constant 70 : index
    %403 = memref.load %arg3[%c70] : memref<128xf32, #tpu.memory_space<smem>>
    %404 = vector.broadcast %403 : f32 to vector<2x14x14xf32>
    %405 = arith.mulf %404, %386 : vector<2x14x14xf32>
    %406 = arith.addf %373, %405 : vector<2x14x14xf32>
    %c86 = arith.constant 86 : index
    %407 = memref.load %arg3[%c86] : memref<128xf32, #tpu.memory_space<smem>>
    %408 = vector.broadcast %407 : f32 to vector<2x14x14xf32>
    %409 = arith.mulf %408, %386 : vector<2x14x14xf32>
    %410 = arith.addf %377, %409 : vector<2x14x14xf32>
    %c102 = arith.constant 102 : index
    %411 = memref.load %arg3[%c102] : memref<128xf32, #tpu.memory_space<smem>>
    %412 = vector.broadcast %411 : f32 to vector<2x14x14xf32>
    %413 = arith.mulf %412, %386 : vector<2x14x14xf32>
    %414 = arith.addf %381, %413 : vector<2x14x14xf32>
    %c118 = arith.constant 118 : index
    %415 = memref.load %arg3[%c118] : memref<128xf32, #tpu.memory_space<smem>>
    %416 = vector.broadcast %415 : f32 to vector<2x14x14xf32>
    %417 = arith.mulf %416, %386 : vector<2x14x14xf32>
    %418 = arith.addf %385, %417 : vector<2x14x14xf32>
    %419 = vector.extract_strided_slice %319 {offsets = [0, 1, 1], sizes = [2, 14, 14], strides = [1, 1, 1]} : vector<2x15x15xf32> to vector<2x14x14xf32>
    %c7_65 = arith.constant 7 : index
    %420 = memref.load %arg3[%c7_65] : memref<128xf32, #tpu.memory_space<smem>>
    %421 = vector.broadcast %420 : f32 to vector<2x14x14xf32>
    %422 = arith.mulf %421, %419 : vector<2x14x14xf32>
    %423 = arith.addf %390, %422 : vector<2x14x14xf32>
    %c23_66 = arith.constant 23 : index
    %424 = memref.load %arg3[%c23_66] : memref<128xf32, #tpu.memory_space<smem>>
    %425 = vector.broadcast %424 : f32 to vector<2x14x14xf32>
    %426 = arith.mulf %425, %419 : vector<2x14x14xf32>
    %427 = arith.addf %394, %426 : vector<2x14x14xf32>
    %c39 = arith.constant 39 : index
    %428 = memref.load %arg3[%c39] : memref<128xf32, #tpu.memory_space<smem>>
    %429 = vector.broadcast %428 : f32 to vector<2x14x14xf32>
    %430 = arith.mulf %429, %419 : vector<2x14x14xf32>
    %431 = arith.addf %398, %430 : vector<2x14x14xf32>
    %c55 = arith.constant 55 : index
    %432 = memref.load %arg3[%c55] : memref<128xf32, #tpu.memory_space<smem>>
    %433 = vector.broadcast %432 : f32 to vector<2x14x14xf32>
    %434 = arith.mulf %433, %419 : vector<2x14x14xf32>
    %435 = arith.addf %402, %434 : vector<2x14x14xf32>
    %c71 = arith.constant 71 : index
    %436 = memref.load %arg3[%c71] : memref<128xf32, #tpu.memory_space<smem>>
    %437 = vector.broadcast %436 : f32 to vector<2x14x14xf32>
    %438 = arith.mulf %437, %419 : vector<2x14x14xf32>
    %439 = arith.addf %406, %438 : vector<2x14x14xf32>
    %c87 = arith.constant 87 : index
    %440 = memref.load %arg3[%c87] : memref<128xf32, #tpu.memory_space<smem>>
    %441 = vector.broadcast %440 : f32 to vector<2x14x14xf32>
    %442 = arith.mulf %441, %419 : vector<2x14x14xf32>
    %443 = arith.addf %410, %442 : vector<2x14x14xf32>
    %c103 = arith.constant 103 : index
    %444 = memref.load %arg3[%c103] : memref<128xf32, #tpu.memory_space<smem>>
    %445 = vector.broadcast %444 : f32 to vector<2x14x14xf32>
    %446 = arith.mulf %445, %419 : vector<2x14x14xf32>
    %447 = arith.addf %414, %446 : vector<2x14x14xf32>
    %c119 = arith.constant 119 : index
    %448 = memref.load %arg3[%c119] : memref<128xf32, #tpu.memory_space<smem>>
    %449 = vector.broadcast %448 : f32 to vector<2x14x14xf32>
    %450 = arith.mulf %449, %419 : vector<2x14x14xf32>
    %451 = arith.addf %418, %450 : vector<2x14x14xf32>
    %c0_67 = arith.constant 0 : index
    %c2_68 = arith.constant 2 : index
    %c0_69 = arith.constant 0 : index
    %c0_70 = arith.constant 0 : index
    %452 = vector.load %arg8[%c0_67, %c2_68, %c0_69, %c0_70] : memref<2x4x15x15xf32, #tpu.memory_space<vmem>>, vector<2x1x15x15xf32>
    %453 = vector.shape_cast %452 : vector<2x1x15x15xf32> to vector<2x15x15xf32>
    %454 = vector.extract_strided_slice %453 {offsets = [0, 0, 0], sizes = [2, 14, 14], strides = [1, 1, 1]} : vector<2x15x15xf32> to vector<2x14x14xf32>
    %c8_71 = arith.constant 8 : index
    %455 = memref.load %arg3[%c8_71] : memref<128xf32, #tpu.memory_space<smem>>
    %456 = vector.broadcast %455 : f32 to vector<2x14x14xf32>
    %457 = arith.mulf %456, %454 : vector<2x14x14xf32>
    %458 = arith.addf %423, %457 : vector<2x14x14xf32>
    %c24_72 = arith.constant 24 : index
    %459 = memref.load %arg3[%c24_72] : memref<128xf32, #tpu.memory_space<smem>>
    %460 = vector.broadcast %459 : f32 to vector<2x14x14xf32>
    %461 = arith.mulf %460, %454 : vector<2x14x14xf32>
    %462 = arith.addf %427, %461 : vector<2x14x14xf32>
    %c40 = arith.constant 40 : index
    %463 = memref.load %arg3[%c40] : memref<128xf32, #tpu.memory_space<smem>>
    %464 = vector.broadcast %463 : f32 to vector<2x14x14xf32>
    %465 = arith.mulf %464, %454 : vector<2x14x14xf32>
    %466 = arith.addf %431, %465 : vector<2x14x14xf32>
    %c56 = arith.constant 56 : index
    %467 = memref.load %arg3[%c56] : memref<128xf32, #tpu.memory_space<smem>>
    %468 = vector.broadcast %467 : f32 to vector<2x14x14xf32>
    %469 = arith.mulf %468, %454 : vector<2x14x14xf32>
    %470 = arith.addf %435, %469 : vector<2x14x14xf32>
    %c72 = arith.constant 72 : index
    %471 = memref.load %arg3[%c72] : memref<128xf32, #tpu.memory_space<smem>>
    %472 = vector.broadcast %471 : f32 to vector<2x14x14xf32>
    %473 = arith.mulf %472, %454 : vector<2x14x14xf32>
    %474 = arith.addf %439, %473 : vector<2x14x14xf32>
    %c88 = arith.constant 88 : index
    %475 = memref.load %arg3[%c88] : memref<128xf32, #tpu.memory_space<smem>>
    %476 = vector.broadcast %475 : f32 to vector<2x14x14xf32>
    %477 = arith.mulf %476, %454 : vector<2x14x14xf32>
    %478 = arith.addf %443, %477 : vector<2x14x14xf32>
    %c104 = arith.constant 104 : index
    %479 = memref.load %arg3[%c104] : memref<128xf32, #tpu.memory_space<smem>>
    %480 = vector.broadcast %479 : f32 to vector<2x14x14xf32>
    %481 = arith.mulf %480, %454 : vector<2x14x14xf32>
    %482 = arith.addf %447, %481 : vector<2x14x14xf32>
    %c120 = arith.constant 120 : index
    %483 = memref.load %arg3[%c120] : memref<128xf32, #tpu.memory_space<smem>>
    %484 = vector.broadcast %483 : f32 to vector<2x14x14xf32>
    %485 = arith.mulf %484, %454 : vector<2x14x14xf32>
    %486 = arith.addf %451, %485 : vector<2x14x14xf32>
    %487 = vector.extract_strided_slice %453 {offsets = [0, 0, 1], sizes = [2, 14, 14], strides = [1, 1, 1]} : vector<2x15x15xf32> to vector<2x14x14xf32>
    %c9_73 = arith.constant 9 : index
    %488 = memref.load %arg3[%c9_73] : memref<128xf32, #tpu.memory_space<smem>>
    %489 = vector.broadcast %488 : f32 to vector<2x14x14xf32>
    %490 = arith.mulf %489, %487 : vector<2x14x14xf32>
    %491 = arith.addf %458, %490 : vector<2x14x14xf32>
    %c25_74 = arith.constant 25 : index
    %492 = memref.load %arg3[%c25_74] : memref<128xf32, #tpu.memory_space<smem>>
    %493 = vector.broadcast %492 : f32 to vector<2x14x14xf32>
    %494 = arith.mulf %493, %487 : vector<2x14x14xf32>
    %495 = arith.addf %462, %494 : vector<2x14x14xf32>
    %c41 = arith.constant 41 : index
    %496 = memref.load %arg3[%c41] : memref<128xf32, #tpu.memory_space<smem>>
    %497 = vector.broadcast %496 : f32 to vector<2x14x14xf32>
    %498 = arith.mulf %497, %487 : vector<2x14x14xf32>
    %499 = arith.addf %466, %498 : vector<2x14x14xf32>
    %c57 = arith.constant 57 : index
    %500 = memref.load %arg3[%c57] : memref<128xf32, #tpu.memory_space<smem>>
    %501 = vector.broadcast %500 : f32 to vector<2x14x14xf32>
    %502 = arith.mulf %501, %487 : vector<2x14x14xf32>
    %503 = arith.addf %470, %502 : vector<2x14x14xf32>
    %c73 = arith.constant 73 : index
    %504 = memref.load %arg3[%c73] : memref<128xf32, #tpu.memory_space<smem>>
    %505 = vector.broadcast %504 : f32 to vector<2x14x14xf32>
    %506 = arith.mulf %505, %487 : vector<2x14x14xf32>
    %507 = arith.addf %474, %506 : vector<2x14x14xf32>
    %c89 = arith.constant 89 : index
    %508 = memref.load %arg3[%c89] : memref<128xf32, #tpu.memory_space<smem>>
    %509 = vector.broadcast %508 : f32 to vector<2x14x14xf32>
    %510 = arith.mulf %509, %487 : vector<2x14x14xf32>
    %511 = arith.addf %478, %510 : vector<2x14x14xf32>
    %c105 = arith.constant 105 : index
    %512 = memref.load %arg3[%c105] : memref<128xf32, #tpu.memory_space<smem>>
    %513 = vector.broadcast %512 : f32 to vector<2x14x14xf32>
    %514 = arith.mulf %513, %487 : vector<2x14x14xf32>
    %515 = arith.addf %482, %514 : vector<2x14x14xf32>
    %c121 = arith.constant 121 : index
    %516 = memref.load %arg3[%c121] : memref<128xf32, #tpu.memory_space<smem>>
    %517 = vector.broadcast %516 : f32 to vector<2x14x14xf32>
    %518 = arith.mulf %517, %487 : vector<2x14x14xf32>
    %519 = arith.addf %486, %518 : vector<2x14x14xf32>
    %520 = vector.extract_strided_slice %453 {offsets = [0, 1, 0], sizes = [2, 14, 14], strides = [1, 1, 1]} : vector<2x15x15xf32> to vector<2x14x14xf32>
    %c10_75 = arith.constant 10 : index
    %521 = memref.load %arg3[%c10_75] : memref<128xf32, #tpu.memory_space<smem>>
    %522 = vector.broadcast %521 : f32 to vector<2x14x14xf32>
    %523 = arith.mulf %522, %520 : vector<2x14x14xf32>
    %524 = arith.addf %491, %523 : vector<2x14x14xf32>
    %c26_76 = arith.constant 26 : index
    %525 = memref.load %arg3[%c26_76] : memref<128xf32, #tpu.memory_space<smem>>
    %526 = vector.broadcast %525 : f32 to vector<2x14x14xf32>
    %527 = arith.mulf %526, %520 : vector<2x14x14xf32>
    %528 = arith.addf %495, %527 : vector<2x14x14xf32>
    %c42 = arith.constant 42 : index
    %529 = memref.load %arg3[%c42] : memref<128xf32, #tpu.memory_space<smem>>
    %530 = vector.broadcast %529 : f32 to vector<2x14x14xf32>
    %531 = arith.mulf %530, %520 : vector<2x14x14xf32>
    %532 = arith.addf %499, %531 : vector<2x14x14xf32>
    %c58 = arith.constant 58 : index
    %533 = memref.load %arg3[%c58] : memref<128xf32, #tpu.memory_space<smem>>
    %534 = vector.broadcast %533 : f32 to vector<2x14x14xf32>
    %535 = arith.mulf %534, %520 : vector<2x14x14xf32>
    %536 = arith.addf %503, %535 : vector<2x14x14xf32>
    %c74 = arith.constant 74 : index
    %537 = memref.load %arg3[%c74] : memref<128xf32, #tpu.memory_space<smem>>
    %538 = vector.broadcast %537 : f32 to vector<2x14x14xf32>
    %539 = arith.mulf %538, %520 : vector<2x14x14xf32>
    %540 = arith.addf %507, %539 : vector<2x14x14xf32>
    %c90 = arith.constant 90 : index
    %541 = memref.load %arg3[%c90] : memref<128xf32, #tpu.memory_space<smem>>
    %542 = vector.broadcast %541 : f32 to vector<2x14x14xf32>
    %543 = arith.mulf %542, %520 : vector<2x14x14xf32>
    %544 = arith.addf %511, %543 : vector<2x14x14xf32>
    %c106 = arith.constant 106 : index
    %545 = memref.load %arg3[%c106] : memref<128xf32, #tpu.memory_space<smem>>
    %546 = vector.broadcast %545 : f32 to vector<2x14x14xf32>
    %547 = arith.mulf %546, %520 : vector<2x14x14xf32>
    %548 = arith.addf %515, %547 : vector<2x14x14xf32>
    %c122 = arith.constant 122 : index
    %549 = memref.load %arg3[%c122] : memref<128xf32, #tpu.memory_space<smem>>
    %550 = vector.broadcast %549 : f32 to vector<2x14x14xf32>
    %551 = arith.mulf %550, %520 : vector<2x14x14xf32>
    %552 = arith.addf %519, %551 : vector<2x14x14xf32>
    %553 = vector.extract_strided_slice %453 {offsets = [0, 1, 1], sizes = [2, 14, 14], strides = [1, 1, 1]} : vector<2x15x15xf32> to vector<2x14x14xf32>
    %c11_77 = arith.constant 11 : index
    %554 = memref.load %arg3[%c11_77] : memref<128xf32, #tpu.memory_space<smem>>
    %555 = vector.broadcast %554 : f32 to vector<2x14x14xf32>
    %556 = arith.mulf %555, %553 : vector<2x14x14xf32>
    %557 = arith.addf %524, %556 : vector<2x14x14xf32>
    %c27_78 = arith.constant 27 : index
    %558 = memref.load %arg3[%c27_78] : memref<128xf32, #tpu.memory_space<smem>>
    %559 = vector.broadcast %558 : f32 to vector<2x14x14xf32>
    %560 = arith.mulf %559, %553 : vector<2x14x14xf32>
    %561 = arith.addf %528, %560 : vector<2x14x14xf32>
    %c43 = arith.constant 43 : index
    %562 = memref.load %arg3[%c43] : memref<128xf32, #tpu.memory_space<smem>>
    %563 = vector.broadcast %562 : f32 to vector<2x14x14xf32>
    %564 = arith.mulf %563, %553 : vector<2x14x14xf32>
    %565 = arith.addf %532, %564 : vector<2x14x14xf32>
    %c59 = arith.constant 59 : index
    %566 = memref.load %arg3[%c59] : memref<128xf32, #tpu.memory_space<smem>>
    %567 = vector.broadcast %566 : f32 to vector<2x14x14xf32>
    %568 = arith.mulf %567, %553 : vector<2x14x14xf32>
    %569 = arith.addf %536, %568 : vector<2x14x14xf32>
    %c75 = arith.constant 75 : index
    %570 = memref.load %arg3[%c75] : memref<128xf32, #tpu.memory_space<smem>>
    %571 = vector.broadcast %570 : f32 to vector<2x14x14xf32>
    %572 = arith.mulf %571, %553 : vector<2x14x14xf32>
    %573 = arith.addf %540, %572 : vector<2x14x14xf32>
    %c91 = arith.constant 91 : index
    %574 = memref.load %arg3[%c91] : memref<128xf32, #tpu.memory_space<smem>>
    %575 = vector.broadcast %574 : f32 to vector<2x14x14xf32>
    %576 = arith.mulf %575, %553 : vector<2x14x14xf32>
    %577 = arith.addf %544, %576 : vector<2x14x14xf32>
    %c107 = arith.constant 107 : index
    %578 = memref.load %arg3[%c107] : memref<128xf32, #tpu.memory_space<smem>>
    %579 = vector.broadcast %578 : f32 to vector<2x14x14xf32>
    %580 = arith.mulf %579, %553 : vector<2x14x14xf32>
    %581 = arith.addf %548, %580 : vector<2x14x14xf32>
    %c123 = arith.constant 123 : index
    %582 = memref.load %arg3[%c123] : memref<128xf32, #tpu.memory_space<smem>>
    %583 = vector.broadcast %582 : f32 to vector<2x14x14xf32>
    %584 = arith.mulf %583, %553 : vector<2x14x14xf32>
    %585 = arith.addf %552, %584 : vector<2x14x14xf32>
    %c0_79 = arith.constant 0 : index
    %c3_80 = arith.constant 3 : index
    %c0_81 = arith.constant 0 : index
    %c0_82 = arith.constant 0 : index
    %586 = vector.load %arg8[%c0_79, %c3_80, %c0_81, %c0_82] : memref<2x4x15x15xf32, #tpu.memory_space<vmem>>, vector<2x1x15x15xf32>
    %587 = vector.shape_cast %586 : vector<2x1x15x15xf32> to vector<2x15x15xf32>
    %588 = vector.extract_strided_slice %587 {offsets = [0, 0, 0], sizes = [2, 14, 14], strides = [1, 1, 1]} : vector<2x15x15xf32> to vector<2x14x14xf32>
    %c12_83 = arith.constant 12 : index
    %589 = memref.load %arg3[%c12_83] : memref<128xf32, #tpu.memory_space<smem>>
    %590 = vector.broadcast %589 : f32 to vector<2x14x14xf32>
    %591 = arith.mulf %590, %588 : vector<2x14x14xf32>
    %592 = arith.addf %557, %591 : vector<2x14x14xf32>
    %c28_84 = arith.constant 28 : index
    %593 = memref.load %arg3[%c28_84] : memref<128xf32, #tpu.memory_space<smem>>
    %594 = vector.broadcast %593 : f32 to vector<2x14x14xf32>
    %595 = arith.mulf %594, %588 : vector<2x14x14xf32>
    %596 = arith.addf %561, %595 : vector<2x14x14xf32>
    %c44 = arith.constant 44 : index
    %597 = memref.load %arg3[%c44] : memref<128xf32, #tpu.memory_space<smem>>
    %598 = vector.broadcast %597 : f32 to vector<2x14x14xf32>
    %599 = arith.mulf %598, %588 : vector<2x14x14xf32>
    %600 = arith.addf %565, %599 : vector<2x14x14xf32>
    %c60 = arith.constant 60 : index
    %601 = memref.load %arg3[%c60] : memref<128xf32, #tpu.memory_space<smem>>
    %602 = vector.broadcast %601 : f32 to vector<2x14x14xf32>
    %603 = arith.mulf %602, %588 : vector<2x14x14xf32>
    %604 = arith.addf %569, %603 : vector<2x14x14xf32>
    %c76 = arith.constant 76 : index
    %605 = memref.load %arg3[%c76] : memref<128xf32, #tpu.memory_space<smem>>
    %606 = vector.broadcast %605 : f32 to vector<2x14x14xf32>
    %607 = arith.mulf %606, %588 : vector<2x14x14xf32>
    %608 = arith.addf %573, %607 : vector<2x14x14xf32>
    %c92 = arith.constant 92 : index
    %609 = memref.load %arg3[%c92] : memref<128xf32, #tpu.memory_space<smem>>
    %610 = vector.broadcast %609 : f32 to vector<2x14x14xf32>
    %611 = arith.mulf %610, %588 : vector<2x14x14xf32>
    %612 = arith.addf %577, %611 : vector<2x14x14xf32>
    %c108 = arith.constant 108 : index
    %613 = memref.load %arg3[%c108] : memref<128xf32, #tpu.memory_space<smem>>
    %614 = vector.broadcast %613 : f32 to vector<2x14x14xf32>
    %615 = arith.mulf %614, %588 : vector<2x14x14xf32>
    %616 = arith.addf %581, %615 : vector<2x14x14xf32>
    %c124 = arith.constant 124 : index
    %617 = memref.load %arg3[%c124] : memref<128xf32, #tpu.memory_space<smem>>
    %618 = vector.broadcast %617 : f32 to vector<2x14x14xf32>
    %619 = arith.mulf %618, %588 : vector<2x14x14xf32>
    %620 = arith.addf %585, %619 : vector<2x14x14xf32>
    %621 = vector.extract_strided_slice %587 {offsets = [0, 0, 1], sizes = [2, 14, 14], strides = [1, 1, 1]} : vector<2x15x15xf32> to vector<2x14x14xf32>
    %c13_85 = arith.constant 13 : index
    %622 = memref.load %arg3[%c13_85] : memref<128xf32, #tpu.memory_space<smem>>
    %623 = vector.broadcast %622 : f32 to vector<2x14x14xf32>
    %624 = arith.mulf %623, %621 : vector<2x14x14xf32>
    %625 = arith.addf %592, %624 : vector<2x14x14xf32>
    %c29_86 = arith.constant 29 : index
    %626 = memref.load %arg3[%c29_86] : memref<128xf32, #tpu.memory_space<smem>>
    %627 = vector.broadcast %626 : f32 to vector<2x14x14xf32>
    %628 = arith.mulf %627, %621 : vector<2x14x14xf32>
    %629 = arith.addf %596, %628 : vector<2x14x14xf32>
    %c45 = arith.constant 45 : index
    %630 = memref.load %arg3[%c45] : memref<128xf32, #tpu.memory_space<smem>>
    %631 = vector.broadcast %630 : f32 to vector<2x14x14xf32>
    %632 = arith.mulf %631, %621 : vector<2x14x14xf32>
    %633 = arith.addf %600, %632 : vector<2x14x14xf32>
    %c61 = arith.constant 61 : index
    %634 = memref.load %arg3[%c61] : memref<128xf32, #tpu.memory_space<smem>>
    %635 = vector.broadcast %634 : f32 to vector<2x14x14xf32>
    %636 = arith.mulf %635, %621 : vector<2x14x14xf32>
    %637 = arith.addf %604, %636 : vector<2x14x14xf32>
    %c77 = arith.constant 77 : index
    %638 = memref.load %arg3[%c77] : memref<128xf32, #tpu.memory_space<smem>>
    %639 = vector.broadcast %638 : f32 to vector<2x14x14xf32>
    %640 = arith.mulf %639, %621 : vector<2x14x14xf32>
    %641 = arith.addf %608, %640 : vector<2x14x14xf32>
    %c93 = arith.constant 93 : index
    %642 = memref.load %arg3[%c93] : memref<128xf32, #tpu.memory_space<smem>>
    %643 = vector.broadcast %642 : f32 to vector<2x14x14xf32>
    %644 = arith.mulf %643, %621 : vector<2x14x14xf32>
    %645 = arith.addf %612, %644 : vector<2x14x14xf32>
    %c109 = arith.constant 109 : index
    %646 = memref.load %arg3[%c109] : memref<128xf32, #tpu.memory_space<smem>>
    %647 = vector.broadcast %646 : f32 to vector<2x14x14xf32>
    %648 = arith.mulf %647, %621 : vector<2x14x14xf32>
    %649 = arith.addf %616, %648 : vector<2x14x14xf32>
    %c125 = arith.constant 125 : index
    %650 = memref.load %arg3[%c125] : memref<128xf32, #tpu.memory_space<smem>>
    %651 = vector.broadcast %650 : f32 to vector<2x14x14xf32>
    %652 = arith.mulf %651, %621 : vector<2x14x14xf32>
    %653 = arith.addf %620, %652 : vector<2x14x14xf32>
    %654 = vector.extract_strided_slice %587 {offsets = [0, 1, 0], sizes = [2, 14, 14], strides = [1, 1, 1]} : vector<2x15x15xf32> to vector<2x14x14xf32>
    %c14_87 = arith.constant 14 : index
    %655 = memref.load %arg3[%c14_87] : memref<128xf32, #tpu.memory_space<smem>>
    %656 = vector.broadcast %655 : f32 to vector<2x14x14xf32>
    %657 = arith.mulf %656, %654 : vector<2x14x14xf32>
    %658 = arith.addf %625, %657 : vector<2x14x14xf32>
    %c30_88 = arith.constant 30 : index
    %659 = memref.load %arg3[%c30_88] : memref<128xf32, #tpu.memory_space<smem>>
    %660 = vector.broadcast %659 : f32 to vector<2x14x14xf32>
    %661 = arith.mulf %660, %654 : vector<2x14x14xf32>
    %662 = arith.addf %629, %661 : vector<2x14x14xf32>
    %c46 = arith.constant 46 : index
    %663 = memref.load %arg3[%c46] : memref<128xf32, #tpu.memory_space<smem>>
    %664 = vector.broadcast %663 : f32 to vector<2x14x14xf32>
    %665 = arith.mulf %664, %654 : vector<2x14x14xf32>
    %666 = arith.addf %633, %665 : vector<2x14x14xf32>
    %c62 = arith.constant 62 : index
    %667 = memref.load %arg3[%c62] : memref<128xf32, #tpu.memory_space<smem>>
    %668 = vector.broadcast %667 : f32 to vector<2x14x14xf32>
    %669 = arith.mulf %668, %654 : vector<2x14x14xf32>
    %670 = arith.addf %637, %669 : vector<2x14x14xf32>
    %c78 = arith.constant 78 : index
    %671 = memref.load %arg3[%c78] : memref<128xf32, #tpu.memory_space<smem>>
    %672 = vector.broadcast %671 : f32 to vector<2x14x14xf32>
    %673 = arith.mulf %672, %654 : vector<2x14x14xf32>
    %674 = arith.addf %641, %673 : vector<2x14x14xf32>
    %c94 = arith.constant 94 : index
    %675 = memref.load %arg3[%c94] : memref<128xf32, #tpu.memory_space<smem>>
    %676 = vector.broadcast %675 : f32 to vector<2x14x14xf32>
    %677 = arith.mulf %676, %654 : vector<2x14x14xf32>
    %678 = arith.addf %645, %677 : vector<2x14x14xf32>
    %c110 = arith.constant 110 : index
    %679 = memref.load %arg3[%c110] : memref<128xf32, #tpu.memory_space<smem>>
    %680 = vector.broadcast %679 : f32 to vector<2x14x14xf32>
    %681 = arith.mulf %680, %654 : vector<2x14x14xf32>
    %682 = arith.addf %649, %681 : vector<2x14x14xf32>
    %c126 = arith.constant 126 : index
    %683 = memref.load %arg3[%c126] : memref<128xf32, #tpu.memory_space<smem>>
    %684 = vector.broadcast %683 : f32 to vector<2x14x14xf32>
    %685 = arith.mulf %684, %654 : vector<2x14x14xf32>
    %686 = arith.addf %653, %685 : vector<2x14x14xf32>
    %687 = vector.extract_strided_slice %587 {offsets = [0, 1, 1], sizes = [2, 14, 14], strides = [1, 1, 1]} : vector<2x15x15xf32> to vector<2x14x14xf32>
    %c15_89 = arith.constant 15 : index
    %688 = memref.load %arg3[%c15_89] : memref<128xf32, #tpu.memory_space<smem>>
    %689 = vector.broadcast %688 : f32 to vector<2x14x14xf32>
    %690 = arith.mulf %689, %687 : vector<2x14x14xf32>
    %691 = arith.addf %658, %690 : vector<2x14x14xf32>
    %c31_90 = arith.constant 31 : index
    %692 = memref.load %arg3[%c31_90] : memref<128xf32, #tpu.memory_space<smem>>
    %693 = vector.broadcast %692 : f32 to vector<2x14x14xf32>
    %694 = arith.mulf %693, %687 : vector<2x14x14xf32>
    %695 = arith.addf %662, %694 : vector<2x14x14xf32>
    %c47 = arith.constant 47 : index
    %696 = memref.load %arg3[%c47] : memref<128xf32, #tpu.memory_space<smem>>
    %697 = vector.broadcast %696 : f32 to vector<2x14x14xf32>
    %698 = arith.mulf %697, %687 : vector<2x14x14xf32>
    %699 = arith.addf %666, %698 : vector<2x14x14xf32>
    %c63 = arith.constant 63 : index
    %700 = memref.load %arg3[%c63] : memref<128xf32, #tpu.memory_space<smem>>
    %701 = vector.broadcast %700 : f32 to vector<2x14x14xf32>
    %702 = arith.mulf %701, %687 : vector<2x14x14xf32>
    %703 = arith.addf %670, %702 : vector<2x14x14xf32>
    %c79 = arith.constant 79 : index
    %704 = memref.load %arg3[%c79] : memref<128xf32, #tpu.memory_space<smem>>
    %705 = vector.broadcast %704 : f32 to vector<2x14x14xf32>
    %706 = arith.mulf %705, %687 : vector<2x14x14xf32>
    %707 = arith.addf %674, %706 : vector<2x14x14xf32>
    %c95 = arith.constant 95 : index
    %708 = memref.load %arg3[%c95] : memref<128xf32, #tpu.memory_space<smem>>
    %709 = vector.broadcast %708 : f32 to vector<2x14x14xf32>
    %710 = arith.mulf %709, %687 : vector<2x14x14xf32>
    %711 = arith.addf %678, %710 : vector<2x14x14xf32>
    %c111 = arith.constant 111 : index
    %712 = memref.load %arg3[%c111] : memref<128xf32, #tpu.memory_space<smem>>
    %713 = vector.broadcast %712 : f32 to vector<2x14x14xf32>
    %714 = arith.mulf %713, %687 : vector<2x14x14xf32>
    %715 = arith.addf %682, %714 : vector<2x14x14xf32>
    %c127 = arith.constant 127 : index
    %716 = memref.load %arg3[%c127] : memref<128xf32, #tpu.memory_space<smem>>
    %717 = vector.broadcast %716 : f32 to vector<2x14x14xf32>
    %718 = arith.mulf %717, %687 : vector<2x14x14xf32>
    %719 = arith.addf %686, %718 : vector<2x14x14xf32>
    %c0_91 = arith.constant 0 : index
    %720 = memref.load %arg4[%c0_91] : memref<8xf32, #tpu.memory_space<smem>>
    %721 = vector.broadcast %720 : f32 to vector<2x14x14xf32>
    %722 = arith.addf %691, %721 : vector<2x14x14xf32>
    %cst_92 = arith.constant 0.000000e+00 : f32
    %723 = vector.broadcast %cst_92 : f32 to vector<2x14x14xf32>
    %724 = arith.maximumf %722, %723 : vector<2x14x14xf32>
    %c0_93 = arith.constant 0 : index
    %c0_94 = arith.constant 0 : index
    %c0_95 = arith.constant 0 : index
    %c0_96 = arith.constant 0 : index
    %725 = vector.load %arg9[%c0_93, %c0_94, %c0_95, %c0_96] : memref<2x8x14x14xf32, #tpu.memory_space<vmem>>, vector<2x1x14x14xf32>
    %726 = vector.shape_cast %725 : vector<2x1x14x14xf32> to vector<2x14x14xf32>
    %727 = vector.shape_cast %724 : vector<2x14x14xf32> to vector<2x1x14x14xf32>
    tpu.vector_store %arg9[%c0_93, %c0_94, %c0_95, %c0_96], %727 {strides = array<i32>} : memref<2x8x14x14xf32, #tpu.memory_space<vmem>>, vector<2x1x14x14xf32>,
    %c1_97 = arith.constant 1 : index
    %728 = memref.load %arg4[%c1_97] : memref<8xf32, #tpu.memory_space<smem>>
    %729 = vector.broadcast %728 : f32 to vector<2x14x14xf32>
    %730 = arith.addf %695, %729 : vector<2x14x14xf32>
    %cst_98 = arith.constant 0.000000e+00 : f32
    %731 = vector.broadcast %cst_98 : f32 to vector<2x14x14xf32>
    %732 = arith.maximumf %730, %731 : vector<2x14x14xf32>
    %c0_99 = arith.constant 0 : index
    %c1_100 = arith.constant 1 : index
    %c0_101 = arith.constant 0 : index
    %c0_102 = arith.constant 0 : index
    %733 = vector.load %arg9[%c0_99, %c1_100, %c0_101, %c0_102] : memref<2x8x14x14xf32, #tpu.memory_space<vmem>>, vector<2x1x14x14xf32>
    %734 = vector.shape_cast %733 : vector<2x1x14x14xf32> to vector<2x14x14xf32>
    %735 = vector.shape_cast %732 : vector<2x14x14xf32> to vector<2x1x14x14xf32>
    tpu.vector_store %arg9[%c0_99, %c1_100, %c0_101, %c0_102], %735 {strides = array<i32>} : memref<2x8x14x14xf32, #tpu.memory_space<vmem>>, vector<2x1x14x14xf32>,
    %c2_103 = arith.constant 2 : index
    %736 = memref.load %arg4[%c2_103] : memref<8xf32, #tpu.memory_space<smem>>
    %737 = vector.broadcast %736 : f32 to vector<2x14x14xf32>
    %738 = arith.addf %699, %737 : vector<2x14x14xf32>
    %cst_104 = arith.constant 0.000000e+00 : f32
    %739 = vector.broadcast %cst_104 : f32 to vector<2x14x14xf32>
    %740 = arith.maximumf %738, %739 : vector<2x14x14xf32>
    %c0_105 = arith.constant 0 : index
    %c2_106 = arith.constant 2 : index
    %c0_107 = arith.constant 0 : index
    %c0_108 = arith.constant 0 : index
    %741 = vector.load %arg9[%c0_105, %c2_106, %c0_107, %c0_108] : memref<2x8x14x14xf32, #tpu.memory_space<vmem>>, vector<2x1x14x14xf32>
    %742 = vector.shape_cast %741 : vector<2x1x14x14xf32> to vector<2x14x14xf32>
    %743 = vector.shape_cast %740 : vector<2x14x14xf32> to vector<2x1x14x14xf32>
    tpu.vector_store %arg9[%c0_105, %c2_106, %c0_107, %c0_108], %743 {strides = array<i32>} : memref<2x8x14x14xf32, #tpu.memory_space<vmem>>, vector<2x1x14x14xf32>,
    %c3_109 = arith.constant 3 : index
    %744 = memref.load %arg4[%c3_109] : memref<8xf32, #tpu.memory_space<smem>>
    %745 = vector.broadcast %744 : f32 to vector<2x14x14xf32>
    %746 = arith.addf %703, %745 : vector<2x14x14xf32>
    %cst_110 = arith.constant 0.000000e+00 : f32
    %747 = vector.broadcast %cst_110 : f32 to vector<2x14x14xf32>
    %748 = arith.maximumf %746, %747 : vector<2x14x14xf32>
    %c0_111 = arith.constant 0 : index
    %c3_112 = arith.constant 3 : index
    %c0_113 = arith.constant 0 : index
    %c0_114 = arith.constant 0 : index
    %749 = vector.load %arg9[%c0_111, %c3_112, %c0_113, %c0_114] : memref<2x8x14x14xf32, #tpu.memory_space<vmem>>, vector<2x1x14x14xf32>
    %750 = vector.shape_cast %749 : vector<2x1x14x14xf32> to vector<2x14x14xf32>
    %751 = vector.shape_cast %748 : vector<2x14x14xf32> to vector<2x1x14x14xf32>
    tpu.vector_store %arg9[%c0_111, %c3_112, %c0_113, %c0_114], %751 {strides = array<i32>} : memref<2x8x14x14xf32, #tpu.memory_space<vmem>>, vector<2x1x14x14xf32>,
    %c4_115 = arith.constant 4 : index
    %752 = memref.load %arg4[%c4_115] : memref<8xf32, #tpu.memory_space<smem>>
    %753 = vector.broadcast %752 : f32 to vector<2x14x14xf32>
    %754 = arith.addf %707, %753 : vector<2x14x14xf32>
    %cst_116 = arith.constant 0.000000e+00 : f32
    %755 = vector.broadcast %cst_116 : f32 to vector<2x14x14xf32>
    %756 = arith.maximumf %754, %755 : vector<2x14x14xf32>
    %c0_117 = arith.constant 0 : index
    %c4_118 = arith.constant 4 : index
    %c0_119 = arith.constant 0 : index
    %c0_120 = arith.constant 0 : index
    %757 = vector.load %arg9[%c0_117, %c4_118, %c0_119, %c0_120] : memref<2x8x14x14xf32, #tpu.memory_space<vmem>>, vector<2x1x14x14xf32>
    %758 = vector.shape_cast %757 : vector<2x1x14x14xf32> to vector<2x14x14xf32>
    %759 = vector.shape_cast %756 : vector<2x14x14xf32> to vector<2x1x14x14xf32>
    tpu.vector_store %arg9[%c0_117, %c4_118, %c0_119, %c0_120], %759 {strides = array<i32>} : memref<2x8x14x14xf32, #tpu.memory_space<vmem>>, vector<2x1x14x14xf32>,
    %c5_121 = arith.constant 5 : index
    %760 = memref.load %arg4[%c5_121] : memref<8xf32, #tpu.memory_space<smem>>
    %761 = vector.broadcast %760 : f32 to vector<2x14x14xf32>
    %762 = arith.addf %711, %761 : vector<2x14x14xf32>
    %cst_122 = arith.constant 0.000000e+00 : f32
    %763 = vector.broadcast %cst_122 : f32 to vector<2x14x14xf32>
    %764 = arith.maximumf %762, %763 : vector<2x14x14xf32>
    %c0_123 = arith.constant 0 : index
    %c5_124 = arith.constant 5 : index
    %c0_125 = arith.constant 0 : index
    %c0_126 = arith.constant 0 : index
    %765 = vector.load %arg9[%c0_123, %c5_124, %c0_125, %c0_126] : memref<2x8x14x14xf32, #tpu.memory_space<vmem>>, vector<2x1x14x14xf32>
    %766 = vector.shape_cast %765 : vector<2x1x14x14xf32> to vector<2x14x14xf32>
    %767 = vector.shape_cast %764 : vector<2x14x14xf32> to vector<2x1x14x14xf32>
    tpu.vector_store %arg9[%c0_123, %c5_124, %c0_125, %c0_126], %767 {strides = array<i32>} : memref<2x8x14x14xf32, #tpu.memory_space<vmem>>, vector<2x1x14x14xf32>,
    %c6_127 = arith.constant 6 : index
    %768 = memref.load %arg4[%c6_127] : memref<8xf32, #tpu.memory_space<smem>>
    %769 = vector.broadcast %768 : f32 to vector<2x14x14xf32>
    %770 = arith.addf %715, %769 : vector<2x14x14xf32>
    %cst_128 = arith.constant 0.000000e+00 : f32
    %771 = vector.broadcast %cst_128 : f32 to vector<2x14x14xf32>
    %772 = arith.maximumf %770, %771 : vector<2x14x14xf32>
    %c0_129 = arith.constant 0 : index
    %c6_130 = arith.constant 6 : index
    %c0_131 = arith.constant 0 : index
    %c0_132 = arith.constant 0 : index
    %773 = vector.load %arg9[%c0_129, %c6_130, %c0_131, %c0_132] : memref<2x8x14x14xf32, #tpu.memory_space<vmem>>, vector<2x1x14x14xf32>
    %774 = vector.shape_cast %773 : vector<2x1x14x14xf32> to vector<2x14x14xf32>
    %775 = vector.shape_cast %772 : vector<2x14x14xf32> to vector<2x1x14x14xf32>
    tpu.vector_store %arg9[%c0_129, %c6_130, %c0_131, %c0_132], %775 {strides = array<i32>} : memref<2x8x14x14xf32, #tpu.memory_space<vmem>>, vector<2x1x14x14xf32>,
    %c7_133 = arith.constant 7 : index
    %776 = memref.load %arg4[%c7_133] : memref<8xf32, #tpu.memory_space<smem>>
    %777 = vector.broadcast %776 : f32 to vector<2x14x14xf32>
    %778 = arith.addf %719, %777 : vector<2x14x14xf32>
    %cst_134 = arith.constant 0.000000e+00 : f32
    %779 = vector.broadcast %cst_134 : f32 to vector<2x14x14xf32>
    %780 = arith.maximumf %778, %779 : vector<2x14x14xf32>
    %c0_135 = arith.constant 0 : index
    %c7_136 = arith.constant 7 : index
    %c0_137 = arith.constant 0 : index
    %c0_138 = arith.constant 0 : index
    %781 = vector.load %arg9[%c0_135, %c7_136, %c0_137, %c0_138] : memref<2x8x14x14xf32, #tpu.memory_space<vmem>>, vector<2x1x14x14xf32>
    %782 = vector.shape_cast %781 : vector<2x1x14x14xf32> to vector<2x14x14xf32>
    %783 = vector.shape_cast %780 : vector<2x14x14xf32> to vector<2x1x14x14xf32>
    tpu.vector_store %arg9[%c0_135, %c7_136, %c0_137, %c0_138], %783 {strides = array<i32>} : memref<2x8x14x14xf32, #tpu.memory_space<vmem>>, vector<2x1x14x14xf32>,
    %cst_139 = arith.constant 0.000000e+00 : f32
    %784 = vector.broadcast %cst_139 : f32 to vector<2x13x13xf32>
    %cst_140 = arith.constant 0.000000e+00 : f32
    %785 = vector.broadcast %cst_140 : f32 to vector<2x13x13xf32>
    %cst_141 = arith.constant 0.000000e+00 : f32
    %786 = vector.broadcast %cst_141 : f32 to vector<2x13x13xf32>
    %cst_142 = arith.constant 0.000000e+00 : f32
    %787 = vector.broadcast %cst_142 : f32 to vector<2x13x13xf32>
    %cst_143 = arith.constant 0.000000e+00 : f32
    %788 = vector.broadcast %cst_143 : f32 to vector<2x13x13xf32>
    %cst_144 = arith.constant 0.000000e+00 : f32
    %789 = vector.broadcast %cst_144 : f32 to vector<2x13x13xf32>
    %cst_145 = arith.constant 0.000000e+00 : f32
    %790 = vector.broadcast %cst_145 : f32 to vector<2x13x13xf32>
    %cst_146 = arith.constant 0.000000e+00 : f32
    %791 = vector.broadcast %cst_146 : f32 to vector<2x13x13xf32>
    %c0_147 = arith.constant 0 : index
    %c0_148 = arith.constant 0 : index
    %c0_149 = arith.constant 0 : index
    %c0_150 = arith.constant 0 : index
    %792 = vector.load %arg9[%c0_147, %c0_148, %c0_149, %c0_150] : memref<2x8x14x14xf32, #tpu.memory_space<vmem>>, vector<2x1x14x14xf32>
    %793 = vector.shape_cast %792 : vector<2x1x14x14xf32> to vector<2x14x14xf32>
    %794 = vector.extract_strided_slice %793 {offsets = [0, 0, 0], sizes = [2, 13, 13], strides = [1, 1, 1]} : vector<2x14x14xf32> to vector<2x13x13xf32>
    %c0_151 = arith.constant 0 : index
    %795 = memref.load %arg5[%c0_151] : memref<256xf32, #tpu.memory_space<smem>>
    %796 = vector.broadcast %795 : f32 to vector<2x13x13xf32>
    %797 = arith.mulf %796, %794 : vector<2x13x13xf32>
    %798 = arith.addf %784, %797 : vector<2x13x13xf32>
    %c32_152 = arith.constant 32 : index
    %799 = memref.load %arg5[%c32_152] : memref<256xf32, #tpu.memory_space<smem>>
    %800 = vector.broadcast %799 : f32 to vector<2x13x13xf32>
    %801 = arith.mulf %800, %794 : vector<2x13x13xf32>
    %802 = arith.addf %785, %801 : vector<2x13x13xf32>
    %c64_153 = arith.constant 64 : index
    %803 = memref.load %arg5[%c64_153] : memref<256xf32, #tpu.memory_space<smem>>
    %804 = vector.broadcast %803 : f32 to vector<2x13x13xf32>
    %805 = arith.mulf %804, %794 : vector<2x13x13xf32>
    %806 = arith.addf %786, %805 : vector<2x13x13xf32>
    %c96_154 = arith.constant 96 : index
    %807 = memref.load %arg5[%c96_154] : memref<256xf32, #tpu.memory_space<smem>>
    %808 = vector.broadcast %807 : f32 to vector<2x13x13xf32>
    %809 = arith.mulf %808, %794 : vector<2x13x13xf32>
    %810 = arith.addf %787, %809 : vector<2x13x13xf32>
    %c128 = arith.constant 128 : index
    %811 = memref.load %arg5[%c128] : memref<256xf32, #tpu.memory_space<smem>>
    %812 = vector.broadcast %811 : f32 to vector<2x13x13xf32>
    %813 = arith.mulf %812, %794 : vector<2x13x13xf32>
    %814 = arith.addf %788, %813 : vector<2x13x13xf32>
    %c160 = arith.constant 160 : index
    %815 = memref.load %arg5[%c160] : memref<256xf32, #tpu.memory_space<smem>>
    %816 = vector.broadcast %815 : f32 to vector<2x13x13xf32>
    %817 = arith.mulf %816, %794 : vector<2x13x13xf32>
    %818 = arith.addf %789, %817 : vector<2x13x13xf32>
    %c192 = arith.constant 192 : index
    %819 = memref.load %arg5[%c192] : memref<256xf32, #tpu.memory_space<smem>>
    %820 = vector.broadcast %819 : f32 to vector<2x13x13xf32>
    %821 = arith.mulf %820, %794 : vector<2x13x13xf32>
    %822 = arith.addf %790, %821 : vector<2x13x13xf32>
    %c224 = arith.constant 224 : index
    %823 = memref.load %arg5[%c224] : memref<256xf32, #tpu.memory_space<smem>>
    %824 = vector.broadcast %823 : f32 to vector<2x13x13xf32>
    %825 = arith.mulf %824, %794 : vector<2x13x13xf32>
    %826 = arith.addf %791, %825 : vector<2x13x13xf32>
    %827 = vector.extract_strided_slice %793 {offsets = [0, 0, 1], sizes = [2, 13, 13], strides = [1, 1, 1]} : vector<2x14x14xf32> to vector<2x13x13xf32>
    %c1_155 = arith.constant 1 : index
    %828 = memref.load %arg5[%c1_155] : memref<256xf32, #tpu.memory_space<smem>>
    %829 = vector.broadcast %828 : f32 to vector<2x13x13xf32>
    %830 = arith.mulf %829, %827 : vector<2x13x13xf32>
    %831 = arith.addf %798, %830 : vector<2x13x13xf32>
    %c33_156 = arith.constant 33 : index
    %832 = memref.load %arg5[%c33_156] : memref<256xf32, #tpu.memory_space<smem>>
    %833 = vector.broadcast %832 : f32 to vector<2x13x13xf32>
    %834 = arith.mulf %833, %827 : vector<2x13x13xf32>
    %835 = arith.addf %802, %834 : vector<2x13x13xf32>
    %c65_157 = arith.constant 65 : index
    %836 = memref.load %arg5[%c65_157] : memref<256xf32, #tpu.memory_space<smem>>
    %837 = vector.broadcast %836 : f32 to vector<2x13x13xf32>
    %838 = arith.mulf %837, %827 : vector<2x13x13xf32>
    %839 = arith.addf %806, %838 : vector<2x13x13xf32>
    %c97_158 = arith.constant 97 : index
    %840 = memref.load %arg5[%c97_158] : memref<256xf32, #tpu.memory_space<smem>>
    %841 = vector.broadcast %840 : f32 to vector<2x13x13xf32>
    %842 = arith.mulf %841, %827 : vector<2x13x13xf32>
    %843 = arith.addf %810, %842 : vector<2x13x13xf32>
    %c129 = arith.constant 129 : index
    %844 = memref.load %arg5[%c129] : memref<256xf32, #tpu.memory_space<smem>>
    %845 = vector.broadcast %844 : f32 to vector<2x13x13xf32>
    %846 = arith.mulf %845, %827 : vector<2x13x13xf32>
    %847 = arith.addf %814, %846 : vector<2x13x13xf32>
    %c161 = arith.constant 161 : index
    %848 = memref.load %arg5[%c161] : memref<256xf32, #tpu.memory_space<smem>>
    %849 = vector.broadcast %848 : f32 to vector<2x13x13xf32>
    %850 = arith.mulf %849, %827 : vector<2x13x13xf32>
    %851 = arith.addf %818, %850 : vector<2x13x13xf32>
    %c193 = arith.constant 193 : index
    %852 = memref.load %arg5[%c193] : memref<256xf32, #tpu.memory_space<smem>>
    %853 = vector.broadcast %852 : f32 to vector<2x13x13xf32>
    %854 = arith.mulf %853, %827 : vector<2x13x13xf32>
    %855 = arith.addf %822, %854 : vector<2x13x13xf32>
    %c225 = arith.constant 225 : index
    %856 = memref.load %arg5[%c225] : memref<256xf32, #tpu.memory_space<smem>>
    %857 = vector.broadcast %856 : f32 to vector<2x13x13xf32>
    %858 = arith.mulf %857, %827 : vector<2x13x13xf32>
    %859 = arith.addf %826, %858 : vector<2x13x13xf32>
    %860 = vector.extract_strided_slice %793 {offsets = [0, 1, 0], sizes = [2, 13, 13], strides = [1, 1, 1]} : vector<2x14x14xf32> to vector<2x13x13xf32>
    %c2_159 = arith.constant 2 : index
    %861 = memref.load %arg5[%c2_159] : memref<256xf32, #tpu.memory_space<smem>>
    %862 = vector.broadcast %861 : f32 to vector<2x13x13xf32>
    %863 = arith.mulf %862, %860 : vector<2x13x13xf32>
    %864 = arith.addf %831, %863 : vector<2x13x13xf32>
    %c34_160 = arith.constant 34 : index
    %865 = memref.load %arg5[%c34_160] : memref<256xf32, #tpu.memory_space<smem>>
    %866 = vector.broadcast %865 : f32 to vector<2x13x13xf32>
    %867 = arith.mulf %866, %860 : vector<2x13x13xf32>
    %868 = arith.addf %835, %867 : vector<2x13x13xf32>
    %c66_161 = arith.constant 66 : index
    %869 = memref.load %arg5[%c66_161] : memref<256xf32, #tpu.memory_space<smem>>
    %870 = vector.broadcast %869 : f32 to vector<2x13x13xf32>
    %871 = arith.mulf %870, %860 : vector<2x13x13xf32>
    %872 = arith.addf %839, %871 : vector<2x13x13xf32>
    %c98_162 = arith.constant 98 : index
    %873 = memref.load %arg5[%c98_162] : memref<256xf32, #tpu.memory_space<smem>>
    %874 = vector.broadcast %873 : f32 to vector<2x13x13xf32>
    %875 = arith.mulf %874, %860 : vector<2x13x13xf32>
    %876 = arith.addf %843, %875 : vector<2x13x13xf32>
    %c130 = arith.constant 130 : index
    %877 = memref.load %arg5[%c130] : memref<256xf32, #tpu.memory_space<smem>>
    %878 = vector.broadcast %877 : f32 to vector<2x13x13xf32>
    %879 = arith.mulf %878, %860 : vector<2x13x13xf32>
    %880 = arith.addf %847, %879 : vector<2x13x13xf32>
    %c162 = arith.constant 162 : index
    %881 = memref.load %arg5[%c162] : memref<256xf32, #tpu.memory_space<smem>>
    %882 = vector.broadcast %881 : f32 to vector<2x13x13xf32>
    %883 = arith.mulf %882, %860 : vector<2x13x13xf32>
    %884 = arith.addf %851, %883 : vector<2x13x13xf32>
    %c194 = arith.constant 194 : index
    %885 = memref.load %arg5[%c194] : memref<256xf32, #tpu.memory_space<smem>>
    %886 = vector.broadcast %885 : f32 to vector<2x13x13xf32>
    %887 = arith.mulf %886, %860 : vector<2x13x13xf32>
    %888 = arith.addf %855, %887 : vector<2x13x13xf32>
    %c226 = arith.constant 226 : index
    %889 = memref.load %arg5[%c226] : memref<256xf32, #tpu.memory_space<smem>>
    %890 = vector.broadcast %889 : f32 to vector<2x13x13xf32>
    %891 = arith.mulf %890, %860 : vector<2x13x13xf32>
    %892 = arith.addf %859, %891 : vector<2x13x13xf32>
    %893 = vector.extract_strided_slice %793 {offsets = [0, 1, 1], sizes = [2, 13, 13], strides = [1, 1, 1]} : vector<2x14x14xf32> to vector<2x13x13xf32>
    %c3_163 = arith.constant 3 : index
    %894 = memref.load %arg5[%c3_163] : memref<256xf32, #tpu.memory_space<smem>>
    %895 = vector.broadcast %894 : f32 to vector<2x13x13xf32>
    %896 = arith.mulf %895, %893 : vector<2x13x13xf32>
    %897 = arith.addf %864, %896 : vector<2x13x13xf32>
    %c35_164 = arith.constant 35 : index
    %898 = memref.load %arg5[%c35_164] : memref<256xf32, #tpu.memory_space<smem>>
    %899 = vector.broadcast %898 : f32 to vector<2x13x13xf32>
    %900 = arith.mulf %899, %893 : vector<2x13x13xf32>
    %901 = arith.addf %868, %900 : vector<2x13x13xf32>
    %c67_165 = arith.constant 67 : index
    %902 = memref.load %arg5[%c67_165] : memref<256xf32, #tpu.memory_space<smem>>
    %903 = vector.broadcast %902 : f32 to vector<2x13x13xf32>
    %904 = arith.mulf %903, %893 : vector<2x13x13xf32>
    %905 = arith.addf %872, %904 : vector<2x13x13xf32>
    %c99_166 = arith.constant 99 : index
    %906 = memref.load %arg5[%c99_166] : memref<256xf32, #tpu.memory_space<smem>>
    %907 = vector.broadcast %906 : f32 to vector<2x13x13xf32>
    %908 = arith.mulf %907, %893 : vector<2x13x13xf32>
    %909 = arith.addf %876, %908 : vector<2x13x13xf32>
    %c131 = arith.constant 131 : index
    %910 = memref.load %arg5[%c131] : memref<256xf32, #tpu.memory_space<smem>>
    %911 = vector.broadcast %910 : f32 to vector<2x13x13xf32>
    %912 = arith.mulf %911, %893 : vector<2x13x13xf32>
    %913 = arith.addf %880, %912 : vector<2x13x13xf32>
    %c163 = arith.constant 163 : index
    %914 = memref.load %arg5[%c163] : memref<256xf32, #tpu.memory_space<smem>>
    %915 = vector.broadcast %914 : f32 to vector<2x13x13xf32>
    %916 = arith.mulf %915, %893 : vector<2x13x13xf32>
    %917 = arith.addf %884, %916 : vector<2x13x13xf32>
    %c195 = arith.constant 195 : index
    %918 = memref.load %arg5[%c195] : memref<256xf32, #tpu.memory_space<smem>>
    %919 = vector.broadcast %918 : f32 to vector<2x13x13xf32>
    %920 = arith.mulf %919, %893 : vector<2x13x13xf32>
    %921 = arith.addf %888, %920 : vector<2x13x13xf32>
    %c227 = arith.constant 227 : index
    %922 = memref.load %arg5[%c227] : memref<256xf32, #tpu.memory_space<smem>>
    %923 = vector.broadcast %922 : f32 to vector<2x13x13xf32>
    %924 = arith.mulf %923, %893 : vector<2x13x13xf32>
    %925 = arith.addf %892, %924 : vector<2x13x13xf32>
    %c0_167 = arith.constant 0 : index
    %c1_168 = arith.constant 1 : index
    %c0_169 = arith.constant 0 : index
    %c0_170 = arith.constant 0 : index
    %926 = vector.load %arg9[%c0_167, %c1_168, %c0_169, %c0_170] : memref<2x8x14x14xf32, #tpu.memory_space<vmem>>, vector<2x1x14x14xf32>
    %927 = vector.shape_cast %926 : vector<2x1x14x14xf32> to vector<2x14x14xf32>
    %928 = vector.extract_strided_slice %927 {offsets = [0, 0, 0], sizes = [2, 13, 13], strides = [1, 1, 1]} : vector<2x14x14xf32> to vector<2x13x13xf32>
    %c4_171 = arith.constant 4 : index
    %929 = memref.load %arg5[%c4_171] : memref<256xf32, #tpu.memory_space<smem>>
    %930 = vector.broadcast %929 : f32 to vector<2x13x13xf32>
    %931 = arith.mulf %930, %928 : vector<2x13x13xf32>
    %932 = arith.addf %897, %931 : vector<2x13x13xf32>
    %c36_172 = arith.constant 36 : index
    %933 = memref.load %arg5[%c36_172] : memref<256xf32, #tpu.memory_space<smem>>
    %934 = vector.broadcast %933 : f32 to vector<2x13x13xf32>
    %935 = arith.mulf %934, %928 : vector<2x13x13xf32>
    %936 = arith.addf %901, %935 : vector<2x13x13xf32>
    %c68_173 = arith.constant 68 : index
    %937 = memref.load %arg5[%c68_173] : memref<256xf32, #tpu.memory_space<smem>>
    %938 = vector.broadcast %937 : f32 to vector<2x13x13xf32>
    %939 = arith.mulf %938, %928 : vector<2x13x13xf32>
    %940 = arith.addf %905, %939 : vector<2x13x13xf32>
    %c100_174 = arith.constant 100 : index
    %941 = memref.load %arg5[%c100_174] : memref<256xf32, #tpu.memory_space<smem>>
    %942 = vector.broadcast %941 : f32 to vector<2x13x13xf32>
    %943 = arith.mulf %942, %928 : vector<2x13x13xf32>
    %944 = arith.addf %909, %943 : vector<2x13x13xf32>
    %c132 = arith.constant 132 : index
    %945 = memref.load %arg5[%c132] : memref<256xf32, #tpu.memory_space<smem>>
    %946 = vector.broadcast %945 : f32 to vector<2x13x13xf32>
    %947 = arith.mulf %946, %928 : vector<2x13x13xf32>
    %948 = arith.addf %913, %947 : vector<2x13x13xf32>
    %c164 = arith.constant 164 : index
    %949 = memref.load %arg5[%c164] : memref<256xf32, #tpu.memory_space<smem>>
    %950 = vector.broadcast %949 : f32 to vector<2x13x13xf32>
    %951 = arith.mulf %950, %928 : vector<2x13x13xf32>
    %952 = arith.addf %917, %951 : vector<2x13x13xf32>
    %c196 = arith.constant 196 : index
    %953 = memref.load %arg5[%c196] : memref<256xf32, #tpu.memory_space<smem>>
    %954 = vector.broadcast %953 : f32 to vector<2x13x13xf32>
    %955 = arith.mulf %954, %928 : vector<2x13x13xf32>
    %956 = arith.addf %921, %955 : vector<2x13x13xf32>
    %c228 = arith.constant 228 : index
    %957 = memref.load %arg5[%c228] : memref<256xf32, #tpu.memory_space<smem>>
    %958 = vector.broadcast %957 : f32 to vector<2x13x13xf32>
    %959 = arith.mulf %958, %928 : vector<2x13x13xf32>
    %960 = arith.addf %925, %959 : vector<2x13x13xf32>
    %961 = vector.extract_strided_slice %927 {offsets = [0, 0, 1], sizes = [2, 13, 13], strides = [1, 1, 1]} : vector<2x14x14xf32> to vector<2x13x13xf32>
    %c5_175 = arith.constant 5 : index
    %962 = memref.load %arg5[%c5_175] : memref<256xf32, #tpu.memory_space<smem>>
    %963 = vector.broadcast %962 : f32 to vector<2x13x13xf32>
    %964 = arith.mulf %963, %961 : vector<2x13x13xf32>
    %965 = arith.addf %932, %964 : vector<2x13x13xf32>
    %c37_176 = arith.constant 37 : index
    %966 = memref.load %arg5[%c37_176] : memref<256xf32, #tpu.memory_space<smem>>
    %967 = vector.broadcast %966 : f32 to vector<2x13x13xf32>
    %968 = arith.mulf %967, %961 : vector<2x13x13xf32>
    %969 = arith.addf %936, %968 : vector<2x13x13xf32>
    %c69_177 = arith.constant 69 : index
    %970 = memref.load %arg5[%c69_177] : memref<256xf32, #tpu.memory_space<smem>>
    %971 = vector.broadcast %970 : f32 to vector<2x13x13xf32>
    %972 = arith.mulf %971, %961 : vector<2x13x13xf32>
    %973 = arith.addf %940, %972 : vector<2x13x13xf32>
    %c101_178 = arith.constant 101 : index
    %974 = memref.load %arg5[%c101_178] : memref<256xf32, #tpu.memory_space<smem>>
    %975 = vector.broadcast %974 : f32 to vector<2x13x13xf32>
    %976 = arith.mulf %975, %961 : vector<2x13x13xf32>
    %977 = arith.addf %944, %976 : vector<2x13x13xf32>
    %c133 = arith.constant 133 : index
    %978 = memref.load %arg5[%c133] : memref<256xf32, #tpu.memory_space<smem>>
    %979 = vector.broadcast %978 : f32 to vector<2x13x13xf32>
    %980 = arith.mulf %979, %961 : vector<2x13x13xf32>
    %981 = arith.addf %948, %980 : vector<2x13x13xf32>
    %c165 = arith.constant 165 : index
    %982 = memref.load %arg5[%c165] : memref<256xf32, #tpu.memory_space<smem>>
    %983 = vector.broadcast %982 : f32 to vector<2x13x13xf32>
    %984 = arith.mulf %983, %961 : vector<2x13x13xf32>
    %985 = arith.addf %952, %984 : vector<2x13x13xf32>
    %c197 = arith.constant 197 : index
    %986 = memref.load %arg5[%c197] : memref<256xf32, #tpu.memory_space<smem>>
    %987 = vector.broadcast %986 : f32 to vector<2x13x13xf32>
    %988 = arith.mulf %987, %961 : vector<2x13x13xf32>
    %989 = arith.addf %956, %988 : vector<2x13x13xf32>
    %c229 = arith.constant 229 : index
    %990 = memref.load %arg5[%c229] : memref<256xf32, #tpu.memory_space<smem>>
    %991 = vector.broadcast %990 : f32 to vector<2x13x13xf32>
    %992 = arith.mulf %991, %961 : vector<2x13x13xf32>
    %993 = arith.addf %960, %992 : vector<2x13x13xf32>
    %994 = vector.extract_strided_slice %927 {offsets = [0, 1, 0], sizes = [2, 13, 13], strides = [1, 1, 1]} : vector<2x14x14xf32> to vector<2x13x13xf32>
    %c6_179 = arith.constant 6 : index
    %995 = memref.load %arg5[%c6_179] : memref<256xf32, #tpu.memory_space<smem>>
    %996 = vector.broadcast %995 : f32 to vector<2x13x13xf32>
    %997 = arith.mulf %996, %994 : vector<2x13x13xf32>
    %998 = arith.addf %965, %997 : vector<2x13x13xf32>
    %c38_180 = arith.constant 38 : index
    %999 = memref.load %arg5[%c38_180] : memref<256xf32, #tpu.memory_space<smem>>
    %1000 = vector.broadcast %999 : f32 to vector<2x13x13xf32>
    %1001 = arith.mulf %1000, %994 : vector<2x13x13xf32>
    %1002 = arith.addf %969, %1001 : vector<2x13x13xf32>
    %c70_181 = arith.constant 70 : index
    %1003 = memref.load %arg5[%c70_181] : memref<256xf32, #tpu.memory_space<smem>>
    %1004 = vector.broadcast %1003 : f32 to vector<2x13x13xf32>
    %1005 = arith.mulf %1004, %994 : vector<2x13x13xf32>
    %1006 = arith.addf %973, %1005 : vector<2x13x13xf32>
    %c102_182 = arith.constant 102 : index
    %1007 = memref.load %arg5[%c102_182] : memref<256xf32, #tpu.memory_space<smem>>
    %1008 = vector.broadcast %1007 : f32 to vector<2x13x13xf32>
    %1009 = arith.mulf %1008, %994 : vector<2x13x13xf32>
    %1010 = arith.addf %977, %1009 : vector<2x13x13xf32>
    %c134 = arith.constant 134 : index
    %1011 = memref.load %arg5[%c134] : memref<256xf32, #tpu.memory_space<smem>>
    %1012 = vector.broadcast %1011 : f32 to vector<2x13x13xf32>
    %1013 = arith.mulf %1012, %994 : vector<2x13x13xf32>
    %1014 = arith.addf %981, %1013 : vector<2x13x13xf32>
    %c166 = arith.constant 166 : index
    %1015 = memref.load %arg5[%c166] : memref<256xf32, #tpu.memory_space<smem>>
    %1016 = vector.broadcast %1015 : f32 to vector<2x13x13xf32>
    %1017 = arith.mulf %1016, %994 : vector<2x13x13xf32>
    %1018 = arith.addf %985, %1017 : vector<2x13x13xf32>
    %c198 = arith.constant 198 : index
    %1019 = memref.load %arg5[%c198] : memref<256xf32, #tpu.memory_space<smem>>
    %1020 = vector.broadcast %1019 : f32 to vector<2x13x13xf32>
    %1021 = arith.mulf %1020, %994 : vector<2x13x13xf32>
    %1022 = arith.addf %989, %1021 : vector<2x13x13xf32>
    %c230 = arith.constant 230 : index
    %1023 = memref.load %arg5[%c230] : memref<256xf32, #tpu.memory_space<smem>>
    %1024 = vector.broadcast %1023 : f32 to vector<2x13x13xf32>
    %1025 = arith.mulf %1024, %994 : vector<2x13x13xf32>
    %1026 = arith.addf %993, %1025 : vector<2x13x13xf32>
    %1027 = vector.extract_strided_slice %927 {offsets = [0, 1, 1], sizes = [2, 13, 13], strides = [1, 1, 1]} : vector<2x14x14xf32> to vector<2x13x13xf32>
    %c7_183 = arith.constant 7 : index
    %1028 = memref.load %arg5[%c7_183] : memref<256xf32, #tpu.memory_space<smem>>
    %1029 = vector.broadcast %1028 : f32 to vector<2x13x13xf32>
    %1030 = arith.mulf %1029, %1027 : vector<2x13x13xf32>
    %1031 = arith.addf %998, %1030 : vector<2x13x13xf32>
    %c39_184 = arith.constant 39 : index
    %1032 = memref.load %arg5[%c39_184] : memref<256xf32, #tpu.memory_space<smem>>
    %1033 = vector.broadcast %1032 : f32 to vector<2x13x13xf32>
    %1034 = arith.mulf %1033, %1027 : vector<2x13x13xf32>
    %1035 = arith.addf %1002, %1034 : vector<2x13x13xf32>
    %c71_185 = arith.constant 71 : index
    %1036 = memref.load %arg5[%c71_185] : memref<256xf32, #tpu.memory_space<smem>>
    %1037 = vector.broadcast %1036 : f32 to vector<2x13x13xf32>
    %1038 = arith.mulf %1037, %1027 : vector<2x13x13xf32>
    %1039 = arith.addf %1006, %1038 : vector<2x13x13xf32>
    %c103_186 = arith.constant 103 : index
    %1040 = memref.load %arg5[%c103_186] : memref<256xf32, #tpu.memory_space<smem>>
    %1041 = vector.broadcast %1040 : f32 to vector<2x13x13xf32>
    %1042 = arith.mulf %1041, %1027 : vector<2x13x13xf32>
    %1043 = arith.addf %1010, %1042 : vector<2x13x13xf32>
    %c135 = arith.constant 135 : index
    %1044 = memref.load %arg5[%c135] : memref<256xf32, #tpu.memory_space<smem>>
    %1045 = vector.broadcast %1044 : f32 to vector<2x13x13xf32>
    %1046 = arith.mulf %1045, %1027 : vector<2x13x13xf32>
    %1047 = arith.addf %1014, %1046 : vector<2x13x13xf32>
    %c167 = arith.constant 167 : index
    %1048 = memref.load %arg5[%c167] : memref<256xf32, #tpu.memory_space<smem>>
    %1049 = vector.broadcast %1048 : f32 to vector<2x13x13xf32>
    %1050 = arith.mulf %1049, %1027 : vector<2x13x13xf32>
    %1051 = arith.addf %1018, %1050 : vector<2x13x13xf32>
    %c199 = arith.constant 199 : index
    %1052 = memref.load %arg5[%c199] : memref<256xf32, #tpu.memory_space<smem>>
    %1053 = vector.broadcast %1052 : f32 to vector<2x13x13xf32>
    %1054 = arith.mulf %1053, %1027 : vector<2x13x13xf32>
    %1055 = arith.addf %1022, %1054 : vector<2x13x13xf32>
    %c231 = arith.constant 231 : index
    %1056 = memref.load %arg5[%c231] : memref<256xf32, #tpu.memory_space<smem>>
    %1057 = vector.broadcast %1056 : f32 to vector<2x13x13xf32>
    %1058 = arith.mulf %1057, %1027 : vector<2x13x13xf32>
    %1059 = arith.addf %1026, %1058 : vector<2x13x13xf32>
    %c0_187 = arith.constant 0 : index
    %c2_188 = arith.constant 2 : index
    %c0_189 = arith.constant 0 : index
    %c0_190 = arith.constant 0 : index
    %1060 = vector.load %arg9[%c0_187, %c2_188, %c0_189, %c0_190] : memref<2x8x14x14xf32, #tpu.memory_space<vmem>>, vector<2x1x14x14xf32>
    %1061 = vector.shape_cast %1060 : vector<2x1x14x14xf32> to vector<2x14x14xf32>
    %1062 = vector.extract_strided_slice %1061 {offsets = [0, 0, 0], sizes = [2, 13, 13], strides = [1, 1, 1]} : vector<2x14x14xf32> to vector<2x13x13xf32>
    %c8_191 = arith.constant 8 : index
    %1063 = memref.load %arg5[%c8_191] : memref<256xf32, #tpu.memory_space<smem>>
    %1064 = vector.broadcast %1063 : f32 to vector<2x13x13xf32>
    %1065 = arith.mulf %1064, %1062 : vector<2x13x13xf32>
    %1066 = arith.addf %1031, %1065 : vector<2x13x13xf32>
    %c40_192 = arith.constant 40 : index
    %1067 = memref.load %arg5[%c40_192] : memref<256xf32, #tpu.memory_space<smem>>
    %1068 = vector.broadcast %1067 : f32 to vector<2x13x13xf32>
    %1069 = arith.mulf %1068, %1062 : vector<2x13x13xf32>
    %1070 = arith.addf %1035, %1069 : vector<2x13x13xf32>
    %c72_193 = arith.constant 72 : index
    %1071 = memref.load %arg5[%c72_193] : memref<256xf32, #tpu.memory_space<smem>>
    %1072 = vector.broadcast %1071 : f32 to vector<2x13x13xf32>
    %1073 = arith.mulf %1072, %1062 : vector<2x13x13xf32>
    %1074 = arith.addf %1039, %1073 : vector<2x13x13xf32>
    %c104_194 = arith.constant 104 : index
    %1075 = memref.load %arg5[%c104_194] : memref<256xf32, #tpu.memory_space<smem>>
    %1076 = vector.broadcast %1075 : f32 to vector<2x13x13xf32>
    %1077 = arith.mulf %1076, %1062 : vector<2x13x13xf32>
    %1078 = arith.addf %1043, %1077 : vector<2x13x13xf32>
    %c136 = arith.constant 136 : index
    %1079 = memref.load %arg5[%c136] : memref<256xf32, #tpu.memory_space<smem>>
    %1080 = vector.broadcast %1079 : f32 to vector<2x13x13xf32>
    %1081 = arith.mulf %1080, %1062 : vector<2x13x13xf32>
    %1082 = arith.addf %1047, %1081 : vector<2x13x13xf32>
    %c168 = arith.constant 168 : index
    %1083 = memref.load %arg5[%c168] : memref<256xf32, #tpu.memory_space<smem>>
    %1084 = vector.broadcast %1083 : f32 to vector<2x13x13xf32>
    %1085 = arith.mulf %1084, %1062 : vector<2x13x13xf32>
    %1086 = arith.addf %1051, %1085 : vector<2x13x13xf32>
    %c200 = arith.constant 200 : index
    %1087 = memref.load %arg5[%c200] : memref<256xf32, #tpu.memory_space<smem>>
    %1088 = vector.broadcast %1087 : f32 to vector<2x13x13xf32>
    %1089 = arith.mulf %1088, %1062 : vector<2x13x13xf32>
    %1090 = arith.addf %1055, %1089 : vector<2x13x13xf32>
    %c232 = arith.constant 232 : index
    %1091 = memref.load %arg5[%c232] : memref<256xf32, #tpu.memory_space<smem>>
    %1092 = vector.broadcast %1091 : f32 to vector<2x13x13xf32>
    %1093 = arith.mulf %1092, %1062 : vector<2x13x13xf32>
    %1094 = arith.addf %1059, %1093 : vector<2x13x13xf32>
    %1095 = vector.extract_strided_slice %1061 {offsets = [0, 0, 1], sizes = [2, 13, 13], strides = [1, 1, 1]} : vector<2x14x14xf32> to vector<2x13x13xf32>
    %c9_195 = arith.constant 9 : index
    %1096 = memref.load %arg5[%c9_195] : memref<256xf32, #tpu.memory_space<smem>>
    %1097 = vector.broadcast %1096 : f32 to vector<2x13x13xf32>
    %1098 = arith.mulf %1097, %1095 : vector<2x13x13xf32>
    %1099 = arith.addf %1066, %1098 : vector<2x13x13xf32>
    %c41_196 = arith.constant 41 : index
    %1100 = memref.load %arg5[%c41_196] : memref<256xf32, #tpu.memory_space<smem>>
    %1101 = vector.broadcast %1100 : f32 to vector<2x13x13xf32>
    %1102 = arith.mulf %1101, %1095 : vector<2x13x13xf32>
    %1103 = arith.addf %1070, %1102 : vector<2x13x13xf32>
    %c73_197 = arith.constant 73 : index
    %1104 = memref.load %arg5[%c73_197] : memref<256xf32, #tpu.memory_space<smem>>
    %1105 = vector.broadcast %1104 : f32 to vector<2x13x13xf32>
    %1106 = arith.mulf %1105, %1095 : vector<2x13x13xf32>
    %1107 = arith.addf %1074, %1106 : vector<2x13x13xf32>
    %c105_198 = arith.constant 105 : index
    %1108 = memref.load %arg5[%c105_198] : memref<256xf32, #tpu.memory_space<smem>>
    %1109 = vector.broadcast %1108 : f32 to vector<2x13x13xf32>
    %1110 = arith.mulf %1109, %1095 : vector<2x13x13xf32>
    %1111 = arith.addf %1078, %1110 : vector<2x13x13xf32>
    %c137 = arith.constant 137 : index
    %1112 = memref.load %arg5[%c137] : memref<256xf32, #tpu.memory_space<smem>>
    %1113 = vector.broadcast %1112 : f32 to vector<2x13x13xf32>
    %1114 = arith.mulf %1113, %1095 : vector<2x13x13xf32>
    %1115 = arith.addf %1082, %1114 : vector<2x13x13xf32>
    %c169 = arith.constant 169 : index
    %1116 = memref.load %arg5[%c169] : memref<256xf32, #tpu.memory_space<smem>>
    %1117 = vector.broadcast %1116 : f32 to vector<2x13x13xf32>
    %1118 = arith.mulf %1117, %1095 : vector<2x13x13xf32>
    %1119 = arith.addf %1086, %1118 : vector<2x13x13xf32>
    %c201 = arith.constant 201 : index
    %1120 = memref.load %arg5[%c201] : memref<256xf32, #tpu.memory_space<smem>>
    %1121 = vector.broadcast %1120 : f32 to vector<2x13x13xf32>
    %1122 = arith.mulf %1121, %1095 : vector<2x13x13xf32>
    %1123 = arith.addf %1090, %1122 : vector<2x13x13xf32>
    %c233 = arith.constant 233 : index
    %1124 = memref.load %arg5[%c233] : memref<256xf32, #tpu.memory_space<smem>>
    %1125 = vector.broadcast %1124 : f32 to vector<2x13x13xf32>
    %1126 = arith.mulf %1125, %1095 : vector<2x13x13xf32>
    %1127 = arith.addf %1094, %1126 : vector<2x13x13xf32>
    %1128 = vector.extract_strided_slice %1061 {offsets = [0, 1, 0], sizes = [2, 13, 13], strides = [1, 1, 1]} : vector<2x14x14xf32> to vector<2x13x13xf32>
    %c10_199 = arith.constant 10 : index
    %1129 = memref.load %arg5[%c10_199] : memref<256xf32, #tpu.memory_space<smem>>
    %1130 = vector.broadcast %1129 : f32 to vector<2x13x13xf32>
    %1131 = arith.mulf %1130, %1128 : vector<2x13x13xf32>
    %1132 = arith.addf %1099, %1131 : vector<2x13x13xf32>
    %c42_200 = arith.constant 42 : index
    %1133 = memref.load %arg5[%c42_200] : memref<256xf32, #tpu.memory_space<smem>>
    %1134 = vector.broadcast %1133 : f32 to vector<2x13x13xf32>
    %1135 = arith.mulf %1134, %1128 : vector<2x13x13xf32>
    %1136 = arith.addf %1103, %1135 : vector<2x13x13xf32>
    %c74_201 = arith.constant 74 : index
    %1137 = memref.load %arg5[%c74_201] : memref<256xf32, #tpu.memory_space<smem>>
    %1138 = vector.broadcast %1137 : f32 to vector<2x13x13xf32>
    %1139 = arith.mulf %1138, %1128 : vector<2x13x13xf32>
    %1140 = arith.addf %1107, %1139 : vector<2x13x13xf32>
    %c106_202 = arith.constant 106 : index
    %1141 = memref.load %arg5[%c106_202] : memref<256xf32, #tpu.memory_space<smem>>
    %1142 = vector.broadcast %1141 : f32 to vector<2x13x13xf32>
    %1143 = arith.mulf %1142, %1128 : vector<2x13x13xf32>
    %1144 = arith.addf %1111, %1143 : vector<2x13x13xf32>
    %c138 = arith.constant 138 : index
    %1145 = memref.load %arg5[%c138] : memref<256xf32, #tpu.memory_space<smem>>
    %1146 = vector.broadcast %1145 : f32 to vector<2x13x13xf32>
    %1147 = arith.mulf %1146, %1128 : vector<2x13x13xf32>
    %1148 = arith.addf %1115, %1147 : vector<2x13x13xf32>
    %c170 = arith.constant 170 : index
    %1149 = memref.load %arg5[%c170] : memref<256xf32, #tpu.memory_space<smem>>
    %1150 = vector.broadcast %1149 : f32 to vector<2x13x13xf32>
    %1151 = arith.mulf %1150, %1128 : vector<2x13x13xf32>
    %1152 = arith.addf %1119, %1151 : vector<2x13x13xf32>
    %c202 = arith.constant 202 : index
    %1153 = memref.load %arg5[%c202] : memref<256xf32, #tpu.memory_space<smem>>
    %1154 = vector.broadcast %1153 : f32 to vector<2x13x13xf32>
    %1155 = arith.mulf %1154, %1128 : vector<2x13x13xf32>
    %1156 = arith.addf %1123, %1155 : vector<2x13x13xf32>
    %c234 = arith.constant 234 : index
    %1157 = memref.load %arg5[%c234] : memref<256xf32, #tpu.memory_space<smem>>
    %1158 = vector.broadcast %1157 : f32 to vector<2x13x13xf32>
    %1159 = arith.mulf %1158, %1128 : vector<2x13x13xf32>
    %1160 = arith.addf %1127, %1159 : vector<2x13x13xf32>
    %1161 = vector.extract_strided_slice %1061 {offsets = [0, 1, 1], sizes = [2, 13, 13], strides = [1, 1, 1]} : vector<2x14x14xf32> to vector<2x13x13xf32>
    %c11_203 = arith.constant 11 : index
    %1162 = memref.load %arg5[%c11_203] : memref<256xf32, #tpu.memory_space<smem>>
    %1163 = vector.broadcast %1162 : f32 to vector<2x13x13xf32>
    %1164 = arith.mulf %1163, %1161 : vector<2x13x13xf32>
    %1165 = arith.addf %1132, %1164 : vector<2x13x13xf32>
    %c43_204 = arith.constant 43 : index
    %1166 = memref.load %arg5[%c43_204] : memref<256xf32, #tpu.memory_space<smem>>
    %1167 = vector.broadcast %1166 : f32 to vector<2x13x13xf32>
    %1168 = arith.mulf %1167, %1161 : vector<2x13x13xf32>
    %1169 = arith.addf %1136, %1168 : vector<2x13x13xf32>
    %c75_205 = arith.constant 75 : index
    %1170 = memref.load %arg5[%c75_205] : memref<256xf32, #tpu.memory_space<smem>>
    %1171 = vector.broadcast %1170 : f32 to vector<2x13x13xf32>
    %1172 = arith.mulf %1171, %1161 : vector<2x13x13xf32>
    %1173 = arith.addf %1140, %1172 : vector<2x13x13xf32>
    %c107_206 = arith.constant 107 : index
    %1174 = memref.load %arg5[%c107_206] : memref<256xf32, #tpu.memory_space<smem>>
    %1175 = vector.broadcast %1174 : f32 to vector<2x13x13xf32>
    %1176 = arith.mulf %1175, %1161 : vector<2x13x13xf32>
    %1177 = arith.addf %1144, %1176 : vector<2x13x13xf32>
    %c139 = arith.constant 139 : index
    %1178 = memref.load %arg5[%c139] : memref<256xf32, #tpu.memory_space<smem>>
    %1179 = vector.broadcast %1178 : f32 to vector<2x13x13xf32>
    %1180 = arith.mulf %1179, %1161 : vector<2x13x13xf32>
    %1181 = arith.addf %1148, %1180 : vector<2x13x13xf32>
    %c171 = arith.constant 171 : index
    %1182 = memref.load %arg5[%c171] : memref<256xf32, #tpu.memory_space<smem>>
    %1183 = vector.broadcast %1182 : f32 to vector<2x13x13xf32>
    %1184 = arith.mulf %1183, %1161 : vector<2x13x13xf32>
    %1185 = arith.addf %1152, %1184 : vector<2x13x13xf32>
    %c203 = arith.constant 203 : index
    %1186 = memref.load %arg5[%c203] : memref<256xf32, #tpu.memory_space<smem>>
    %1187 = vector.broadcast %1186 : f32 to vector<2x13x13xf32>
    %1188 = arith.mulf %1187, %1161 : vector<2x13x13xf32>
    %1189 = arith.addf %1156, %1188 : vector<2x13x13xf32>
    %c235 = arith.constant 235 : index
    %1190 = memref.load %arg5[%c235] : memref<256xf32, #tpu.memory_space<smem>>
    %1191 = vector.broadcast %1190 : f32 to vector<2x13x13xf32>
    %1192 = arith.mulf %1191, %1161 : vector<2x13x13xf32>
    %1193 = arith.addf %1160, %1192 : vector<2x13x13xf32>
    %c0_207 = arith.constant 0 : index
    %c3_208 = arith.constant 3 : index
    %c0_209 = arith.constant 0 : index
    %c0_210 = arith.constant 0 : index
    %1194 = vector.load %arg9[%c0_207, %c3_208, %c0_209, %c0_210] : memref<2x8x14x14xf32, #tpu.memory_space<vmem>>, vector<2x1x14x14xf32>
    %1195 = vector.shape_cast %1194 : vector<2x1x14x14xf32> to vector<2x14x14xf32>
    %1196 = vector.extract_strided_slice %1195 {offsets = [0, 0, 0], sizes = [2, 13, 13], strides = [1, 1, 1]} : vector<2x14x14xf32> to vector<2x13x13xf32>
    %c12_211 = arith.constant 12 : index
    %1197 = memref.load %arg5[%c12_211] : memref<256xf32, #tpu.memory_space<smem>>
    %1198 = vector.broadcast %1197 : f32 to vector<2x13x13xf32>
    %1199 = arith.mulf %1198, %1196 : vector<2x13x13xf32>
    %1200 = arith.addf %1165, %1199 : vector<2x13x13xf32>
    %c44_212 = arith.constant 44 : index
    %1201 = memref.load %arg5[%c44_212] : memref<256xf32, #tpu.memory_space<smem>>
    %1202 = vector.broadcast %1201 : f32 to vector<2x13x13xf32>
    %1203 = arith.mulf %1202, %1196 : vector<2x13x13xf32>
    %1204 = arith.addf %1169, %1203 : vector<2x13x13xf32>
    %c76_213 = arith.constant 76 : index
    %1205 = memref.load %arg5[%c76_213] : memref<256xf32, #tpu.memory_space<smem>>
    %1206 = vector.broadcast %1205 : f32 to vector<2x13x13xf32>
    %1207 = arith.mulf %1206, %1196 : vector<2x13x13xf32>
    %1208 = arith.addf %1173, %1207 : vector<2x13x13xf32>
    %c108_214 = arith.constant 108 : index
    %1209 = memref.load %arg5[%c108_214] : memref<256xf32, #tpu.memory_space<smem>>
    %1210 = vector.broadcast %1209 : f32 to vector<2x13x13xf32>
    %1211 = arith.mulf %1210, %1196 : vector<2x13x13xf32>
    %1212 = arith.addf %1177, %1211 : vector<2x13x13xf32>
    %c140 = arith.constant 140 : index
    %1213 = memref.load %arg5[%c140] : memref<256xf32, #tpu.memory_space<smem>>
    %1214 = vector.broadcast %1213 : f32 to vector<2x13x13xf32>
    %1215 = arith.mulf %1214, %1196 : vector<2x13x13xf32>
    %1216 = arith.addf %1181, %1215 : vector<2x13x13xf32>
    %c172 = arith.constant 172 : index
    %1217 = memref.load %arg5[%c172] : memref<256xf32, #tpu.memory_space<smem>>
    %1218 = vector.broadcast %1217 : f32 to vector<2x13x13xf32>
    %1219 = arith.mulf %1218, %1196 : vector<2x13x13xf32>
    %1220 = arith.addf %1185, %1219 : vector<2x13x13xf32>
    %c204 = arith.constant 204 : index
    %1221 = memref.load %arg5[%c204] : memref<256xf32, #tpu.memory_space<smem>>
    %1222 = vector.broadcast %1221 : f32 to vector<2x13x13xf32>
    %1223 = arith.mulf %1222, %1196 : vector<2x13x13xf32>
    %1224 = arith.addf %1189, %1223 : vector<2x13x13xf32>
    %c236 = arith.constant 236 : index
    %1225 = memref.load %arg5[%c236] : memref<256xf32, #tpu.memory_space<smem>>
    %1226 = vector.broadcast %1225 : f32 to vector<2x13x13xf32>
    %1227 = arith.mulf %1226, %1196 : vector<2x13x13xf32>
    %1228 = arith.addf %1193, %1227 : vector<2x13x13xf32>
    %1229 = vector.extract_strided_slice %1195 {offsets = [0, 0, 1], sizes = [2, 13, 13], strides = [1, 1, 1]} : vector<2x14x14xf32> to vector<2x13x13xf32>
    %c13_215 = arith.constant 13 : index
    %1230 = memref.load %arg5[%c13_215] : memref<256xf32, #tpu.memory_space<smem>>
    %1231 = vector.broadcast %1230 : f32 to vector<2x13x13xf32>
    %1232 = arith.mulf %1231, %1229 : vector<2x13x13xf32>
    %1233 = arith.addf %1200, %1232 : vector<2x13x13xf32>
    %c45_216 = arith.constant 45 : index
    %1234 = memref.load %arg5[%c45_216] : memref<256xf32, #tpu.memory_space<smem>>
    %1235 = vector.broadcast %1234 : f32 to vector<2x13x13xf32>
    %1236 = arith.mulf %1235, %1229 : vector<2x13x13xf32>
    %1237 = arith.addf %1204, %1236 : vector<2x13x13xf32>
    %c77_217 = arith.constant 77 : index
    %1238 = memref.load %arg5[%c77_217] : memref<256xf32, #tpu.memory_space<smem>>
    %1239 = vector.broadcast %1238 : f32 to vector<2x13x13xf32>
    %1240 = arith.mulf %1239, %1229 : vector<2x13x13xf32>
    %1241 = arith.addf %1208, %1240 : vector<2x13x13xf32>
    %c109_218 = arith.constant 109 : index
    %1242 = memref.load %arg5[%c109_218] : memref<256xf32, #tpu.memory_space<smem>>
    %1243 = vector.broadcast %1242 : f32 to vector<2x13x13xf32>
    %1244 = arith.mulf %1243, %1229 : vector<2x13x13xf32>
    %1245 = arith.addf %1212, %1244 : vector<2x13x13xf32>
    %c141 = arith.constant 141 : index
    %1246 = memref.load %arg5[%c141] : memref<256xf32, #tpu.memory_space<smem>>
    %1247 = vector.broadcast %1246 : f32 to vector<2x13x13xf32>
    %1248 = arith.mulf %1247, %1229 : vector<2x13x13xf32>
    %1249 = arith.addf %1216, %1248 : vector<2x13x13xf32>
    %c173 = arith.constant 173 : index
    %1250 = memref.load %arg5[%c173] : memref<256xf32, #tpu.memory_space<smem>>
    %1251 = vector.broadcast %1250 : f32 to vector<2x13x13xf32>
    %1252 = arith.mulf %1251, %1229 : vector<2x13x13xf32>
    %1253 = arith.addf %1220, %1252 : vector<2x13x13xf32>
    %c205 = arith.constant 205 : index
    %1254 = memref.load %arg5[%c205] : memref<256xf32, #tpu.memory_space<smem>>
    %1255 = vector.broadcast %1254 : f32 to vector<2x13x13xf32>
    %1256 = arith.mulf %1255, %1229 : vector<2x13x13xf32>
    %1257 = arith.addf %1224, %1256 : vector<2x13x13xf32>
    %c237 = arith.constant 237 : index
    %1258 = memref.load %arg5[%c237] : memref<256xf32, #tpu.memory_space<smem>>
    %1259 = vector.broadcast %1258 : f32 to vector<2x13x13xf32>
    %1260 = arith.mulf %1259, %1229 : vector<2x13x13xf32>
    %1261 = arith.addf %1228, %1260 : vector<2x13x13xf32>
    %1262 = vector.extract_strided_slice %1195 {offsets = [0, 1, 0], sizes = [2, 13, 13], strides = [1, 1, 1]} : vector<2x14x14xf32> to vector<2x13x13xf32>
    %c14_219 = arith.constant 14 : index
    %1263 = memref.load %arg5[%c14_219] : memref<256xf32, #tpu.memory_space<smem>>
    %1264 = vector.broadcast %1263 : f32 to vector<2x13x13xf32>
    %1265 = arith.mulf %1264, %1262 : vector<2x13x13xf32>
    %1266 = arith.addf %1233, %1265 : vector<2x13x13xf32>
    %c46_220 = arith.constant 46 : index
    %1267 = memref.load %arg5[%c46_220] : memref<256xf32, #tpu.memory_space<smem>>
    %1268 = vector.broadcast %1267 : f32 to vector<2x13x13xf32>
    %1269 = arith.mulf %1268, %1262 : vector<2x13x13xf32>
    %1270 = arith.addf %1237, %1269 : vector<2x13x13xf32>
    %c78_221 = arith.constant 78 : index
    %1271 = memref.load %arg5[%c78_221] : memref<256xf32, #tpu.memory_space<smem>>
    %1272 = vector.broadcast %1271 : f32 to vector<2x13x13xf32>
    %1273 = arith.mulf %1272, %1262 : vector<2x13x13xf32>
    %1274 = arith.addf %1241, %1273 : vector<2x13x13xf32>
    %c110_222 = arith.constant 110 : index
    %1275 = memref.load %arg5[%c110_222] : memref<256xf32, #tpu.memory_space<smem>>
    %1276 = vector.broadcast %1275 : f32 to vector<2x13x13xf32>
    %1277 = arith.mulf %1276, %1262 : vector<2x13x13xf32>
    %1278 = arith.addf %1245, %1277 : vector<2x13x13xf32>
    %c142 = arith.constant 142 : index
    %1279 = memref.load %arg5[%c142] : memref<256xf32, #tpu.memory_space<smem>>
    %1280 = vector.broadcast %1279 : f32 to vector<2x13x13xf32>
    %1281 = arith.mulf %1280, %1262 : vector<2x13x13xf32>
    %1282 = arith.addf %1249, %1281 : vector<2x13x13xf32>
    %c174 = arith.constant 174 : index
    %1283 = memref.load %arg5[%c174] : memref<256xf32, #tpu.memory_space<smem>>
    %1284 = vector.broadcast %1283 : f32 to vector<2x13x13xf32>
    %1285 = arith.mulf %1284, %1262 : vector<2x13x13xf32>
    %1286 = arith.addf %1253, %1285 : vector<2x13x13xf32>
    %c206 = arith.constant 206 : index
    %1287 = memref.load %arg5[%c206] : memref<256xf32, #tpu.memory_space<smem>>
    %1288 = vector.broadcast %1287 : f32 to vector<2x13x13xf32>
    %1289 = arith.mulf %1288, %1262 : vector<2x13x13xf32>
    %1290 = arith.addf %1257, %1289 : vector<2x13x13xf32>
    %c238 = arith.constant 238 : index
    %1291 = memref.load %arg5[%c238] : memref<256xf32, #tpu.memory_space<smem>>
    %1292 = vector.broadcast %1291 : f32 to vector<2x13x13xf32>
    %1293 = arith.mulf %1292, %1262 : vector<2x13x13xf32>
    %1294 = arith.addf %1261, %1293 : vector<2x13x13xf32>
    %1295 = vector.extract_strided_slice %1195 {offsets = [0, 1, 1], sizes = [2, 13, 13], strides = [1, 1, 1]} : vector<2x14x14xf32> to vector<2x13x13xf32>
    %c15_223 = arith.constant 15 : index
    %1296 = memref.load %arg5[%c15_223] : memref<256xf32, #tpu.memory_space<smem>>
    %1297 = vector.broadcast %1296 : f32 to vector<2x13x13xf32>
    %1298 = arith.mulf %1297, %1295 : vector<2x13x13xf32>
    %1299 = arith.addf %1266, %1298 : vector<2x13x13xf32>
    %c47_224 = arith.constant 47 : index
    %1300 = memref.load %arg5[%c47_224] : memref<256xf32, #tpu.memory_space<smem>>
    %1301 = vector.broadcast %1300 : f32 to vector<2x13x13xf32>
    %1302 = arith.mulf %1301, %1295 : vector<2x13x13xf32>
    %1303 = arith.addf %1270, %1302 : vector<2x13x13xf32>
    %c79_225 = arith.constant 79 : index
    %1304 = memref.load %arg5[%c79_225] : memref<256xf32, #tpu.memory_space<smem>>
    %1305 = vector.broadcast %1304 : f32 to vector<2x13x13xf32>
    %1306 = arith.mulf %1305, %1295 : vector<2x13x13xf32>
    %1307 = arith.addf %1274, %1306 : vector<2x13x13xf32>
    %c111_226 = arith.constant 111 : index
    %1308 = memref.load %arg5[%c111_226] : memref<256xf32, #tpu.memory_space<smem>>
    %1309 = vector.broadcast %1308 : f32 to vector<2x13x13xf32>
    %1310 = arith.mulf %1309, %1295 : vector<2x13x13xf32>
    %1311 = arith.addf %1278, %1310 : vector<2x13x13xf32>
    %c143 = arith.constant 143 : index
    %1312 = memref.load %arg5[%c143] : memref<256xf32, #tpu.memory_space<smem>>
    %1313 = vector.broadcast %1312 : f32 to vector<2x13x13xf32>
    %1314 = arith.mulf %1313, %1295 : vector<2x13x13xf32>
    %1315 = arith.addf %1282, %1314 : vector<2x13x13xf32>
    %c175 = arith.constant 175 : index
    %1316 = memref.load %arg5[%c175] : memref<256xf32, #tpu.memory_space<smem>>
    %1317 = vector.broadcast %1316 : f32 to vector<2x13x13xf32>
    %1318 = arith.mulf %1317, %1295 : vector<2x13x13xf32>
    %1319 = arith.addf %1286, %1318 : vector<2x13x13xf32>
    %c207 = arith.constant 207 : index
    %1320 = memref.load %arg5[%c207] : memref<256xf32, #tpu.memory_space<smem>>
    %1321 = vector.broadcast %1320 : f32 to vector<2x13x13xf32>
    %1322 = arith.mulf %1321, %1295 : vector<2x13x13xf32>
    %1323 = arith.addf %1290, %1322 : vector<2x13x13xf32>
    %c239 = arith.constant 239 : index
    %1324 = memref.load %arg5[%c239] : memref<256xf32, #tpu.memory_space<smem>>
    %1325 = vector.broadcast %1324 : f32 to vector<2x13x13xf32>
    %1326 = arith.mulf %1325, %1295 : vector<2x13x13xf32>
    %1327 = arith.addf %1294, %1326 : vector<2x13x13xf32>
    %c0_227 = arith.constant 0 : index
    %c4_228 = arith.constant 4 : index
    %c0_229 = arith.constant 0 : index
    %c0_230 = arith.constant 0 : index
    %1328 = vector.load %arg9[%c0_227, %c4_228, %c0_229, %c0_230] : memref<2x8x14x14xf32, #tpu.memory_space<vmem>>, vector<2x1x14x14xf32>
    %1329 = vector.shape_cast %1328 : vector<2x1x14x14xf32> to vector<2x14x14xf32>
    %1330 = vector.extract_strided_slice %1329 {offsets = [0, 0, 0], sizes = [2, 13, 13], strides = [1, 1, 1]} : vector<2x14x14xf32> to vector<2x13x13xf32>
    %c16_231 = arith.constant 16 : index
    %1331 = memref.load %arg5[%c16_231] : memref<256xf32, #tpu.memory_space<smem>>
    %1332 = vector.broadcast %1331 : f32 to vector<2x13x13xf32>
    %1333 = arith.mulf %1332, %1330 : vector<2x13x13xf32>
    %1334 = arith.addf %1299, %1333 : vector<2x13x13xf32>
    %c48_232 = arith.constant 48 : index
    %1335 = memref.load %arg5[%c48_232] : memref<256xf32, #tpu.memory_space<smem>>
    %1336 = vector.broadcast %1335 : f32 to vector<2x13x13xf32>
    %1337 = arith.mulf %1336, %1330 : vector<2x13x13xf32>
    %1338 = arith.addf %1303, %1337 : vector<2x13x13xf32>
    %c80_233 = arith.constant 80 : index
    %1339 = memref.load %arg5[%c80_233] : memref<256xf32, #tpu.memory_space<smem>>
    %1340 = vector.broadcast %1339 : f32 to vector<2x13x13xf32>
    %1341 = arith.mulf %1340, %1330 : vector<2x13x13xf32>
    %1342 = arith.addf %1307, %1341 : vector<2x13x13xf32>
    %c112_234 = arith.constant 112 : index
    %1343 = memref.load %arg5[%c112_234] : memref<256xf32, #tpu.memory_space<smem>>
    %1344 = vector.broadcast %1343 : f32 to vector<2x13x13xf32>
    %1345 = arith.mulf %1344, %1330 : vector<2x13x13xf32>
    %1346 = arith.addf %1311, %1345 : vector<2x13x13xf32>
    %c144 = arith.constant 144 : index
    %1347 = memref.load %arg5[%c144] : memref<256xf32, #tpu.memory_space<smem>>
    %1348 = vector.broadcast %1347 : f32 to vector<2x13x13xf32>
    %1349 = arith.mulf %1348, %1330 : vector<2x13x13xf32>
    %1350 = arith.addf %1315, %1349 : vector<2x13x13xf32>
    %c176 = arith.constant 176 : index
    %1351 = memref.load %arg5[%c176] : memref<256xf32, #tpu.memory_space<smem>>
    %1352 = vector.broadcast %1351 : f32 to vector<2x13x13xf32>
    %1353 = arith.mulf %1352, %1330 : vector<2x13x13xf32>
    %1354 = arith.addf %1319, %1353 : vector<2x13x13xf32>
    %c208 = arith.constant 208 : index
    %1355 = memref.load %arg5[%c208] : memref<256xf32, #tpu.memory_space<smem>>
    %1356 = vector.broadcast %1355 : f32 to vector<2x13x13xf32>
    %1357 = arith.mulf %1356, %1330 : vector<2x13x13xf32>
    %1358 = arith.addf %1323, %1357 : vector<2x13x13xf32>
    %c240 = arith.constant 240 : index
    %1359 = memref.load %arg5[%c240] : memref<256xf32, #tpu.memory_space<smem>>
    %1360 = vector.broadcast %1359 : f32 to vector<2x13x13xf32>
    %1361 = arith.mulf %1360, %1330 : vector<2x13x13xf32>
    %1362 = arith.addf %1327, %1361 : vector<2x13x13xf32>
    %1363 = vector.extract_strided_slice %1329 {offsets = [0, 0, 1], sizes = [2, 13, 13], strides = [1, 1, 1]} : vector<2x14x14xf32> to vector<2x13x13xf32>
    %c17_235 = arith.constant 17 : index
    %1364 = memref.load %arg5[%c17_235] : memref<256xf32, #tpu.memory_space<smem>>
    %1365 = vector.broadcast %1364 : f32 to vector<2x13x13xf32>
    %1366 = arith.mulf %1365, %1363 : vector<2x13x13xf32>
    %1367 = arith.addf %1334, %1366 : vector<2x13x13xf32>
    %c49_236 = arith.constant 49 : index
    %1368 = memref.load %arg5[%c49_236] : memref<256xf32, #tpu.memory_space<smem>>
    %1369 = vector.broadcast %1368 : f32 to vector<2x13x13xf32>
    %1370 = arith.mulf %1369, %1363 : vector<2x13x13xf32>
    %1371 = arith.addf %1338, %1370 : vector<2x13x13xf32>
    %c81_237 = arith.constant 81 : index
    %1372 = memref.load %arg5[%c81_237] : memref<256xf32, #tpu.memory_space<smem>>
    %1373 = vector.broadcast %1372 : f32 to vector<2x13x13xf32>
    %1374 = arith.mulf %1373, %1363 : vector<2x13x13xf32>
    %1375 = arith.addf %1342, %1374 : vector<2x13x13xf32>
    %c113_238 = arith.constant 113 : index
    %1376 = memref.load %arg5[%c113_238] : memref<256xf32, #tpu.memory_space<smem>>
    %1377 = vector.broadcast %1376 : f32 to vector<2x13x13xf32>
    %1378 = arith.mulf %1377, %1363 : vector<2x13x13xf32>
    %1379 = arith.addf %1346, %1378 : vector<2x13x13xf32>
    %c145 = arith.constant 145 : index
    %1380 = memref.load %arg5[%c145] : memref<256xf32, #tpu.memory_space<smem>>
    %1381 = vector.broadcast %1380 : f32 to vector<2x13x13xf32>
    %1382 = arith.mulf %1381, %1363 : vector<2x13x13xf32>
    %1383 = arith.addf %1350, %1382 : vector<2x13x13xf32>
    %c177 = arith.constant 177 : index
    %1384 = memref.load %arg5[%c177] : memref<256xf32, #tpu.memory_space<smem>>
    %1385 = vector.broadcast %1384 : f32 to vector<2x13x13xf32>
    %1386 = arith.mulf %1385, %1363 : vector<2x13x13xf32>
    %1387 = arith.addf %1354, %1386 : vector<2x13x13xf32>
    %c209 = arith.constant 209 : index
    %1388 = memref.load %arg5[%c209] : memref<256xf32, #tpu.memory_space<smem>>
    %1389 = vector.broadcast %1388 : f32 to vector<2x13x13xf32>
    %1390 = arith.mulf %1389, %1363 : vector<2x13x13xf32>
    %1391 = arith.addf %1358, %1390 : vector<2x13x13xf32>
    %c241 = arith.constant 241 : index
    %1392 = memref.load %arg5[%c241] : memref<256xf32, #tpu.memory_space<smem>>
    %1393 = vector.broadcast %1392 : f32 to vector<2x13x13xf32>
    %1394 = arith.mulf %1393, %1363 : vector<2x13x13xf32>
    %1395 = arith.addf %1362, %1394 : vector<2x13x13xf32>
    %1396 = vector.extract_strided_slice %1329 {offsets = [0, 1, 0], sizes = [2, 13, 13], strides = [1, 1, 1]} : vector<2x14x14xf32> to vector<2x13x13xf32>
    %c18_239 = arith.constant 18 : index
    %1397 = memref.load %arg5[%c18_239] : memref<256xf32, #tpu.memory_space<smem>>
    %1398 = vector.broadcast %1397 : f32 to vector<2x13x13xf32>
    %1399 = arith.mulf %1398, %1396 : vector<2x13x13xf32>
    %1400 = arith.addf %1367, %1399 : vector<2x13x13xf32>
    %c50_240 = arith.constant 50 : index
    %1401 = memref.load %arg5[%c50_240] : memref<256xf32, #tpu.memory_space<smem>>
    %1402 = vector.broadcast %1401 : f32 to vector<2x13x13xf32>
    %1403 = arith.mulf %1402, %1396 : vector<2x13x13xf32>
    %1404 = arith.addf %1371, %1403 : vector<2x13x13xf32>
    %c82_241 = arith.constant 82 : index
    %1405 = memref.load %arg5[%c82_241] : memref<256xf32, #tpu.memory_space<smem>>
    %1406 = vector.broadcast %1405 : f32 to vector<2x13x13xf32>
    %1407 = arith.mulf %1406, %1396 : vector<2x13x13xf32>
    %1408 = arith.addf %1375, %1407 : vector<2x13x13xf32>
    %c114_242 = arith.constant 114 : index
    %1409 = memref.load %arg5[%c114_242] : memref<256xf32, #tpu.memory_space<smem>>
    %1410 = vector.broadcast %1409 : f32 to vector<2x13x13xf32>
    %1411 = arith.mulf %1410, %1396 : vector<2x13x13xf32>
    %1412 = arith.addf %1379, %1411 : vector<2x13x13xf32>
    %c146 = arith.constant 146 : index
    %1413 = memref.load %arg5[%c146] : memref<256xf32, #tpu.memory_space<smem>>
    %1414 = vector.broadcast %1413 : f32 to vector<2x13x13xf32>
    %1415 = arith.mulf %1414, %1396 : vector<2x13x13xf32>
    %1416 = arith.addf %1383, %1415 : vector<2x13x13xf32>
    %c178 = arith.constant 178 : index
    %1417 = memref.load %arg5[%c178] : memref<256xf32, #tpu.memory_space<smem>>
    %1418 = vector.broadcast %1417 : f32 to vector<2x13x13xf32>
    %1419 = arith.mulf %1418, %1396 : vector<2x13x13xf32>
    %1420 = arith.addf %1387, %1419 : vector<2x13x13xf32>
    %c210 = arith.constant 210 : index
    %1421 = memref.load %arg5[%c210] : memref<256xf32, #tpu.memory_space<smem>>
    %1422 = vector.broadcast %1421 : f32 to vector<2x13x13xf32>
    %1423 = arith.mulf %1422, %1396 : vector<2x13x13xf32>
    %1424 = arith.addf %1391, %1423 : vector<2x13x13xf32>
    %c242 = arith.constant 242 : index
    %1425 = memref.load %arg5[%c242] : memref<256xf32, #tpu.memory_space<smem>>
    %1426 = vector.broadcast %1425 : f32 to vector<2x13x13xf32>
    %1427 = arith.mulf %1426, %1396 : vector<2x13x13xf32>
    %1428 = arith.addf %1395, %1427 : vector<2x13x13xf32>
    %1429 = vector.extract_strided_slice %1329 {offsets = [0, 1, 1], sizes = [2, 13, 13], strides = [1, 1, 1]} : vector<2x14x14xf32> to vector<2x13x13xf32>
    %c19_243 = arith.constant 19 : index
    %1430 = memref.load %arg5[%c19_243] : memref<256xf32, #tpu.memory_space<smem>>
    %1431 = vector.broadcast %1430 : f32 to vector<2x13x13xf32>
    %1432 = arith.mulf %1431, %1429 : vector<2x13x13xf32>
    %1433 = arith.addf %1400, %1432 : vector<2x13x13xf32>
    %c51_244 = arith.constant 51 : index
    %1434 = memref.load %arg5[%c51_244] : memref<256xf32, #tpu.memory_space<smem>>
    %1435 = vector.broadcast %1434 : f32 to vector<2x13x13xf32>
    %1436 = arith.mulf %1435, %1429 : vector<2x13x13xf32>
    %1437 = arith.addf %1404, %1436 : vector<2x13x13xf32>
    %c83_245 = arith.constant 83 : index
    %1438 = memref.load %arg5[%c83_245] : memref<256xf32, #tpu.memory_space<smem>>
    %1439 = vector.broadcast %1438 : f32 to vector<2x13x13xf32>
    %1440 = arith.mulf %1439, %1429 : vector<2x13x13xf32>
    %1441 = arith.addf %1408, %1440 : vector<2x13x13xf32>
    %c115_246 = arith.constant 115 : index
    %1442 = memref.load %arg5[%c115_246] : memref<256xf32, #tpu.memory_space<smem>>
    %1443 = vector.broadcast %1442 : f32 to vector<2x13x13xf32>
    %1444 = arith.mulf %1443, %1429 : vector<2x13x13xf32>
    %1445 = arith.addf %1412, %1444 : vector<2x13x13xf32>
    %c147 = arith.constant 147 : index
    %1446 = memref.load %arg5[%c147] : memref<256xf32, #tpu.memory_space<smem>>
    %1447 = vector.broadcast %1446 : f32 to vector<2x13x13xf32>
    %1448 = arith.mulf %1447, %1429 : vector<2x13x13xf32>
    %1449 = arith.addf %1416, %1448 : vector<2x13x13xf32>
    %c179 = arith.constant 179 : index
    %1450 = memref.load %arg5[%c179] : memref<256xf32, #tpu.memory_space<smem>>
    %1451 = vector.broadcast %1450 : f32 to vector<2x13x13xf32>
    %1452 = arith.mulf %1451, %1429 : vector<2x13x13xf32>
    %1453 = arith.addf %1420, %1452 : vector<2x13x13xf32>
    %c211 = arith.constant 211 : index
    %1454 = memref.load %arg5[%c211] : memref<256xf32, #tpu.memory_space<smem>>
    %1455 = vector.broadcast %1454 : f32 to vector<2x13x13xf32>
    %1456 = arith.mulf %1455, %1429 : vector<2x13x13xf32>
    %1457 = arith.addf %1424, %1456 : vector<2x13x13xf32>
    %c243 = arith.constant 243 : index
    %1458 = memref.load %arg5[%c243] : memref<256xf32, #tpu.memory_space<smem>>
    %1459 = vector.broadcast %1458 : f32 to vector<2x13x13xf32>
    %1460 = arith.mulf %1459, %1429 : vector<2x13x13xf32>
    %1461 = arith.addf %1428, %1460 : vector<2x13x13xf32>
    %c0_247 = arith.constant 0 : index
    %c5_248 = arith.constant 5 : index
    %c0_249 = arith.constant 0 : index
    %c0_250 = arith.constant 0 : index
    %1462 = vector.load %arg9[%c0_247, %c5_248, %c0_249, %c0_250] : memref<2x8x14x14xf32, #tpu.memory_space<vmem>>, vector<2x1x14x14xf32>
    %1463 = vector.shape_cast %1462 : vector<2x1x14x14xf32> to vector<2x14x14xf32>
    %1464 = vector.extract_strided_slice %1463 {offsets = [0, 0, 0], sizes = [2, 13, 13], strides = [1, 1, 1]} : vector<2x14x14xf32> to vector<2x13x13xf32>
    %c20_251 = arith.constant 20 : index
    %1465 = memref.load %arg5[%c20_251] : memref<256xf32, #tpu.memory_space<smem>>
    %1466 = vector.broadcast %1465 : f32 to vector<2x13x13xf32>
    %1467 = arith.mulf %1466, %1464 : vector<2x13x13xf32>
    %1468 = arith.addf %1433, %1467 : vector<2x13x13xf32>
    %c52_252 = arith.constant 52 : index
    %1469 = memref.load %arg5[%c52_252] : memref<256xf32, #tpu.memory_space<smem>>
    %1470 = vector.broadcast %1469 : f32 to vector<2x13x13xf32>
    %1471 = arith.mulf %1470, %1464 : vector<2x13x13xf32>
    %1472 = arith.addf %1437, %1471 : vector<2x13x13xf32>
    %c84_253 = arith.constant 84 : index
    %1473 = memref.load %arg5[%c84_253] : memref<256xf32, #tpu.memory_space<smem>>
    %1474 = vector.broadcast %1473 : f32 to vector<2x13x13xf32>
    %1475 = arith.mulf %1474, %1464 : vector<2x13x13xf32>
    %1476 = arith.addf %1441, %1475 : vector<2x13x13xf32>
    %c116_254 = arith.constant 116 : index
    %1477 = memref.load %arg5[%c116_254] : memref<256xf32, #tpu.memory_space<smem>>
    %1478 = vector.broadcast %1477 : f32 to vector<2x13x13xf32>
    %1479 = arith.mulf %1478, %1464 : vector<2x13x13xf32>
    %1480 = arith.addf %1445, %1479 : vector<2x13x13xf32>
    %c148 = arith.constant 148 : index
    %1481 = memref.load %arg5[%c148] : memref<256xf32, #tpu.memory_space<smem>>
    %1482 = vector.broadcast %1481 : f32 to vector<2x13x13xf32>
    %1483 = arith.mulf %1482, %1464 : vector<2x13x13xf32>
    %1484 = arith.addf %1449, %1483 : vector<2x13x13xf32>
    %c180 = arith.constant 180 : index
    %1485 = memref.load %arg5[%c180] : memref<256xf32, #tpu.memory_space<smem>>
    %1486 = vector.broadcast %1485 : f32 to vector<2x13x13xf32>
    %1487 = arith.mulf %1486, %1464 : vector<2x13x13xf32>
    %1488 = arith.addf %1453, %1487 : vector<2x13x13xf32>
    %c212 = arith.constant 212 : index
    %1489 = memref.load %arg5[%c212] : memref<256xf32, #tpu.memory_space<smem>>
    %1490 = vector.broadcast %1489 : f32 to vector<2x13x13xf32>
    %1491 = arith.mulf %1490, %1464 : vector<2x13x13xf32>
    %1492 = arith.addf %1457, %1491 : vector<2x13x13xf32>
    %c244 = arith.constant 244 : index
    %1493 = memref.load %arg5[%c244] : memref<256xf32, #tpu.memory_space<smem>>
    %1494 = vector.broadcast %1493 : f32 to vector<2x13x13xf32>
    %1495 = arith.mulf %1494, %1464 : vector<2x13x13xf32>
    %1496 = arith.addf %1461, %1495 : vector<2x13x13xf32>
    %1497 = vector.extract_strided_slice %1463 {offsets = [0, 0, 1], sizes = [2, 13, 13], strides = [1, 1, 1]} : vector<2x14x14xf32> to vector<2x13x13xf32>
    %c21_255 = arith.constant 21 : index
    %1498 = memref.load %arg5[%c21_255] : memref<256xf32, #tpu.memory_space<smem>>
    %1499 = vector.broadcast %1498 : f32 to vector<2x13x13xf32>
    %1500 = arith.mulf %1499, %1497 : vector<2x13x13xf32>
    %1501 = arith.addf %1468, %1500 : vector<2x13x13xf32>
    %c53_256 = arith.constant 53 : index
    %1502 = memref.load %arg5[%c53_256] : memref<256xf32, #tpu.memory_space<smem>>
    %1503 = vector.broadcast %1502 : f32 to vector<2x13x13xf32>
    %1504 = arith.mulf %1503, %1497 : vector<2x13x13xf32>
    %1505 = arith.addf %1472, %1504 : vector<2x13x13xf32>
    %c85_257 = arith.constant 85 : index
    %1506 = memref.load %arg5[%c85_257] : memref<256xf32, #tpu.memory_space<smem>>
    %1507 = vector.broadcast %1506 : f32 to vector<2x13x13xf32>
    %1508 = arith.mulf %1507, %1497 : vector<2x13x13xf32>
    %1509 = arith.addf %1476, %1508 : vector<2x13x13xf32>
    %c117_258 = arith.constant 117 : index
    %1510 = memref.load %arg5[%c117_258] : memref<256xf32, #tpu.memory_space<smem>>
    %1511 = vector.broadcast %1510 : f32 to vector<2x13x13xf32>
    %1512 = arith.mulf %1511, %1497 : vector<2x13x13xf32>
    %1513 = arith.addf %1480, %1512 : vector<2x13x13xf32>
    %c149 = arith.constant 149 : index
    %1514 = memref.load %arg5[%c149] : memref<256xf32, #tpu.memory_space<smem>>
    %1515 = vector.broadcast %1514 : f32 to vector<2x13x13xf32>
    %1516 = arith.mulf %1515, %1497 : vector<2x13x13xf32>
    %1517 = arith.addf %1484, %1516 : vector<2x13x13xf32>
    %c181 = arith.constant 181 : index
    %1518 = memref.load %arg5[%c181] : memref<256xf32, #tpu.memory_space<smem>>
    %1519 = vector.broadcast %1518 : f32 to vector<2x13x13xf32>
    %1520 = arith.mulf %1519, %1497 : vector<2x13x13xf32>
    %1521 = arith.addf %1488, %1520 : vector<2x13x13xf32>
    %c213 = arith.constant 213 : index
    %1522 = memref.load %arg5[%c213] : memref<256xf32, #tpu.memory_space<smem>>
    %1523 = vector.broadcast %1522 : f32 to vector<2x13x13xf32>
    %1524 = arith.mulf %1523, %1497 : vector<2x13x13xf32>
    %1525 = arith.addf %1492, %1524 : vector<2x13x13xf32>
    %c245 = arith.constant 245 : index
    %1526 = memref.load %arg5[%c245] : memref<256xf32, #tpu.memory_space<smem>>
    %1527 = vector.broadcast %1526 : f32 to vector<2x13x13xf32>
    %1528 = arith.mulf %1527, %1497 : vector<2x13x13xf32>
    %1529 = arith.addf %1496, %1528 : vector<2x13x13xf32>
    %1530 = vector.extract_strided_slice %1463 {offsets = [0, 1, 0], sizes = [2, 13, 13], strides = [1, 1, 1]} : vector<2x14x14xf32> to vector<2x13x13xf32>
    %c22_259 = arith.constant 22 : index
    %1531 = memref.load %arg5[%c22_259] : memref<256xf32, #tpu.memory_space<smem>>
    %1532 = vector.broadcast %1531 : f32 to vector<2x13x13xf32>
    %1533 = arith.mulf %1532, %1530 : vector<2x13x13xf32>
    %1534 = arith.addf %1501, %1533 : vector<2x13x13xf32>
    %c54_260 = arith.constant 54 : index
    %1535 = memref.load %arg5[%c54_260] : memref<256xf32, #tpu.memory_space<smem>>
    %1536 = vector.broadcast %1535 : f32 to vector<2x13x13xf32>
    %1537 = arith.mulf %1536, %1530 : vector<2x13x13xf32>
    %1538 = arith.addf %1505, %1537 : vector<2x13x13xf32>
    %c86_261 = arith.constant 86 : index
    %1539 = memref.load %arg5[%c86_261] : memref<256xf32, #tpu.memory_space<smem>>
    %1540 = vector.broadcast %1539 : f32 to vector<2x13x13xf32>
    %1541 = arith.mulf %1540, %1530 : vector<2x13x13xf32>
    %1542 = arith.addf %1509, %1541 : vector<2x13x13xf32>
    %c118_262 = arith.constant 118 : index
    %1543 = memref.load %arg5[%c118_262] : memref<256xf32, #tpu.memory_space<smem>>
    %1544 = vector.broadcast %1543 : f32 to vector<2x13x13xf32>
    %1545 = arith.mulf %1544, %1530 : vector<2x13x13xf32>
    %1546 = arith.addf %1513, %1545 : vector<2x13x13xf32>
    %c150 = arith.constant 150 : index
    %1547 = memref.load %arg5[%c150] : memref<256xf32, #tpu.memory_space<smem>>
    %1548 = vector.broadcast %1547 : f32 to vector<2x13x13xf32>
    %1549 = arith.mulf %1548, %1530 : vector<2x13x13xf32>
    %1550 = arith.addf %1517, %1549 : vector<2x13x13xf32>
    %c182 = arith.constant 182 : index
    %1551 = memref.load %arg5[%c182] : memref<256xf32, #tpu.memory_space<smem>>
    %1552 = vector.broadcast %1551 : f32 to vector<2x13x13xf32>
    %1553 = arith.mulf %1552, %1530 : vector<2x13x13xf32>
    %1554 = arith.addf %1521, %1553 : vector<2x13x13xf32>
    %c214 = arith.constant 214 : index
    %1555 = memref.load %arg5[%c214] : memref<256xf32, #tpu.memory_space<smem>>
    %1556 = vector.broadcast %1555 : f32 to vector<2x13x13xf32>
    %1557 = arith.mulf %1556, %1530 : vector<2x13x13xf32>
    %1558 = arith.addf %1525, %1557 : vector<2x13x13xf32>
    %c246 = arith.constant 246 : index
    %1559 = memref.load %arg5[%c246] : memref<256xf32, #tpu.memory_space<smem>>
    %1560 = vector.broadcast %1559 : f32 to vector<2x13x13xf32>
    %1561 = arith.mulf %1560, %1530 : vector<2x13x13xf32>
    %1562 = arith.addf %1529, %1561 : vector<2x13x13xf32>
    %1563 = vector.extract_strided_slice %1463 {offsets = [0, 1, 1], sizes = [2, 13, 13], strides = [1, 1, 1]} : vector<2x14x14xf32> to vector<2x13x13xf32>
    %c23_263 = arith.constant 23 : index
    %1564 = memref.load %arg5[%c23_263] : memref<256xf32, #tpu.memory_space<smem>>
    %1565 = vector.broadcast %1564 : f32 to vector<2x13x13xf32>
    %1566 = arith.mulf %1565, %1563 : vector<2x13x13xf32>
    %1567 = arith.addf %1534, %1566 : vector<2x13x13xf32>
    %c55_264 = arith.constant 55 : index
    %1568 = memref.load %arg5[%c55_264] : memref<256xf32, #tpu.memory_space<smem>>
    %1569 = vector.broadcast %1568 : f32 to vector<2x13x13xf32>
    %1570 = arith.mulf %1569, %1563 : vector<2x13x13xf32>
    %1571 = arith.addf %1538, %1570 : vector<2x13x13xf32>
    %c87_265 = arith.constant 87 : index
    %1572 = memref.load %arg5[%c87_265] : memref<256xf32, #tpu.memory_space<smem>>
    %1573 = vector.broadcast %1572 : f32 to vector<2x13x13xf32>
    %1574 = arith.mulf %1573, %1563 : vector<2x13x13xf32>
    %1575 = arith.addf %1542, %1574 : vector<2x13x13xf32>
    %c119_266 = arith.constant 119 : index
    %1576 = memref.load %arg5[%c119_266] : memref<256xf32, #tpu.memory_space<smem>>
    %1577 = vector.broadcast %1576 : f32 to vector<2x13x13xf32>
    %1578 = arith.mulf %1577, %1563 : vector<2x13x13xf32>
    %1579 = arith.addf %1546, %1578 : vector<2x13x13xf32>
    %c151 = arith.constant 151 : index
    %1580 = memref.load %arg5[%c151] : memref<256xf32, #tpu.memory_space<smem>>
    %1581 = vector.broadcast %1580 : f32 to vector<2x13x13xf32>
    %1582 = arith.mulf %1581, %1563 : vector<2x13x13xf32>
    %1583 = arith.addf %1550, %1582 : vector<2x13x13xf32>
    %c183 = arith.constant 183 : index
    %1584 = memref.load %arg5[%c183] : memref<256xf32, #tpu.memory_space<smem>>
    %1585 = vector.broadcast %1584 : f32 to vector<2x13x13xf32>
    %1586 = arith.mulf %1585, %1563 : vector<2x13x13xf32>
    %1587 = arith.addf %1554, %1586 : vector<2x13x13xf32>
    %c215 = arith.constant 215 : index
    %1588 = memref.load %arg5[%c215] : memref<256xf32, #tpu.memory_space<smem>>
    %1589 = vector.broadcast %1588 : f32 to vector<2x13x13xf32>
    %1590 = arith.mulf %1589, %1563 : vector<2x13x13xf32>
    %1591 = arith.addf %1558, %1590 : vector<2x13x13xf32>
    %c247 = arith.constant 247 : index
    %1592 = memref.load %arg5[%c247] : memref<256xf32, #tpu.memory_space<smem>>
    %1593 = vector.broadcast %1592 : f32 to vector<2x13x13xf32>
    %1594 = arith.mulf %1593, %1563 : vector<2x13x13xf32>
    %1595 = arith.addf %1562, %1594 : vector<2x13x13xf32>
    %c0_267 = arith.constant 0 : index
    %c6_268 = arith.constant 6 : index
    %c0_269 = arith.constant 0 : index
    %c0_270 = arith.constant 0 : index
    %1596 = vector.load %arg9[%c0_267, %c6_268, %c0_269, %c0_270] : memref<2x8x14x14xf32, #tpu.memory_space<vmem>>, vector<2x1x14x14xf32>
    %1597 = vector.shape_cast %1596 : vector<2x1x14x14xf32> to vector<2x14x14xf32>
    %1598 = vector.extract_strided_slice %1597 {offsets = [0, 0, 0], sizes = [2, 13, 13], strides = [1, 1, 1]} : vector<2x14x14xf32> to vector<2x13x13xf32>
    %c24_271 = arith.constant 24 : index
    %1599 = memref.load %arg5[%c24_271] : memref<256xf32, #tpu.memory_space<smem>>
    %1600 = vector.broadcast %1599 : f32 to vector<2x13x13xf32>
    %1601 = arith.mulf %1600, %1598 : vector<2x13x13xf32>
    %1602 = arith.addf %1567, %1601 : vector<2x13x13xf32>
    %c56_272 = arith.constant 56 : index
    %1603 = memref.load %arg5[%c56_272] : memref<256xf32, #tpu.memory_space<smem>>
    %1604 = vector.broadcast %1603 : f32 to vector<2x13x13xf32>
    %1605 = arith.mulf %1604, %1598 : vector<2x13x13xf32>
    %1606 = arith.addf %1571, %1605 : vector<2x13x13xf32>
    %c88_273 = arith.constant 88 : index
    %1607 = memref.load %arg5[%c88_273] : memref<256xf32, #tpu.memory_space<smem>>
    %1608 = vector.broadcast %1607 : f32 to vector<2x13x13xf32>
    %1609 = arith.mulf %1608, %1598 : vector<2x13x13xf32>
    %1610 = arith.addf %1575, %1609 : vector<2x13x13xf32>
    %c120_274 = arith.constant 120 : index
    %1611 = memref.load %arg5[%c120_274] : memref<256xf32, #tpu.memory_space<smem>>
    %1612 = vector.broadcast %1611 : f32 to vector<2x13x13xf32>
    %1613 = arith.mulf %1612, %1598 : vector<2x13x13xf32>
    %1614 = arith.addf %1579, %1613 : vector<2x13x13xf32>
    %c152 = arith.constant 152 : index
    %1615 = memref.load %arg5[%c152] : memref<256xf32, #tpu.memory_space<smem>>
    %1616 = vector.broadcast %1615 : f32 to vector<2x13x13xf32>
    %1617 = arith.mulf %1616, %1598 : vector<2x13x13xf32>
    %1618 = arith.addf %1583, %1617 : vector<2x13x13xf32>
    %c184 = arith.constant 184 : index
    %1619 = memref.load %arg5[%c184] : memref<256xf32, #tpu.memory_space<smem>>
    %1620 = vector.broadcast %1619 : f32 to vector<2x13x13xf32>
    %1621 = arith.mulf %1620, %1598 : vector<2x13x13xf32>
    %1622 = arith.addf %1587, %1621 : vector<2x13x13xf32>
    %c216 = arith.constant 216 : index
    %1623 = memref.load %arg5[%c216] : memref<256xf32, #tpu.memory_space<smem>>
    %1624 = vector.broadcast %1623 : f32 to vector<2x13x13xf32>
    %1625 = arith.mulf %1624, %1598 : vector<2x13x13xf32>
    %1626 = arith.addf %1591, %1625 : vector<2x13x13xf32>
    %c248 = arith.constant 248 : index
    %1627 = memref.load %arg5[%c248] : memref<256xf32, #tpu.memory_space<smem>>
    %1628 = vector.broadcast %1627 : f32 to vector<2x13x13xf32>
    %1629 = arith.mulf %1628, %1598 : vector<2x13x13xf32>
    %1630 = arith.addf %1595, %1629 : vector<2x13x13xf32>
    %1631 = vector.extract_strided_slice %1597 {offsets = [0, 0, 1], sizes = [2, 13, 13], strides = [1, 1, 1]} : vector<2x14x14xf32> to vector<2x13x13xf32>
    %c25_275 = arith.constant 25 : index
    %1632 = memref.load %arg5[%c25_275] : memref<256xf32, #tpu.memory_space<smem>>
    %1633 = vector.broadcast %1632 : f32 to vector<2x13x13xf32>
    %1634 = arith.mulf %1633, %1631 : vector<2x13x13xf32>
    %1635 = arith.addf %1602, %1634 : vector<2x13x13xf32>
    %c57_276 = arith.constant 57 : index
    %1636 = memref.load %arg5[%c57_276] : memref<256xf32, #tpu.memory_space<smem>>
    %1637 = vector.broadcast %1636 : f32 to vector<2x13x13xf32>
    %1638 = arith.mulf %1637, %1631 : vector<2x13x13xf32>
    %1639 = arith.addf %1606, %1638 : vector<2x13x13xf32>
    %c89_277 = arith.constant 89 : index
    %1640 = memref.load %arg5[%c89_277] : memref<256xf32, #tpu.memory_space<smem>>
    %1641 = vector.broadcast %1640 : f32 to vector<2x13x13xf32>
    %1642 = arith.mulf %1641, %1631 : vector<2x13x13xf32>
    %1643 = arith.addf %1610, %1642 : vector<2x13x13xf32>
    %c121_278 = arith.constant 121 : index
    %1644 = memref.load %arg5[%c121_278] : memref<256xf32, #tpu.memory_space<smem>>
    %1645 = vector.broadcast %1644 : f32 to vector<2x13x13xf32>
    %1646 = arith.mulf %1645, %1631 : vector<2x13x13xf32>
    %1647 = arith.addf %1614, %1646 : vector<2x13x13xf32>
    %c153 = arith.constant 153 : index
    %1648 = memref.load %arg5[%c153] : memref<256xf32, #tpu.memory_space<smem>>
    %1649 = vector.broadcast %1648 : f32 to vector<2x13x13xf32>
    %1650 = arith.mulf %1649, %1631 : vector<2x13x13xf32>
    %1651 = arith.addf %1618, %1650 : vector<2x13x13xf32>
    %c185 = arith.constant 185 : index
    %1652 = memref.load %arg5[%c185] : memref<256xf32, #tpu.memory_space<smem>>
    %1653 = vector.broadcast %1652 : f32 to vector<2x13x13xf32>
    %1654 = arith.mulf %1653, %1631 : vector<2x13x13xf32>
    %1655 = arith.addf %1622, %1654 : vector<2x13x13xf32>
    %c217 = arith.constant 217 : index
    %1656 = memref.load %arg5[%c217] : memref<256xf32, #tpu.memory_space<smem>>
    %1657 = vector.broadcast %1656 : f32 to vector<2x13x13xf32>
    %1658 = arith.mulf %1657, %1631 : vector<2x13x13xf32>
    %1659 = arith.addf %1626, %1658 : vector<2x13x13xf32>
    %c249 = arith.constant 249 : index
    %1660 = memref.load %arg5[%c249] : memref<256xf32, #tpu.memory_space<smem>>
    %1661 = vector.broadcast %1660 : f32 to vector<2x13x13xf32>
    %1662 = arith.mulf %1661, %1631 : vector<2x13x13xf32>
    %1663 = arith.addf %1630, %1662 : vector<2x13x13xf32>
    %1664 = vector.extract_strided_slice %1597 {offsets = [0, 1, 0], sizes = [2, 13, 13], strides = [1, 1, 1]} : vector<2x14x14xf32> to vector<2x13x13xf32>
    %c26_279 = arith.constant 26 : index
    %1665 = memref.load %arg5[%c26_279] : memref<256xf32, #tpu.memory_space<smem>>
    %1666 = vector.broadcast %1665 : f32 to vector<2x13x13xf32>
    %1667 = arith.mulf %1666, %1664 : vector<2x13x13xf32>
    %1668 = arith.addf %1635, %1667 : vector<2x13x13xf32>
    %c58_280 = arith.constant 58 : index
    %1669 = memref.load %arg5[%c58_280] : memref<256xf32, #tpu.memory_space<smem>>
    %1670 = vector.broadcast %1669 : f32 to vector<2x13x13xf32>
    %1671 = arith.mulf %1670, %1664 : vector<2x13x13xf32>
    %1672 = arith.addf %1639, %1671 : vector<2x13x13xf32>
    %c90_281 = arith.constant 90 : index
    %1673 = memref.load %arg5[%c90_281] : memref<256xf32, #tpu.memory_space<smem>>
    %1674 = vector.broadcast %1673 : f32 to vector<2x13x13xf32>
    %1675 = arith.mulf %1674, %1664 : vector<2x13x13xf32>
    %1676 = arith.addf %1643, %1675 : vector<2x13x13xf32>
    %c122_282 = arith.constant 122 : index
    %1677 = memref.load %arg5[%c122_282] : memref<256xf32, #tpu.memory_space<smem>>
    %1678 = vector.broadcast %1677 : f32 to vector<2x13x13xf32>
    %1679 = arith.mulf %1678, %1664 : vector<2x13x13xf32>
    %1680 = arith.addf %1647, %1679 : vector<2x13x13xf32>
    %c154 = arith.constant 154 : index
    %1681 = memref.load %arg5[%c154] : memref<256xf32, #tpu.memory_space<smem>>
    %1682 = vector.broadcast %1681 : f32 to vector<2x13x13xf32>
    %1683 = arith.mulf %1682, %1664 : vector<2x13x13xf32>
    %1684 = arith.addf %1651, %1683 : vector<2x13x13xf32>
    %c186 = arith.constant 186 : index
    %1685 = memref.load %arg5[%c186] : memref<256xf32, #tpu.memory_space<smem>>
    %1686 = vector.broadcast %1685 : f32 to vector<2x13x13xf32>
    %1687 = arith.mulf %1686, %1664 : vector<2x13x13xf32>
    %1688 = arith.addf %1655, %1687 : vector<2x13x13xf32>
    %c218 = arith.constant 218 : index
    %1689 = memref.load %arg5[%c218] : memref<256xf32, #tpu.memory_space<smem>>
    %1690 = vector.broadcast %1689 : f32 to vector<2x13x13xf32>
    %1691 = arith.mulf %1690, %1664 : vector<2x13x13xf32>
    %1692 = arith.addf %1659, %1691 : vector<2x13x13xf32>
    %c250 = arith.constant 250 : index
    %1693 = memref.load %arg5[%c250] : memref<256xf32, #tpu.memory_space<smem>>
    %1694 = vector.broadcast %1693 : f32 to vector<2x13x13xf32>
    %1695 = arith.mulf %1694, %1664 : vector<2x13x13xf32>
    %1696 = arith.addf %1663, %1695 : vector<2x13x13xf32>
    %1697 = vector.extract_strided_slice %1597 {offsets = [0, 1, 1], sizes = [2, 13, 13], strides = [1, 1, 1]} : vector<2x14x14xf32> to vector<2x13x13xf32>
    %c27_283 = arith.constant 27 : index
    %1698 = memref.load %arg5[%c27_283] : memref<256xf32, #tpu.memory_space<smem>>
    %1699 = vector.broadcast %1698 : f32 to vector<2x13x13xf32>
    %1700 = arith.mulf %1699, %1697 : vector<2x13x13xf32>
    %1701 = arith.addf %1668, %1700 : vector<2x13x13xf32>
    %c59_284 = arith.constant 59 : index
    %1702 = memref.load %arg5[%c59_284] : memref<256xf32, #tpu.memory_space<smem>>
    %1703 = vector.broadcast %1702 : f32 to vector<2x13x13xf32>
    %1704 = arith.mulf %1703, %1697 : vector<2x13x13xf32>
    %1705 = arith.addf %1672, %1704 : vector<2x13x13xf32>
    %c91_285 = arith.constant 91 : index
    %1706 = memref.load %arg5[%c91_285] : memref<256xf32, #tpu.memory_space<smem>>
    %1707 = vector.broadcast %1706 : f32 to vector<2x13x13xf32>
    %1708 = arith.mulf %1707, %1697 : vector<2x13x13xf32>
    %1709 = arith.addf %1676, %1708 : vector<2x13x13xf32>
    %c123_286 = arith.constant 123 : index
    %1710 = memref.load %arg5[%c123_286] : memref<256xf32, #tpu.memory_space<smem>>
    %1711 = vector.broadcast %1710 : f32 to vector<2x13x13xf32>
    %1712 = arith.mulf %1711, %1697 : vector<2x13x13xf32>
    %1713 = arith.addf %1680, %1712 : vector<2x13x13xf32>
    %c155 = arith.constant 155 : index
    %1714 = memref.load %arg5[%c155] : memref<256xf32, #tpu.memory_space<smem>>
    %1715 = vector.broadcast %1714 : f32 to vector<2x13x13xf32>
    %1716 = arith.mulf %1715, %1697 : vector<2x13x13xf32>
    %1717 = arith.addf %1684, %1716 : vector<2x13x13xf32>
    %c187 = arith.constant 187 : index
    %1718 = memref.load %arg5[%c187] : memref<256xf32, #tpu.memory_space<smem>>
    %1719 = vector.broadcast %1718 : f32 to vector<2x13x13xf32>
    %1720 = arith.mulf %1719, %1697 : vector<2x13x13xf32>
    %1721 = arith.addf %1688, %1720 : vector<2x13x13xf32>
    %c219 = arith.constant 219 : index
    %1722 = memref.load %arg5[%c219] : memref<256xf32, #tpu.memory_space<smem>>
    %1723 = vector.broadcast %1722 : f32 to vector<2x13x13xf32>
    %1724 = arith.mulf %1723, %1697 : vector<2x13x13xf32>
    %1725 = arith.addf %1692, %1724 : vector<2x13x13xf32>
    %c251 = arith.constant 251 : index
    %1726 = memref.load %arg5[%c251] : memref<256xf32, #tpu.memory_space<smem>>
    %1727 = vector.broadcast %1726 : f32 to vector<2x13x13xf32>
    %1728 = arith.mulf %1727, %1697 : vector<2x13x13xf32>
    %1729 = arith.addf %1696, %1728 : vector<2x13x13xf32>
    %c0_287 = arith.constant 0 : index
    %c7_288 = arith.constant 7 : index
    %c0_289 = arith.constant 0 : index
    %c0_290 = arith.constant 0 : index
    %1730 = vector.load %arg9[%c0_287, %c7_288, %c0_289, %c0_290] : memref<2x8x14x14xf32, #tpu.memory_space<vmem>>, vector<2x1x14x14xf32>
    %1731 = vector.shape_cast %1730 : vector<2x1x14x14xf32> to vector<2x14x14xf32>
    %1732 = vector.extract_strided_slice %1731 {offsets = [0, 0, 0], sizes = [2, 13, 13], strides = [1, 1, 1]} : vector<2x14x14xf32> to vector<2x13x13xf32>
    %c28_291 = arith.constant 28 : index
    %1733 = memref.load %arg5[%c28_291] : memref<256xf32, #tpu.memory_space<smem>>
    %1734 = vector.broadcast %1733 : f32 to vector<2x13x13xf32>
    %1735 = arith.mulf %1734, %1732 : vector<2x13x13xf32>
    %1736 = arith.addf %1701, %1735 : vector<2x13x13xf32>
    %c60_292 = arith.constant 60 : index
    %1737 = memref.load %arg5[%c60_292] : memref<256xf32, #tpu.memory_space<smem>>
    %1738 = vector.broadcast %1737 : f32 to vector<2x13x13xf32>
    %1739 = arith.mulf %1738, %1732 : vector<2x13x13xf32>
    %1740 = arith.addf %1705, %1739 : vector<2x13x13xf32>
    %c92_293 = arith.constant 92 : index
    %1741 = memref.load %arg5[%c92_293] : memref<256xf32, #tpu.memory_space<smem>>
    %1742 = vector.broadcast %1741 : f32 to vector<2x13x13xf32>
    %1743 = arith.mulf %1742, %1732 : vector<2x13x13xf32>
    %1744 = arith.addf %1709, %1743 : vector<2x13x13xf32>
    %c124_294 = arith.constant 124 : index
    %1745 = memref.load %arg5[%c124_294] : memref<256xf32, #tpu.memory_space<smem>>
    %1746 = vector.broadcast %1745 : f32 to vector<2x13x13xf32>
    %1747 = arith.mulf %1746, %1732 : vector<2x13x13xf32>
    %1748 = arith.addf %1713, %1747 : vector<2x13x13xf32>
    %c156 = arith.constant 156 : index
    %1749 = memref.load %arg5[%c156] : memref<256xf32, #tpu.memory_space<smem>>
    %1750 = vector.broadcast %1749 : f32 to vector<2x13x13xf32>
    %1751 = arith.mulf %1750, %1732 : vector<2x13x13xf32>
    %1752 = arith.addf %1717, %1751 : vector<2x13x13xf32>
    %c188 = arith.constant 188 : index
    %1753 = memref.load %arg5[%c188] : memref<256xf32, #tpu.memory_space<smem>>
    %1754 = vector.broadcast %1753 : f32 to vector<2x13x13xf32>
    %1755 = arith.mulf %1754, %1732 : vector<2x13x13xf32>
    %1756 = arith.addf %1721, %1755 : vector<2x13x13xf32>
    %c220 = arith.constant 220 : index
    %1757 = memref.load %arg5[%c220] : memref<256xf32, #tpu.memory_space<smem>>
    %1758 = vector.broadcast %1757 : f32 to vector<2x13x13xf32>
    %1759 = arith.mulf %1758, %1732 : vector<2x13x13xf32>
    %1760 = arith.addf %1725, %1759 : vector<2x13x13xf32>
    %c252 = arith.constant 252 : index
    %1761 = memref.load %arg5[%c252] : memref<256xf32, #tpu.memory_space<smem>>
    %1762 = vector.broadcast %1761 : f32 to vector<2x13x13xf32>
    %1763 = arith.mulf %1762, %1732 : vector<2x13x13xf32>
    %1764 = arith.addf %1729, %1763 : vector<2x13x13xf32>
    %1765 = vector.extract_strided_slice %1731 {offsets = [0, 0, 1], sizes = [2, 13, 13], strides = [1, 1, 1]} : vector<2x14x14xf32> to vector<2x13x13xf32>
    %c29_295 = arith.constant 29 : index
    %1766 = memref.load %arg5[%c29_295] : memref<256xf32, #tpu.memory_space<smem>>
    %1767 = vector.broadcast %1766 : f32 to vector<2x13x13xf32>
    %1768 = arith.mulf %1767, %1765 : vector<2x13x13xf32>
    %1769 = arith.addf %1736, %1768 : vector<2x13x13xf32>
    %c61_296 = arith.constant 61 : index
    %1770 = memref.load %arg5[%c61_296] : memref<256xf32, #tpu.memory_space<smem>>
    %1771 = vector.broadcast %1770 : f32 to vector<2x13x13xf32>
    %1772 = arith.mulf %1771, %1765 : vector<2x13x13xf32>
    %1773 = arith.addf %1740, %1772 : vector<2x13x13xf32>
    %c93_297 = arith.constant 93 : index
    %1774 = memref.load %arg5[%c93_297] : memref<256xf32, #tpu.memory_space<smem>>
    %1775 = vector.broadcast %1774 : f32 to vector<2x13x13xf32>
    %1776 = arith.mulf %1775, %1765 : vector<2x13x13xf32>
    %1777 = arith.addf %1744, %1776 : vector<2x13x13xf32>
    %c125_298 = arith.constant 125 : index
    %1778 = memref.load %arg5[%c125_298] : memref<256xf32, #tpu.memory_space<smem>>
    %1779 = vector.broadcast %1778 : f32 to vector<2x13x13xf32>
    %1780 = arith.mulf %1779, %1765 : vector<2x13x13xf32>
    %1781 = arith.addf %1748, %1780 : vector<2x13x13xf32>
    %c157 = arith.constant 157 : index
    %1782 = memref.load %arg5[%c157] : memref<256xf32, #tpu.memory_space<smem>>
    %1783 = vector.broadcast %1782 : f32 to vector<2x13x13xf32>
    %1784 = arith.mulf %1783, %1765 : vector<2x13x13xf32>
    %1785 = arith.addf %1752, %1784 : vector<2x13x13xf32>
    %c189 = arith.constant 189 : index
    %1786 = memref.load %arg5[%c189] : memref<256xf32, #tpu.memory_space<smem>>
    %1787 = vector.broadcast %1786 : f32 to vector<2x13x13xf32>
    %1788 = arith.mulf %1787, %1765 : vector<2x13x13xf32>
    %1789 = arith.addf %1756, %1788 : vector<2x13x13xf32>
    %c221 = arith.constant 221 : index
    %1790 = memref.load %arg5[%c221] : memref<256xf32, #tpu.memory_space<smem>>
    %1791 = vector.broadcast %1790 : f32 to vector<2x13x13xf32>
    %1792 = arith.mulf %1791, %1765 : vector<2x13x13xf32>
    %1793 = arith.addf %1760, %1792 : vector<2x13x13xf32>
    %c253 = arith.constant 253 : index
    %1794 = memref.load %arg5[%c253] : memref<256xf32, #tpu.memory_space<smem>>
    %1795 = vector.broadcast %1794 : f32 to vector<2x13x13xf32>
    %1796 = arith.mulf %1795, %1765 : vector<2x13x13xf32>
    %1797 = arith.addf %1764, %1796 : vector<2x13x13xf32>
    %1798 = vector.extract_strided_slice %1731 {offsets = [0, 1, 0], sizes = [2, 13, 13], strides = [1, 1, 1]} : vector<2x14x14xf32> to vector<2x13x13xf32>
    %c30_299 = arith.constant 30 : index
    %1799 = memref.load %arg5[%c30_299] : memref<256xf32, #tpu.memory_space<smem>>
    %1800 = vector.broadcast %1799 : f32 to vector<2x13x13xf32>
    %1801 = arith.mulf %1800, %1798 : vector<2x13x13xf32>
    %1802 = arith.addf %1769, %1801 : vector<2x13x13xf32>
    %c62_300 = arith.constant 62 : index
    %1803 = memref.load %arg5[%c62_300] : memref<256xf32, #tpu.memory_space<smem>>
    %1804 = vector.broadcast %1803 : f32 to vector<2x13x13xf32>
    %1805 = arith.mulf %1804, %1798 : vector<2x13x13xf32>
    %1806 = arith.addf %1773, %1805 : vector<2x13x13xf32>
    %c94_301 = arith.constant 94 : index
    %1807 = memref.load %arg5[%c94_301] : memref<256xf32, #tpu.memory_space<smem>>
    %1808 = vector.broadcast %1807 : f32 to vector<2x13x13xf32>
    %1809 = arith.mulf %1808, %1798 : vector<2x13x13xf32>
    %1810 = arith.addf %1777, %1809 : vector<2x13x13xf32>
    %c126_302 = arith.constant 126 : index
    %1811 = memref.load %arg5[%c126_302] : memref<256xf32, #tpu.memory_space<smem>>
    %1812 = vector.broadcast %1811 : f32 to vector<2x13x13xf32>
    %1813 = arith.mulf %1812, %1798 : vector<2x13x13xf32>
    %1814 = arith.addf %1781, %1813 : vector<2x13x13xf32>
    %c158 = arith.constant 158 : index
    %1815 = memref.load %arg5[%c158] : memref<256xf32, #tpu.memory_space<smem>>
    %1816 = vector.broadcast %1815 : f32 to vector<2x13x13xf32>
    %1817 = arith.mulf %1816, %1798 : vector<2x13x13xf32>
    %1818 = arith.addf %1785, %1817 : vector<2x13x13xf32>
    %c190 = arith.constant 190 : index
    %1819 = memref.load %arg5[%c190] : memref<256xf32, #tpu.memory_space<smem>>
    %1820 = vector.broadcast %1819 : f32 to vector<2x13x13xf32>
    %1821 = arith.mulf %1820, %1798 : vector<2x13x13xf32>
    %1822 = arith.addf %1789, %1821 : vector<2x13x13xf32>
    %c222 = arith.constant 222 : index
    %1823 = memref.load %arg5[%c222] : memref<256xf32, #tpu.memory_space<smem>>
    %1824 = vector.broadcast %1823 : f32 to vector<2x13x13xf32>
    %1825 = arith.mulf %1824, %1798 : vector<2x13x13xf32>
    %1826 = arith.addf %1793, %1825 : vector<2x13x13xf32>
    %c254 = arith.constant 254 : index
    %1827 = memref.load %arg5[%c254] : memref<256xf32, #tpu.memory_space<smem>>
    %1828 = vector.broadcast %1827 : f32 to vector<2x13x13xf32>
    %1829 = arith.mulf %1828, %1798 : vector<2x13x13xf32>
    %1830 = arith.addf %1797, %1829 : vector<2x13x13xf32>
    %1831 = vector.extract_strided_slice %1731 {offsets = [0, 1, 1], sizes = [2, 13, 13], strides = [1, 1, 1]} : vector<2x14x14xf32> to vector<2x13x13xf32>
    %c31_303 = arith.constant 31 : index
    %1832 = memref.load %arg5[%c31_303] : memref<256xf32, #tpu.memory_space<smem>>
    %1833 = vector.broadcast %1832 : f32 to vector<2x13x13xf32>
    %1834 = arith.mulf %1833, %1831 : vector<2x13x13xf32>
    %1835 = arith.addf %1802, %1834 : vector<2x13x13xf32>
    %c63_304 = arith.constant 63 : index
    %1836 = memref.load %arg5[%c63_304] : memref<256xf32, #tpu.memory_space<smem>>
    %1837 = vector.broadcast %1836 : f32 to vector<2x13x13xf32>
    %1838 = arith.mulf %1837, %1831 : vector<2x13x13xf32>
    %1839 = arith.addf %1806, %1838 : vector<2x13x13xf32>
    %c95_305 = arith.constant 95 : index
    %1840 = memref.load %arg5[%c95_305] : memref<256xf32, #tpu.memory_space<smem>>
    %1841 = vector.broadcast %1840 : f32 to vector<2x13x13xf32>
    %1842 = arith.mulf %1841, %1831 : vector<2x13x13xf32>
    %1843 = arith.addf %1810, %1842 : vector<2x13x13xf32>
    %c127_306 = arith.constant 127 : index
    %1844 = memref.load %arg5[%c127_306] : memref<256xf32, #tpu.memory_space<smem>>
    %1845 = vector.broadcast %1844 : f32 to vector<2x13x13xf32>
    %1846 = arith.mulf %1845, %1831 : vector<2x13x13xf32>
    %1847 = arith.addf %1814, %1846 : vector<2x13x13xf32>
    %c159 = arith.constant 159 : index
    %1848 = memref.load %arg5[%c159] : memref<256xf32, #tpu.memory_space<smem>>
    %1849 = vector.broadcast %1848 : f32 to vector<2x13x13xf32>
    %1850 = arith.mulf %1849, %1831 : vector<2x13x13xf32>
    %1851 = arith.addf %1818, %1850 : vector<2x13x13xf32>
    %c191 = arith.constant 191 : index
    %1852 = memref.load %arg5[%c191] : memref<256xf32, #tpu.memory_space<smem>>
    %1853 = vector.broadcast %1852 : f32 to vector<2x13x13xf32>
    %1854 = arith.mulf %1853, %1831 : vector<2x13x13xf32>
    %1855 = arith.addf %1822, %1854 : vector<2x13x13xf32>
    %c223 = arith.constant 223 : index
    %1856 = memref.load %arg5[%c223] : memref<256xf32, #tpu.memory_space<smem>>
    %1857 = vector.broadcast %1856 : f32 to vector<2x13x13xf32>
    %1858 = arith.mulf %1857, %1831 : vector<2x13x13xf32>
    %1859 = arith.addf %1826, %1858 : vector<2x13x13xf32>
    %c255 = arith.constant 255 : index
    %1860 = memref.load %arg5[%c255] : memref<256xf32, #tpu.memory_space<smem>>
    %1861 = vector.broadcast %1860 : f32 to vector<2x13x13xf32>
    %1862 = arith.mulf %1861, %1831 : vector<2x13x13xf32>
    %1863 = arith.addf %1830, %1862 : vector<2x13x13xf32>
    %c0_307 = arith.constant 0 : index
    %1864 = memref.load %arg6[%c0_307] : memref<8xf32, #tpu.memory_space<smem>>
    %1865 = vector.broadcast %1864 : f32 to vector<2x13x13xf32>
    %1866 = arith.addf %1835, %1865 : vector<2x13x13xf32>
    %cst_308 = arith.constant 0.000000e+00 : f32
    %1867 = vector.broadcast %cst_308 : f32 to vector<2x13x13xf32>
    %1868 = arith.maximumf %1866, %1867 : vector<2x13x13xf32>
    %c0_309 = arith.constant 0 : index
    %c0_310 = arith.constant 0 : index
    %c0_311 = arith.constant 0 : index
    %c0_312 = arith.constant 0 : index
    %1869 = vector.load %arg7[%c0_309, %c0_310, %c0_311, %c0_312] : memref<2x8x13x13xf32, #tpu.memory_space<vmem>>, vector<2x1x13x13xf32>
    %1870 = vector.shape_cast %1869 : vector<2x1x13x13xf32> to vector<2x13x13xf32>
    %1871 = vector.shape_cast %1868 : vector<2x13x13xf32> to vector<2x1x13x13xf32>
    tpu.vector_store %arg7[%c0_309, %c0_310, %c0_311, %c0_312], %1871 {strides = array<i32>} : memref<2x8x13x13xf32, #tpu.memory_space<vmem>>, vector<2x1x13x13xf32>,
    %c1_313 = arith.constant 1 : index
    %1872 = memref.load %arg6[%c1_313] : memref<8xf32, #tpu.memory_space<smem>>
    %1873 = vector.broadcast %1872 : f32 to vector<2x13x13xf32>
    %1874 = arith.addf %1839, %1873 : vector<2x13x13xf32>
    %cst_314 = arith.constant 0.000000e+00 : f32
    %1875 = vector.broadcast %cst_314 : f32 to vector<2x13x13xf32>
    %1876 = arith.maximumf %1874, %1875 : vector<2x13x13xf32>
    %c0_315 = arith.constant 0 : index
    %c1_316 = arith.constant 1 : index
    %c0_317 = arith.constant 0 : index
    %c0_318 = arith.constant 0 : index
    %1877 = vector.load %arg7[%c0_315, %c1_316, %c0_317, %c0_318] : memref<2x8x13x13xf32, #tpu.memory_space<vmem>>, vector<2x1x13x13xf32>
    %1878 = vector.shape_cast %1877 : vector<2x1x13x13xf32> to vector<2x13x13xf32>
    %1879 = vector.shape_cast %1876 : vector<2x13x13xf32> to vector<2x1x13x13xf32>
    tpu.vector_store %arg7[%c0_315, %c1_316, %c0_317, %c0_318], %1879 {strides = array<i32>} : memref<2x8x13x13xf32, #tpu.memory_space<vmem>>, vector<2x1x13x13xf32>,
    %c2_319 = arith.constant 2 : index
    %1880 = memref.load %arg6[%c2_319] : memref<8xf32, #tpu.memory_space<smem>>
    %1881 = vector.broadcast %1880 : f32 to vector<2x13x13xf32>
    %1882 = arith.addf %1843, %1881 : vector<2x13x13xf32>
    %cst_320 = arith.constant 0.000000e+00 : f32
    %1883 = vector.broadcast %cst_320 : f32 to vector<2x13x13xf32>
    %1884 = arith.maximumf %1882, %1883 : vector<2x13x13xf32>
    %c0_321 = arith.constant 0 : index
    %c2_322 = arith.constant 2 : index
    %c0_323 = arith.constant 0 : index
    %c0_324 = arith.constant 0 : index
    %1885 = vector.load %arg7[%c0_321, %c2_322, %c0_323, %c0_324] : memref<2x8x13x13xf32, #tpu.memory_space<vmem>>, vector<2x1x13x13xf32>
    %1886 = vector.shape_cast %1885 : vector<2x1x13x13xf32> to vector<2x13x13xf32>
    %1887 = vector.shape_cast %1884 : vector<2x13x13xf32> to vector<2x1x13x13xf32>
    tpu.vector_store %arg7[%c0_321, %c2_322, %c0_323, %c0_324], %1887 {strides = array<i32>} : memref<2x8x13x13xf32, #tpu.memory_space<vmem>>, vector<2x1x13x13xf32>,
    %c3_325 = arith.constant 3 : index
    %1888 = memref.load %arg6[%c3_325] : memref<8xf32, #tpu.memory_space<smem>>
    %1889 = vector.broadcast %1888 : f32 to vector<2x13x13xf32>
    %1890 = arith.addf %1847, %1889 : vector<2x13x13xf32>
    %cst_326 = arith.constant 0.000000e+00 : f32
    %1891 = vector.broadcast %cst_326 : f32 to vector<2x13x13xf32>
    %1892 = arith.maximumf %1890, %1891 : vector<2x13x13xf32>
    %c0_327 = arith.constant 0 : index
    %c3_328 = arith.constant 3 : index
    %c0_329 = arith.constant 0 : index
    %c0_330 = arith.constant 0 : index
    %1893 = vector.load %arg7[%c0_327, %c3_328, %c0_329, %c0_330] : memref<2x8x13x13xf32, #tpu.memory_space<vmem>>, vector<2x1x13x13xf32>
    %1894 = vector.shape_cast %1893 : vector<2x1x13x13xf32> to vector<2x13x13xf32>
    %1895 = vector.shape_cast %1892 : vector<2x13x13xf32> to vector<2x1x13x13xf32>
    tpu.vector_store %arg7[%c0_327, %c3_328, %c0_329, %c0_330], %1895 {strides = array<i32>} : memref<2x8x13x13xf32, #tpu.memory_space<vmem>>, vector<2x1x13x13xf32>,
    %c4_331 = arith.constant 4 : index
    %1896 = memref.load %arg6[%c4_331] : memref<8xf32, #tpu.memory_space<smem>>
    %1897 = vector.broadcast %1896 : f32 to vector<2x13x13xf32>
    %1898 = arith.addf %1851, %1897 : vector<2x13x13xf32>
    %cst_332 = arith.constant 0.000000e+00 : f32
    %1899 = vector.broadcast %cst_332 : f32 to vector<2x13x13xf32>
    %1900 = arith.maximumf %1898, %1899 : vector<2x13x13xf32>
    %c0_333 = arith.constant 0 : index
    %c4_334 = arith.constant 4 : index
    %c0_335 = arith.constant 0 : index
    %c0_336 = arith.constant 0 : index
    %1901 = vector.load %arg7[%c0_333, %c4_334, %c0_335, %c0_336] : memref<2x8x13x13xf32, #tpu.memory_space<vmem>>, vector<2x1x13x13xf32>
    %1902 = vector.shape_cast %1901 : vector<2x1x13x13xf32> to vector<2x13x13xf32>
    %1903 = vector.shape_cast %1900 : vector<2x13x13xf32> to vector<2x1x13x13xf32>
    tpu.vector_store %arg7[%c0_333, %c4_334, %c0_335, %c0_336], %1903 {strides = array<i32>} : memref<2x8x13x13xf32, #tpu.memory_space<vmem>>, vector<2x1x13x13xf32>,
    %c5_337 = arith.constant 5 : index
    %1904 = memref.load %arg6[%c5_337] : memref<8xf32, #tpu.memory_space<smem>>
    %1905 = vector.broadcast %1904 : f32 to vector<2x13x13xf32>
    %1906 = arith.addf %1855, %1905 : vector<2x13x13xf32>
    %cst_338 = arith.constant 0.000000e+00 : f32
    %1907 = vector.broadcast %cst_338 : f32 to vector<2x13x13xf32>
    %1908 = arith.maximumf %1906, %1907 : vector<2x13x13xf32>
    %c0_339 = arith.constant 0 : index
    %c5_340 = arith.constant 5 : index
    %c0_341 = arith.constant 0 : index
    %c0_342 = arith.constant 0 : index
    %1909 = vector.load %arg7[%c0_339, %c5_340, %c0_341, %c0_342] : memref<2x8x13x13xf32, #tpu.memory_space<vmem>>, vector<2x1x13x13xf32>
    %1910 = vector.shape_cast %1909 : vector<2x1x13x13xf32> to vector<2x13x13xf32>
    %1911 = vector.shape_cast %1908 : vector<2x13x13xf32> to vector<2x1x13x13xf32>
    tpu.vector_store %arg7[%c0_339, %c5_340, %c0_341, %c0_342], %1911 {strides = array<i32>} : memref<2x8x13x13xf32, #tpu.memory_space<vmem>>, vector<2x1x13x13xf32>,
    %c6_343 = arith.constant 6 : index
    %1912 = memref.load %arg6[%c6_343] : memref<8xf32, #tpu.memory_space<smem>>
    %1913 = vector.broadcast %1912 : f32 to vector<2x13x13xf32>
    %1914 = arith.addf %1859, %1913 : vector<2x13x13xf32>
    %cst_344 = arith.constant 0.000000e+00 : f32
    %1915 = vector.broadcast %cst_344 : f32 to vector<2x13x13xf32>
    %1916 = arith.maximumf %1914, %1915 : vector<2x13x13xf32>
    %c0_345 = arith.constant 0 : index
    %c6_346 = arith.constant 6 : index
    %c0_347 = arith.constant 0 : index
    %c0_348 = arith.constant 0 : index
    %1917 = vector.load %arg7[%c0_345, %c6_346, %c0_347, %c0_348] : memref<2x8x13x13xf32, #tpu.memory_space<vmem>>, vector<2x1x13x13xf32>
    %1918 = vector.shape_cast %1917 : vector<2x1x13x13xf32> to vector<2x13x13xf32>
    %1919 = vector.shape_cast %1916 : vector<2x13x13xf32> to vector<2x1x13x13xf32>
    tpu.vector_store %arg7[%c0_345, %c6_346, %c0_347, %c0_348], %1919 {strides = array<i32>} : memref<2x8x13x13xf32, #tpu.memory_space<vmem>>, vector<2x1x13x13xf32>,
    %c7_349 = arith.constant 7 : index
    %1920 = memref.load %arg6[%c7_349] : memref<8xf32, #tpu.memory_space<smem>>
    %1921 = vector.broadcast %1920 : f32 to vector<2x13x13xf32>
    %1922 = arith.addf %1863, %1921 : vector<2x13x13xf32>
    %cst_350 = arith.constant 0.000000e+00 : f32
    %1923 = vector.broadcast %cst_350 : f32 to vector<2x13x13xf32>
    %1924 = arith.maximumf %1922, %1923 : vector<2x13x13xf32>
    %c0_351 = arith.constant 0 : index
    %c7_352 = arith.constant 7 : index
    %c0_353 = arith.constant 0 : index
    %c0_354 = arith.constant 0 : index
    %1925 = vector.load %arg7[%c0_351, %c7_352, %c0_353, %c0_354] : memref<2x8x13x13xf32, #tpu.memory_space<vmem>>, vector<2x1x13x13xf32>
    %1926 = vector.shape_cast %1925 : vector<2x1x13x13xf32> to vector<2x13x13xf32>
    %1927 = vector.shape_cast %1924 : vector<2x13x13xf32> to vector<2x1x13x13xf32>
    tpu.vector_store %arg7[%c0_351, %c7_352, %c0_353, %c0_354], %1927 {strides = array<i32>} : memref<2x8x13x13xf32, #tpu.memory_space<vmem>>, vector<2x1x13x13xf32>,
    return
  }
}

</mosaic_0001>

<llo_original>
// kernel: net_conv2d_forward.1
$region0: #{net_conv2d_forward.1}
  #allocation0 [shape = 'u32[]', space=smem, size = 0x4, offset = 0x4, fixed_abs, tag = 'smem constant byte address 0x4 - core index']
  #allocation1 [shape = 'u32[144,128]{1,0:T(1,128)}', space=vmem, size = 0x12000, scoped, tag = 'internal scratch']
  #allocation2 [shape = 'f32[2,4,15,15]{3,2,1,0:T(8,128)}', space=vmem, size = 0x10000, scoped, tag = 'scratch operand']
  #allocation3 [shape = 'f32[2,8,14,14]{3,2,1,0:T(8,128)}', space=vmem, size = 0x20000, scoped, tag = 'scratch operand']
  %s0 = inlined_call_operand.vmem [shape: f32[2,2,16,16], index: 0, kind: input, shape index: {}]
  %s1 = inlined_call_operand.vmem [shape: f32[32], index: 1, kind: input, shape index: {}]
  %s2 = inlined_call_operand.vmem [shape: f32[4], index: 2, kind: input, shape index: {}]
  %s3 = inlined_call_operand.vmem [shape: f32[128], index: 3, kind: input, shape index: {}]
  %s4 = inlined_call_operand.vmem [shape: f32[8], index: 4, kind: input, shape index: {}]
  %s5 = inlined_call_operand.vmem [shape: f32[256], index: 5, kind: input, shape index: {}]
  %s6 = inlined_call_operand.vmem [shape: f32[8], index: 6, kind: input, shape index: {}]
  %s7 = inlined_call_operand.vmem [shape: f32[2,8,13,13], index: 7, kind: output, shape index: {}]
  %s8 = sld [smem:[#allocation0]]
  $region62: #{net_conv2d_forward.1} parent=0
    _
  %s10 = ssub.s32 1, %s8
  %s11 = scalar_select 0, %s10, %s8
  $region1: #{net_conv2d_forward.1} parent=0
    #allocation4 [shape = 'u8[512]{0}', space=smem, size = 0x200, scoped, tag = 'input window, operand 1, single buffered']
    #allocation5 [shape = 's32[1]{0}', space=sflag, size = 0x4, scoped, tag = 'scoped memory for net_conv2d_forward.1']
    #allocation6 [shape = 'u8[512]{0}', space=smem, size = 0x200, scoped, tag = 'input window, operand 2, single buffered']
    #allocation7 [shape = 's32[1]{0}', space=sflag, size = 0x4, scoped, tag = 'scoped memory for net_conv2d_forward.1']
    #allocation8 [shape = 'u8[512]{0}', space=smem, size = 0x200, scoped, tag = 'input window, operand 3, single buffered']
    #allocation9 [shape = 'u8[512]{0}', space=smem, size = 0x200, scoped, tag = 'input window, operand 4, single buffered']
    #allocation10 [shape = 's32[1]{0}', space=sflag, size = 0x4, scoped, tag = 'scoped memory for net_conv2d_forward.1']
    #allocation11 [shape = 'u8[1024]{0}', space=smem, size = 0x400, scoped, tag = 'input window, operand 5, single buffered']
    #allocation12 [shape = 'u8[512]{0}', space=smem, size = 0x200, scoped, tag = 'input window, operand 6, single buffered']
    #allocation13 [shape = 's32[1]{0}', space=sflag, size = 0x4, scoped, tag = 'scoped memory for net_conv2d_forward.1']
    %12 = vsyncpa [#allocation5], 0
    %13 = vsyncpa [#allocation7], 0
    %14 = vsyncpa [#allocation10], 0
    %15 = vsyncpa [#allocation13], 0
    // Predicated region
    $region2: #{net_conv2d_forward.1} parent=1 // pred_check
      _
    $region3: #{net_conv2d_forward.1} parent=1 // pred_check_branch
      %17 = sbr.rel (0) target = $region5
    $region4: #{net_conv2d_forward.1} parent=1 // pred_region
      _
    $region5: #{net_conv2d_forward.1} parent=1 // pred_fallthru
      _
    // Predicated region
    $region6: #{net_conv2d_forward.1} parent=1 // pred_check
      _
    $region7: #{net_conv2d_forward.1} parent=1 // pred_check_branch
      %19 = sbr.rel (0) target = $region9
    $region8: #{net_conv2d_forward.1} parent=1 // pred_region
      %s21 = ssub.s32 16, 16
      %22 = vsyncadd [#allocation5], %s21
      %s24 = sshll.u32 %s1, 4
      %s25 = int_to_ptr.vmem [resolvable:$true] %s24
      %27 = dma.vmem_to_smem %s25, 16, [#allocation4], [#allocation5]
    $region9: #{net_conv2d_forward.1} parent=1 // pred_fallthru
      _
    // Predicated region
    $region10: #{net_conv2d_forward.1} parent=1 // pred_check
      _
    $region11: #{net_conv2d_forward.1} parent=1 // pred_check_branch
      %29 = sbr.rel (0) target = $region13
    $region12: #{net_conv2d_forward.1} parent=1 // pred_region
      %s31 = ssub.s32 16, 16
      %32 = vsyncadd [#allocation7], %s31
      %s34 = sshll.u32 %s2, 4
      %s35 = int_to_ptr.vmem [resolvable:$true] %s34
      %37 = dma.vmem_to_smem %s35, 16, [#allocation6], [#allocation7]
    $region13: #{net_conv2d_forward.1} parent=1 // pred_fallthru
      _
    // Predicated region
    $region14: #{net_conv2d_forward.1} parent=1 // pred_check
      _
    $region15: #{net_conv2d_forward.1} parent=1 // pred_check_branch
      %39 = sbr.rel (0) target = $region17
    $region16: #{net_conv2d_forward.1} parent=1 // pred_region
      %s41 = ssub.s32 16, 16
      %42 = vsyncadd [#allocation7], %s41
      %s44 = sshll.u32 %s3, 4
      %s45 = int_to_ptr.vmem [resolvable:$true] %s44
      %47 = dma.vmem_to_smem %s45, 16, [#allocation8], [#allocation7]
    $region17: #{net_conv2d_forward.1} parent=1 // pred_fallthru
      _
    // Predicated region
    $region18: #{net_conv2d_forward.1} parent=1 // pred_check
      _
    $region19: #{net_conv2d_forward.1} parent=1 // pred_check_branch
      %49 = sbr.rel (0) target = $region21
    $region20: #{net_conv2d_forward.1} parent=1 // pred_region
      %s51 = ssub.s32 16, 16
      %52 = vsyncadd [#allocation10], %s51
      %s54 = sshll.u32 %s4, 4
      %s55 = int_to_ptr.vmem [resolvable:$true] %s54
      %57 = dma.vmem_to_smem %s55, 16, [#allocation9], [#allocation10]
    $region21: #{net_conv2d_forward.1} parent=1 // pred_fallthru
      _
    // Predicated region
    $region22: #{net_conv2d_forward.1} parent=1 // pred_check
      _
    $region23: #{net_conv2d_forward.1} parent=1 // pred_check_branch
      %59 = sbr.rel (0) target = $region25
    $region24: #{net_conv2d_forward.1} parent=1 // pred_region
      %s61 = ssub.s32 32, 32
      %62 = vsyncadd [#allocation10], %s61
      %s64 = sshll.u32 %s5, 4
      %s65 = int_to_ptr.vmem [resolvable:$true] %s64
      %67 = dma.vmem_to_smem %s65, 32, [#allocation11], [#allocation10]
    $region25: #{net_conv2d_forward.1} parent=1 // pred_fallthru
      _
    // Predicated region
    $region26: #{net_conv2d_forward.1} parent=1 // pred_check
      _
    $region27: #{net_conv2d_forward.1} parent=1 // pred_check_branch
      %69 = sbr.rel (0) target = $region29
    $region28: #{net_conv2d_forward.1} parent=1 // pred_region
      %s71 = ssub.s32 16, 16
      %72 = vsyncadd [#allocation13], %s71
      %s74 = sshll.u32 %s6, 4
      %s75 = int_to_ptr.vmem [resolvable:$true] %s74
      %77 = dma.vmem_to_smem %s75, 16, [#allocation12], [#allocation13]
    $region29: #{net_conv2d_forward.1} parent=1 // pred_fallthru
      _
    // Predicated region
    $region30: #{net_conv2d_forward.1} parent=1 // pred_check
      _
    $region31: #{net_conv2d_forward.1} parent=1 // pred_check_branch
      %79 = sbr.rel (0) target = $region33
    $region32: #{net_conv2d_forward.1} parent=1 // pred_region
      %80 = dma.done [#allocation5], 16
    $region33: #{net_conv2d_forward.1} parent=1 // pred_fallthru
      _
    // Predicated region
    $region34: #{net_conv2d_forward.1} parent=1 // pred_check
      _
    $region35: #{net_conv2d_forward.1} parent=1 // pred_check_branch
      %82 = sbr.rel (0) target = $region37
    $region36: #{net_conv2d_forward.1} parent=1 // pred_region
      %83 = dma.done [#allocation7], 16
    $region37: #{net_conv2d_forward.1} parent=1 // pred_fallthru
      _
    // Predicated region
    $region38: #{net_conv2d_forward.1} parent=1 // pred_check
      _
    $region39: #{net_conv2d_forward.1} parent=1 // pred_check_branch
      %85 = sbr.rel (0) target = $region41
    $region40: #{net_conv2d_forward.1} parent=1 // pred_region
      %86 = dma.done [#allocation7], 16
    $region41: #{net_conv2d_forward.1} parent=1 // pred_fallthru
      _
    // Predicated region
    $region42: #{net_conv2d_forward.1} parent=1 // pred_check
      _
    $region43: #{net_conv2d_forward.1} parent=1 // pred_check_branch
      %88 = sbr.rel (0) target = $region45
    $region44: #{net_conv2d_forward.1} parent=1 // pred_region
      %89 = dma.done [#allocation10], 16
    $region45: #{net_conv2d_forward.1} parent=1 // pred_fallthru
      _
    // Predicated region
    $region46: #{net_conv2d_forward.1} parent=1 // pred_check
      _
    $region47: #{net_conv2d_forward.1} parent=1 // pred_check_branch
      %91 = sbr.rel (0) target = $region49
    $region48: #{net_conv2d_forward.1} parent=1 // pred_region
      %92 = dma.done [#allocation10], 32
    $region49: #{net_conv2d_forward.1} parent=1 // pred_fallthru
      _
    // Predicated region
    $region50: #{net_conv2d_forward.1} parent=1 // pred_check
      _
    $region51: #{net_conv2d_forward.1} parent=1 // pred_check_branch
      %94 = sbr.rel (0) target = $region53
    $region52: #{net_conv2d_forward.1} parent=1 // pred_region
      %95 = dma.done [#allocation13], 16
    $region53: #{net_conv2d_forward.1} parent=1 // pred_fallthru
      _
    %96 = sfence
    %v97 = vld [vmem:[%s0] sm:$0xff]
    %v98 = vld [vmem:[%s0 + $0x8] sm:$0xff]
    %v99 = vld [vmem:[%s0 + $0x20] sm:$0xff]
    %v100 = vld [vmem:[%s0 + $0x28] sm:$0xff]
    %s101 = sld [smem:[#allocation4]]
    %v102 = vstv %s101
    %v103 = vmul.f32 %v102, %v97
    %v104 = vmul.f32 %v102, %v98
    %v105 = vmul.f32 %v102, %v99
    %v106 = vmul.f32 %v102, %v100
    %v107 = vadd.f32 %v103, 0.0
    %v108 = vadd.f32 %v104, 0.0
    %v109 = vadd.f32 %v105, 0.0
    %v110 = vadd.f32 %v106, 0.0
    %s111 = sld [smem:[#allocation4 + $0x8]]
    %v112 = vstv %s111
    %v113 = vmul.f32 %v112, %v97
    %v114 = vmul.f32 %v112, %v98
    %v115 = vmul.f32 %v112, %v99
    %v116 = vmul.f32 %v112, %v100
    %v117 = vadd.f32 %v113, 0.0
    %v118 = vadd.f32 %v114, 0.0
    %v119 = vadd.f32 %v115, 0.0
    %v120 = vadd.f32 %v116, 0.0
    %s121 = sld [smem:[#allocation4 + $0x10]]
    %v122 = vstv %s121
    %v123 = vmul.f32 %v122, %v97
    %v124 = vmul.f32 %v122, %v98
    %v125 = vmul.f32 %v122, %v99
    %v126 = vmul.f32 %v122, %v100
    %v127 = vadd.f32 %v123, 0.0
    %v128 = vadd.f32 %v124, 0.0
    %v129 = vadd.f32 %v125, 0.0
    %v130 = vadd.f32 %v126, 0.0
    %s131 = sld [smem:[#allocation4 + $0x18]]
    %v132 = vstv %s131
    %v133 = vmul.f32 %v132, %v97
    %v134 = vmul.f32 %v132, %v98
    %v135 = vmul.f32 %v132, %v99
    %v136 = vmul.f32 %v132, %v100
    %v137 = vadd.f32 %v133, 0.0
    %v138 = vadd.f32 %v134, 0.0
    %v139 = vadd.f32 %v135, 0.0
    %v140 = vadd.f32 %v136, 0.0
    %s141 = sld [smem:[#allocation4 + $0x1]]
    %v142 = vstv %s141
    %v143 = vmul.f32 %v142, %v97
    %v144 = vmul.f32 %v142, %v98
    %v145 = vmul.f32 %v142, %v99
    %v146 = vmul.f32 %v142, %v100
    %151 = vrot.lane.b32.xlu0 %v143, 127
    %v152 = vpop.permute.xlu0 %151
    %153 = vrot.lane.b32.xlu0 %v144, 127
    %v154 = vpop.permute.xlu0 %153
    %155 = vrot.lane.b32.xlu0 %v145, 127
    %v156 = vpop.permute.xlu0 %155
    %157 = vrot.lane.b32.xlu0 %v146, 127
    %v158 = vpop.permute.xlu0 %157
    %v163 = vadd.f32 %v107, %v152
    %v164 = vadd.f32 %v108, %v154
    %v165 = vadd.f32 %v109, %v156
    %v166 = vadd.f32 %v110, %v158
    %s167 = sld [smem:[#allocation4 + $0x9]]
    %v168 = vstv %s167
    %v169 = vmul.f32 %v168, %v97
    %v170 = vmul.f32 %v168, %v98
    %v171 = vmul.f32 %v168, %v99
    %v172 = vmul.f32 %v168, %v100
    %177 = vrot.lane.b32.xlu0 %v169, 127
    %v178 = vpop.permute.xlu0 %177
    %179 = vrot.lane.b32.xlu0 %v170, 127
    %v180 = vpop.permute.xlu0 %179
    %181 = vrot.lane.b32.xlu0 %v171, 127
    %v182 = vpop.permute.xlu0 %181
    %183 = vrot.lane.b32.xlu0 %v172, 127
    %v184 = vpop.permute.xlu0 %183
    %v189 = vadd.f32 %v117, %v178
    %v190 = vadd.f32 %v118, %v180
    %v191 = vadd.f32 %v119, %v182
    %v192 = vadd.f32 %v120, %v184
    %s193 = sld [smem:[#allocation4 + $0x11]]
    %v194 = vstv %s193
    %v195 = vmul.f32 %v194, %v97
    %v196 = vmul.f32 %v194, %v98
    %v197 = vmul.f32 %v194, %v99
    %v198 = vmul.f32 %v194, %v100
    %203 = vrot.lane.b32.xlu0 %v195, 127
    %v204 = vpop.permute.xlu0 %203
    %205 = vrot.lane.b32.xlu0 %v196, 127
    %v206 = vpop.permute.xlu0 %205
    %207 = vrot.lane.b32.xlu0 %v197, 127
    %v208 = vpop.permute.xlu0 %207
    %209 = vrot.lane.b32.xlu0 %v198, 127
    %v210 = vpop.permute.xlu0 %209
    %v215 = vadd.f32 %v127, %v204
    %v216 = vadd.f32 %v128, %v206
    %v217 = vadd.f32 %v129, %v208
    %v218 = vadd.f32 %v130, %v210
    %s219 = sld [smem:[#allocation4 + $0x19]]
    %v220 = vstv %s219
    %v221 = vmul.f32 %v220, %v97
    %v222 = vmul.f32 %v220, %v98
    %v223 = vmul.f32 %v220, %v99
    %v224 = vmul.f32 %v220, %v100
    %229 = vrot.lane.b32.xlu0 %v221, 127
    %v230 = vpop.permute.xlu0 %229
    %231 = vrot.lane.b32.xlu0 %v222, 127
    %v232 = vpop.permute.xlu0 %231
    %233 = vrot.lane.b32.xlu0 %v223, 127
    %v234 = vpop.permute.xlu0 %233
    %235 = vrot.lane.b32.xlu0 %v224, 127
    %v236 = vpop.permute.xlu0 %235
    %v241 = vadd.f32 %v137, %v230
    %v242 = vadd.f32 %v138, %v232
    %v243 = vadd.f32 %v139, %v234
    %v244 = vadd.f32 %v140, %v236
    %s245 = sld [smem:[#allocation4 + $0x2]]
    %v246 = vstv %s245
    %v247 = vmul.f32 %v246, %v97
    %v248 = vmul.f32 %v246, %v98
    %v249 = vmul.f32 %v246, %v99
    %v250 = vmul.f32 %v246, %v100
    %vm255 = vcmask 1046528
    %v256 = vrot.slane %v247, 1
    %v257 = vrot.slane %v248, 1
    %v258 = vsel %vm255, %v256, %v257
    %v259 = vrot.slane %v249, 1
    %v260 = vrot.slane %v250, 1
    %v261 = vsel %vm255, %v259, %v260
    %v266 = vadd.f32 %v163, %v258
    %v267 = vadd.f32 %v164, %v257
    %v268 = vadd.f32 %v165, %v261
    %v269 = vadd.f32 %v166, %v260
    %s270 = sld [smem:[#allocation4 + $0xa]]
    %v271 = vstv %s270
    %v272 = vmul.f32 %v271, %v97
    %v273 = vmul.f32 %v271, %v98
    %v274 = vmul.f32 %v271, %v99
    %v275 = vmul.f32 %v271, %v100
    %v280 = vrot.slane %v272, 1
    %v281 = vrot.slane %v273, 1
    %v282 = vsel %vm255, %v280, %v281
    %v283 = vrot.slane %v274, 1
    %v284 = vrot.slane %v275, 1
    %v285 = vsel %vm255, %v283, %v284
    %v290 = vadd.f32 %v189, %v282
    %v291 = vadd.f32 %v190, %v281
    %v292 = vadd.f32 %v191, %v285
    %v293 = vadd.f32 %v192, %v284
    %s294 = sld [smem:[#allocation4 + $0x12]]
    %v295 = vstv %s294
    %v296 = vmul.f32 %v295, %v97
    %v297 = vmul.f32 %v295, %v98
    %v298 = vmul.f32 %v295, %v99
    %v299 = vmul.f32 %v295, %v100
    %v304 = vrot.slane %v296, 1
    %v305 = vrot.slane %v297, 1
    %v306 = vsel %vm255, %v304, %v305
    %v307 = vrot.slane %v298, 1
    %v308 = vrot.slane %v299, 1
    %v309 = vsel %vm255, %v307, %v308
    %v314 = vadd.f32 %v215, %v306
    %v315 = vadd.f32 %v216, %v305
    %v316 = vadd.f32 %v217, %v309
    %v317 = vadd.f32 %v218, %v308
    %s318 = sld [smem:[#allocation4 + $0x1a]]
    %v319 = vstv %s318
    %v320 = vmul.f32 %v319, %v97
    %v321 = vmul.f32 %v319, %v98
    %v322 = vmul.f32 %v319, %v99
    %v323 = vmul.f32 %v319, %v100
    %v328 = vrot.slane %v320, 1
    %v329 = vrot.slane %v321, 1
    %v330 = vsel %vm255, %v328, %v329
    %v331 = vrot.slane %v322, 1
    %v332 = vrot.slane %v323, 1
    %v333 = vsel %vm255, %v331, %v332
    %v338 = vadd.f32 %v241, %v330
    %v339 = vadd.f32 %v242, %v329
    %v340 = vadd.f32 %v243, %v333
    %v341 = vadd.f32 %v244, %v332
    %s342 = sld [smem:[#allocation4 + $0x3]]
    %v343 = vstv %s342
    %v344 = vmul.f32 %v343, %v97
    %v345 = vmul.f32 %v343, %v98
    %v346 = vmul.f32 %v343, %v99
    %v347 = vmul.f32 %v343, %v100
    %v352 = vrot.slane %v344, 1
    %v353 = vrot.slane %v345, 1
    %v354 = vsel %vm255, %v352, %v353
    %v355 = vrot.slane %v346, 1
    %v356 = vrot.slane %v347, 1
    %v357 = vsel %vm255, %v355, %v356
    %358 = vrot.lane.b32.xlu0 %v354, 127
    %v359 = vpop.permute.xlu0 %358
    %360 = vrot.lane.b32.xlu0 %v353, 127
    %v361 = vpop.permute.xlu0 %360
    %362 = vrot.lane.b32.xlu0 %v357, 127
    %v363 = vpop.permute.xlu0 %362
    %364 = vrot.lane.b32.xlu0 %v356, 127
    %v365 = vpop.permute.xlu0 %364
    %v370 = vadd.f32 %v266, %v359
    %v371 = vadd.f32 %v267, %v361
    %v372 = vadd.f32 %v268, %v363
    %v373 = vadd.f32 %v269, %v365
    %s374 = sld [smem:[#allocation4 + $0xb]]
    %v375 = vstv %s374
    %v376 = vmul.f32 %v375, %v97
    %v377 = vmul.f32 %v375, %v98
    %v378 = vmul.f32 %v375, %v99
    %v379 = vmul.f32 %v375, %v100
    %v384 = vrot.slane %v376, 1
    %v385 = vrot.slane %v377, 1
    %v386 = vsel %vm255, %v384, %v385
    %v387 = vrot.slane %v378, 1
    %v388 = vrot.slane %v379, 1
    %v389 = vsel %vm255, %v387, %v388
    %390 = vrot.lane.b32.xlu0 %v386, 127
    %v391 = vpop.permute.xlu0 %390
    %392 = vrot.lane.b32.xlu0 %v385, 127
    %v393 = vpop.permute.xlu0 %392
    %394 = vrot.lane.b32.xlu0 %v389, 127
    %v395 = vpop.permute.xlu0 %394
    %396 = vrot.lane.b32.xlu0 %v388, 127
    %v397 = vpop.permute.xlu0 %396
    %v402 = vadd.f32 %v290, %v391
    %v403 = vadd.f32 %v291, %v393
    %v404 = vadd.f32 %v292, %v395
    %v405 = vadd.f32 %v293, %v397
    %s406 = sld [smem:[#allocation4 + $0x13]]
    %v407 = vstv %s406
    %v408 = vmul.f32 %v407, %v97
    %v409 = vmul.f32 %v407, %v98
    %v410 = vmul.f32 %v407, %v99
    %v411 = vmul.f32 %v407, %v100
    %v416 = vrot.slane %v408, 1
    %v417 = vrot.slane %v409, 1
    %v418 = vsel %vm255, %v416, %v417
    %v419 = vrot.slane %v410, 1
    %v420 = vrot.slane %v411, 1
    %v421 = vsel %vm255, %v419, %v420
    %422 = vrot.lane.b32.xlu0 %v418, 127
    %v423 = vpop.permute.xlu0 %422
    %424 = vrot.lane.b32.xlu0 %v417, 127
    %v425 = vpop.permute.xlu0 %424
    %426 = vrot.lane.b32.xlu0 %v421, 127
    %v427 = vpop.permute.xlu0 %426
    %428 = vrot.lane.b32.xlu0 %v420, 127
    %v429 = vpop.permute.xlu0 %428
    %v434 = vadd.f32 %v314, %v423
    %v435 = vadd.f32 %v315, %v425
    %v436 = vadd.f32 %v316, %v427
    %v437 = vadd.f32 %v317, %v429
    %s438 = sld [smem:[#allocation4 + $0x1b]]
    %v439 = vstv %s438
    %v440 = vmul.f32 %v439, %v97
    %v441 = vmul.f32 %v439, %v98
    %v442 = vmul.f32 %v439, %v99
    %v443 = vmul.f32 %v439, %v100
    %v448 = vrot.slane %v440, 1
    %v449 = vrot.slane %v441, 1
    %v450 = vsel %vm255, %v448, %v449
    %v451 = vrot.slane %v442, 1
    %v452 = vrot.slane %v443, 1
    %v453 = vsel %vm255, %v451, %v452
    %454 = vrot.lane.b32.xlu0 %v450, 127
    %v455 = vpop.permute.xlu0 %454
    %456 = vrot.lane.b32.xlu0 %v449, 127
    %v457 = vpop.permute.xlu0 %456
    %458 = vrot.lane.b32.xlu0 %v453, 127
    %v459 = vpop.permute.xlu0 %458
    %460 = vrot.lane.b32.xlu0 %v452, 127
    %v461 = vpop.permute.xlu0 %460
    %v466 = vadd.f32 %v338, %v455
    %v467 = vadd.f32 %v339, %v457
    %v468 = vadd.f32 %v340, %v459
    %v469 = vadd.f32 %v341, %v461
    %s470 = scalar_lea.vmem %s0, 16
    %v471 = vld [vmem:[%s470] sm:$0xff]
    %v472 = vld [vmem:[%s470 + $0x8] sm:$0xff]
    %v473 = vld [vmem:[%s470 + $0x20] sm:$0xff]
    %v474 = vld [vmem:[%s470 + $0x28] sm:$0xff]
    %s475 = sld [smem:[#allocation4 + $0x4]]
    %v476 = vstv %s475
    %v477 = vmul.f32 %v476, %v471
    %v478 = vmul.f32 %v476, %v472
    %v479 = vmul.f32 %v476, %v473
    %v480 = vmul.f32 %v476, %v474
    %v481 = vadd.f32 %v370, %v477
    %v482 = vadd.f32 %v371, %v478
    %v483 = vadd.f32 %v372, %v479
    %v484 = vadd.f32 %v373, %v480
    %s485 = sld [smem:[#allocation4 + $0xc]]
    %v486 = vstv %s485
    %v487 = vmul.f32 %v486, %v471
    %v488 = vmul.f32 %v486, %v472
    %v489 = vmul.f32 %v486, %v473
    %v490 = vmul.f32 %v486, %v474
    %v491 = vadd.f32 %v402, %v487
    %v492 = vadd.f32 %v403, %v488
    %v493 = vadd.f32 %v404, %v489
    %v494 = vadd.f32 %v405, %v490
    %s495 = sld [smem:[#allocation4 + $0x14]]
    %v496 = vstv %s495
    %v497 = vmul.f32 %v496, %v471
    %v498 = vmul.f32 %v496, %v472
    %v499 = vmul.f32 %v496, %v473
    %v500 = vmul.f32 %v496, %v474
    %v501 = vadd.f32 %v434, %v497
    %v502 = vadd.f32 %v435, %v498
    %v503 = vadd.f32 %v436, %v499
    %v504 = vadd.f32 %v437, %v500
    %s505 = sld [smem:[#allocation4 + $0x1c]]
    %v506 = vstv %s505
    %v507 = vmul.f32 %v506, %v471
    %v508 = vmul.f32 %v506, %v472
    %v509 = vmul.f32 %v506, %v473
    %v510 = vmul.f32 %v506, %v474
    %v511 = vadd.f32 %v466, %v507
    %v512 = vadd.f32 %v467, %v508
    %v513 = vadd.f32 %v468, %v509
    %v514 = vadd.f32 %v469, %v510
    %s515 = sld [smem:[#allocation4 + $0x5]]
    %v516 = vstv %s515
    %v517 = vmul.f32 %v516, %v471
    %v518 = vmul.f32 %v516, %v472
    %v519 = vmul.f32 %v516, %v473
    %v520 = vmul.f32 %v516, %v474
    %525 = vrot.lane.b32.xlu0 %v517, 127
    %v526 = vpop.permute.xlu0 %525
    %527 = vrot.lane.b32.xlu0 %v518, 127
    %v528 = vpop.permute.xlu0 %527
    %529 = vrot.lane.b32.xlu0 %v519, 127
    %v530 = vpop.permute.xlu0 %529
    %531 = vrot.lane.b32.xlu0 %v520, 127
    %v532 = vpop.permute.xlu0 %531
    %v537 = vadd.f32 %v481, %v526
    %v538 = vadd.f32 %v482, %v528
    %v539 = vadd.f32 %v483, %v530
    %v540 = vadd.f32 %v484, %v532
    %s541 = sld [smem:[#allocation4 + $0xd]]
    %v542 = vstv %s541
    %v543 = vmul.f32 %v542, %v471
    %v544 = vmul.f32 %v542, %v472
    %v545 = vmul.f32 %v542, %v473
    %v546 = vmul.f32 %v542, %v474
    %551 = vrot.lane.b32.xlu0 %v543, 127
    %v552 = vpop.permute.xlu0 %551
    %553 = vrot.lane.b32.xlu0 %v544, 127
    %v554 = vpop.permute.xlu0 %553
    %555 = vrot.lane.b32.xlu0 %v545, 127
    %v556 = vpop.permute.xlu0 %555
    %557 = vrot.lane.b32.xlu0 %v546, 127
    %v558 = vpop.permute.xlu0 %557
    %v563 = vadd.f32 %v491, %v552
    %v564 = vadd.f32 %v492, %v554
    %v565 = vadd.f32 %v493, %v556
    %v566 = vadd.f32 %v494, %v558
    %s567 = sld [smem:[#allocation4 + $0x15]]
    %v568 = vstv %s567
    %v569 = vmul.f32 %v568, %v471
    %v570 = vmul.f32 %v568, %v472
    %v571 = vmul.f32 %v568, %v473
    %v572 = vmul.f32 %v568, %v474
    %577 = vrot.lane.b32.xlu0 %v569, 127
    %v578 = vpop.permute.xlu0 %577
    %579 = vrot.lane.b32.xlu0 %v570, 127
    %v580 = vpop.permute.xlu0 %579
    %581 = vrot.lane.b32.xlu0 %v571, 127
    %v582 = vpop.permute.xlu0 %581
    %583 = vrot.lane.b32.xlu0 %v572, 127
    %v584 = vpop.permute.xlu0 %583
    %v589 = vadd.f32 %v501, %v578
    %v590 = vadd.f32 %v502, %v580
    %v591 = vadd.f32 %v503, %v582
    %v592 = vadd.f32 %v504, %v584
    %s593 = sld [smem:[#allocation4 + $0x1d]]
    %v594 = vstv %s593
    %v595 = vmul.f32 %v594, %v471
    %v596 = vmul.f32 %v594, %v472
    %v597 = vmul.f32 %v594, %v473
    %v598 = vmul.f32 %v594, %v474
    %603 = vrot.lane.b32.xlu0 %v595, 127
    %v604 = vpop.permute.xlu0 %603
    %605 = vrot.lane.b32.xlu0 %v596, 127
    %v606 = vpop.permute.xlu0 %605
    %607 = vrot.lane.b32.xlu0 %v597, 127
    %v608 = vpop.permute.xlu0 %607
    %609 = vrot.lane.b32.xlu0 %v598, 127
    %v610 = vpop.permute.xlu0 %609
    %v615 = vadd.f32 %v511, %v604
    %v616 = vadd.f32 %v512, %v606
    %v617 = vadd.f32 %v513, %v608
    %v618 = vadd.f32 %v514, %v610
    %s619 = sld [smem:[#allocation4 + $0x6]]
    %v620 = vstv %s619
    %v621 = vmul.f32 %v620, %v471
    %v622 = vmul.f32 %v620, %v472
    %v623 = vmul.f32 %v620, %v473
    %v624 = vmul.f32 %v620, %v474
    %v629 = vrot.slane %v621, 1
    %v630 = vrot.slane %v622, 1
    %v631 = vsel %vm255, %v629, %v630
    %v632 = vrot.slane %v623, 1
    %v633 = vrot.slane %v624, 1
    %v634 = vsel %vm255, %v632, %v633
    %v639 = vadd.f32 %v537, %v631
    %v640 = vadd.f32 %v538, %v630
    %v641 = vadd.f32 %v539, %v634
    %v642 = vadd.f32 %v540, %v633
    %s643 = sld [smem:[#allocation4 + $0xe]]
    %v644 = vstv %s643
    %v645 = vmul.f32 %v644, %v471
    %v646 = vmul.f32 %v644, %v472
    %v647 = vmul.f32 %v644, %v473
    %v648 = vmul.f32 %v644, %v474
    %v653 = vrot.slane %v645, 1
    %v654 = vrot.slane %v646, 1
    %v655 = vsel %vm255, %v653, %v654
    %v656 = vrot.slane %v647, 1
    %v657 = vrot.slane %v648, 1
    %v658 = vsel %vm255, %v656, %v657
    %v663 = vadd.f32 %v563, %v655
    %v664 = vadd.f32 %v564, %v654
    %v665 = vadd.f32 %v565, %v658
    %v666 = vadd.f32 %v566, %v657
    %s667 = sld [smem:[#allocation4 + $0x16]]
    %v668 = vstv %s667
    %v669 = vmul.f32 %v668, %v471
    %v670 = vmul.f32 %v668, %v472
    %v671 = vmul.f32 %v668, %v473
    %v672 = vmul.f32 %v668, %v474
    %v677 = vrot.slane %v669, 1
    %v678 = vrot.slane %v670, 1
    %v679 = vsel %vm255, %v677, %v678
    %v680 = vrot.slane %v671, 1
    %v681 = vrot.slane %v672, 1
    %v682 = vsel %vm255, %v680, %v681
    %v687 = vadd.f32 %v589, %v679
    %v688 = vadd.f32 %v590, %v678
    %v689 = vadd.f32 %v591, %v682
    %v690 = vadd.f32 %v592, %v681
    %s691 = sld [smem:[#allocation4 + $0x1e]]
    %v692 = vstv %s691
    %v693 = vmul.f32 %v692, %v471
    %v694 = vmul.f32 %v692, %v472
    %v695 = vmul.f32 %v692, %v473
    %v696 = vmul.f32 %v692, %v474
    %v701 = vrot.slane %v693, 1
    %v702 = vrot.slane %v694, 1
    %v703 = vsel %vm255, %v701, %v702
    %v704 = vrot.slane %v695, 1
    %v705 = vrot.slane %v696, 1
    %v706 = vsel %vm255, %v704, %v705
    %v711 = vadd.f32 %v615, %v703
    %v712 = vadd.f32 %v616, %v702
    %v713 = vadd.f32 %v617, %v706
    %v714 = vadd.f32 %v618, %v705
    %s715 = sld [smem:[#allocation4 + $0x7]]
    %v716 = vstv %s715
    %v717 = vmul.f32 %v716, %v471
    %v718 = vmul.f32 %v716, %v472
    %v719 = vmul.f32 %v716, %v473
    %v720 = vmul.f32 %v716, %v474
    %v725 = vrot.slane %v717, 1
    %v726 = vrot.slane %v718, 1
    %v727 = vsel %vm255, %v725, %v726
    %v728 = vrot.slane %v719, 1
    %v729 = vrot.slane %v720, 1
    %v730 = vsel %vm255, %v728, %v729
    %731 = vrot.lane.b32.xlu0 %v727, 127
    %v732 = vpop.permute.xlu0 %731
    %733 = vrot.lane.b32.xlu0 %v726, 127
    %v734 = vpop.permute.xlu0 %733
    %735 = vrot.lane.b32.xlu0 %v730, 127
    %v736 = vpop.permute.xlu0 %735
    %737 = vrot.lane.b32.xlu0 %v729, 127
    %v738 = vpop.permute.xlu0 %737
    %v743 = vadd.f32 %v639, %v732
    %v744 = vadd.f32 %v640, %v734
    %v745 = vadd.f32 %v641, %v736
    %v746 = vadd.f32 %v642, %v738
    %s747 = sld [smem:[#allocation4 + $0xf]]
    %v748 = vstv %s747
    %v749 = vmul.f32 %v748, %v471
    %v750 = vmul.f32 %v748, %v472
    %v751 = vmul.f32 %v748, %v473
    %v752 = vmul.f32 %v748, %v474
    %v757 = vrot.slane %v749, 1
    %v758 = vrot.slane %v750, 1
    %v759 = vsel %vm255, %v757, %v758
    %v760 = vrot.slane %v751, 1
    %v761 = vrot.slane %v752, 1
    %v762 = vsel %vm255, %v760, %v761
    %763 = vrot.lane.b32.xlu0 %v759, 127
    %v764 = vpop.permute.xlu0 %763
    %765 = vrot.lane.b32.xlu0 %v758, 127
    %v766 = vpop.permute.xlu0 %765
    %767 = vrot.lane.b32.xlu0 %v762, 127
    %v768 = vpop.permute.xlu0 %767
    %769 = vrot.lane.b32.xlu0 %v761, 127
    %v770 = vpop.permute.xlu0 %769
    %v775 = vadd.f32 %v663, %v764
    %v776 = vadd.f32 %v664, %v766
    %v777 = vadd.f32 %v665, %v768
    %v778 = vadd.f32 %v666, %v770
    %s779 = sld [smem:[#allocation4 + $0x17]]
    %v780 = vstv %s779
    %v781 = vmul.f32 %v780, %v471
    %v782 = vmul.f32 %v780, %v472
    %v783 = vmul.f32 %v780, %v473
    %v784 = vmul.f32 %v780, %v474
    %v789 = vrot.slane %v781, 1
    %v790 = vrot.slane %v782, 1
    %v791 = vsel %vm255, %v789, %v790
    %v792 = vrot.slane %v783, 1
    %v793 = vrot.slane %v784, 1
    %v794 = vsel %vm255, %v792, %v793
    %795 = vrot.lane.b32.xlu0 %v791, 127
    %v796 = vpop.permute.xlu0 %795
    %797 = vrot.lane.b32.xlu0 %v790, 127
    %v798 = vpop.permute.xlu0 %797
    %799 = vrot.lane.b32.xlu0 %v794, 127
    %v800 = vpop.permute.xlu0 %799
    %801 = vrot.lane.b32.xlu0 %v793, 127
    %v802 = vpop.permute.xlu0 %801
    %v807 = vadd.f32 %v687, %v796
    %v808 = vadd.f32 %v688, %v798
    %v809 = vadd.f32 %v689, %v800
    %v810 = vadd.f32 %v690, %v802
    %s811 = sld [smem:[#allocation4 + $0x1f]]
    %v812 = vstv %s811
    %v813 = vmul.f32 %v812, %v471
    %v814 = vmul.f32 %v812, %v472
    %v815 = vmul.f32 %v812, %v473
    %v816 = vmul.f32 %v812, %v474
    %v821 = vrot.slane %v813, 1
    %v822 = vrot.slane %v814, 1
    %v823 = vsel %vm255, %v821, %v822
    %v824 = vrot.slane %v815, 1
    %v825 = vrot.slane %v816, 1
    %v826 = vsel %vm255, %v824, %v825
    %827 = vrot.lane.b32.xlu0 %v823, 127
    %v828 = vpop.permute.xlu0 %827
    %829 = vrot.lane.b32.xlu0 %v822, 127
    %v830 = vpop.permute.xlu0 %829
    %831 = vrot.lane.b32.xlu0 %v826, 127
    %v832 = vpop.permute.xlu0 %831
    %833 = vrot.lane.b32.xlu0 %v825, 127
    %v834 = vpop.permute.xlu0 %833
    %v839 = vadd.f32 %v711, %v828
    %v840 = vadd.f32 %v712, %v830
    %v841 = vadd.f32 %v713, %v832
    %v842 = vadd.f32 %v714, %v834
    %s843 = sld [smem:[#allocation6]]
    %v844 = vstv %s843
    %v845 = vadd.f32 %v743, %v844
    %v846 = vadd.f32 %v744, %v844
    %v847 = vadd.f32 %v745, %v844
    %v848 = vadd.f32 %v746, %v844
    %v849 = vmax.f32 %v845, 0.0
    %v850 = vmax.f32 %v846, 0.0
    %v851 = vmax.f32 %v847, 0.0
    %v852 = vmax.f32 %v848, 0.0
    %vm853 = vcmask 121856
    %854 = vst.msk [vmem:[#allocation2] sm:$0xff] %vm853, %v849
    %vm855 = vcmask 120832
    %856 = vst.msk [vmem:[#allocation2 + $0x8] sm:$0x7f] %vm855, %v850
    %857 = vst.msk [vmem:[#allocation2 + $0x40] sm:$0xff] %vm853, %v851
    %858 = vst.msk [vmem:[#allocation2 + $0x48] sm:$0x7f] %vm855, %v852
    %s859 = sld [smem:[#allocation6 + $0x1]]
    %v860 = vstv %s859
    %v861 = vadd.f32 %v775, %v860
    %v862 = vadd.f32 %v776, %v860
    %v863 = vadd.f32 %v777, %v860
    %v864 = vadd.f32 %v778, %v860
    %v865 = vmax.f32 %v861, 0.0
    %v866 = vmax.f32 %v862, 0.0
    %v867 = vmax.f32 %v863, 0.0
    %v868 = vmax.f32 %v864, 0.0
    %s869 = scalar_lea.vmem [#allocation2], 16
    %870 = vst.msk [vmem:[%s869] sm:$0xff] %vm853, %v865
    %871 = vst.msk [vmem:[%s869 + $0x8] sm:$0x7f] %vm855, %v866
    %872 = vst.msk [vmem:[%s869 + $0x40] sm:$0xff] %vm853, %v867
    %873 = vst.msk [vmem:[%s869 + $0x48] sm:$0x7f] %vm855, %v868
    %s874 = sld [smem:[#allocation6 + $0x2]]
    %v875 = vstv %s874
    %v876 = vadd.f32 %v807, %v875
    %v877 = vadd.f32 %v808, %v875
    %v878 = vadd.f32 %v809, %v875
    %v879 = vadd.f32 %v810, %v875
    %v880 = vmax.f32 %v876, 0.0
    %v881 = vmax.f32 %v877, 0.0
    %v882 = vmax.f32 %v878, 0.0
    %v883 = vmax.f32 %v879, 0.0
    %s884 = scalar_lea.vmem [#allocation2], 32
    %885 = vst.msk [vmem:[%s884] sm:$0xff] %vm853, %v880
    %886 = vst.msk [vmem:[%s884 + $0x8] sm:$0x7f] %vm855, %v881
    %887 = vst.msk [vmem:[%s884 + $0x40] sm:$0xff] %vm853, %v882
    %888 = vst.msk [vmem:[%s884 + $0x48] sm:$0x7f] %vm855, %v883
    %s889 = sld [smem:[#allocation6 + $0x3]]
    %v890 = vstv %s889
    %v891 = vadd.f32 %v839, %v890
    %v892 = vadd.f32 %v840, %v890
    %v893 = vadd.f32 %v841, %v890
    %v894 = vadd.f32 %v842, %v890
    %v895 = vmax.f32 %v891, 0.0
    %v896 = vmax.f32 %v892, 0.0
    %v897 = vmax.f32 %v893, 0.0
    %v898 = vmax.f32 %v894, 0.0
    %s899 = scalar_lea.vmem [#allocation2], 48
    %900 = vst.msk [vmem:[%s899] sm:$0xff] %vm853, %v895
    %901 = vst.msk [vmem:[%s899 + $0x8] sm:$0x7f] %vm855, %v896
    %902 = vst.msk [vmem:[%s899 + $0x40] sm:$0xff] %vm853, %v897
    %903 = vst.msk [vmem:[%s899 + $0x48] sm:$0x7f] %vm855, %v898
    %v904 = vld [vmem:[#allocation2] sm:$0xff]
    %v905 = vld [vmem:[#allocation2 + $0x8] sm:$0x7f]
    %v906 = vld [vmem:[#allocation2 + $0x40] sm:$0xff]
    %v907 = vld [vmem:[#allocation2 + $0x48] sm:$0x7f]
    %s908 = sld [smem:[#allocation8]]
    %v909 = vstv %s908
    %v910 = vmul.f32 %v909, %v904
    %v911 = vmul.f32 %v909, %v905
    %v912 = vmul.f32 %v909, %v906
    %v913 = vmul.f32 %v909, %v907
    %v914 = vadd.f32 %v910, 0.0
    %v915 = vadd.f32 %v911, 0.0
    %v916 = vadd.f32 %v912, 0.0
    %v917 = vadd.f32 %v913, 0.0
    %s918 = sld [smem:[#allocation8 + $0x10]]
    %v919 = vstv %s918
    %v920 = vmul.f32 %v919, %v904
    %v921 = vmul.f32 %v919, %v905
    %v922 = vmul.f32 %v919, %v906
    %v923 = vmul.f32 %v919, %v907
    %v924 = vadd.f32 %v920, 0.0
    %v925 = vadd.f32 %v921, 0.0
    %v926 = vadd.f32 %v922, 0.0
    %v927 = vadd.f32 %v923, 0.0
    %s928 = sld [smem:[#allocation8 + $0x20]]
    %v929 = vstv %s928
    %v930 = vmul.f32 %v929, %v904
    %v931 = vmul.f32 %v929, %v905
    %v932 = vmul.f32 %v929, %v906
    %v933 = vmul.f32 %v929, %v907
    %v934 = vadd.f32 %v930, 0.0
    %v935 = vadd.f32 %v931, 0.0
    %v936 = vadd.f32 %v932, 0.0
    %v937 = vadd.f32 %v933, 0.0
    %s938 = sld [smem:[#allocation8 + $0x30]]
    %v939 = vstv %s938
    %v940 = vmul.f32 %v939, %v904
    %v941 = vmul.f32 %v939, %v905
    %v942 = vmul.f32 %v939, %v906
    %v943 = vmul.f32 %v939, %v907
    %v944 = vadd.f32 %v940, 0.0
    %v945 = vadd.f32 %v941, 0.0
    %v946 = vadd.f32 %v942, 0.0
    %v947 = vadd.f32 %v943, 0.0
    %s948 = sld [smem:[#allocation8 + $0x40]]
    %v949 = vstv %s948
    %v950 = vmul.f32 %v949, %v904
    %v951 = vmul.f32 %v949, %v905
    %v952 = vmul.f32 %v949, %v906
    %v953 = vmul.f32 %v949, %v907
    %v954 = vadd.f32 %v950, 0.0
    %v955 = vadd.f32 %v951, 0.0
    %v956 = vadd.f32 %v952, 0.0
    %v957 = vadd.f32 %v953, 0.0
    %s958 = sld [smem:[#allocation8 + $0x50]]
    %v959 = vstv %s958
    %v960 = vmul.f32 %v959, %v904
    %v961 = vmul.f32 %v959, %v905
    %v962 = vmul.f32 %v959, %v906
    %v963 = vmul.f32 %v959, %v907
    %v964 = vadd.f32 %v960, 0.0
    %v965 = vadd.f32 %v961, 0.0
    %v966 = vadd.f32 %v962, 0.0
    %v967 = vadd.f32 %v963, 0.0
    %s968 = sld [smem:[#allocation8 + $0x60]]
    %v969 = vstv %s968
    %v970 = vmul.f32 %v969, %v904
    %v971 = vmul.f32 %v969, %v905
    %v972 = vmul.f32 %v969, %v906
    %v973 = vmul.f32 %v969, %v907
    %v974 = vadd.f32 %v970, 0.0
    %v975 = vadd.f32 %v971, 0.0
    %v976 = vadd.f32 %v972, 0.0
    %v977 = vadd.f32 %v973, 0.0
    %s978 = sld [smem:[#allocation8 + $0x70]]
    %v979 = vstv %s978
    %v980 = vmul.f32 %v979, %v904
    %v981 = vmul.f32 %v979, %v905
    %v982 = vmul.f32 %v979, %v906
    %v983 = vmul.f32 %v979, %v907
    %v984 = vadd.f32 %v980, 0.0
    %v985 = vadd.f32 %v981, 0.0
    %v986 = vadd.f32 %v982, 0.0
    %v987 = vadd.f32 %v983, 0.0
    %s988 = sld [smem:[#allocation8 + $0x1]]
    %v989 = vstv %s988
    %v990 = vmul.f32 %v989, %v904
    %v991 = vmul.f32 %v989, %v905
    %v992 = vmul.f32 %v989, %v906
    %v993 = vmul.f32 %v989, %v907
    %998 = vrot.lane.b32.xlu0 %v990, 127
    %v999 = vpop.permute.xlu0 %998
    %1000 = vrot.lane.b32.xlu0 %v991, 127
    %v1001 = vpop.permute.xlu0 %1000
    %1002 = vrot.lane.b32.xlu0 %v992, 127
    %v1003 = vpop.permute.xlu0 %1002
    %1004 = vrot.lane.b32.xlu0 %v993, 127
    %v1005 = vpop.permute.xlu0 %1004
    %v1010 = vadd.f32 %v914, %v999
    %v1011 = vadd.f32 %v915, %v1001
    %v1012 = vadd.f32 %v916, %v1003
    %v1013 = vadd.f32 %v917, %v1005
    %s1014 = sld [smem:[#allocation8 + $0x11]]
    %v1015 = vstv %s1014
    %v1016 = vmul.f32 %v1015, %v904
    %v1017 = vmul.f32 %v1015, %v905
    %v1018 = vmul.f32 %v1015, %v906
    %v1019 = vmul.f32 %v1015, %v907
    %1024 = vrot.lane.b32.xlu0 %v1016, 127
    %v1025 = vpop.permute.xlu0 %1024
    %1026 = vrot.lane.b32.xlu0 %v1017, 127
    %v1027 = vpop.permute.xlu0 %1026
    %1028 = vrot.lane.b32.xlu0 %v1018, 127
    %v1029 = vpop.permute.xlu0 %1028
    %1030 = vrot.lane.b32.xlu0 %v1019, 127
    %v1031 = vpop.permute.xlu0 %1030
    %v1036 = vadd.f32 %v924, %v1025
    %v1037 = vadd.f32 %v925, %v1027
    %v1038 = vadd.f32 %v926, %v1029
    %v1039 = vadd.f32 %v927, %v1031
    %s1040 = sld [smem:[#allocation8 + $0x21]]
    %v1041 = vstv %s1040
    %v1042 = vmul.f32 %v1041, %v904
    %v1043 = vmul.f32 %v1041, %v905
    %v1044 = vmul.f32 %v1041, %v906
    %v1045 = vmul.f32 %v1041, %v907
    %1050 = vrot.lane.b32.xlu0 %v1042, 127
    %v1051 = vpop.permute.xlu0 %1050
    %1052 = vrot.lane.b32.xlu0 %v1043, 127
    %v1053 = vpop.permute.xlu0 %1052
    %1054 = vrot.lane.b32.xlu0 %v1044, 127
    %v1055 = vpop.permute.xlu0 %1054
    %1056 = vrot.lane.b32.xlu0 %v1045, 127
    %v1057 = vpop.permute.xlu0 %1056
    %v1062 = vadd.f32 %v934, %v1051
    %v1063 = vadd.f32 %v935, %v1053
    %v1064 = vadd.f32 %v936, %v1055
    %v1065 = vadd.f32 %v937, %v1057
    %s1066 = sld [smem:[#allocation8 + $0x31]]
    %v1067 = vstv %s1066
    %v1068 = vmul.f32 %v1067, %v904
    %v1069 = vmul.f32 %v1067, %v905
    %v1070 = vmul.f32 %v1067, %v906
    %v1071 = vmul.f32 %v1067, %v907
    %1076 = vrot.lane.b32.xlu0 %v1068, 127
    %v1077 = vpop.permute.xlu0 %1076
    %1078 = vrot.lane.b32.xlu0 %v1069, 127
    %v1079 = vpop.permute.xlu0 %1078
    %1080 = vrot.lane.b32.xlu0 %v1070, 127
    %v1081 = vpop.permute.xlu0 %1080
    %1082 = vrot.lane.b32.xlu0 %v1071, 127
    %v1083 = vpop.permute.xlu0 %1082
    %v1088 = vadd.f32 %v944, %v1077
    %v1089 = vadd.f32 %v945, %v1079
    %v1090 = vadd.f32 %v946, %v1081
    %v1091 = vadd.f32 %v947, %v1083
    %s1092 = sld [smem:[#allocation8 + $0x41]]
    %v1093 = vstv %s1092
    %v1094 = vmul.f32 %v1093, %v904
    %v1095 = vmul.f32 %v1093, %v905
    %v1096 = vmul.f32 %v1093, %v906
    %v1097 = vmul.f32 %v1093, %v907
    %1102 = vrot.lane.b32.xlu0 %v1094, 127
    %v1103 = vpop.permute.xlu0 %1102
    %1104 = vrot.lane.b32.xlu0 %v1095, 127
    %v1105 = vpop.permute.xlu0 %1104
    %1106 = vrot.lane.b32.xlu0 %v1096, 127
    %v1107 = vpop.permute.xlu0 %1106
    %1108 = vrot.lane.b32.xlu0 %v1097, 127
    %v1109 = vpop.permute.xlu0 %1108
    %v1114 = vadd.f32 %v954, %v1103
    %v1115 = vadd.f32 %v955, %v1105
    %v1116 = vadd.f32 %v956, %v1107
    %v1117 = vadd.f32 %v957, %v1109
    %s1118 = sld [smem:[#allocation8 + $0x51]]
    %v1119 = vstv %s1118
    %v1120 = vmul.f32 %v1119, %v904
    %v1121 = vmul.f32 %v1119, %v905
    %v1122 = vmul.f32 %v1119, %v906
    %v1123 = vmul.f32 %v1119, %v907
    %1128 = vrot.lane.b32.xlu0 %v1120, 127
    %v1129 = vpop.permute.xlu0 %1128
    %1130 = vrot.lane.b32.xlu0 %v1121, 127
    %v1131 = vpop.permute.xlu0 %1130
    %1132 = vrot.lane.b32.xlu0 %v1122, 127
    %v1133 = vpop.permute.xlu0 %1132
    %1134 = vrot.lane.b32.xlu0 %v1123, 127
    %v1135 = vpop.permute.xlu0 %1134
    %v1140 = vadd.f32 %v964, %v1129
    %v1141 = vadd.f32 %v965, %v1131
    %v1142 = vadd.f32 %v966, %v1133
    %v1143 = vadd.f32 %v967, %v1135
    %s1144 = sld [smem:[#allocation8 + $0x61]]
    %v1145 = vstv %s1144
    %v1146 = vmul.f32 %v1145, %v904
    %v1147 = vmul.f32 %v1145, %v905
    %v1148 = vmul.f32 %v1145, %v906
    %v1149 = vmul.f32 %v1145, %v907
    %1154 = vrot.lane.b32.xlu0 %v1146, 127
    %v1155 = vpop.permute.xlu0 %1154
    %1156 = vrot.lane.b32.xlu0 %v1147, 127
    %v1157 = vpop.permute.xlu0 %1156
    %1158 = vrot.lane.b32.xlu0 %v1148, 127
    %v1159 = vpop.permute.xlu0 %1158
    %1160 = vrot.lane.b32.xlu0 %v1149, 127
    %v1161 = vpop.permute.xlu0 %1160
    %v1166 = vadd.f32 %v974, %v1155
    %v1167 = vadd.f32 %v975, %v1157
    %v1168 = vadd.f32 %v976, %v1159
    %v1169 = vadd.f32 %v977, %v1161
    %s1170 = sld [smem:[#allocation8 + $0x71]]
    %v1171 = vstv %s1170
    %v1172 = vmul.f32 %v1171, %v904
    %v1173 = vmul.f32 %v1171, %v905
    %v1174 = vmul.f32 %v1171, %v906
    %v1175 = vmul.f32 %v1171, %v907
    %1180 = vrot.lane.b32.xlu0 %v1172, 127
    %v1181 = vpop.permute.xlu0 %1180
    %1182 = vrot.lane.b32.xlu0 %v1173, 127
    %v1183 = vpop.permute.xlu0 %1182
    %1184 = vrot.lane.b32.xlu0 %v1174, 127
    %v1185 = vpop.permute.xlu0 %1184
    %1186 = vrot.lane.b32.xlu0 %v1175, 127
    %v1187 = vpop.permute.xlu0 %1186
    %v1192 = vadd.f32 %v984, %v1181
    %v1193 = vadd.f32 %v985, %v1183
    %v1194 = vadd.f32 %v986, %v1185
    %v1195 = vadd.f32 %v987, %v1187
    %s1196 = sld [smem:[#allocation8 + $0x2]]
    %v1197 = vstv %s1196
    %v1198 = vmul.f32 %v1197, %v904
    %v1199 = vmul.f32 %v1197, %v905
    %v1200 = vmul.f32 %v1197, %v906
    %v1201 = vmul.f32 %v1197, %v907
    %v1206 = vrot.slane %v1198, 1
    %v1207 = vrot.slane %v1199, 1
    %v1208 = vsel %vm255, %v1206, %v1207
    %v1209 = vrot.slane %v1200, 1
    %v1210 = vrot.slane %v1201, 1
    %v1211 = vsel %vm255, %v1209, %v1210
    %v1216 = vadd.f32 %v1010, %v1208
    %v1217 = vadd.f32 %v1011, %v1207
    %v1218 = vadd.f32 %v1012, %v1211
    %v1219 = vadd.f32 %v1013, %v1210
    %s1220 = sld [smem:[#allocation8 + $0x12]]
    %v1221 = vstv %s1220
    %v1222 = vmul.f32 %v1221, %v904
    %v1223 = vmul.f32 %v1221, %v905
    %v1224 = vmul.f32 %v1221, %v906
    %v1225 = vmul.f32 %v1221, %v907
    %v1230 = vrot.slane %v1222, 1
    %v1231 = vrot.slane %v1223, 1
    %v1232 = vsel %vm255, %v1230, %v1231
    %v1233 = vrot.slane %v1224, 1
    %v1234 = vrot.slane %v1225, 1
    %v1235 = vsel %vm255, %v1233, %v1234
    %v1240 = vadd.f32 %v1036, %v1232
    %v1241 = vadd.f32 %v1037, %v1231
    %v1242 = vadd.f32 %v1038, %v1235
    %v1243 = vadd.f32 %v1039, %v1234
    %s1244 = sld [smem:[#allocation8 + $0x22]]
    %v1245 = vstv %s1244
    %v1246 = vmul.f32 %v1245, %v904
    %v1247 = vmul.f32 %v1245, %v905
    %v1248 = vmul.f32 %v1245, %v906
    %v1249 = vmul.f32 %v1245, %v907
    %v1254 = vrot.slane %v1246, 1
    %v1255 = vrot.slane %v1247, 1
    %v1256 = vsel %vm255, %v1254, %v1255
    %v1257 = vrot.slane %v1248, 1
    %v1258 = vrot.slane %v1249, 1
    %v1259 = vsel %vm255, %v1257, %v1258
    %v1264 = vadd.f32 %v1062, %v1256
    %v1265 = vadd.f32 %v1063, %v1255
    %v1266 = vadd.f32 %v1064, %v1259
    %v1267 = vadd.f32 %v1065, %v1258
    %s1268 = sld [smem:[#allocation8 + $0x32]]
    %v1269 = vstv %s1268
    %v1270 = vmul.f32 %v1269, %v904
    %v1271 = vmul.f32 %v1269, %v905
    %v1272 = vmul.f32 %v1269, %v906
    %v1273 = vmul.f32 %v1269, %v907
    %v1278 = vrot.slane %v1270, 1
    %v1279 = vrot.slane %v1271, 1
    %v1280 = vsel %vm255, %v1278, %v1279
    %v1281 = vrot.slane %v1272, 1
    %v1282 = vrot.slane %v1273, 1
    %v1283 = vsel %vm255, %v1281, %v1282
    %v1288 = vadd.f32 %v1088, %v1280
    %v1289 = vadd.f32 %v1089, %v1279
    %v1290 = vadd.f32 %v1090, %v1283
    %v1291 = vadd.f32 %v1091, %v1282
    %s1292 = sld [smem:[#allocation8 + $0x42]]
    %v1293 = vstv %s1292
    %v1294 = vmul.f32 %v1293, %v904
    %v1295 = vmul.f32 %v1293, %v905
    %v1296 = vmul.f32 %v1293, %v906
    %v1297 = vmul.f32 %v1293, %v907
    %v1302 = vrot.slane %v1294, 1
    %v1303 = vrot.slane %v1295, 1
    %v1304 = vsel %vm255, %v1302, %v1303
    %v1305 = vrot.slane %v1296, 1
    %v1306 = vrot.slane %v1297, 1
    %v1307 = vsel %vm255, %v1305, %v1306
    %v1312 = vadd.f32 %v1114, %v1304
    %v1313 = vadd.f32 %v1115, %v1303
    %v1314 = vadd.f32 %v1116, %v1307
    %v1315 = vadd.f32 %v1117, %v1306
    %s1316 = sld [smem:[#allocation8 + $0x52]]
    %v1317 = vstv %s1316
    %v1318 = vmul.f32 %v1317, %v904
    %v1319 = vmul.f32 %v1317, %v905
    %v1320 = vmul.f32 %v1317, %v906
    %v1321 = vmul.f32 %v1317, %v907
    %v1326 = vrot.slane %v1318, 1
    %v1327 = vrot.slane %v1319, 1
    %v1328 = vsel %vm255, %v1326, %v1327
    %v1329 = vrot.slane %v1320, 1
    %v1330 = vrot.slane %v1321, 1
    %v1331 = vsel %vm255, %v1329, %v1330
    %v1336 = vadd.f32 %v1140, %v1328
    %v1337 = vadd.f32 %v1141, %v1327
    %v1338 = vadd.f32 %v1142, %v1331
    %v1339 = vadd.f32 %v1143, %v1330
    %s1340 = sld [smem:[#allocation8 + $0x62]]
    %v1341 = vstv %s1340
    %v1342 = vmul.f32 %v1341, %v904
    %v1343 = vmul.f32 %v1341, %v905
    %v1344 = vmul.f32 %v1341, %v906
    %v1345 = vmul.f32 %v1341, %v907
    %v1350 = vrot.slane %v1342, 1
    %v1351 = vrot.slane %v1343, 1
    %v1352 = vsel %vm255, %v1350, %v1351
    %v1353 = vrot.slane %v1344, 1
    %v1354 = vrot.slane %v1345, 1
    %v1355 = vsel %vm255, %v1353, %v1354
    %v1360 = vadd.f32 %v1166, %v1352
    %v1361 = vadd.f32 %v1167, %v1351
    %v1362 = vadd.f32 %v1168, %v1355
    %v1363 = vadd.f32 %v1169, %v1354
    %s1364 = sld [smem:[#allocation8 + $0x72]]
    %v1365 = vstv %s1364
    %v1366 = vmul.f32 %v1365, %v904
    %v1367 = vmul.f32 %v1365, %v905
    %v1368 = vmul.f32 %v1365, %v906
    %v1369 = vmul.f32 %v1365, %v907
    %v1374 = vrot.slane %v1366, 1
    %v1375 = vrot.slane %v1367, 1
    %v1376 = vsel %vm255, %v1374, %v1375
    %v1377 = vrot.slane %v1368, 1
    %v1378 = vrot.slane %v1369, 1
    %v1379 = vsel %vm255, %v1377, %v1378
    %v1384 = vadd.f32 %v1192, %v1376
    %v1385 = vadd.f32 %v1193, %v1375
    %v1386 = vadd.f32 %v1194, %v1379
    %v1387 = vadd.f32 %v1195, %v1378
    %s1388 = sld [smem:[#allocation8 + $0x3]]
    %v1389 = vstv %s1388
    %v1390 = vmul.f32 %v1389, %v904
    %v1391 = vmul.f32 %v1389, %v905
    %v1392 = vmul.f32 %v1389, %v906
    %v1393 = vmul.f32 %v1389, %v907
    %v1398 = vrot.slane %v1390, 1
    %v1399 = vrot.slane %v1391, 1
    %v1400 = vsel %vm255, %v1398, %v1399
    %v1401 = vrot.slane %v1392, 1
    %v1402 = vrot.slane %v1393, 1
    %v1403 = vsel %vm255, %v1401, %v1402
    %1404 = vrot.lane.b32.xlu0 %v1400, 127
    %v1405 = vpop.permute.xlu0 %1404
    %1406 = vrot.lane.b32.xlu0 %v1399, 127
    %v1407 = vpop.permute.xlu0 %1406
    %1408 = vrot.lane.b32.xlu0 %v1403, 127
    %v1409 = vpop.permute.xlu0 %1408
    %1410 = vrot.lane.b32.xlu0 %v1402, 127
    %v1411 = vpop.permute.xlu0 %1410
    %v1416 = vadd.f32 %v1216, %v1405
    %v1417 = vadd.f32 %v1217, %v1407
    %v1418 = vadd.f32 %v1218, %v1409
    %v1419 = vadd.f32 %v1219, %v1411
    %s1420 = sld [smem:[#allocation8 + $0x13]]
    %v1421 = vstv %s1420
    %v1422 = vmul.f32 %v1421, %v904
    %v1423 = vmul.f32 %v1421, %v905
    %v1424 = vmul.f32 %v1421, %v906
    %v1425 = vmul.f32 %v1421, %v907
    %v1430 = vrot.slane %v1422, 1
    %v1431 = vrot.slane %v1423, 1
    %v1432 = vsel %vm255, %v1430, %v1431
    %v1433 = vrot.slane %v1424, 1
    %v1434 = vrot.slane %v1425, 1
    %v1435 = vsel %vm255, %v1433, %v1434
    %1436 = vrot.lane.b32.xlu0 %v1432, 127
    %v1437 = vpop.permute.xlu0 %1436
    %1438 = vrot.lane.b32.xlu0 %v1431, 127
    %v1439 = vpop.permute.xlu0 %1438
    %1440 = vrot.lane.b32.xlu0 %v1435, 127
    %v1441 = vpop.permute.xlu0 %1440
    %1442 = vrot.lane.b32.xlu0 %v1434, 127
    %v1443 = vpop.permute.xlu0 %1442
    %v1448 = vadd.f32 %v1240, %v1437
    %v1449 = vadd.f32 %v1241, %v1439
    %v1450 = vadd.f32 %v1242, %v1441
    %v1451 = vadd.f32 %v1243, %v1443
    %s1452 = sld [smem:[#allocation8 + $0x23]]
    %v1453 = vstv %s1452
    %v1454 = vmul.f32 %v1453, %v904
    %v1455 = vmul.f32 %v1453, %v905
    %v1456 = vmul.f32 %v1453, %v906
    %v1457 = vmul.f32 %v1453, %v907
    %v1462 = vrot.slane %v1454, 1
    %v1463 = vrot.slane %v1455, 1
    %v1464 = vsel %vm255, %v1462, %v1463
    %v1465 = vrot.slane %v1456, 1
    %v1466 = vrot.slane %v1457, 1
    %v1467 = vsel %vm255, %v1465, %v1466
    %1468 = vrot.lane.b32.xlu0 %v1464, 127
    %v1469 = vpop.permute.xlu0 %1468
    %1470 = vrot.lane.b32.xlu0 %v1463, 127
    %v1471 = vpop.permute.xlu0 %1470
    %1472 = vrot.lane.b32.xlu0 %v1467, 127
    %v1473 = vpop.permute.xlu0 %1472
    %1474 = vrot.lane.b32.xlu0 %v1466, 127
    %v1475 = vpop.permute.xlu0 %1474
    %v1480 = vadd.f32 %v1264, %v1469
    %v1481 = vadd.f32 %v1265, %v1471
    %v1482 = vadd.f32 %v1266, %v1473
    %v1483 = vadd.f32 %v1267, %v1475
    %s1484 = sld [smem:[#allocation8 + $0x33]]
    %v1485 = vstv %s1484
    %v1486 = vmul.f32 %v1485, %v904
    %v1487 = vmul.f32 %v1485, %v905
    %v1488 = vmul.f32 %v1485, %v906
    %v1489 = vmul.f32 %v1485, %v907
    %v1494 = vrot.slane %v1486, 1
    %v1495 = vrot.slane %v1487, 1
    %v1496 = vsel %vm255, %v1494, %v1495
    %v1497 = vrot.slane %v1488, 1
    %v1498 = vrot.slane %v1489, 1
    %v1499 = vsel %vm255, %v1497, %v1498
    %1500 = vrot.lane.b32.xlu0 %v1496, 127
    %v1501 = vpop.permute.xlu0 %1500
    %1502 = vrot.lane.b32.xlu0 %v1495, 127
    %v1503 = vpop.permute.xlu0 %1502
    %1504 = vrot.lane.b32.xlu0 %v1499, 127
    %v1505 = vpop.permute.xlu0 %1504
    %1506 = vrot.lane.b32.xlu0 %v1498, 127
    %v1507 = vpop.permute.xlu0 %1506
    %v1512 = vadd.f32 %v1288, %v1501
    %v1513 = vadd.f32 %v1289, %v1503
    %v1514 = vadd.f32 %v1290, %v1505
    %v1515 = vadd.f32 %v1291, %v1507
    %s1516 = sld [smem:[#allocation8 + $0x43]]
    %v1517 = vstv %s1516
    %v1518 = vmul.f32 %v1517, %v904
    %v1519 = vmul.f32 %v1517, %v905
    %v1520 = vmul.f32 %v1517, %v906
    %v1521 = vmul.f32 %v1517, %v907
    %v1526 = vrot.slane %v1518, 1
    %v1527 = vrot.slane %v1519, 1
    %v1528 = vsel %vm255, %v1526, %v1527
    %v1529 = vrot.slane %v1520, 1
    %v1530 = vrot.slane %v1521, 1
    %v1531 = vsel %vm255, %v1529, %v1530
    %1532 = vrot.lane.b32.xlu0 %v1528, 127
    %v1533 = vpop.permute.xlu0 %1532
    %1534 = vrot.lane.b32.xlu0 %v1527, 127
    %v1535 = vpop.permute.xlu0 %1534
    %1536 = vrot.lane.b32.xlu0 %v1531, 127
    %v1537 = vpop.permute.xlu0 %1536
    %1538 = vrot.lane.b32.xlu0 %v1530, 127
    %v1539 = vpop.permute.xlu0 %1538
    %v1544 = vadd.f32 %v1312, %v1533
    %v1545 = vadd.f32 %v1313, %v1535
    %v1546 = vadd.f32 %v1314, %v1537
    %v1547 = vadd.f32 %v1315, %v1539
    %s1548 = sld [smem:[#allocation8 + $0x53]]
    %v1549 = vstv %s1548
    %v1550 = vmul.f32 %v1549, %v904
    %v1551 = vmul.f32 %v1549, %v905
    %v1552 = vmul.f32 %v1549, %v906
    %v1553 = vmul.f32 %v1549, %v907
    %v1558 = vrot.slane %v1550, 1
    %v1559 = vrot.slane %v1551, 1
    %v1560 = vsel %vm255, %v1558, %v1559
    %v1561 = vrot.slane %v1552, 1
    %v1562 = vrot.slane %v1553, 1
    %v1563 = vsel %vm255, %v1561, %v1562
    %1564 = vrot.lane.b32.xlu0 %v1560, 127
    %v1565 = vpop.permute.xlu0 %1564
    %1566 = vrot.lane.b32.xlu0 %v1559, 127
    %v1567 = vpop.permute.xlu0 %1566
    %1568 = vrot.lane.b32.xlu0 %v1563, 127
    %v1569 = vpop.permute.xlu0 %1568
    %1570 = vrot.lane.b32.xlu0 %v1562, 127
    %v1571 = vpop.permute.xlu0 %1570
    %v1576 = vadd.f32 %v1336, %v1565
    %v1577 = vadd.f32 %v1337, %v1567
    %v1578 = vadd.f32 %v1338, %v1569
    %v1579 = vadd.f32 %v1339, %v1571
    %s1580 = sld [smem:[#allocation8 + $0x63]]
    %v1581 = vstv %s1580
    %v1582 = vmul.f32 %v1581, %v904
    %v1583 = vmul.f32 %v1581, %v905
    %v1584 = vmul.f32 %v1581, %v906
    %v1585 = vmul.f32 %v1581, %v907
    %v1590 = vrot.slane %v1582, 1
    %v1591 = vrot.slane %v1583, 1
    %v1592 = vsel %vm255, %v1590, %v1591
    %v1593 = vrot.slane %v1584, 1
    %v1594 = vrot.slane %v1585, 1
    %v1595 = vsel %vm255, %v1593, %v1594
    %1596 = vrot.lane.b32.xlu0 %v1592, 127
    %v1597 = vpop.permute.xlu0 %1596
    %1598 = vrot.lane.b32.xlu0 %v1591, 127
    %v1599 = vpop.permute.xlu0 %1598
    %1600 = vrot.lane.b32.xlu0 %v1595, 127
    %v1601 = vpop.permute.xlu0 %1600
    %1602 = vrot.lane.b32.xlu0 %v1594, 127
    %v1603 = vpop.permute.xlu0 %1602
    %v1608 = vadd.f32 %v1360, %v1597
    %v1609 = vadd.f32 %v1361, %v1599
    %v1610 = vadd.f32 %v1362, %v1601
    %v1611 = vadd.f32 %v1363, %v1603
    %s1612 = sld [smem:[#allocation8 + $0x73]]
    %v1613 = vstv %s1612
    %v1614 = vmul.f32 %v1613, %v904
    %v1615 = vmul.f32 %v1613, %v905
    %v1616 = vmul.f32 %v1613, %v906
    %v1617 = vmul.f32 %v1613, %v907
    %v1622 = vrot.slane %v1614, 1
    %v1623 = vrot.slane %v1615, 1
    %v1624 = vsel %vm255, %v1622, %v1623
    %v1625 = vrot.slane %v1616, 1
    %v1626 = vrot.slane %v1617, 1
    %v1627 = vsel %vm255, %v1625, %v1626
    %1628 = vrot.lane.b32.xlu0 %v1624, 127
    %v1629 = vpop.permute.xlu0 %1628
    %1630 = vrot.lane.b32.xlu0 %v1623, 127
    %v1631 = vpop.permute.xlu0 %1630
    %1632 = vrot.lane.b32.xlu0 %v1627, 127
    %v1633 = vpop.permute.xlu0 %1632
    %1634 = vrot.lane.b32.xlu0 %v1626, 127
    %v1635 = vpop.permute.xlu0 %1634
    %v1640 = vadd.f32 %v1384, %v1629
    %v1641 = vadd.f32 %v1385, %v1631
    %v1642 = vadd.f32 %v1386, %v1633
    %v1643 = vadd.f32 %v1387, %v1635
    %v1644 = vld [vmem:[%s869] sm:$0xff]
    %v1645 = vld [vmem:[%s869 + $0x8] sm:$0x7f]
    %v1646 = vld [vmem:[%s869 + $0x40] sm:$0xff]
    %v1647 = vld [vmem:[%s869 + $0x48] sm:$0x7f]
    %s1648 = sld [smem:[#allocation8 + $0x4]]
    %v1649 = vstv %s1648
    %v1650 = vmul.f32 %v1649, %v1644
    %v1651 = vmul.f32 %v1649, %v1645
    %v1652 = vmul.f32 %v1649, %v1646
    %v1653 = vmul.f32 %v1649, %v1647
    %v1654 = vadd.f32 %v1416, %v1650
    %v1655 = vadd.f32 %v1417, %v1651
    %v1656 = vadd.f32 %v1418, %v1652
    %v1657 = vadd.f32 %v1419, %v1653
    %s1658 = sld [smem:[#allocation8 + $0x14]]
    %v1659 = vstv %s1658
    %v1660 = vmul.f32 %v1659, %v1644
    %v1661 = vmul.f32 %v1659, %v1645
    %v1662 = vmul.f32 %v1659, %v1646
    %v1663 = vmul.f32 %v1659, %v1647
    %v1664 = vadd.f32 %v1448, %v1660
    %v1665 = vadd.f32 %v1449, %v1661
    %v1666 = vadd.f32 %v1450, %v1662
    %v1667 = vadd.f32 %v1451, %v1663
    %s1668 = sld [smem:[#allocation8 + $0x24]]
    %v1669 = vstv %s1668
    %v1670 = vmul.f32 %v1669, %v1644
    %v1671 = vmul.f32 %v1669, %v1645
    %v1672 = vmul.f32 %v1669, %v1646
    %v1673 = vmul.f32 %v1669, %v1647
    %v1674 = vadd.f32 %v1480, %v1670
    %v1675 = vadd.f32 %v1481, %v1671
    %v1676 = vadd.f32 %v1482, %v1672
    %v1677 = vadd.f32 %v1483, %v1673
    %s1678 = sld [smem:[#allocation8 + $0x34]]
    %v1679 = vstv %s1678
    %v1680 = vmul.f32 %v1679, %v1644
    %v1681 = vmul.f32 %v1679, %v1645
    %v1682 = vmul.f32 %v1679, %v1646
    %v1683 = vmul.f32 %v1679, %v1647
    %v1684 = vadd.f32 %v1512, %v1680
    %v1685 = vadd.f32 %v1513, %v1681
    %v1686 = vadd.f32 %v1514, %v1682
    %v1687 = vadd.f32 %v1515, %v1683
    %s1688 = sld [smem:[#allocation8 + $0x44]]
    %v1689 = vstv %s1688
    %v1690 = vmul.f32 %v1689, %v1644
    %v1691 = vmul.f32 %v1689, %v1645
    %v1692 = vmul.f32 %v1689, %v1646
    %v1693 = vmul.f32 %v1689, %v1647
    %v1694 = vadd.f32 %v1544, %v1690
    %v1695 = vadd.f32 %v1545, %v1691
    %v1696 = vadd.f32 %v1546, %v1692
    %v1697 = vadd.f32 %v1547, %v1693
    %s1698 = sld [smem:[#allocation8 + $0x54]]
    %v1699 = vstv %s1698
    %v1700 = vmul.f32 %v1699, %v1644
    %v1701 = vmul.f32 %v1699, %v1645
    %v1702 = vmul.f32 %v1699, %v1646
    %v1703 = vmul.f32 %v1699, %v1647
    %v1704 = vadd.f32 %v1576, %v1700
    %v1705 = vadd.f32 %v1577, %v1701
    %v1706 = vadd.f32 %v1578, %v1702
    %v1707 = vadd.f32 %v1579, %v1703
    %s1708 = sld [smem:[#allocation8 + $0x64]]
    %v1709 = vstv %s1708
    %v1710 = vmul.f32 %v1709, %v1644
    %v1711 = vmul.f32 %v1709, %v1645
    %v1712 = vmul.f32 %v1709, %v1646
    %v1713 = vmul.f32 %v1709, %v1647
    %v1714 = vadd.f32 %v1608, %v1710
    %v1715 = vadd.f32 %v1609, %v1711
    %v1716 = vadd.f32 %v1610, %v1712
    %v1717 = vadd.f32 %v1611, %v1713
    %s1718 = sld [smem:[#allocation8 + $0x74]]
    %v1719 = vstv %s1718
    %v1720 = vmul.f32 %v1719, %v1644
    %v1721 = vmul.f32 %v1719, %v1645
    %v1722 = vmul.f32 %v1719, %v1646
    %v1723 = vmul.f32 %v1719, %v1647
    %v1724 = vadd.f32 %v1640, %v1720
    %v1725 = vadd.f32 %v1641, %v1721
    %v1726 = vadd.f32 %v1642, %v1722
    %v1727 = vadd.f32 %v1643, %v1723
    %s1728 = sld [smem:[#allocation8 + $0x5]]
    %v1729 = vstv %s1728
    %v1730 = vmul.f32 %v1729, %v1644
    %v1731 = vmul.f32 %v1729, %v1645
    %v1732 = vmul.f32 %v1729, %v1646
    %v1733 = vmul.f32 %v1729, %v1647
    %1738 = vrot.lane.b32.xlu0 %v1730, 127
    %v1739 = vpop.permute.xlu0 %1738
    %1740 = vrot.lane.b32.xlu0 %v1731, 127
    %v1741 = vpop.permute.xlu0 %1740
    %1742 = vrot.lane.b32.xlu0 %v1732, 127
    %v1743 = vpop.permute.xlu0 %1742
    %1744 = vrot.lane.b32.xlu0 %v1733, 127
    %v1745 = vpop.permute.xlu0 %1744
    %v1750 = vadd.f32 %v1654, %v1739
    %v1751 = vadd.f32 %v1655, %v1741
    %v1752 = vadd.f32 %v1656, %v1743
    %v1753 = vadd.f32 %v1657, %v1745
    %s1754 = sld [smem:[#allocation8 + $0x15]]
    %v1755 = vstv %s1754
    %v1756 = vmul.f32 %v1755, %v1644
    %v1757 = vmul.f32 %v1755, %v1645
    %v1758 = vmul.f32 %v1755, %v1646
    %v1759 = vmul.f32 %v1755, %v1647
    %1764 = vrot.lane.b32.xlu0 %v1756, 127
    %v1765 = vpop.permute.xlu0 %1764
    %1766 = vrot.lane.b32.xlu0 %v1757, 127
    %v1767 = vpop.permute.xlu0 %1766
    %1768 = vrot.lane.b32.xlu0 %v1758, 127
    %v1769 = vpop.permute.xlu0 %1768
    %1770 = vrot.lane.b32.xlu0 %v1759, 127
    %v1771 = vpop.permute.xlu0 %1770
    %v1776 = vadd.f32 %v1664, %v1765
    %v1777 = vadd.f32 %v1665, %v1767
    %v1778 = vadd.f32 %v1666, %v1769
    %v1779 = vadd.f32 %v1667, %v1771
    %s1780 = sld [smem:[#allocation8 + $0x25]]
    %v1781 = vstv %s1780
    %v1782 = vmul.f32 %v1781, %v1644
    %v1783 = vmul.f32 %v1781, %v1645
    %v1784 = vmul.f32 %v1781, %v1646
    %v1785 = vmul.f32 %v1781, %v1647
    %1790 = vrot.lane.b32.xlu0 %v1782, 127
    %v1791 = vpop.permute.xlu0 %1790
    %1792 = vrot.lane.b32.xlu0 %v1783, 127
    %v1793 = vpop.permute.xlu0 %1792
    %1794 = vrot.lane.b32.xlu0 %v1784, 127
    %v1795 = vpop.permute.xlu0 %1794
    %1796 = vrot.lane.b32.xlu0 %v1785, 127
    %v1797 = vpop.permute.xlu0 %1796
    %v1802 = vadd.f32 %v1674, %v1791
    %v1803 = vadd.f32 %v1675, %v1793
    %v1804 = vadd.f32 %v1676, %v1795
    %v1805 = vadd.f32 %v1677, %v1797
    %s1806 = sld [smem:[#allocation8 + $0x35]]
    %v1807 = vstv %s1806
    %v1808 = vmul.f32 %v1807, %v1644
    %v1809 = vmul.f32 %v1807, %v1645
    %v1810 = vmul.f32 %v1807, %v1646
    %v1811 = vmul.f32 %v1807, %v1647
    %1816 = vrot.lane.b32.xlu0 %v1808, 127
    %v1817 = vpop.permute.xlu0 %1816
    %1818 = vrot.lane.b32.xlu0 %v1809, 127
    %v1819 = vpop.permute.xlu0 %1818
    %1820 = vrot.lane.b32.xlu0 %v1810, 127
    %v1821 = vpop.permute.xlu0 %1820
    %1822 = vrot.lane.b32.xlu0 %v1811, 127
    %v1823 = vpop.permute.xlu0 %1822
    %v1828 = vadd.f32 %v1684, %v1817
    %v1829 = vadd.f32 %v1685, %v1819
    %v1830 = vadd.f32 %v1686, %v1821
    %v1831 = vadd.f32 %v1687, %v1823
    %s1832 = sld [smem:[#allocation8 + $0x45]]
    %v1833 = vstv %s1832
    %v1834 = vmul.f32 %v1833, %v1644
    %v1835 = vmul.f32 %v1833, %v1645
    %v1836 = vmul.f32 %v1833, %v1646
    %v1837 = vmul.f32 %v1833, %v1647
    %1842 = vrot.lane.b32.xlu0 %v1834, 127
    %v1843 = vpop.permute.xlu0 %1842
    %1844 = vrot.lane.b32.xlu0 %v1835, 127
    %v1845 = vpop.permute.xlu0 %1844
    %1846 = vrot.lane.b32.xlu0 %v1836, 127
    %v1847 = vpop.permute.xlu0 %1846
    %1848 = vrot.lane.b32.xlu0 %v1837, 127
    %v1849 = vpop.permute.xlu0 %1848
    %v1854 = vadd.f32 %v1694, %v1843
    %v1855 = vadd.f32 %v1695, %v1845
    %v1856 = vadd.f32 %v1696, %v1847
    %v1857 = vadd.f32 %v1697, %v1849
    %s1858 = sld [smem:[#allocation8 + $0x55]]
    %v1859 = vstv %s1858
    %v1860 = vmul.f32 %v1859, %v1644
    %v1861 = vmul.f32 %v1859, %v1645
    %v1862 = vmul.f32 %v1859, %v1646
    %v1863 = vmul.f32 %v1859, %v1647
    %1868 = vrot.lane.b32.xlu0 %v1860, 127
    %v1869 = vpop.permute.xlu0 %1868
    %1870 = vrot.lane.b32.xlu0 %v1861, 127
    %v1871 = vpop.permute.xlu0 %1870
    %1872 = vrot.lane.b32.xlu0 %v1862, 127
    %v1873 = vpop.permute.xlu0 %1872
    %1874 = vrot.lane.b32.xlu0 %v1863, 127
    %v1875 = vpop.permute.xlu0 %1874
    %v1880 = vadd.f32 %v1704, %v1869
    %v1881 = vadd.f32 %v1705, %v1871
    %v1882 = vadd.f32 %v1706, %v1873
    %v1883 = vadd.f32 %v1707, %v1875
    %s1884 = sld [smem:[#allocation8 + $0x65]]
    %v1885 = vstv %s1884
    %v1886 = vmul.f32 %v1885, %v1644
    %v1887 = vmul.f32 %v1885, %v1645
    %v1888 = vmul.f32 %v1885, %v1646
    %v1889 = vmul.f32 %v1885, %v1647
    %1894 = vrot.lane.b32.xlu0 %v1886, 127
    %v1895 = vpop.permute.xlu0 %1894
    %1896 = vrot.lane.b32.xlu0 %v1887, 127
    %v1897 = vpop.permute.xlu0 %1896
    %1898 = vrot.lane.b32.xlu0 %v1888, 127
    %v1899 = vpop.permute.xlu0 %1898
    %1900 = vrot.lane.b32.xlu0 %v1889, 127
    %v1901 = vpop.permute.xlu0 %1900
    %v1906 = vadd.f32 %v1714, %v1895
    %v1907 = vadd.f32 %v1715, %v1897
    %v1908 = vadd.f32 %v1716, %v1899
    %v1909 = vadd.f32 %v1717, %v1901
    %s1910 = sld [smem:[#allocation8 + $0x75]]
    %v1911 = vstv %s1910
    %v1912 = vmul.f32 %v1911, %v1644
    %v1913 = vmul.f32 %v1911, %v1645
    %v1914 = vmul.f32 %v1911, %v1646
    %v1915 = vmul.f32 %v1911, %v1647
    %1920 = vrot.lane.b32.xlu0 %v1912, 127
    %v1921 = vpop.permute.xlu0 %1920
    %1922 = vrot.lane.b32.xlu0 %v1913, 127
    %v1923 = vpop.permute.xlu0 %1922
    %1924 = vrot.lane.b32.xlu0 %v1914, 127
    %v1925 = vpop.permute.xlu0 %1924
    %1926 = vrot.lane.b32.xlu0 %v1915, 127
    %v1927 = vpop.permute.xlu0 %1926
    %v1932 = vadd.f32 %v1724, %v1921
    %v1933 = vadd.f32 %v1725, %v1923
    %v1934 = vadd.f32 %v1726, %v1925
    %v1935 = vadd.f32 %v1727, %v1927
    %s1936 = sld [smem:[#allocation8 + $0x6]]
    %v1937 = vstv %s1936
    %v1938 = vmul.f32 %v1937, %v1644
    %v1939 = vmul.f32 %v1937, %v1645
    %v1940 = vmul.f32 %v1937, %v1646
    %v1941 = vmul.f32 %v1937, %v1647
    %v1946 = vrot.slane %v1938, 1
    %v1947 = vrot.slane %v1939, 1
    %v1948 = vsel %vm255, %v1946, %v1947
    %v1949 = vrot.slane %v1940, 1
    %v1950 = vrot.slane %v1941, 1
    %v1951 = vsel %vm255, %v1949, %v1950
    %v1956 = vadd.f32 %v1750, %v1948
    %v1957 = vadd.f32 %v1751, %v1947
    %v1958 = vadd.f32 %v1752, %v1951
    %v1959 = vadd.f32 %v1753, %v1950
    %s1960 = sld [smem:[#allocation8 + $0x16]]
    %v1961 = vstv %s1960
    %v1962 = vmul.f32 %v1961, %v1644
    %v1963 = vmul.f32 %v1961, %v1645
    %v1964 = vmul.f32 %v1961, %v1646
    %v1965 = vmul.f32 %v1961, %v1647
    %v1970 = vrot.slane %v1962, 1
    %v1971 = vrot.slane %v1963, 1
    %v1972 = vsel %vm255, %v1970, %v1971
    %v1973 = vrot.slane %v1964, 1
    %v1974 = vrot.slane %v1965, 1
    %v1975 = vsel %vm255, %v1973, %v1974
    %v1980 = vadd.f32 %v1776, %v1972
    %v1981 = vadd.f32 %v1777, %v1971
    %v1982 = vadd.f32 %v1778, %v1975
    %v1983 = vadd.f32 %v1779, %v1974
    %s1984 = sld [smem:[#allocation8 + $0x26]]
    %v1985 = vstv %s1984
    %v1986 = vmul.f32 %v1985, %v1644
    %v1987 = vmul.f32 %v1985, %v1645
    %v1988 = vmul.f32 %v1985, %v1646
    %v1989 = vmul.f32 %v1985, %v1647
    %v1994 = vrot.slane %v1986, 1
    %v1995 = vrot.slane %v1987, 1
    %v1996 = vsel %vm255, %v1994, %v1995
    %v1997 = vrot.slane %v1988, 1
    %v1998 = vrot.slane %v1989, 1
    %v1999 = vsel %vm255, %v1997, %v1998
    %v2004 = vadd.f32 %v1802, %v1996
    %v2005 = vadd.f32 %v1803, %v1995
    %v2006 = vadd.f32 %v1804, %v1999
    %v2007 = vadd.f32 %v1805, %v1998
    %s2008 = sld [smem:[#allocation8 + $0x36]]
    %v2009 = vstv %s2008
    %v2010 = vmul.f32 %v2009, %v1644
    %v2011 = vmul.f32 %v2009, %v1645
    %v2012 = vmul.f32 %v2009, %v1646
    %v2013 = vmul.f32 %v2009, %v1647
    %v2018 = vrot.slane %v2010, 1
    %v2019 = vrot.slane %v2011, 1
    %v2020 = vsel %vm255, %v2018, %v2019
    %v2021 = vrot.slane %v2012, 1
    %v2022 = vrot.slane %v2013, 1
    %v2023 = vsel %vm255, %v2021, %v2022
    %v2028 = vadd.f32 %v1828, %v2020
    %v2029 = vadd.f32 %v1829, %v2019
    %v2030 = vadd.f32 %v1830, %v2023
    %v2031 = vadd.f32 %v1831, %v2022
    %s2032 = sld [smem:[#allocation8 + $0x46]]
    %v2033 = vstv %s2032
    %v2034 = vmul.f32 %v2033, %v1644
    %v2035 = vmul.f32 %v2033, %v1645
    %v2036 = vmul.f32 %v2033, %v1646
    %v2037 = vmul.f32 %v2033, %v1647
    %v2042 = vrot.slane %v2034, 1
    %v2043 = vrot.slane %v2035, 1
    %v2044 = vsel %vm255, %v2042, %v2043
    %v2045 = vrot.slane %v2036, 1
    %v2046 = vrot.slane %v2037, 1
    %v2047 = vsel %vm255, %v2045, %v2046
    %v2052 = vadd.f32 %v1854, %v2044
    %v2053 = vadd.f32 %v1855, %v2043
    %v2054 = vadd.f32 %v1856, %v2047
    %v2055 = vadd.f32 %v1857, %v2046
    %s2056 = sld [smem:[#allocation8 + $0x56]]
    %v2057 = vstv %s2056
    %v2058 = vmul.f32 %v2057, %v1644
    %v2059 = vmul.f32 %v2057, %v1645
    %v2060 = vmul.f32 %v2057, %v1646
    %v2061 = vmul.f32 %v2057, %v1647
    %v2066 = vrot.slane %v2058, 1
    %v2067 = vrot.slane %v2059, 1
    %v2068 = vsel %vm255, %v2066, %v2067
    %v2069 = vrot.slane %v2060, 1
    %v2070 = vrot.slane %v2061, 1
    %v2071 = vsel %vm255, %v2069, %v2070
    %v2076 = vadd.f32 %v1880, %v2068
    %v2077 = vadd.f32 %v1881, %v2067
    %v2078 = vadd.f32 %v1882, %v2071
    %v2079 = vadd.f32 %v1883, %v2070
    %s2080 = sld [smem:[#allocation8 + $0x66]]
    %v2081 = vstv %s2080
    %v2082 = vmul.f32 %v2081, %v1644
    %v2083 = vmul.f32 %v2081, %v1645
    %v2084 = vmul.f32 %v2081, %v1646
    %v2085 = vmul.f32 %v2081, %v1647
    %v2090 = vrot.slane %v2082, 1
    %v2091 = vrot.slane %v2083, 1
    %v2092 = vsel %vm255, %v2090, %v2091
    %v2093 = vrot.slane %v2084, 1
    %v2094 = vrot.slane %v2085, 1
    %v2095 = vsel %vm255, %v2093, %v2094
    %v2100 = vadd.f32 %v1906, %v2092
    %v2101 = vadd.f32 %v1907, %v2091
    %v2102 = vadd.f32 %v1908, %v2095
    %v2103 = vadd.f32 %v1909, %v2094
    %s2104 = sld [smem:[#allocation8 + $0x76]]
    %v2105 = vstv %s2104
    %v2106 = vmul.f32 %v2105, %v1644
    %v2107 = vmul.f32 %v2105, %v1645
    %v2108 = vmul.f32 %v2105, %v1646
    %v2109 = vmul.f32 %v2105, %v1647
    %v2114 = vrot.slane %v2106, 1
    %v2115 = vrot.slane %v2107, 1
    %v2116 = vsel %vm255, %v2114, %v2115
    %v2117 = vrot.slane %v2108, 1
    %v2118 = vrot.slane %v2109, 1
    %v2119 = vsel %vm255, %v2117, %v2118
    %v2124 = vadd.f32 %v1932, %v2116
    %v2125 = vadd.f32 %v1933, %v2115
    %v2126 = vadd.f32 %v1934, %v2119
    %v2127 = vadd.f32 %v1935, %v2118
    %s2128 = sld [smem:[#allocation8 + $0x7]]
    %v2129 = vstv %s2128
    %v2130 = vmul.f32 %v2129, %v1644
    %v2131 = vmul.f32 %v2129, %v1645
    %v2132 = vmul.f32 %v2129, %v1646
    %v2133 = vmul.f32 %v2129, %v1647
    %v2138 = vrot.slane %v2130, 1
    %v2139 = vrot.slane %v2131, 1
    %v2140 = vsel %vm255, %v2138, %v2139
    %v2141 = vrot.slane %v2132, 1
    %v2142 = vrot.slane %v2133, 1
    %v2143 = vsel %vm255, %v2141, %v2142
    %2144 = vrot.lane.b32.xlu0 %v2140, 127
    %v2145 = vpop.permute.xlu0 %2144
    %2146 = vrot.lane.b32.xlu0 %v2139, 127
    %v2147 = vpop.permute.xlu0 %2146
    %2148 = vrot.lane.b32.xlu0 %v2143, 127
    %v2149 = vpop.permute.xlu0 %2148
    %2150 = vrot.lane.b32.xlu0 %v2142, 127
    %v2151 = vpop.permute.xlu0 %2150
    %v2156 = vadd.f32 %v1956, %v2145
    %v2157 = vadd.f32 %v1957, %v2147
    %v2158 = vadd.f32 %v1958, %v2149
    %v2159 = vadd.f32 %v1959, %v2151
    %s2160 = sld [smem:[#allocation8 + $0x17]]
    %v2161 = vstv %s2160
    %v2162 = vmul.f32 %v2161, %v1644
    %v2163 = vmul.f32 %v2161, %v1645
    %v2164 = vmul.f32 %v2161, %v1646
    %v2165 = vmul.f32 %v2161, %v1647
    %v2170 = vrot.slane %v2162, 1
    %v2171 = vrot.slane %v2163, 1
    %v2172 = vsel %vm255, %v2170, %v2171
    %v2173 = vrot.slane %v2164, 1
    %v2174 = vrot.slane %v2165, 1
    %v2175 = vsel %vm255, %v2173, %v2174
    %2176 = vrot.lane.b32.xlu0 %v2172, 127
    %v2177 = vpop.permute.xlu0 %2176
    %2178 = vrot.lane.b32.xlu0 %v2171, 127
    %v2179 = vpop.permute.xlu0 %2178
    %2180 = vrot.lane.b32.xlu0 %v2175, 127
    %v2181 = vpop.permute.xlu0 %2180
    %2182 = vrot.lane.b32.xlu0 %v2174, 127
    %v2183 = vpop.permute.xlu0 %2182
    %v2188 = vadd.f32 %v1980, %v2177
    %v2189 = vadd.f32 %v1981, %v2179
    %v2190 = vadd.f32 %v1982, %v2181
    %v2191 = vadd.f32 %v1983, %v2183
    %s2192 = sld [smem:[#allocation8 + $0x27]]
    %v2193 = vstv %s2192
    %v2194 = vmul.f32 %v2193, %v1644
    %v2195 = vmul.f32 %v2193, %v1645
    %v2196 = vmul.f32 %v2193, %v1646
    %v2197 = vmul.f32 %v2193, %v1647
    %v2202 = vrot.slane %v2194, 1
    %v2203 = vrot.slane %v2195, 1
    %v2204 = vsel %vm255, %v2202, %v2203
    %v2205 = vrot.slane %v2196, 1
    %v2206 = vrot.slane %v2197, 1
    %v2207 = vsel %vm255, %v2205, %v2206
    %2208 = vrot.lane.b32.xlu0 %v2204, 127
    %v2209 = vpop.permute.xlu0 %2208
    %2210 = vrot.lane.b32.xlu0 %v2203, 127
    %v2211 = vpop.permute.xlu0 %2210
    %2212 = vrot.lane.b32.xlu0 %v2207, 127
    %v2213 = vpop.permute.xlu0 %2212
    %2214 = vrot.lane.b32.xlu0 %v2206, 127
    %v2215 = vpop.permute.xlu0 %2214
    %v2220 = vadd.f32 %v2004, %v2209
    %v2221 = vadd.f32 %v2005, %v2211
    %v2222 = vadd.f32 %v2006, %v2213
    %v2223 = vadd.f32 %v2007, %v2215
    %s2224 = sld [smem:[#allocation8 + $0x37]]
    %v2225 = vstv %s2224
    %v2226 = vmul.f32 %v2225, %v1644
    %v2227 = vmul.f32 %v2225, %v1645
    %v2228 = vmul.f32 %v2225, %v1646
    %v2229 = vmul.f32 %v2225, %v1647
    %v2234 = vrot.slane %v2226, 1
    %v2235 = vrot.slane %v2227, 1
    %v2236 = vsel %vm255, %v2234, %v2235
    %v2237 = vrot.slane %v2228, 1
    %v2238 = vrot.slane %v2229, 1
    %v2239 = vsel %vm255, %v2237, %v2238
    %2240 = vrot.lane.b32.xlu0 %v2236, 127
    %v2241 = vpop.permute.xlu0 %2240
    %2242 = vrot.lane.b32.xlu0 %v2235, 127
    %v2243 = vpop.permute.xlu0 %2242
    %2244 = vrot.lane.b32.xlu0 %v2239, 127
    %v2245 = vpop.permute.xlu0 %2244
    %2246 = vrot.lane.b32.xlu0 %v2238, 127
    %v2247 = vpop.permute.xlu0 %2246
    %v2252 = vadd.f32 %v2028, %v2241
    %v2253 = vadd.f32 %v2029, %v2243
    %v2254 = vadd.f32 %v2030, %v2245
    %v2255 = vadd.f32 %v2031, %v2247
    %s2256 = sld [smem:[#allocation8 + $0x47]]
    %v2257 = vstv %s2256
    %v2258 = vmul.f32 %v2257, %v1644
    %v2259 = vmul.f32 %v2257, %v1645
    %v2260 = vmul.f32 %v2257, %v1646
    %v2261 = vmul.f32 %v2257, %v1647
    %v2266 = vrot.slane %v2258, 1
    %v2267 = vrot.slane %v2259, 1
    %v2268 = vsel %vm255, %v2266, %v2267
    %v2269 = vrot.slane %v2260, 1
    %v2270 = vrot.slane %v2261, 1
    %v2271 = vsel %vm255, %v2269, %v2270
    %2272 = vrot.lane.b32.xlu0 %v2268, 127
    %v2273 = vpop.permute.xlu0 %2272
    %2274 = vrot.lane.b32.xlu0 %v2267, 127
    %v2275 = vpop.permute.xlu0 %2274
    %2276 = vrot.lane.b32.xlu0 %v2271, 127
    %v2277 = vpop.permute.xlu0 %2276
    %2278 = vrot.lane.b32.xlu0 %v2270, 127
    %v2279 = vpop.permute.xlu0 %2278
    %v2284 = vadd.f32 %v2052, %v2273
    %v2285 = vadd.f32 %v2053, %v2275
    %v2286 = vadd.f32 %v2054, %v2277
    %v2287 = vadd.f32 %v2055, %v2279
    %s2288 = sld [smem:[#allocation8 + $0x57]]
    %v2289 = vstv %s2288
    %v2290 = vmul.f32 %v2289, %v1644
    %v2291 = vmul.f32 %v2289, %v1645
    %v2292 = vmul.f32 %v2289, %v1646
    %v2293 = vmul.f32 %v2289, %v1647
    %v2298 = vrot.slane %v2290, 1
    %v2299 = vrot.slane %v2291, 1
    %v2300 = vsel %vm255, %v2298, %v2299
    %v2301 = vrot.slane %v2292, 1
    %v2302 = vrot.slane %v2293, 1
    %v2303 = vsel %vm255, %v2301, %v2302
    %2304 = vrot.lane.b32.xlu0 %v2300, 127
    %v2305 = vpop.permute.xlu0 %2304
    %2306 = vrot.lane.b32.xlu0 %v2299, 127
    %v2307 = vpop.permute.xlu0 %2306
    %2308 = vrot.lane.b32.xlu0 %v2303, 127
    %v2309 = vpop.permute.xlu0 %2308
    %2310 = vrot.lane.b32.xlu0 %v2302, 127
    %v2311 = vpop.permute.xlu0 %2310
    %v2316 = vadd.f32 %v2076, %v2305
    %v2317 = vadd.f32 %v2077, %v2307
    %v2318 = vadd.f32 %v2078, %v2309
    %v2319 = vadd.f32 %v2079, %v2311
    %s2320 = sld [smem:[#allocation8 + $0x67]]
    %v2321 = vstv %s2320
    %v2322 = vmul.f32 %v2321, %v1644
    %v2323 = vmul.f32 %v2321, %v1645
    %v2324 = vmul.f32 %v2321, %v1646
    %v2325 = vmul.f32 %v2321, %v1647
    %v2330 = vrot.slane %v2322, 1
    %v2331 = vrot.slane %v2323, 1
    %v2332 = vsel %vm255, %v2330, %v2331
    %v2333 = vrot.slane %v2324, 1
    %v2334 = vrot.slane %v2325, 1
    %v2335 = vsel %vm255, %v2333, %v2334
    %2336 = vrot.lane.b32.xlu0 %v2332, 127
    %v2337 = vpop.permute.xlu0 %2336
    %2338 = vrot.lane.b32.xlu0 %v2331, 127
    %v2339 = vpop.permute.xlu0 %2338
    %2340 = vrot.lane.b32.xlu0 %v2335, 127
    %v2341 = vpop.permute.xlu0 %2340
    %2342 = vrot.lane.b32.xlu0 %v2334, 127
    %v2343 = vpop.permute.xlu0 %2342
    %v2348 = vadd.f32 %v2100, %v2337
    %v2349 = vadd.f32 %v2101, %v2339
    %v2350 = vadd.f32 %v2102, %v2341
    %v2351 = vadd.f32 %v2103, %v2343
    %s2352 = sld [smem:[#allocation8 + $0x77]]
    %v2353 = vstv %s2352
    %v2354 = vmul.f32 %v2353, %v1644
    %v2355 = vmul.f32 %v2353, %v1645
    %v2356 = vmul.f32 %v2353, %v1646
    %v2357 = vmul.f32 %v2353, %v1647
    %v2362 = vrot.slane %v2354, 1
    %v2363 = vrot.slane %v2355, 1
    %v2364 = vsel %vm255, %v2362, %v2363
    %v2365 = vrot.slane %v2356, 1
    %v2366 = vrot.slane %v2357, 1
    %v2367 = vsel %vm255, %v2365, %v2366
    %2368 = vrot.lane.b32.xlu0 %v2364, 127
    %v2369 = vpop.permute.xlu0 %2368
    %2370 = vrot.lane.b32.xlu0 %v2363, 127
    %v2371 = vpop.permute.xlu0 %2370
    %2372 = vrot.lane.b32.xlu0 %v2367, 127
    %v2373 = vpop.permute.xlu0 %2372
    %2374 = vrot.lane.b32.xlu0 %v2366, 127
    %v2375 = vpop.permute.xlu0 %2374
    %v2380 = vadd.f32 %v2124, %v2369
    %v2381 = vadd.f32 %v2125, %v2371
    %v2382 = vadd.f32 %v2126, %v2373
    %v2383 = vadd.f32 %v2127, %v2375
    %v2384 = vld [vmem:[%s884] sm:$0xff]
    %v2385 = vld [vmem:[%s884 + $0x8] sm:$0x7f]
    %v2386 = vld [vmem:[%s884 + $0x40] sm:$0xff]
    %v2387 = vld [vmem:[%s884 + $0x48] sm:$0x7f]
    %s2388 = sld [smem:[#allocation8 + $0x8]]
    %v2389 = vstv %s2388
    %v2390 = vmul.f32 %v2389, %v2384
    %v2391 = vmul.f32 %v2389, %v2385
    %v2392 = vmul.f32 %v2389, %v2386
    %v2393 = vmul.f32 %v2389, %v2387
    %v2394 = vadd.f32 %v2156, %v2390
    %v2395 = vadd.f32 %v2157, %v2391
    %v2396 = vadd.f32 %v2158, %v2392
    %v2397 = vadd.f32 %v2159, %v2393
    %s2398 = sld [smem:[#allocation8 + $0x18]]
    %v2399 = vstv %s2398
    %v2400 = vmul.f32 %v2399, %v2384
    %v2401 = vmul.f32 %v2399, %v2385
    %v2402 = vmul.f32 %v2399, %v2386
    %v2403 = vmul.f32 %v2399, %v2387
    %v2404 = vadd.f32 %v2188, %v2400
    %v2405 = vadd.f32 %v2189, %v2401
    %v2406 = vadd.f32 %v2190, %v2402
    %v2407 = vadd.f32 %v2191, %v2403
    %s2408 = sld [smem:[#allocation8 + $0x28]]
    %v2409 = vstv %s2408
    %v2410 = vmul.f32 %v2409, %v2384
    %v2411 = vmul.f32 %v2409, %v2385
    %v2412 = vmul.f32 %v2409, %v2386
    %v2413 = vmul.f32 %v2409, %v2387
    %v2414 = vadd.f32 %v2220, %v2410
    %v2415 = vadd.f32 %v2221, %v2411
    %v2416 = vadd.f32 %v2222, %v2412
    %v2417 = vadd.f32 %v2223, %v2413
    %s2418 = sld [smem:[#allocation8 + $0x38]]
    %v2419 = vstv %s2418
    %v2420 = vmul.f32 %v2419, %v2384
    %v2421 = vmul.f32 %v2419, %v2385
    %v2422 = vmul.f32 %v2419, %v2386
    %v2423 = vmul.f32 %v2419, %v2387
    %v2424 = vadd.f32 %v2252, %v2420
    %v2425 = vadd.f32 %v2253, %v2421
    %v2426 = vadd.f32 %v2254, %v2422
    %v2427 = vadd.f32 %v2255, %v2423
    %s2428 = sld [smem:[#allocation8 + $0x48]]
    %v2429 = vstv %s2428
    %v2430 = vmul.f32 %v2429, %v2384
    %v2431 = vmul.f32 %v2429, %v2385
    %v2432 = vmul.f32 %v2429, %v2386
    %v2433 = vmul.f32 %v2429, %v2387
    %v2434 = vadd.f32 %v2284, %v2430
    %v2435 = vadd.f32 %v2285, %v2431
    %v2436 = vadd.f32 %v2286, %v2432
    %v2437 = vadd.f32 %v2287, %v2433
    %s2438 = sld [smem:[#allocation8 + $0x58]]
    %v2439 = vstv %s2438
    %v2440 = vmul.f32 %v2439, %v2384
    %v2441 = vmul.f32 %v2439, %v2385
    %v2442 = vmul.f32 %v2439, %v2386
    %v2443 = vmul.f32 %v2439, %v2387
    %v2444 = vadd.f32 %v2316, %v2440
    %v2445 = vadd.f32 %v2317, %v2441
    %v2446 = vadd.f32 %v2318, %v2442
    %v2447 = vadd.f32 %v2319, %v2443
    %s2448 = sld [smem:[#allocation8 + $0x68]]
    %v2449 = vstv %s2448
    %v2450 = vmul.f32 %v2449, %v2384
    %v2451 = vmul.f32 %v2449, %v2385
    %v2452 = vmul.f32 %v2449, %v2386
    %v2453 = vmul.f32 %v2449, %v2387
    %v2454 = vadd.f32 %v2348, %v2450
    %v2455 = vadd.f32 %v2349, %v2451
    %v2456 = vadd.f32 %v2350, %v2452
    %v2457 = vadd.f32 %v2351, %v2453
    %s2458 = sld [smem:[#allocation8 + $0x78]]
    %v2459 = vstv %s2458
    %v2460 = vmul.f32 %v2459, %v2384
    %v2461 = vmul.f32 %v2459, %v2385
    %v2462 = vmul.f32 %v2459, %v2386
    %v2463 = vmul.f32 %v2459, %v2387
    %v2464 = vadd.f32 %v2380, %v2460
    %v2465 = vadd.f32 %v2381, %v2461
    %v2466 = vadd.f32 %v2382, %v2462
    %v2467 = vadd.f32 %v2383, %v2463
    %s2468 = sld [smem:[#allocation8 + $0x9]]
    %v2469 = vstv %s2468
    %v2470 = vmul.f32 %v2469, %v2384
    %v2471 = vmul.f32 %v2469, %v2385
    %v2472 = vmul.f32 %v2469, %v2386
    %v2473 = vmul.f32 %v2469, %v2387
    %2478 = vrot.lane.b32.xlu0 %v2470, 127
    %v2479 = vpop.permute.xlu0 %2478
    %2480 = vrot.lane.b32.xlu0 %v2471, 127
    %v2481 = vpop.permute.xlu0 %2480
    %2482 = vrot.lane.b32.xlu0 %v2472, 127
    %v2483 = vpop.permute.xlu0 %2482
    %2484 = vrot.lane.b32.xlu0 %v2473, 127
    %v2485 = vpop.permute.xlu0 %2484
    %v2490 = vadd.f32 %v2394, %v2479
    %v2491 = vadd.f32 %v2395, %v2481
    %v2492 = vadd.f32 %v2396, %v2483
    %v2493 = vadd.f32 %v2397, %v2485
    %s2494 = sld [smem:[#allocation8 + $0x19]]
    %v2495 = vstv %s2494
    %v2496 = vmul.f32 %v2495, %v2384
    %v2497 = vmul.f32 %v2495, %v2385
    %v2498 = vmul.f32 %v2495, %v2386
    %v2499 = vmul.f32 %v2495, %v2387
    %2504 = vrot.lane.b32.xlu0 %v2496, 127
    %v2505 = vpop.permute.xlu0 %2504
    %2506 = vrot.lane.b32.xlu0 %v2497, 127
    %v2507 = vpop.permute.xlu0 %2506
    %2508 = vrot.lane.b32.xlu0 %v2498, 127
    %v2509 = vpop.permute.xlu0 %2508
    %2510 = vrot.lane.b32.xlu0 %v2499, 127
    %v2511 = vpop.permute.xlu0 %2510
    %v2516 = vadd.f32 %v2404, %v2505
    %v2517 = vadd.f32 %v2405, %v2507
    %v2518 = vadd.f32 %v2406, %v2509
    %v2519 = vadd.f32 %v2407, %v2511
    %s2520 = sld [smem:[#allocation8 + $0x29]]
    %v2521 = vstv %s2520
    %v2522 = vmul.f32 %v2521, %v2384
    %v2523 = vmul.f32 %v2521, %v2385
    %v2524 = vmul.f32 %v2521, %v2386
    %v2525 = vmul.f32 %v2521, %v2387
    %2530 = vrot.lane.b32.xlu0 %v2522, 127
    %v2531 = vpop.permute.xlu0 %2530
    %2532 = vrot.lane.b32.xlu0 %v2523, 127
    %v2533 = vpop.permute.xlu0 %2532
    %2534 = vrot.lane.b32.xlu0 %v2524, 127
    %v2535 = vpop.permute.xlu0 %2534
    %2536 = vrot.lane.b32.xlu0 %v2525, 127
    %v2537 = vpop.permute.xlu0 %2536
    %v2542 = vadd.f32 %v2414, %v2531
    %v2543 = vadd.f32 %v2415, %v2533
    %v2544 = vadd.f32 %v2416, %v2535
    %v2545 = vadd.f32 %v2417, %v2537
    %s2546 = sld [smem:[#allocation8 + $0x39]]
    %v2547 = vstv %s2546
    %v2548 = vmul.f32 %v2547, %v2384
    %v2549 = vmul.f32 %v2547, %v2385
    %v2550 = vmul.f32 %v2547, %v2386
    %v2551 = vmul.f32 %v2547, %v2387
    %2556 = vrot.lane.b32.xlu0 %v2548, 127
    %v2557 = vpop.permute.xlu0 %2556
    %2558 = vrot.lane.b32.xlu0 %v2549, 127
    %v2559 = vpop.permute.xlu0 %2558
    %2560 = vrot.lane.b32.xlu0 %v2550, 127
    %v2561 = vpop.permute.xlu0 %2560
    %2562 = vrot.lane.b32.xlu0 %v2551, 127
    %v2563 = vpop.permute.xlu0 %2562
    %v2568 = vadd.f32 %v2424, %v2557
    %v2569 = vadd.f32 %v2425, %v2559
    %v2570 = vadd.f32 %v2426, %v2561
    %v2571 = vadd.f32 %v2427, %v2563
    %s2572 = sld [smem:[#allocation8 + $0x49]]
    %v2573 = vstv %s2572
    %v2574 = vmul.f32 %v2573, %v2384
    %v2575 = vmul.f32 %v2573, %v2385
    %v2576 = vmul.f32 %v2573, %v2386
    %v2577 = vmul.f32 %v2573, %v2387
    %2582 = vrot.lane.b32.xlu0 %v2574, 127
    %v2583 = vpop.permute.xlu0 %2582
    %2584 = vrot.lane.b32.xlu0 %v2575, 127
    %v2585 = vpop.permute.xlu0 %2584
    %2586 = vrot.lane.b32.xlu0 %v2576, 127
    %v2587 = vpop.permute.xlu0 %2586
    %2588 = vrot.lane.b32.xlu0 %v2577, 127
    %v2589 = vpop.permute.xlu0 %2588
    %v2594 = vadd.f32 %v2434, %v2583
    %v2595 = vadd.f32 %v2435, %v2585
    %v2596 = vadd.f32 %v2436, %v2587
    %v2597 = vadd.f32 %v2437, %v2589
    %s2598 = sld [smem:[#allocation8 + $0x59]]
    %v2599 = vstv %s2598
    %v2600 = vmul.f32 %v2599, %v2384
    %v2601 = vmul.f32 %v2599, %v2385
    %v2602 = vmul.f32 %v2599, %v2386
    %v2603 = vmul.f32 %v2599, %v2387
    %2608 = vrot.lane.b32.xlu0 %v2600, 127
    %v2609 = vpop.permute.xlu0 %2608
    %2610 = vrot.lane.b32.xlu0 %v2601, 127
    %v2611 = vpop.permute.xlu0 %2610
    %2612 = vrot.lane.b32.xlu0 %v2602, 127
    %v2613 = vpop.permute.xlu0 %2612
    %2614 = vrot.lane.b32.xlu0 %v2603, 127
    %v2615 = vpop.permute.xlu0 %2614
    %v2620 = vadd.f32 %v2444, %v2609
    %v2621 = vadd.f32 %v2445, %v2611
    %v2622 = vadd.f32 %v2446, %v2613
    %v2623 = vadd.f32 %v2447, %v2615
    %s2624 = sld [smem:[#allocation8 + $0x69]]
    %v2625 = vstv %s2624
    %v2626 = vmul.f32 %v2625, %v2384
    %v2627 = vmul.f32 %v2625, %v2385
    %v2628 = vmul.f32 %v2625, %v2386
    %v2629 = vmul.f32 %v2625, %v2387
    %2634 = vrot.lane.b32.xlu0 %v2626, 127
    %v2635 = vpop.permute.xlu0 %2634
    %2636 = vrot.lane.b32.xlu0 %v2627, 127
    %v2637 = vpop.permute.xlu0 %2636
    %2638 = vrot.lane.b32.xlu0 %v2628, 127
    %v2639 = vpop.permute.xlu0 %2638
    %2640 = vrot.lane.b32.xlu0 %v2629, 127
    %v2641 = vpop.permute.xlu0 %2640
    %v2646 = vadd.f32 %v2454, %v2635
    %v2647 = vadd.f32 %v2455, %v2637
    %v2648 = vadd.f32 %v2456, %v2639
    %v2649 = vadd.f32 %v2457, %v2641
    %s2650 = sld [smem:[#allocation8 + $0x79]]
    %v2651 = vstv %s2650
    %v2652 = vmul.f32 %v2651, %v2384
    %v2653 = vmul.f32 %v2651, %v2385
    %v2654 = vmul.f32 %v2651, %v2386
    %v2655 = vmul.f32 %v2651, %v2387
    %2660 = vrot.lane.b32.xlu0 %v2652, 127
    %v2661 = vpop.permute.xlu0 %2660
    %2662 = vrot.lane.b32.xlu0 %v2653, 127
    %v2663 = vpop.permute.xlu0 %2662
    %2664 = vrot.lane.b32.xlu0 %v2654, 127
    %v2665 = vpop.permute.xlu0 %2664
    %2666 = vrot.lane.b32.xlu0 %v2655, 127
    %v2667 = vpop.permute.xlu0 %2666
    %v2672 = vadd.f32 %v2464, %v2661
    %v2673 = vadd.f32 %v2465, %v2663
    %v2674 = vadd.f32 %v2466, %v2665
    %v2675 = vadd.f32 %v2467, %v2667
    %s2676 = sld [smem:[#allocation8 + $0xa]]
    %v2677 = vstv %s2676
    %v2678 = vmul.f32 %v2677, %v2384
    %v2679 = vmul.f32 %v2677, %v2385
    %v2680 = vmul.f32 %v2677, %v2386
    %v2681 = vmul.f32 %v2677, %v2387
    %v2686 = vrot.slane %v2678, 1
    %v2687 = vrot.slane %v2679, 1
    %v2688 = vsel %vm255, %v2686, %v2687
    %v2689 = vrot.slane %v2680, 1
    %v2690 = vrot.slane %v2681, 1
    %v2691 = vsel %vm255, %v2689, %v2690
    %v2696 = vadd.f32 %v2490, %v2688
    %v2697 = vadd.f32 %v2491, %v2687
    %v2698 = vadd.f32 %v2492, %v2691
    %v2699 = vadd.f32 %v2493, %v2690
    %s2700 = sld [smem:[#allocation8 + $0x1a]]
    %v2701 = vstv %s2700
    %v2702 = vmul.f32 %v2701, %v2384
    %v2703 = vmul.f32 %v2701, %v2385
    %v2704 = vmul.f32 %v2701, %v2386
    %v2705 = vmul.f32 %v2701, %v2387
    %v2710 = vrot.slane %v2702, 1
    %v2711 = vrot.slane %v2703, 1
    %v2712 = vsel %vm255, %v2710, %v2711
    %v2713 = vrot.slane %v2704, 1
    %v2714 = vrot.slane %v2705, 1
    %v2715 = vsel %vm255, %v2713, %v2714
    %v2720 = vadd.f32 %v2516, %v2712
    %v2721 = vadd.f32 %v2517, %v2711
    %v2722 = vadd.f32 %v2518, %v2715
    %v2723 = vadd.f32 %v2519, %v2714
    %s2724 = sld [smem:[#allocation8 + $0x2a]]
    %v2725 = vstv %s2724
    %v2726 = vmul.f32 %v2725, %v2384
    %v2727 = vmul.f32 %v2725, %v2385
    %v2728 = vmul.f32 %v2725, %v2386
    %v2729 = vmul.f32 %v2725, %v2387
    %v2734 = vrot.slane %v2726, 1
    %v2735 = vrot.slane %v2727, 1
    %v2736 = vsel %vm255, %v2734, %v2735
    %v2737 = vrot.slane %v2728, 1
    %v2738 = vrot.slane %v2729, 1
    %v2739 = vsel %vm255, %v2737, %v2738
    %v2744 = vadd.f32 %v2542, %v2736
    %v2745 = vadd.f32 %v2543, %v2735
    %v2746 = vadd.f32 %v2544, %v2739
    %v2747 = vadd.f32 %v2545, %v2738
    %s2748 = sld [smem:[#allocation8 + $0x3a]]
    %v2749 = vstv %s2748
    %v2750 = vmul.f32 %v2749, %v2384
    %v2751 = vmul.f32 %v2749, %v2385
    %v2752 = vmul.f32 %v2749, %v2386
    %v2753 = vmul.f32 %v2749, %v2387
    %v2758 = vrot.slane %v2750, 1
    %v2759 = vrot.slane %v2751, 1
    %v2760 = vsel %vm255, %v2758, %v2759
    %v2761 = vrot.slane %v2752, 1
    %v2762 = vrot.slane %v2753, 1
    %v2763 = vsel %vm255, %v2761, %v2762
    %v2768 = vadd.f32 %v2568, %v2760
    %v2769 = vadd.f32 %v2569, %v2759
    %v2770 = vadd.f32 %v2570, %v2763
    %v2771 = vadd.f32 %v2571, %v2762
    %s2772 = sld [smem:[#allocation8 + $0x4a]]
    %v2773 = vstv %s2772
    %v2774 = vmul.f32 %v2773, %v2384
    %v2775 = vmul.f32 %v2773, %v2385
    %v2776 = vmul.f32 %v2773, %v2386
    %v2777 = vmul.f32 %v2773, %v2387
    %v2782 = vrot.slane %v2774, 1
    %v2783 = vrot.slane %v2775, 1
    %v2784 = vsel %vm255, %v2782, %v2783
    %v2785 = vrot.slane %v2776, 1
    %v2786 = vrot.slane %v2777, 1
    %v2787 = vsel %vm255, %v2785, %v2786
    %v2792 = vadd.f32 %v2594, %v2784
    %v2793 = vadd.f32 %v2595, %v2783
    %v2794 = vadd.f32 %v2596, %v2787
    %v2795 = vadd.f32 %v2597, %v2786
    %s2796 = sld [smem:[#allocation8 + $0x5a]]
    %v2797 = vstv %s2796
    %v2798 = vmul.f32 %v2797, %v2384
    %v2799 = vmul.f32 %v2797, %v2385
    %v2800 = vmul.f32 %v2797, %v2386
    %v2801 = vmul.f32 %v2797, %v2387
    %v2806 = vrot.slane %v2798, 1
    %v2807 = vrot.slane %v2799, 1
    %v2808 = vsel %vm255, %v2806, %v2807
    %v2809 = vrot.slane %v2800, 1
    %v2810 = vrot.slane %v2801, 1
    %v2811 = vsel %vm255, %v2809, %v2810
    %v2816 = vadd.f32 %v2620, %v2808
    %v2817 = vadd.f32 %v2621, %v2807
    %v2818 = vadd.f32 %v2622, %v2811
    %v2819 = vadd.f32 %v2623, %v2810
    %s2820 = sld [smem:[#allocation8 + $0x6a]]
    %v2821 = vstv %s2820
    %v2822 = vmul.f32 %v2821, %v2384
    %v2823 = vmul.f32 %v2821, %v2385
    %v2824 = vmul.f32 %v2821, %v2386
    %v2825 = vmul.f32 %v2821, %v2387
    %v2830 = vrot.slane %v2822, 1
    %v2831 = vrot.slane %v2823, 1
    %v2832 = vsel %vm255, %v2830, %v2831
    %v2833 = vrot.slane %v2824, 1
    %v2834 = vrot.slane %v2825, 1
    %v2835 = vsel %vm255, %v2833, %v2834
    %v2840 = vadd.f32 %v2646, %v2832
    %v2841 = vadd.f32 %v2647, %v2831
    %v2842 = vadd.f32 %v2648, %v2835
    %v2843 = vadd.f32 %v2649, %v2834
    %s2844 = sld [smem:[#allocation8 + $0x7a]]
    %v2845 = vstv %s2844
    %v2846 = vmul.f32 %v2845, %v2384
    %v2847 = vmul.f32 %v2845, %v2385
    %v2848 = vmul.f32 %v2845, %v2386
    %v2849 = vmul.f32 %v2845, %v2387
    %v2854 = vrot.slane %v2846, 1
    %v2855 = vrot.slane %v2847, 1
    %v2856 = vsel %vm255, %v2854, %v2855
    %v2857 = vrot.slane %v2848, 1
    %v2858 = vrot.slane %v2849, 1
    %v2859 = vsel %vm255, %v2857, %v2858
    %v2864 = vadd.f32 %v2672, %v2856
    %v2865 = vadd.f32 %v2673, %v2855
    %v2866 = vadd.f32 %v2674, %v2859
    %v2867 = vadd.f32 %v2675, %v2858
    %s2868 = sld [smem:[#allocation8 + $0xb]]
    %v2869 = vstv %s2868
    %v2870 = vmul.f32 %v2869, %v2384
    %v2871 = vmul.f32 %v2869, %v2385
    %v2872 = vmul.f32 %v2869, %v2386
    %v2873 = vmul.f32 %v2869, %v2387
    %v2878 = vrot.slane %v2870, 1
    %v2879 = vrot.slane %v2871, 1
    %v2880 = vsel %vm255, %v2878, %v2879
    %v2881 = vrot.slane %v2872, 1
    %v2882 = vrot.slane %v2873, 1
    %v2883 = vsel %vm255, %v2881, %v2882
    %2884 = vrot.lane.b32.xlu0 %v2880, 127
    %v2885 = vpop.permute.xlu0 %2884
    %2886 = vrot.lane.b32.xlu0 %v2879, 127
    %v2887 = vpop.permute.xlu0 %2886
    %2888 = vrot.lane.b32.xlu0 %v2883, 127
    %v2889 = vpop.permute.xlu0 %2888
    %2890 = vrot.lane.b32.xlu0 %v2882, 127
    %v2891 = vpop.permute.xlu0 %2890
    %v2896 = vadd.f32 %v2696, %v2885
    %v2897 = vadd.f32 %v2697, %v2887
    %v2898 = vadd.f32 %v2698, %v2889
    %v2899 = vadd.f32 %v2699, %v2891
    %s2900 = sld [smem:[#allocation8 + $0x1b]]
    %v2901 = vstv %s2900
    %v2902 = vmul.f32 %v2901, %v2384
    %v2903 = vmul.f32 %v2901, %v2385
    %v2904 = vmul.f32 %v2901, %v2386
    %v2905 = vmul.f32 %v2901, %v2387
    %v2910 = vrot.slane %v2902, 1
    %v2911 = vrot.slane %v2903, 1
    %v2912 = vsel %vm255, %v2910, %v2911
    %v2913 = vrot.slane %v2904, 1
    %v2914 = vrot.slane %v2905, 1
    %v2915 = vsel %vm255, %v2913, %v2914
    %2916 = vrot.lane.b32.xlu0 %v2912, 127
    %v2917 = vpop.permute.xlu0 %2916
    %2918 = vrot.lane.b32.xlu0 %v2911, 127
    %v2919 = vpop.permute.xlu0 %2918
    %2920 = vrot.lane.b32.xlu0 %v2915, 127
    %v2921 = vpop.permute.xlu0 %2920
    %2922 = vrot.lane.b32.xlu0 %v2914, 127
    %v2923 = vpop.permute.xlu0 %2922
    %v2928 = vadd.f32 %v2720, %v2917
    %v2929 = vadd.f32 %v2721, %v2919
    %v2930 = vadd.f32 %v2722, %v2921
    %v2931 = vadd.f32 %v2723, %v2923
    %s2932 = sld [smem:[#allocation8 + $0x2b]]
    %v2933 = vstv %s2932
    %v2934 = vmul.f32 %v2933, %v2384
    %v2935 = vmul.f32 %v2933, %v2385
    %v2936 = vmul.f32 %v2933, %v2386
    %v2937 = vmul.f32 %v2933, %v2387
    %v2942 = vrot.slane %v2934, 1
    %v2943 = vrot.slane %v2935, 1
    %v2944 = vsel %vm255, %v2942, %v2943
    %v2945 = vrot.slane %v2936, 1
    %v2946 = vrot.slane %v2937, 1
    %v2947 = vsel %vm255, %v2945, %v2946
    %2948 = vrot.lane.b32.xlu0 %v2944, 127
    %v2949 = vpop.permute.xlu0 %2948
    %2950 = vrot.lane.b32.xlu0 %v2943, 127
    %v2951 = vpop.permute.xlu0 %2950
    %2952 = vrot.lane.b32.xlu0 %v2947, 127
    %v2953 = vpop.permute.xlu0 %2952
    %2954 = vrot.lane.b32.xlu0 %v2946, 127
    %v2955 = vpop.permute.xlu0 %2954
    %v2960 = vadd.f32 %v2744, %v2949
    %v2961 = vadd.f32 %v2745, %v2951
    %v2962 = vadd.f32 %v2746, %v2953
    %v2963 = vadd.f32 %v2747, %v2955
    %s2964 = sld [smem:[#allocation8 + $0x3b]]
    %v2965 = vstv %s2964
    %v2966 = vmul.f32 %v2965, %v2384
    %v2967 = vmul.f32 %v2965, %v2385
    %v2968 = vmul.f32 %v2965, %v2386
    %v2969 = vmul.f32 %v2965, %v2387
    %v2974 = vrot.slane %v2966, 1
    %v2975 = vrot.slane %v2967, 1
    %v2976 = vsel %vm255, %v2974, %v2975
    %v2977 = vrot.slane %v2968, 1
    %v2978 = vrot.slane %v2969, 1
    %v2979 = vsel %vm255, %v2977, %v2978
    %2980 = vrot.lane.b32.xlu0 %v2976, 127
    %v2981 = vpop.permute.xlu0 %2980
    %2982 = vrot.lane.b32.xlu0 %v2975, 127
    %v2983 = vpop.permute.xlu0 %2982
    %2984 = vrot.lane.b32.xlu0 %v2979, 127
    %v2985 = vpop.permute.xlu0 %2984
    %2986 = vrot.lane.b32.xlu0 %v2978, 127
    %v2987 = vpop.permute.xlu0 %2986
    %v2992 = vadd.f32 %v2768, %v2981
    %v2993 = vadd.f32 %v2769, %v2983
    %v2994 = vadd.f32 %v2770, %v2985
    %v2995 = vadd.f32 %v2771, %v2987
    %s2996 = sld [smem:[#allocation8 + $0x4b]]
    %v2997 = vstv %s2996
    %v2998 = vmul.f32 %v2997, %v2384
    %v2999 = vmul.f32 %v2997, %v2385
    %v3000 = vmul.f32 %v2997, %v2386
    %v3001 = vmul.f32 %v2997, %v2387
    %v3006 = vrot.slane %v2998, 1
    %v3007 = vrot.slane %v2999, 1
    %v3008 = vsel %vm255, %v3006, %v3007
    %v3009 = vrot.slane %v3000, 1
    %v3010 = vrot.slane %v3001, 1
    %v3011 = vsel %vm255, %v3009, %v3010
    %3012 = vrot.lane.b32.xlu0 %v3008, 127
    %v3013 = vpop.permute.xlu0 %3012
    %3014 = vrot.lane.b32.xlu0 %v3007, 127
    %v3015 = vpop.permute.xlu0 %3014
    %3016 = vrot.lane.b32.xlu0 %v3011, 127
    %v3017 = vpop.permute.xlu0 %3016
    %3018 = vrot.lane.b32.xlu0 %v3010, 127
    %v3019 = vpop.permute.xlu0 %3018
    %v3024 = vadd.f32 %v2792, %v3013
    %v3025 = vadd.f32 %v2793, %v3015
    %v3026 = vadd.f32 %v2794, %v3017
    %v3027 = vadd.f32 %v2795, %v3019
    %s3028 = sld [smem:[#allocation8 + $0x5b]]
    %v3029 = vstv %s3028
    %v3030 = vmul.f32 %v3029, %v2384
    %v3031 = vmul.f32 %v3029, %v2385
    %v3032 = vmul.f32 %v3029, %v2386
    %v3033 = vmul.f32 %v3029, %v2387
    %v3038 = vrot.slane %v3030, 1
    %v3039 = vrot.slane %v3031, 1
    %v3040 = vsel %vm255, %v3038, %v3039
    %v3041 = vrot.slane %v3032, 1
    %v3042 = vrot.slane %v3033, 1
    %v3043 = vsel %vm255, %v3041, %v3042
    %3044 = vrot.lane.b32.xlu0 %v3040, 127
    %v3045 = vpop.permute.xlu0 %3044
    %3046 = vrot.lane.b32.xlu0 %v3039, 127
    %v3047 = vpop.permute.xlu0 %3046
    %3048 = vrot.lane.b32.xlu0 %v3043, 127
    %v3049 = vpop.permute.xlu0 %3048
    %3050 = vrot.lane.b32.xlu0 %v3042, 127
    %v3051 = vpop.permute.xlu0 %3050
    %v3056 = vadd.f32 %v2816, %v3045
    %v3057 = vadd.f32 %v2817, %v3047
    %v3058 = vadd.f32 %v2818, %v3049
    %v3059 = vadd.f32 %v2819, %v3051
    %s3060 = sld [smem:[#allocation8 + $0x6b]]
    %v3061 = vstv %s3060
    %v3062 = vmul.f32 %v3061, %v2384
    %v3063 = vmul.f32 %v3061, %v2385
    %v3064 = vmul.f32 %v3061, %v2386
    %v3065 = vmul.f32 %v3061, %v2387
    %v3070 = vrot.slane %v3062, 1
    %v3071 = vrot.slane %v3063, 1
    %v3072 = vsel %vm255, %v3070, %v3071
    %v3073 = vrot.slane %v3064, 1
    %v3074 = vrot.slane %v3065, 1
    %v3075 = vsel %vm255, %v3073, %v3074
    %3076 = vrot.lane.b32.xlu0 %v3072, 127
    %v3077 = vpop.permute.xlu0 %3076
    %3078 = vrot.lane.b32.xlu0 %v3071, 127
    %v3079 = vpop.permute.xlu0 %3078
    %3080 = vrot.lane.b32.xlu0 %v3075, 127
    %v3081 = vpop.permute.xlu0 %3080
    %3082 = vrot.lane.b32.xlu0 %v3074, 127
    %v3083 = vpop.permute.xlu0 %3082
    %v3088 = vadd.f32 %v2840, %v3077
    %v3089 = vadd.f32 %v2841, %v3079
    %v3090 = vadd.f32 %v2842, %v3081
    %v3091 = vadd.f32 %v2843, %v3083
    %s3092 = sld [smem:[#allocation8 + $0x7b]]
    %v3093 = vstv %s3092
    %v3094 = vmul.f32 %v3093, %v2384
    %v3095 = vmul.f32 %v3093, %v2385
    %v3096 = vmul.f32 %v3093, %v2386
    %v3097 = vmul.f32 %v3093, %v2387
    %v3102 = vrot.slane %v3094, 1
    %v3103 = vrot.slane %v3095, 1
    %v3104 = vsel %vm255, %v3102, %v3103
    %v3105 = vrot.slane %v3096, 1
    %v3106 = vrot.slane %v3097, 1
    %v3107 = vsel %vm255, %v3105, %v3106
    %3108 = vrot.lane.b32.xlu0 %v3104, 127
    %v3109 = vpop.permute.xlu0 %3108
    %3110 = vrot.lane.b32.xlu0 %v3103, 127
    %v3111 = vpop.permute.xlu0 %3110
    %3112 = vrot.lane.b32.xlu0 %v3107, 127
    %v3113 = vpop.permute.xlu0 %3112
    %3114 = vrot.lane.b32.xlu0 %v3106, 127
    %v3115 = vpop.permute.xlu0 %3114
    %v3120 = vadd.f32 %v2864, %v3109
    %v3121 = vadd.f32 %v2865, %v3111
    %v3122 = vadd.f32 %v2866, %v3113
    %v3123 = vadd.f32 %v2867, %v3115
    %v3124 = vld [vmem:[%s899] sm:$0xff]
    %v3125 = vld [vmem:[%s899 + $0x8] sm:$0x7f]
    %v3126 = vld [vmem:[%s899 + $0x40] sm:$0xff]
    %v3127 = vld [vmem:[%s899 + $0x48] sm:$0x7f]
    %s3128 = sld [smem:[#allocation8 + $0xc]]
    %v3129 = vstv %s3128
    %v3130 = vmul.f32 %v3129, %v3124
    %v3131 = vmul.f32 %v3129, %v3125
    %v3132 = vmul.f32 %v3129, %v3126
    %v3133 = vmul.f32 %v3129, %v3127
    %v3134 = vadd.f32 %v2896, %v3130
    %v3135 = vadd.f32 %v2897, %v3131
    %v3136 = vadd.f32 %v2898, %v3132
    %v3137 = vadd.f32 %v2899, %v3133
    %s3138 = sld [smem:[#allocation8 + $0x1c]]
    %v3139 = vstv %s3138
    %v3140 = vmul.f32 %v3139, %v3124
    %v3141 = vmul.f32 %v3139, %v3125
    %v3142 = vmul.f32 %v3139, %v3126
    %v3143 = vmul.f32 %v3139, %v3127
    %v3144 = vadd.f32 %v2928, %v3140
    %v3145 = vadd.f32 %v2929, %v3141
    %v3146 = vadd.f32 %v2930, %v3142
    %v3147 = vadd.f32 %v2931, %v3143
    %s3148 = sld [smem:[#allocation8 + $0x2c]]
    %v3149 = vstv %s3148
    %v3150 = vmul.f32 %v3149, %v3124
    %v3151 = vmul.f32 %v3149, %v3125
    %v3152 = vmul.f32 %v3149, %v3126
    %v3153 = vmul.f32 %v3149, %v3127
    %v3154 = vadd.f32 %v2960, %v3150
    %v3155 = vadd.f32 %v2961, %v3151
    %v3156 = vadd.f32 %v2962, %v3152
    %v3157 = vadd.f32 %v2963, %v3153
    %s3158 = sld [smem:[#allocation8 + $0x3c]]
    %v3159 = vstv %s3158
    %v3160 = vmul.f32 %v3159, %v3124
    %v3161 = vmul.f32 %v3159, %v3125
    %v3162 = vmul.f32 %v3159, %v3126
    %v3163 = vmul.f32 %v3159, %v3127
    %v3164 = vadd.f32 %v2992, %v3160
    %v3165 = vadd.f32 %v2993, %v3161
    %v3166 = vadd.f32 %v2994, %v3162
    %v3167 = vadd.f32 %v2995, %v3163
    %s3168 = sld [smem:[#allocation8 + $0x4c]]
    %v3169 = vstv %s3168
    %v3170 = vmul.f32 %v3169, %v3124
    %v3171 = vmul.f32 %v3169, %v3125
    %v3172 = vmul.f32 %v3169, %v3126
    %v3173 = vmul.f32 %v3169, %v3127
    %v3174 = vadd.f32 %v3024, %v3170
    %v3175 = vadd.f32 %v3025, %v3171
    %v3176 = vadd.f32 %v3026, %v3172
    %v3177 = vadd.f32 %v3027, %v3173
    %s3178 = sld [smem:[#allocation8 + $0x5c]]
    %v3179 = vstv %s3178
    %v3180 = vmul.f32 %v3179, %v3124
    %v3181 = vmul.f32 %v3179, %v3125
    %v3182 = vmul.f32 %v3179, %v3126
    %v3183 = vmul.f32 %v3179, %v3127
    %v3184 = vadd.f32 %v3056, %v3180
    %v3185 = vadd.f32 %v3057, %v3181
    %v3186 = vadd.f32 %v3058, %v3182
    %v3187 = vadd.f32 %v3059, %v3183
    %s3188 = sld [smem:[#allocation8 + $0x6c]]
    %v3189 = vstv %s3188
    %v3190 = vmul.f32 %v3189, %v3124
    %v3191 = vmul.f32 %v3189, %v3125
    %v3192 = vmul.f32 %v3189, %v3126
    %v3193 = vmul.f32 %v3189, %v3127
    %v3194 = vadd.f32 %v3088, %v3190
    %v3195 = vadd.f32 %v3089, %v3191
    %v3196 = vadd.f32 %v3090, %v3192
    %v3197 = vadd.f32 %v3091, %v3193
    %s3198 = sld [smem:[#allocation8 + $0x7c]]
    %v3199 = vstv %s3198
    %v3200 = vmul.f32 %v3199, %v3124
    %v3201 = vmul.f32 %v3199, %v3125
    %v3202 = vmul.f32 %v3199, %v3126
    %v3203 = vmul.f32 %v3199, %v3127
    %v3204 = vadd.f32 %v3120, %v3200
    %v3205 = vadd.f32 %v3121, %v3201
    %v3206 = vadd.f32 %v3122, %v3202
    %v3207 = vadd.f32 %v3123, %v3203
    %s3208 = sld [smem:[#allocation8 + $0xd]]
    %v3209 = vstv %s3208
    %v3210 = vmul.f32 %v3209, %v3124
    %v3211 = vmul.f32 %v3209, %v3125
    %v3212 = vmul.f32 %v3209, %v3126
    %v3213 = vmul.f32 %v3209, %v3127
    %3218 = vrot.lane.b32.xlu0 %v3210, 127
    %v3219 = vpop.permute.xlu0 %3218
    %3220 = vrot.lane.b32.xlu0 %v3211, 127
    %v3221 = vpop.permute.xlu0 %3220
    %3222 = vrot.lane.b32.xlu0 %v3212, 127
    %v3223 = vpop.permute.xlu0 %3222
    %3224 = vrot.lane.b32.xlu0 %v3213, 127
    %v3225 = vpop.permute.xlu0 %3224
    %v3230 = vadd.f32 %v3134, %v3219
    %v3231 = vadd.f32 %v3135, %v3221
    %v3232 = vadd.f32 %v3136, %v3223
    %v3233 = vadd.f32 %v3137, %v3225
    %s3234 = sld [smem:[#allocation8 + $0x1d]]
    %v3235 = vstv %s3234
    %v3236 = vmul.f32 %v3235, %v3124
    %v3237 = vmul.f32 %v3235, %v3125
    %v3238 = vmul.f32 %v3235, %v3126
    %v3239 = vmul.f32 %v3235, %v3127
    %3244 = vrot.lane.b32.xlu0 %v3236, 127
    %v3245 = vpop.permute.xlu0 %3244
    %3246 = vrot.lane.b32.xlu0 %v3237, 127
    %v3247 = vpop.permute.xlu0 %3246
    %3248 = vrot.lane.b32.xlu0 %v3238, 127
    %v3249 = vpop.permute.xlu0 %3248
    %3250 = vrot.lane.b32.xlu0 %v3239, 127
    %v3251 = vpop.permute.xlu0 %3250
    %v3256 = vadd.f32 %v3144, %v3245
    %v3257 = vadd.f32 %v3145, %v3247
    %v3258 = vadd.f32 %v3146, %v3249
    %v3259 = vadd.f32 %v3147, %v3251
    %s3260 = sld [smem:[#allocation8 + $0x2d]]
    %v3261 = vstv %s3260
    %v3262 = vmul.f32 %v3261, %v3124
    %v3263 = vmul.f32 %v3261, %v3125
    %v3264 = vmul.f32 %v3261, %v3126
    %v3265 = vmul.f32 %v3261, %v3127
    %3270 = vrot.lane.b32.xlu0 %v3262, 127
    %v3271 = vpop.permute.xlu0 %3270
    %3272 = vrot.lane.b32.xlu0 %v3263, 127
    %v3273 = vpop.permute.xlu0 %3272
    %3274 = vrot.lane.b32.xlu0 %v3264, 127
    %v3275 = vpop.permute.xlu0 %3274
    %3276 = vrot.lane.b32.xlu0 %v3265, 127
    %v3277 = vpop.permute.xlu0 %3276
    %v3282 = vadd.f32 %v3154, %v3271
    %v3283 = vadd.f32 %v3155, %v3273
    %v3284 = vadd.f32 %v3156, %v3275
    %v3285 = vadd.f32 %v3157, %v3277
    %s3286 = sld [smem:[#allocation8 + $0x3d]]
    %v3287 = vstv %s3286
    %v3288 = vmul.f32 %v3287, %v3124
    %v3289 = vmul.f32 %v3287, %v3125
    %v3290 = vmul.f32 %v3287, %v3126
    %v3291 = vmul.f32 %v3287, %v3127
    %3296 = vrot.lane.b32.xlu0 %v3288, 127
    %v3297 = vpop.permute.xlu0 %3296
    %3298 = vrot.lane.b32.xlu0 %v3289, 127
    %v3299 = vpop.permute.xlu0 %3298
    %3300 = vrot.lane.b32.xlu0 %v3290, 127
    %v3301 = vpop.permute.xlu0 %3300
    %3302 = vrot.lane.b32.xlu0 %v3291, 127
    %v3303 = vpop.permute.xlu0 %3302
    %v3308 = vadd.f32 %v3164, %v3297
    %v3309 = vadd.f32 %v3165, %v3299
    %v3310 = vadd.f32 %v3166, %v3301
    %v3311 = vadd.f32 %v3167, %v3303
    %s3312 = sld [smem:[#allocation8 + $0x4d]]
    %v3313 = vstv %s3312
    %v3314 = vmul.f32 %v3313, %v3124
    %v3315 = vmul.f32 %v3313, %v3125
    %v3316 = vmul.f32 %v3313, %v3126
    %v3317 = vmul.f32 %v3313, %v3127
    %3322 = vrot.lane.b32.xlu0 %v3314, 127
    %v3323 = vpop.permute.xlu0 %3322
    %3324 = vrot.lane.b32.xlu0 %v3315, 127
    %v3325 = vpop.permute.xlu0 %3324
    %3326 = vrot.lane.b32.xlu0 %v3316, 127
    %v3327 = vpop.permute.xlu0 %3326
    %3328 = vrot.lane.b32.xlu0 %v3317, 127
    %v3329 = vpop.permute.xlu0 %3328
    %v3334 = vadd.f32 %v3174, %v3323
    %v3335 = vadd.f32 %v3175, %v3325
    %v3336 = vadd.f32 %v3176, %v3327
    %v3337 = vadd.f32 %v3177, %v3329
    %s3338 = sld [smem:[#allocation8 + $0x5d]]
    %v3339 = vstv %s3338
    %v3340 = vmul.f32 %v3339, %v3124
    %v3341 = vmul.f32 %v3339, %v3125
    %v3342 = vmul.f32 %v3339, %v3126
    %v3343 = vmul.f32 %v3339, %v3127
    %3348 = vrot.lane.b32.xlu0 %v3340, 127
    %v3349 = vpop.permute.xlu0 %3348
    %3350 = vrot.lane.b32.xlu0 %v3341, 127
    %v3351 = vpop.permute.xlu0 %3350
    %3352 = vrot.lane.b32.xlu0 %v3342, 127
    %v3353 = vpop.permute.xlu0 %3352
    %3354 = vrot.lane.b32.xlu0 %v3343, 127
    %v3355 = vpop.permute.xlu0 %3354
    %v3360 = vadd.f32 %v3184, %v3349
    %v3361 = vadd.f32 %v3185, %v3351
    %v3362 = vadd.f32 %v3186, %v3353
    %v3363 = vadd.f32 %v3187, %v3355
    %s3364 = sld [smem:[#allocation8 + $0x6d]]
    %v3365 = vstv %s3364
    %v3366 = vmul.f32 %v3365, %v3124
    %v3367 = vmul.f32 %v3365, %v3125
    %v3368 = vmul.f32 %v3365, %v3126
    %v3369 = vmul.f32 %v3365, %v3127
    %3374 = vrot.lane.b32.xlu0 %v3366, 127
    %v3375 = vpop.permute.xlu0 %3374
    %3376 = vrot.lane.b32.xlu0 %v3367, 127
    %v3377 = vpop.permute.xlu0 %3376
    %3378 = vrot.lane.b32.xlu0 %v3368, 127
    %v3379 = vpop.permute.xlu0 %3378
    %3380 = vrot.lane.b32.xlu0 %v3369, 127
    %v3381 = vpop.permute.xlu0 %3380
    %v3386 = vadd.f32 %v3194, %v3375
    %v3387 = vadd.f32 %v3195, %v3377
    %v3388 = vadd.f32 %v3196, %v3379
    %v3389 = vadd.f32 %v3197, %v3381
    %s3390 = sld [smem:[#allocation8 + $0x7d]]
    %v3391 = vstv %s3390
    %v3392 = vmul.f32 %v3391, %v3124
    %v3393 = vmul.f32 %v3391, %v3125
    %v3394 = vmul.f32 %v3391, %v3126
    %v3395 = vmul.f32 %v3391, %v3127
    %3400 = vrot.lane.b32.xlu0 %v3392, 127
    %v3401 = vpop.permute.xlu0 %3400
    %3402 = vrot.lane.b32.xlu0 %v3393, 127
    %v3403 = vpop.permute.xlu0 %3402
    %3404 = vrot.lane.b32.xlu0 %v3394, 127
    %v3405 = vpop.permute.xlu0 %3404
    %3406 = vrot.lane.b32.xlu0 %v3395, 127
    %v3407 = vpop.permute.xlu0 %3406
    %v3412 = vadd.f32 %v3204, %v3401
    %v3413 = vadd.f32 %v3205, %v3403
    %v3414 = vadd.f32 %v3206, %v3405
    %v3415 = vadd.f32 %v3207, %v3407
    %s3416 = sld [smem:[#allocation8 + $0xe]]
    %v3417 = vstv %s3416
    %v3418 = vmul.f32 %v3417, %v3124
    %v3419 = vmul.f32 %v3417, %v3125
    %v3420 = vmul.f32 %v3417, %v3126
    %v3421 = vmul.f32 %v3417, %v3127
    %v3426 = vrot.slane %v3418, 1
    %v3427 = vrot.slane %v3419, 1
    %v3428 = vsel %vm255, %v3426, %v3427
    %v3429 = vrot.slane %v3420, 1
    %v3430 = vrot.slane %v3421, 1
    %v3431 = vsel %vm255, %v3429, %v3430
    %v3436 = vadd.f32 %v3230, %v3428
    %v3437 = vadd.f32 %v3231, %v3427
    %v3438 = vadd.f32 %v3232, %v3431
    %v3439 = vadd.f32 %v3233, %v3430
    %s3440 = sld [smem:[#allocation8 + $0x1e]]
    %v3441 = vstv %s3440
    %v3442 = vmul.f32 %v3441, %v3124
    %v3443 = vmul.f32 %v3441, %v3125
    %v3444 = vmul.f32 %v3441, %v3126
    %v3445 = vmul.f32 %v3441, %v3127
    %v3450 = vrot.slane %v3442, 1
    %v3451 = vrot.slane %v3443, 1
    %v3452 = vsel %vm255, %v3450, %v3451
    %v3453 = vrot.slane %v3444, 1
    %v3454 = vrot.slane %v3445, 1
    %v3455 = vsel %vm255, %v3453, %v3454
    %v3460 = vadd.f32 %v3256, %v3452
    %v3461 = vadd.f32 %v3257, %v3451
    %v3462 = vadd.f32 %v3258, %v3455
    %v3463 = vadd.f32 %v3259, %v3454
    %s3464 = sld [smem:[#allocation8 + $0x2e]]
    %v3465 = vstv %s3464
    %v3466 = vmul.f32 %v3465, %v3124
    %v3467 = vmul.f32 %v3465, %v3125
    %v3468 = vmul.f32 %v3465, %v3126
    %v3469 = vmul.f32 %v3465, %v3127
    %v3474 = vrot.slane %v3466, 1
    %v3475 = vrot.slane %v3467, 1
    %v3476 = vsel %vm255, %v3474, %v3475
    %v3477 = vrot.slane %v3468, 1
    %v3478 = vrot.slane %v3469, 1
    %v3479 = vsel %vm255, %v3477, %v3478
    %v3484 = vadd.f32 %v3282, %v3476
    %v3485 = vadd.f32 %v3283, %v3475
    %v3486 = vadd.f32 %v3284, %v3479
    %v3487 = vadd.f32 %v3285, %v3478
    %s3488 = sld [smem:[#allocation8 + $0x3e]]
    %v3489 = vstv %s3488
    %v3490 = vmul.f32 %v3489, %v3124
    %v3491 = vmul.f32 %v3489, %v3125
    %v3492 = vmul.f32 %v3489, %v3126
    %v3493 = vmul.f32 %v3489, %v3127
    %v3498 = vrot.slane %v3490, 1
    %v3499 = vrot.slane %v3491, 1
    %v3500 = vsel %vm255, %v3498, %v3499
    %v3501 = vrot.slane %v3492, 1
    %v3502 = vrot.slane %v3493, 1
    %v3503 = vsel %vm255, %v3501, %v3502
    %v3508 = vadd.f32 %v3308, %v3500
    %v3509 = vadd.f32 %v3309, %v3499
    %v3510 = vadd.f32 %v3310, %v3503
    %v3511 = vadd.f32 %v3311, %v3502
    %s3512 = sld [smem:[#allocation8 + $0x4e]]
    %v3513 = vstv %s3512
    %v3514 = vmul.f32 %v3513, %v3124
    %v3515 = vmul.f32 %v3513, %v3125
    %v3516 = vmul.f32 %v3513, %v3126
    %v3517 = vmul.f32 %v3513, %v3127
    %v3522 = vrot.slane %v3514, 1
    %v3523 = vrot.slane %v3515, 1
    %v3524 = vsel %vm255, %v3522, %v3523
    %v3525 = vrot.slane %v3516, 1
    %v3526 = vrot.slane %v3517, 1
    %v3527 = vsel %vm255, %v3525, %v3526
    %v3532 = vadd.f32 %v3334, %v3524
    %v3533 = vadd.f32 %v3335, %v3523
    %v3534 = vadd.f32 %v3336, %v3527
    %v3535 = vadd.f32 %v3337, %v3526
    %s3536 = sld [smem:[#allocation8 + $0x5e]]
    %v3537 = vstv %s3536
    %v3538 = vmul.f32 %v3537, %v3124
    %v3539 = vmul.f32 %v3537, %v3125
    %v3540 = vmul.f32 %v3537, %v3126
    %v3541 = vmul.f32 %v3537, %v3127
    %v3546 = vrot.slane %v3538, 1
    %v3547 = vrot.slane %v3539, 1
    %v3548 = vsel %vm255, %v3546, %v3547
    %v3549 = vrot.slane %v3540, 1
    %v3550 = vrot.slane %v3541, 1
    %v3551 = vsel %vm255, %v3549, %v3550
    %v3556 = vadd.f32 %v3360, %v3548
    %v3557 = vadd.f32 %v3361, %v3547
    %v3558 = vadd.f32 %v3362, %v3551
    %v3559 = vadd.f32 %v3363, %v3550
    %s3560 = sld [smem:[#allocation8 + $0x6e]]
    %v3561 = vstv %s3560
    %v3562 = vmul.f32 %v3561, %v3124
    %v3563 = vmul.f32 %v3561, %v3125
    %v3564 = vmul.f32 %v3561, %v3126
    %v3565 = vmul.f32 %v3561, %v3127
    %v3570 = vrot.slane %v3562, 1
    %v3571 = vrot.slane %v3563, 1
    %v3572 = vsel %vm255, %v3570, %v3571
    %v3573 = vrot.slane %v3564, 1
    %v3574 = vrot.slane %v3565, 1
    %v3575 = vsel %vm255, %v3573, %v3574
    %v3580 = vadd.f32 %v3386, %v3572
    %v3581 = vadd.f32 %v3387, %v3571
    %v3582 = vadd.f32 %v3388, %v3575
    %v3583 = vadd.f32 %v3389, %v3574
    %s3584 = sld [smem:[#allocation8 + $0x7e]]
    %v3585 = vstv %s3584
    %v3586 = vmul.f32 %v3585, %v3124
    %v3587 = vmul.f32 %v3585, %v3125
    %v3588 = vmul.f32 %v3585, %v3126
    %v3589 = vmul.f32 %v3585, %v3127
    %v3594 = vrot.slane %v3586, 1
    %v3595 = vrot.slane %v3587, 1
    %v3596 = vsel %vm255, %v3594, %v3595
    %v3597 = vrot.slane %v3588, 1
    %v3598 = vrot.slane %v3589, 1
    %v3599 = vsel %vm255, %v3597, %v3598
    %v3604 = vadd.f32 %v3412, %v3596
    %v3605 = vadd.f32 %v3413, %v3595
    %v3606 = vadd.f32 %v3414, %v3599
    %v3607 = vadd.f32 %v3415, %v3598
    %s3608 = sld [smem:[#allocation8 + $0xf]]
    %v3609 = vstv %s3608
    %v3610 = vmul.f32 %v3609, %v3124
    %v3611 = vmul.f32 %v3609, %v3125
    %v3612 = vmul.f32 %v3609, %v3126
    %v3613 = vmul.f32 %v3609, %v3127
    %v3618 = vrot.slane %v3610, 1
    %v3619 = vrot.slane %v3611, 1
    %v3620 = vsel %vm255, %v3618, %v3619
    %v3621 = vrot.slane %v3612, 1
    %v3622 = vrot.slane %v3613, 1
    %v3623 = vsel %vm255, %v3621, %v3622
    %3624 = vrot.lane.b32.xlu0 %v3620, 127
    %v3625 = vpop.permute.xlu0 %3624
    %3626 = vrot.lane.b32.xlu0 %v3619, 127
    %v3627 = vpop.permute.xlu0 %3626
    %3628 = vrot.lane.b32.xlu0 %v3623, 127
    %v3629 = vpop.permute.xlu0 %3628
    %3630 = vrot.lane.b32.xlu0 %v3622, 127
    %v3631 = vpop.permute.xlu0 %3630
    %v3636 = vadd.f32 %v3436, %v3625
    %v3637 = vadd.f32 %v3437, %v3627
    %v3638 = vadd.f32 %v3438, %v3629
    %v3639 = vadd.f32 %v3439, %v3631
    %s3640 = sld [smem:[#allocation8 + $0x1f]]
    %v3641 = vstv %s3640
    %v3642 = vmul.f32 %v3641, %v3124
    %v3643 = vmul.f32 %v3641, %v3125
    %v3644 = vmul.f32 %v3641, %v3126
    %v3645 = vmul.f32 %v3641, %v3127
    %v3650 = vrot.slane %v3642, 1
    %v3651 = vrot.slane %v3643, 1
    %v3652 = vsel %vm255, %v3650, %v3651
    %v3653 = vrot.slane %v3644, 1
    %v3654 = vrot.slane %v3645, 1
    %v3655 = vsel %vm255, %v3653, %v3654
    %3656 = vrot.lane.b32.xlu0 %v3652, 127
    %v3657 = vpop.permute.xlu0 %3656
    %3658 = vrot.lane.b32.xlu0 %v3651, 127
    %v3659 = vpop.permute.xlu0 %3658
    %3660 = vrot.lane.b32.xlu0 %v3655, 127
    %v3661 = vpop.permute.xlu0 %3660
    %3662 = vrot.lane.b32.xlu0 %v3654, 127
    %v3663 = vpop.permute.xlu0 %3662
    %v3668 = vadd.f32 %v3460, %v3657
    %v3669 = vadd.f32 %v3461, %v3659
    %v3670 = vadd.f32 %v3462, %v3661
    %v3671 = vadd.f32 %v3463, %v3663
    %s3672 = sld [smem:[#allocation8 + $0x2f]]
    %v3673 = vstv %s3672
    %v3674 = vmul.f32 %v3673, %v3124
    %v3675 = vmul.f32 %v3673, %v3125
    %v3676 = vmul.f32 %v3673, %v3126
    %v3677 = vmul.f32 %v3673, %v3127
    %v3682 = vrot.slane %v3674, 1
    %v3683 = vrot.slane %v3675, 1
    %v3684 = vsel %vm255, %v3682, %v3683
    %v3685 = vrot.slane %v3676, 1
    %v3686 = vrot.slane %v3677, 1
    %v3687 = vsel %vm255, %v3685, %v3686
    %3688 = vrot.lane.b32.xlu0 %v3684, 127
    %v3689 = vpop.permute.xlu0 %3688
    %3690 = vrot.lane.b32.xlu0 %v3683, 127
    %v3691 = vpop.permute.xlu0 %3690
    %3692 = vrot.lane.b32.xlu0 %v3687, 127
    %v3693 = vpop.permute.xlu0 %3692
    %3694 = vrot.lane.b32.xlu0 %v3686, 127
    %v3695 = vpop.permute.xlu0 %3694
    %v3700 = vadd.f32 %v3484, %v3689
    %v3701 = vadd.f32 %v3485, %v3691
    %v3702 = vadd.f32 %v3486, %v3693
    %v3703 = vadd.f32 %v3487, %v3695
    %s3704 = sld [smem:[#allocation8 + $0x3f]]
    %v3705 = vstv %s3704
    %v3706 = vmul.f32 %v3705, %v3124
    %v3707 = vmul.f32 %v3705, %v3125
    %v3708 = vmul.f32 %v3705, %v3126
    %v3709 = vmul.f32 %v3705, %v3127
    %v3714 = vrot.slane %v3706, 1
    %v3715 = vrot.slane %v3707, 1
    %v3716 = vsel %vm255, %v3714, %v3715
    %v3717 = vrot.slane %v3708, 1
    %v3718 = vrot.slane %v3709, 1
    %v3719 = vsel %vm255, %v3717, %v3718
    %3720 = vrot.lane.b32.xlu0 %v3716, 127
    %v3721 = vpop.permute.xlu0 %3720
    %3722 = vrot.lane.b32.xlu0 %v3715, 127
    %v3723 = vpop.permute.xlu0 %3722
    %3724 = vrot.lane.b32.xlu0 %v3719, 127
    %v3725 = vpop.permute.xlu0 %3724
    %3726 = vrot.lane.b32.xlu0 %v3718, 127
    %v3727 = vpop.permute.xlu0 %3726
    %v3732 = vadd.f32 %v3508, %v3721
    %v3733 = vadd.f32 %v3509, %v3723
    %v3734 = vadd.f32 %v3510, %v3725
    %v3735 = vadd.f32 %v3511, %v3727
    %s3736 = sld [smem:[#allocation8 + $0x4f]]
    %v3737 = vstv %s3736
    %v3738 = vmul.f32 %v3737, %v3124
    %v3739 = vmul.f32 %v3737, %v3125
    %v3740 = vmul.f32 %v3737, %v3126
    %v3741 = vmul.f32 %v3737, %v3127
    %v3746 = vrot.slane %v3738, 1
    %v3747 = vrot.slane %v3739, 1
    %v3748 = vsel %vm255, %v3746, %v3747
    %v3749 = vrot.slane %v3740, 1
    %v3750 = vrot.slane %v3741, 1
    %v3751 = vsel %vm255, %v3749, %v3750
    %3752 = vrot.lane.b32.xlu0 %v3748, 127
    %v3753 = vpop.permute.xlu0 %3752
    %3754 = vrot.lane.b32.xlu0 %v3747, 127
    %v3755 = vpop.permute.xlu0 %3754
    %3756 = vrot.lane.b32.xlu0 %v3751, 127
    %v3757 = vpop.permute.xlu0 %3756
    %3758 = vrot.lane.b32.xlu0 %v3750, 127
    %v3759 = vpop.permute.xlu0 %3758
    %v3764 = vadd.f32 %v3532, %v3753
    %v3765 = vadd.f32 %v3533, %v3755
    %v3766 = vadd.f32 %v3534, %v3757
    %v3767 = vadd.f32 %v3535, %v3759
    %s3768 = sld [smem:[#allocation8 + $0x5f]]
    %v3769 = vstv %s3768
    %v3770 = vmul.f32 %v3769, %v3124
    %v3771 = vmul.f32 %v3769, %v3125
    %v3772 = vmul.f32 %v3769, %v3126
    %v3773 = vmul.f32 %v3769, %v3127
    %v3778 = vrot.slane %v3770, 1
    %v3779 = vrot.slane %v3771, 1
    %v3780 = vsel %vm255, %v3778, %v3779
    %v3781 = vrot.slane %v3772, 1
    %v3782 = vrot.slane %v3773, 1
    %v3783 = vsel %vm255, %v3781, %v3782
    %3784 = vrot.lane.b32.xlu0 %v3780, 127
    %v3785 = vpop.permute.xlu0 %3784
    %3786 = vrot.lane.b32.xlu0 %v3779, 127
    %v3787 = vpop.permute.xlu0 %3786
    %3788 = vrot.lane.b32.xlu0 %v3783, 127
    %v3789 = vpop.permute.xlu0 %3788
    %3790 = vrot.lane.b32.xlu0 %v3782, 127
    %v3791 = vpop.permute.xlu0 %3790
    %v3796 = vadd.f32 %v3556, %v3785
    %v3797 = vadd.f32 %v3557, %v3787
    %v3798 = vadd.f32 %v3558, %v3789
    %v3799 = vadd.f32 %v3559, %v3791
    %s3800 = sld [smem:[#allocation8 + $0x6f]]
    %v3801 = vstv %s3800
    %v3802 = vmul.f32 %v3801, %v3124
    %v3803 = vmul.f32 %v3801, %v3125
    %v3804 = vmul.f32 %v3801, %v3126
    %v3805 = vmul.f32 %v3801, %v3127
    %v3810 = vrot.slane %v3802, 1
    %v3811 = vrot.slane %v3803, 1
    %v3812 = vsel %vm255, %v3810, %v3811
    %v3813 = vrot.slane %v3804, 1
    %v3814 = vrot.slane %v3805, 1
    %v3815 = vsel %vm255, %v3813, %v3814
    %3816 = vrot.lane.b32.xlu0 %v3812, 127
    %v3817 = vpop.permute.xlu0 %3816
    %3818 = vrot.lane.b32.xlu0 %v3811, 127
    %v3819 = vpop.permute.xlu0 %3818
    %3820 = vrot.lane.b32.xlu0 %v3815, 127
    %v3821 = vpop.permute.xlu0 %3820
    %3822 = vrot.lane.b32.xlu0 %v3814, 127
    %v3823 = vpop.permute.xlu0 %3822
    %v3828 = vadd.f32 %v3580, %v3817
    %v3829 = vadd.f32 %v3581, %v3819
    %v3830 = vadd.f32 %v3582, %v3821
    %v3831 = vadd.f32 %v3583, %v3823
    %s3832 = sld [smem:[#allocation8 + $0x7f]]
    %v3833 = vstv %s3832
    %v3834 = vmul.f32 %v3833, %v3124
    %v3835 = vmul.f32 %v3833, %v3125
    %v3836 = vmul.f32 %v3833, %v3126
    %v3837 = vmul.f32 %v3833, %v3127
    %v3842 = vrot.slane %v3834, 1
    %v3843 = vrot.slane %v3835, 1
    %v3844 = vsel %vm255, %v3842, %v3843
    %v3845 = vrot.slane %v3836, 1
    %v3846 = vrot.slane %v3837, 1
    %v3847 = vsel %vm255, %v3845, %v3846
    %3848 = vrot.lane.b32.xlu0 %v3844, 127
    %v3849 = vpop.permute.xlu0 %3848
    %3850 = vrot.lane.b32.xlu0 %v3843, 127
    %v3851 = vpop.permute.xlu0 %3850
    %3852 = vrot.lane.b32.xlu0 %v3847, 127
    %v3853 = vpop.permute.xlu0 %3852
    %3854 = vrot.lane.b32.xlu0 %v3846, 127
    %v3855 = vpop.permute.xlu0 %3854
    %v3860 = vadd.f32 %v3604, %v3849
    %v3861 = vadd.f32 %v3605, %v3851
    %v3862 = vadd.f32 %v3606, %v3853
    %v3863 = vadd.f32 %v3607, %v3855
    %s3864 = sld [smem:[#allocation9]]
    %v3865 = vstv %s3864
    %v3866 = vadd.f32 %v3636, %v3865
    %v3867 = vadd.f32 %v3637, %v3865
    %v3868 = vadd.f32 %v3638, %v3865
    %v3869 = vadd.f32 %v3639, %v3865
    %v3870 = vmax.f32 %v3866, 0.0
    %v3871 = vmax.f32 %v3867, 0.0
    %v3872 = vmax.f32 %v3868, 0.0
    %v3873 = vmax.f32 %v3869, 0.0
    %vm3874 = vcmask 113664
    %3875 = vst.msk [vmem:[#allocation3] sm:$0xff] %vm3874, %v3870
    %vm3876 = vcmask 111616
    %3877 = vst.msk [vmem:[#allocation3 + $0x8] sm:$0x3f] %vm3876, %v3871
    %3878 = vst.msk [vmem:[#allocation3 + $0x80] sm:$0xff] %vm3874, %v3872
    %3879 = vst.msk [vmem:[#allocation3 + $0x88] sm:$0x3f] %vm3876, %v3873
    %s3880 = sld [smem:[#allocation9 + $0x1]]
    %v3881 = vstv %s3880
    %v3882 = vadd.f32 %v3668, %v3881
    %v3883 = vadd.f32 %v3669, %v3881
    %v3884 = vadd.f32 %v3670, %v3881
    %v3885 = vadd.f32 %v3671, %v3881
    %v3886 = vmax.f32 %v3882, 0.0
    %v3887 = vmax.f32 %v3883, 0.0
    %v3888 = vmax.f32 %v3884, 0.0
    %v3889 = vmax.f32 %v3885, 0.0
    %s3890 = scalar_lea.vmem [#allocation3], 16
    %3891 = vst.msk [vmem:[%s3890] sm:$0xff] %vm3874, %v3886
    %3892 = vst.msk [vmem:[%s3890 + $0x8] sm:$0x3f] %vm3876, %v3887
    %3893 = vst.msk [vmem:[%s3890 + $0x80] sm:$0xff] %vm3874, %v3888
    %3894 = vst.msk [vmem:[%s3890 + $0x88] sm:$0x3f] %vm3876, %v3889
    %s3895 = sld [smem:[#allocation9 + $0x2]]
    %v3896 = vstv %s3895
    %v3897 = vadd.f32 %v3700, %v3896
    %v3898 = vadd.f32 %v3701, %v3896
    %v3899 = vadd.f32 %v3702, %v3896
    %v3900 = vadd.f32 %v3703, %v3896
    %v3901 = vmax.f32 %v3897, 0.0
    %v3902 = vmax.f32 %v3898, 0.0
    %v3903 = vmax.f32 %v3899, 0.0
    %v3904 = vmax.f32 %v3900, 0.0
    %s3905 = scalar_lea.vmem [#allocation3], 32
    %3906 = vst.msk [vmem:[%s3905] sm:$0xff] %vm3874, %v3901
    %3907 = vst.msk [vmem:[%s3905 + $0x8] sm:$0x3f] %vm3876, %v3902
    %3908 = vst.msk [vmem:[%s3905 + $0x80] sm:$0xff] %vm3874, %v3903
    %3909 = vst.msk [vmem:[%s3905 + $0x88] sm:$0x3f] %vm3876, %v3904
    %s3910 = sld [smem:[#allocation9 + $0x3]]
    %v3911 = vstv %s3910
    %v3912 = vadd.f32 %v3732, %v3911
    %v3913 = vadd.f32 %v3733, %v3911
    %v3914 = vadd.f32 %v3734, %v3911
    %v3915 = vadd.f32 %v3735, %v3911
    %v3916 = vmax.f32 %v3912, 0.0
    %v3917 = vmax.f32 %v3913, 0.0
    %v3918 = vmax.f32 %v3914, 0.0
    %v3919 = vmax.f32 %v3915, 0.0
    %s3920 = scalar_lea.vmem [#allocation3], 48
    %3921 = vst.msk [vmem:[%s3920] sm:$0xff] %vm3874, %v3916
    %3922 = vst.msk [vmem:[%s3920 + $0x8] sm:$0x3f] %vm3876, %v3917
    %3923 = vst.msk [vmem:[%s3920 + $0x80] sm:$0xff] %vm3874, %v3918
    %3924 = vst.msk [vmem:[%s3920 + $0x88] sm:$0x3f] %vm3876, %v3919
    %s3925 = sld [smem:[#allocation9 + $0x4]]
    %v3926 = vstv %s3925
    %v3927 = vadd.f32 %v3764, %v3926
    %v3928 = vadd.f32 %v3765, %v3926
    %v3929 = vadd.f32 %v3766, %v3926
    %v3930 = vadd.f32 %v3767, %v3926
    %v3931 = vmax.f32 %v3927, 0.0
    %v3932 = vmax.f32 %v3928, 0.0
    %v3933 = vmax.f32 %v3929, 0.0
    %v3934 = vmax.f32 %v3930, 0.0
    %s3935 = scalar_lea.vmem [#allocation3], 64
    %3936 = vst.msk [vmem:[%s3935] sm:$0xff] %vm3874, %v3931
    %3937 = vst.msk [vmem:[%s3935 + $0x8] sm:$0x3f] %vm3876, %v3932
    %3938 = vst.msk [vmem:[%s3935 + $0x80] sm:$0xff] %vm3874, %v3933
    %3939 = vst.msk [vmem:[%s3935 + $0x88] sm:$0x3f] %vm3876, %v3934
    %s3940 = sld [smem:[#allocation9 + $0x5]]
    %v3941 = vstv %s3940
    %v3942 = vadd.f32 %v3796, %v3941
    %v3943 = vadd.f32 %v3797, %v3941
    %v3944 = vadd.f32 %v3798, %v3941
    %v3945 = vadd.f32 %v3799, %v3941
    %v3946 = vmax.f32 %v3942, 0.0
    %v3947 = vmax.f32 %v3943, 0.0
    %v3948 = vmax.f32 %v3944, 0.0
    %v3949 = vmax.f32 %v3945, 0.0
    %s3950 = scalar_lea.vmem [#allocation3], 80
    %3951 = vst.msk [vmem:[%s3950] sm:$0xff] %vm3874, %v3946
    %3952 = vst.msk [vmem:[%s3950 + $0x8] sm:$0x3f] %vm3876, %v3947
    %3953 = vst.msk [vmem:[%s3950 + $0x80] sm:$0xff] %vm3874, %v3948
    %3954 = vst.msk [vmem:[%s3950 + $0x88] sm:$0x3f] %vm3876, %v3949
    %s3955 = sld [smem:[#allocation9 + $0x6]]
    %v3956 = vstv %s3955
    %v3957 = vadd.f32 %v3828, %v3956
    %v3958 = vadd.f32 %v3829, %v3956
    %v3959 = vadd.f32 %v3830, %v3956
    %v3960 = vadd.f32 %v3831, %v3956
    %v3961 = vmax.f32 %v3957, 0.0
    %v3962 = vmax.f32 %v3958, 0.0
    %v3963 = vmax.f32 %v3959, 0.0
    %v3964 = vmax.f32 %v3960, 0.0
    %s3965 = scalar_lea.vmem [#allocation3], 96
    %3966 = vst.msk [vmem:[%s3965] sm:$0xff] %vm3874, %v3961
    %3967 = vst.msk [vmem:[%s3965 + $0x8] sm:$0x3f] %vm3876, %v3962
    %3968 = vst.msk [vmem:[%s3965 + $0x80] sm:$0xff] %vm3874, %v3963
    %3969 = vst.msk [vmem:[%s3965 + $0x88] sm:$0x3f] %vm3876, %v3964
    %s3970 = sld [smem:[#allocation9 + $0x7]]
    %v3971 = vstv %s3970
    %v3972 = vadd.f32 %v3860, %v3971
    %v3973 = vadd.f32 %v3861, %v3971
    %v3974 = vadd.f32 %v3862, %v3971
    %v3975 = vadd.f32 %v3863, %v3971
    %v3976 = vmax.f32 %v3972, 0.0
    %v3977 = vmax.f32 %v3973, 0.0
    %v3978 = vmax.f32 %v3974, 0.0
    %v3979 = vmax.f32 %v3975, 0.0
    %s3980 = scalar_lea.vmem [#allocation3], 112
    %3981 = vst.msk [vmem:[%s3980] sm:$0xff] %vm3874, %v3976
    %3982 = vst.msk [vmem:[%s3980 + $0x8] sm:$0x3f] %vm3876, %v3977
    %3983 = vst.msk [vmem:[%s3980 + $0x80] sm:$0xff] %vm3874, %v3978
    %3984 = vst.msk [vmem:[%s3980 + $0x88] sm:$0x3f] %vm3876, %v3979
    %v3985 = vld [vmem:[#allocation3] sm:$0xff]
    %v3986 = vld [vmem:[#allocation3 + $0x8] sm:$0x3f]
    %v3987 = vld [vmem:[#allocation3 + $0x80] sm:$0xff]
    %v3988 = vld [vmem:[#allocation3 + $0x88] sm:$0x3f]
    %s3989 = sld [smem:[#allocation11]]
    %v3990 = vstv %s3989
    %v3991 = vmul.f32 %v3990, %v3985
    %v3992 = vmul.f32 %v3990, %v3986
    %v3993 = vmul.f32 %v3990, %v3987
    %v3994 = vmul.f32 %v3990, %v3988
    %v3995 = vadd.f32 %v3991, 0.0
    %v3996 = vadd.f32 %v3992, 0.0
    %v3997 = vadd.f32 %v3993, 0.0
    %v3998 = vadd.f32 %v3994, 0.0
    %s3999 = sld [smem:[#allocation11 + $0x20]]
    %v4000 = vstv %s3999
    %v4001 = vmul.f32 %v4000, %v3985
    %v4002 = vmul.f32 %v4000, %v3986
    %v4003 = vmul.f32 %v4000, %v3987
    %v4004 = vmul.f32 %v4000, %v3988
    %v4005 = vadd.f32 %v4001, 0.0
    %v4006 = vadd.f32 %v4002, 0.0
    %v4007 = vadd.f32 %v4003, 0.0
    %v4008 = vadd.f32 %v4004, 0.0
    %s4009 = sld [smem:[#allocation11 + $0x40]]
    %v4010 = vstv %s4009
    %v4011 = vmul.f32 %v4010, %v3985
    %v4012 = vmul.f32 %v4010, %v3986
    %v4013 = vmul.f32 %v4010, %v3987
    %v4014 = vmul.f32 %v4010, %v3988
    %v4015 = vadd.f32 %v4011, 0.0
    %v4016 = vadd.f32 %v4012, 0.0
    %v4017 = vadd.f32 %v4013, 0.0
    %v4018 = vadd.f32 %v4014, 0.0
    %s4019 = sld [smem:[#allocation11 + $0x60]]
    %v4020 = vstv %s4019
    %v4021 = vmul.f32 %v4020, %v3985
    %v4022 = vmul.f32 %v4020, %v3986
    %v4023 = vmul.f32 %v4020, %v3987
    %v4024 = vmul.f32 %v4020, %v3988
    %v4025 = vadd.f32 %v4021, 0.0
    %v4026 = vadd.f32 %v4022, 0.0
    %v4027 = vadd.f32 %v4023, 0.0
    %v4028 = vadd.f32 %v4024, 0.0
    %s4029 = sld [smem:[#allocation11 + $0x80]]
    %v4030 = vstv %s4029
    %v4031 = vmul.f32 %v4030, %v3985
    %v4032 = vmul.f32 %v4030, %v3986
    %v4033 = vmul.f32 %v4030, %v3987
    %v4034 = vmul.f32 %v4030, %v3988
    %v4035 = vadd.f32 %v4031, 0.0
    %v4036 = vadd.f32 %v4032, 0.0
    %v4037 = vadd.f32 %v4033, 0.0
    %v4038 = vadd.f32 %v4034, 0.0
    %s4039 = sld [smem:[#allocation11 + $0xa0]]
    %v4040 = vstv %s4039
    %v4041 = vmul.f32 %v4040, %v3985
    %v4042 = vmul.f32 %v4040, %v3986
    %v4043 = vmul.f32 %v4040, %v3987
    %v4044 = vmul.f32 %v4040, %v3988
    %v4045 = vadd.f32 %v4041, 0.0
    %v4046 = vadd.f32 %v4042, 0.0
    %v4047 = vadd.f32 %v4043, 0.0
    %v4048 = vadd.f32 %v4044, 0.0
    %s4049 = sld [smem:[#allocation11 + $0xc0]]
    %v4050 = vstv %s4049
    %v4051 = vmul.f32 %v4050, %v3985
    %v4052 = vmul.f32 %v4050, %v3986
    %v4053 = vmul.f32 %v4050, %v3987
    %v4054 = vmul.f32 %v4050, %v3988
    %v4055 = vadd.f32 %v4051, 0.0
    %v4056 = vadd.f32 %v4052, 0.0
    %v4057 = vadd.f32 %v4053, 0.0
    %v4058 = vadd.f32 %v4054, 0.0
    %s4059 = sld [smem:[#allocation11 + $0xe0]]
    %v4060 = vstv %s4059
    %v4061 = vmul.f32 %v4060, %v3985
    %v4062 = vmul.f32 %v4060, %v3986
    %v4063 = vmul.f32 %v4060, %v3987
    %v4064 = vmul.f32 %v4060, %v3988
    %v4065 = vadd.f32 %v4061, 0.0
    %v4066 = vadd.f32 %v4062, 0.0
    %v4067 = vadd.f32 %v4063, 0.0
    %v4068 = vadd.f32 %v4064, 0.0
    %s4069 = sld [smem:[#allocation11 + $0x1]]
    %v4070 = vstv %s4069
    %v4071 = vmul.f32 %v4070, %v3985
    %v4072 = vmul.f32 %v4070, %v3986
    %v4073 = vmul.f32 %v4070, %v3987
    %v4074 = vmul.f32 %v4070, %v3988
    %4079 = vrot.lane.b32.xlu0 %v4071, 127
    %v4080 = vpop.permute.xlu0 %4079
    %4081 = vrot.lane.b32.xlu0 %v4072, 127
    %v4082 = vpop.permute.xlu0 %4081
    %4083 = vrot.lane.b32.xlu0 %v4073, 127
    %v4084 = vpop.permute.xlu0 %4083
    %4085 = vrot.lane.b32.xlu0 %v4074, 127
    %v4086 = vpop.permute.xlu0 %4085
    %v4091 = vadd.f32 %v3995, %v4080
    %v4092 = vadd.f32 %v3996, %v4082
    %v4093 = vadd.f32 %v3997, %v4084
    %v4094 = vadd.f32 %v3998, %v4086
    %s4095 = sld [smem:[#allocation11 + $0x21]]
    %v4096 = vstv %s4095
    %v4097 = vmul.f32 %v4096, %v3985
    %v4098 = vmul.f32 %v4096, %v3986
    %v4099 = vmul.f32 %v4096, %v3987
    %v4100 = vmul.f32 %v4096, %v3988
    %4105 = vrot.lane.b32.xlu0 %v4097, 127
    %v4106 = vpop.permute.xlu0 %4105
    %4107 = vrot.lane.b32.xlu0 %v4098, 127
    %v4108 = vpop.permute.xlu0 %4107
    %4109 = vrot.lane.b32.xlu0 %v4099, 127
    %v4110 = vpop.permute.xlu0 %4109
    %4111 = vrot.lane.b32.xlu0 %v4100, 127
    %v4112 = vpop.permute.xlu0 %4111
    %v4117 = vadd.f32 %v4005, %v4106
    %v4118 = vadd.f32 %v4006, %v4108
    %v4119 = vadd.f32 %v4007, %v4110
    %v4120 = vadd.f32 %v4008, %v4112
    %s4121 = sld [smem:[#allocation11 + $0x41]]
    %v4122 = vstv %s4121
    %v4123 = vmul.f32 %v4122, %v3985
    %v4124 = vmul.f32 %v4122, %v3986
    %v4125 = vmul.f32 %v4122, %v3987
    %v4126 = vmul.f32 %v4122, %v3988
    %4131 = vrot.lane.b32.xlu0 %v4123, 127
    %v4132 = vpop.permute.xlu0 %4131
    %4133 = vrot.lane.b32.xlu0 %v4124, 127
    %v4134 = vpop.permute.xlu0 %4133
    %4135 = vrot.lane.b32.xlu0 %v4125, 127
    %v4136 = vpop.permute.xlu0 %4135
    %4137 = vrot.lane.b32.xlu0 %v4126, 127
    %v4138 = vpop.permute.xlu0 %4137
    %v4143 = vadd.f32 %v4015, %v4132
    %v4144 = vadd.f32 %v4016, %v4134
    %v4145 = vadd.f32 %v4017, %v4136
    %v4146 = vadd.f32 %v4018, %v4138
    %s4147 = sld [smem:[#allocation11 + $0x61]]
    %v4148 = vstv %s4147
    %v4149 = vmul.f32 %v4148, %v3985
    %v4150 = vmul.f32 %v4148, %v3986
    %v4151 = vmul.f32 %v4148, %v3987
    %v4152 = vmul.f32 %v4148, %v3988
    %4157 = vrot.lane.b32.xlu0 %v4149, 127
    %v4158 = vpop.permute.xlu0 %4157
    %4159 = vrot.lane.b32.xlu0 %v4150, 127
    %v4160 = vpop.permute.xlu0 %4159
    %4161 = vrot.lane.b32.xlu0 %v4151, 127
    %v4162 = vpop.permute.xlu0 %4161
    %4163 = vrot.lane.b32.xlu0 %v4152, 127
    %v4164 = vpop.permute.xlu0 %4163
    %v4169 = vadd.f32 %v4025, %v4158
    %v4170 = vadd.f32 %v4026, %v4160
    %v4171 = vadd.f32 %v4027, %v4162
    %v4172 = vadd.f32 %v4028, %v4164
    %s4173 = sld [smem:[#allocation11 + $0x81]]
    %v4174 = vstv %s4173
    %v4175 = vmul.f32 %v4174, %v3985
    %v4176 = vmul.f32 %v4174, %v3986
    %v4177 = vmul.f32 %v4174, %v3987
    %v4178 = vmul.f32 %v4174, %v3988
    %4183 = vrot.lane.b32.xlu0 %v4175, 127
    %v4184 = vpop.permute.xlu0 %4183
    %4185 = vrot.lane.b32.xlu0 %v4176, 127
    %v4186 = vpop.permute.xlu0 %4185
    %4187 = vrot.lane.b32.xlu0 %v4177, 127
    %v4188 = vpop.permute.xlu0 %4187
    %4189 = vrot.lane.b32.xlu0 %v4178, 127
    %v4190 = vpop.permute.xlu0 %4189
    %v4195 = vadd.f32 %v4035, %v4184
    %v4196 = vadd.f32 %v4036, %v4186
    %v4197 = vadd.f32 %v4037, %v4188
    %v4198 = vadd.f32 %v4038, %v4190
    %s4199 = sld [smem:[#allocation11 + $0xa1]]
    %v4200 = vstv %s4199
    %v4201 = vmul.f32 %v4200, %v3985
    %v4202 = vmul.f32 %v4200, %v3986
    %v4203 = vmul.f32 %v4200, %v3987
    %v4204 = vmul.f32 %v4200, %v3988
    %4209 = vrot.lane.b32.xlu0 %v4201, 127
    %v4210 = vpop.permute.xlu0 %4209
    %4211 = vrot.lane.b32.xlu0 %v4202, 127
    %v4212 = vpop.permute.xlu0 %4211
    %4213 = vrot.lane.b32.xlu0 %v4203, 127
    %v4214 = vpop.permute.xlu0 %4213
    %4215 = vrot.lane.b32.xlu0 %v4204, 127
    %v4216 = vpop.permute.xlu0 %4215
    %v4221 = vadd.f32 %v4045, %v4210
    %v4222 = vadd.f32 %v4046, %v4212
    %v4223 = vadd.f32 %v4047, %v4214
    %v4224 = vadd.f32 %v4048, %v4216
    %s4225 = sld [smem:[#allocation11 + $0xc1]]
    %v4226 = vstv %s4225
    %v4227 = vmul.f32 %v4226, %v3985
    %v4228 = vmul.f32 %v4226, %v3986
    %v4229 = vmul.f32 %v4226, %v3987
    %v4230 = vmul.f32 %v4226, %v3988
    %4235 = vrot.lane.b32.xlu0 %v4227, 127
    %v4236 = vpop.permute.xlu0 %4235
    %4237 = vrot.lane.b32.xlu0 %v4228, 127
    %v4238 = vpop.permute.xlu0 %4237
    %4239 = vrot.lane.b32.xlu0 %v4229, 127
    %v4240 = vpop.permute.xlu0 %4239
    %4241 = vrot.lane.b32.xlu0 %v4230, 127
    %v4242 = vpop.permute.xlu0 %4241
    %v4247 = vadd.f32 %v4055, %v4236
    %v4248 = vadd.f32 %v4056, %v4238
    %v4249 = vadd.f32 %v4057, %v4240
    %v4250 = vadd.f32 %v4058, %v4242
    %s4251 = sld [smem:[#allocation11 + $0xe1]]
    %v4252 = vstv %s4251
    %v4253 = vmul.f32 %v4252, %v3985
    %v4254 = vmul.f32 %v4252, %v3986
    %v4255 = vmul.f32 %v4252, %v3987
    %v4256 = vmul.f32 %v4252, %v3988
    %4261 = vrot.lane.b32.xlu0 %v4253, 127
    %v4262 = vpop.permute.xlu0 %4261
    %4263 = vrot.lane.b32.xlu0 %v4254, 127
    %v4264 = vpop.permute.xlu0 %4263
    %4265 = vrot.lane.b32.xlu0 %v4255, 127
    %v4266 = vpop.permute.xlu0 %4265
    %4267 = vrot.lane.b32.xlu0 %v4256, 127
    %v4268 = vpop.permute.xlu0 %4267
    %v4273 = vadd.f32 %v4065, %v4262
    %v4274 = vadd.f32 %v4066, %v4264
    %v4275 = vadd.f32 %v4067, %v4266
    %v4276 = vadd.f32 %v4068, %v4268
    %s4277 = sld [smem:[#allocation11 + $0x2]]
    %v4278 = vstv %s4277
    %v4279 = vmul.f32 %v4278, %v3985
    %v4280 = vmul.f32 %v4278, %v3986
    %v4281 = vmul.f32 %v4278, %v3987
    %v4282 = vmul.f32 %v4278, %v3988
    %v4287 = vrot.slane %v4279, 1
    %v4288 = vrot.slane %v4280, 1
    %v4289 = vsel %vm255, %v4287, %v4288
    %v4290 = vrot.slane %v4281, 1
    %v4291 = vrot.slane %v4282, 1
    %v4292 = vsel %vm255, %v4290, %v4291
    %v4297 = vadd.f32 %v4091, %v4289
    %v4298 = vadd.f32 %v4092, %v4288
    %v4299 = vadd.f32 %v4093, %v4292
    %v4300 = vadd.f32 %v4094, %v4291
    %s4301 = sld [smem:[#allocation11 + $0x22]]
    %v4302 = vstv %s4301
    %v4303 = vmul.f32 %v4302, %v3985
    %v4304 = vmul.f32 %v4302, %v3986
    %v4305 = vmul.f32 %v4302, %v3987
    %v4306 = vmul.f32 %v4302, %v3988
    %v4311 = vrot.slane %v4303, 1
    %v4312 = vrot.slane %v4304, 1
    %v4313 = vsel %vm255, %v4311, %v4312
    %v4314 = vrot.slane %v4305, 1
    %v4315 = vrot.slane %v4306, 1
    %v4316 = vsel %vm255, %v4314, %v4315
    %v4321 = vadd.f32 %v4117, %v4313
    %v4322 = vadd.f32 %v4118, %v4312
    %v4323 = vadd.f32 %v4119, %v4316
    %v4324 = vadd.f32 %v4120, %v4315
    %s4325 = sld [smem:[#allocation11 + $0x42]]
    %v4326 = vstv %s4325
    %v4327 = vmul.f32 %v4326, %v3985
    %v4328 = vmul.f32 %v4326, %v3986
    %v4329 = vmul.f32 %v4326, %v3987
    %v4330 = vmul.f32 %v4326, %v3988
    %v4335 = vrot.slane %v4327, 1
    %v4336 = vrot.slane %v4328, 1
    %v4337 = vsel %vm255, %v4335, %v4336
    %v4338 = vrot.slane %v4329, 1
    %v4339 = vrot.slane %v4330, 1
    %v4340 = vsel %vm255, %v4338, %v4339
    %v4345 = vadd.f32 %v4143, %v4337
    %v4346 = vadd.f32 %v4144, %v4336
    %v4347 = vadd.f32 %v4145, %v4340
    %v4348 = vadd.f32 %v4146, %v4339
    %s4349 = sld [smem:[#allocation11 + $0x62]]
    %v4350 = vstv %s4349
    %v4351 = vmul.f32 %v4350, %v3985
    %v4352 = vmul.f32 %v4350, %v3986
    %v4353 = vmul.f32 %v4350, %v3987
    %v4354 = vmul.f32 %v4350, %v3988
    %v4359 = vrot.slane %v4351, 1
    %v4360 = vrot.slane %v4352, 1
    %v4361 = vsel %vm255, %v4359, %v4360
    %v4362 = vrot.slane %v4353, 1
    %v4363 = vrot.slane %v4354, 1
    %v4364 = vsel %vm255, %v4362, %v4363
    %v4369 = vadd.f32 %v4169, %v4361
    %v4370 = vadd.f32 %v4170, %v4360
    %v4371 = vadd.f32 %v4171, %v4364
    %v4372 = vadd.f32 %v4172, %v4363
    %s4373 = sld [smem:[#allocation11 + $0x82]]
    %v4374 = vstv %s4373
    %v4375 = vmul.f32 %v4374, %v3985
    %v4376 = vmul.f32 %v4374, %v3986
    %v4377 = vmul.f32 %v4374, %v3987
    %v4378 = vmul.f32 %v4374, %v3988
    %v4383 = vrot.slane %v4375, 1
    %v4384 = vrot.slane %v4376, 1
    %v4385 = vsel %vm255, %v4383, %v4384
    %v4386 = vrot.slane %v4377, 1
    %v4387 = vrot.slane %v4378, 1
    %v4388 = vsel %vm255, %v4386, %v4387
    %v4393 = vadd.f32 %v4195, %v4385
    %v4394 = vadd.f32 %v4196, %v4384
    %v4395 = vadd.f32 %v4197, %v4388
    %v4396 = vadd.f32 %v4198, %v4387
    %s4397 = sld [smem:[#allocation11 + $0xa2]]
    %v4398 = vstv %s4397
    %v4399 = vmul.f32 %v4398, %v3985
    %v4400 = vmul.f32 %v4398, %v3986
    %v4401 = vmul.f32 %v4398, %v3987
    %v4402 = vmul.f32 %v4398, %v3988
    %v4407 = vrot.slane %v4399, 1
    %v4408 = vrot.slane %v4400, 1
    %v4409 = vsel %vm255, %v4407, %v4408
    %v4410 = vrot.slane %v4401, 1
    %v4411 = vrot.slane %v4402, 1
    %v4412 = vsel %vm255, %v4410, %v4411
    %v4417 = vadd.f32 %v4221, %v4409
    %v4418 = vadd.f32 %v4222, %v4408
    %v4419 = vadd.f32 %v4223, %v4412
    %v4420 = vadd.f32 %v4224, %v4411
    %s4421 = sld [smem:[#allocation11 + $0xc2]]
    %v4422 = vstv %s4421
    %v4423 = vmul.f32 %v4422, %v3985
    %v4424 = vmul.f32 %v4422, %v3986
    %v4425 = vmul.f32 %v4422, %v3987
    %v4426 = vmul.f32 %v4422, %v3988
    %v4431 = vrot.slane %v4423, 1
    %v4432 = vrot.slane %v4424, 1
    %v4433 = vsel %vm255, %v4431, %v4432
    %v4434 = vrot.slane %v4425, 1
    %v4435 = vrot.slane %v4426, 1
    %v4436 = vsel %vm255, %v4434, %v4435
    %v4441 = vadd.f32 %v4247, %v4433
    %v4442 = vadd.f32 %v4248, %v4432
    %v4443 = vadd.f32 %v4249, %v4436
    %v4444 = vadd.f32 %v4250, %v4435
    %s4445 = sld [smem:[#allocation11 + $0xe2]]
    %v4446 = vstv %s4445
    %v4447 = vmul.f32 %v4446, %v3985
    %v4448 = vmul.f32 %v4446, %v3986
    %v4449 = vmul.f32 %v4446, %v3987
    %v4450 = vmul.f32 %v4446, %v3988
    %v4455 = vrot.slane %v4447, 1
    %v4456 = vrot.slane %v4448, 1
    %v4457 = vsel %vm255, %v4455, %v4456
    %v4458 = vrot.slane %v4449, 1
    %v4459 = vrot.slane %v4450, 1
    %v4460 = vsel %vm255, %v4458, %v4459
    %v4465 = vadd.f32 %v4273, %v4457
    %v4466 = vadd.f32 %v4274, %v4456
    %v4467 = vadd.f32 %v4275, %v4460
    %v4468 = vadd.f32 %v4276, %v4459
    %s4469 = sld [smem:[#allocation11 + $0x3]]
    %v4470 = vstv %s4469
    %v4471 = vmul.f32 %v4470, %v3985
    %v4472 = vmul.f32 %v4470, %v3986
    %v4473 = vmul.f32 %v4470, %v3987
    %v4474 = vmul.f32 %v4470, %v3988
    %v4479 = vrot.slane %v4471, 1
    %v4480 = vrot.slane %v4472, 1
    %v4481 = vsel %vm255, %v4479, %v4480
    %v4482 = vrot.slane %v4473, 1
    %v4483 = vrot.slane %v4474, 1
    %v4484 = vsel %vm255, %v4482, %v4483
    %4485 = vrot.lane.b32.xlu0 %v4481, 127
    %v4486 = vpop.permute.xlu0 %4485
    %4487 = vrot.lane.b32.xlu0 %v4480, 127
    %v4488 = vpop.permute.xlu0 %4487
    %4489 = vrot.lane.b32.xlu0 %v4484, 127
    %v4490 = vpop.permute.xlu0 %4489
    %4491 = vrot.lane.b32.xlu0 %v4483, 127
    %v4492 = vpop.permute.xlu0 %4491
    %v4497 = vadd.f32 %v4297, %v4486
    %v4498 = vadd.f32 %v4298, %v4488
    %v4499 = vadd.f32 %v4299, %v4490
    %v4500 = vadd.f32 %v4300, %v4492
    %s4501 = sld [smem:[#allocation11 + $0x23]]
    %v4502 = vstv %s4501
    %v4503 = vmul.f32 %v4502, %v3985
    %v4504 = vmul.f32 %v4502, %v3986
    %v4505 = vmul.f32 %v4502, %v3987
    %v4506 = vmul.f32 %v4502, %v3988
    %v4511 = vrot.slane %v4503, 1
    %v4512 = vrot.slane %v4504, 1
    %v4513 = vsel %vm255, %v4511, %v4512
    %v4514 = vrot.slane %v4505, 1
    %v4515 = vrot.slane %v4506, 1
    %v4516 = vsel %vm255, %v4514, %v4515
    %4517 = vrot.lane.b32.xlu0 %v4513, 127
    %v4518 = vpop.permute.xlu0 %4517
    %4519 = vrot.lane.b32.xlu0 %v4512, 127
    %v4520 = vpop.permute.xlu0 %4519
    %4521 = vrot.lane.b32.xlu0 %v4516, 127
    %v4522 = vpop.permute.xlu0 %4521
    %4523 = vrot.lane.b32.xlu0 %v4515, 127
    %v4524 = vpop.permute.xlu0 %4523
    %v4529 = vadd.f32 %v4321, %v4518
    %v4530 = vadd.f32 %v4322, %v4520
    %v4531 = vadd.f32 %v4323, %v4522
    %v4532 = vadd.f32 %v4324, %v4524
    %s4533 = sld [smem:[#allocation11 + $0x43]]
    %v4534 = vstv %s4533
    %v4535 = vmul.f32 %v4534, %v3985
    %v4536 = vmul.f32 %v4534, %v3986
    %v4537 = vmul.f32 %v4534, %v3987
    %v4538 = vmul.f32 %v4534, %v3988
    %v4543 = vrot.slane %v4535, 1
    %v4544 = vrot.slane %v4536, 1
    %v4545 = vsel %vm255, %v4543, %v4544
    %v4546 = vrot.slane %v4537, 1
    %v4547 = vrot.slane %v4538, 1
    %v4548 = vsel %vm255, %v4546, %v4547
    %4549 = vrot.lane.b32.xlu0 %v4545, 127
    %v4550 = vpop.permute.xlu0 %4549
    %4551 = vrot.lane.b32.xlu0 %v4544, 127
    %v4552 = vpop.permute.xlu0 %4551
    %4553 = vrot.lane.b32.xlu0 %v4548, 127
    %v4554 = vpop.permute.xlu0 %4553
    %4555 = vrot.lane.b32.xlu0 %v4547, 127
    %v4556 = vpop.permute.xlu0 %4555
    %v4561 = vadd.f32 %v4345, %v4550
    %v4562 = vadd.f32 %v4346, %v4552
    %v4563 = vadd.f32 %v4347, %v4554
    %v4564 = vadd.f32 %v4348, %v4556
    %s4565 = sld [smem:[#allocation11 + $0x63]]
    %v4566 = vstv %s4565
    %v4567 = vmul.f32 %v4566, %v3985
    %v4568 = vmul.f32 %v4566, %v3986
    %v4569 = vmul.f32 %v4566, %v3987
    %v4570 = vmul.f32 %v4566, %v3988
    %v4575 = vrot.slane %v4567, 1
    %v4576 = vrot.slane %v4568, 1
    %v4577 = vsel %vm255, %v4575, %v4576
    %v4578 = vrot.slane %v4569, 1
    %v4579 = vrot.slane %v4570, 1
    %v4580 = vsel %vm255, %v4578, %v4579
    %4581 = vrot.lane.b32.xlu0 %v4577, 127
    %v4582 = vpop.permute.xlu0 %4581
    %4583 = vrot.lane.b32.xlu0 %v4576, 127
    %v4584 = vpop.permute.xlu0 %4583
    %4585 = vrot.lane.b32.xlu0 %v4580, 127
    %v4586 = vpop.permute.xlu0 %4585
    %4587 = vrot.lane.b32.xlu0 %v4579, 127
    %v4588 = vpop.permute.xlu0 %4587
    %v4593 = vadd.f32 %v4369, %v4582
    %v4594 = vadd.f32 %v4370, %v4584
    %v4595 = vadd.f32 %v4371, %v4586
    %v4596 = vadd.f32 %v4372, %v4588
    %s4597 = sld [smem:[#allocation11 + $0x83]]
    %v4598 = vstv %s4597
    %v4599 = vmul.f32 %v4598, %v3985
    %v4600 = vmul.f32 %v4598, %v3986
    %v4601 = vmul.f32 %v4598, %v3987
    %v4602 = vmul.f32 %v4598, %v3988
    %v4607 = vrot.slane %v4599, 1
    %v4608 = vrot.slane %v4600, 1
    %v4609 = vsel %vm255, %v4607, %v4608
    %v4610 = vrot.slane %v4601, 1
    %v4611 = vrot.slane %v4602, 1
    %v4612 = vsel %vm255, %v4610, %v4611
    %4613 = vrot.lane.b32.xlu0 %v4609, 127
    %v4614 = vpop.permute.xlu0 %4613
    %4615 = vrot.lane.b32.xlu0 %v4608, 127
    %v4616 = vpop.permute.xlu0 %4615
    %4617 = vrot.lane.b32.xlu0 %v4612, 127
    %v4618 = vpop.permute.xlu0 %4617
    %4619 = vrot.lane.b32.xlu0 %v4611, 127
    %v4620 = vpop.permute.xlu0 %4619
    %v4625 = vadd.f32 %v4393, %v4614
    %v4626 = vadd.f32 %v4394, %v4616
    %v4627 = vadd.f32 %v4395, %v4618
    %v4628 = vadd.f32 %v4396, %v4620
    %s4629 = sld [smem:[#allocation11 + $0xa3]]
    %v4630 = vstv %s4629
    %v4631 = vmul.f32 %v4630, %v3985
    %v4632 = vmul.f32 %v4630, %v3986
    %v4633 = vmul.f32 %v4630, %v3987
    %v4634 = vmul.f32 %v4630, %v3988
    %v4639 = vrot.slane %v4631, 1
    %v4640 = vrot.slane %v4632, 1
    %v4641 = vsel %vm255, %v4639, %v4640
    %v4642 = vrot.slane %v4633, 1
    %v4643 = vrot.slane %v4634, 1
    %v4644 = vsel %vm255, %v4642, %v4643
    %4645 = vrot.lane.b32.xlu0 %v4641, 127
    %v4646 = vpop.permute.xlu0 %4645
    %4647 = vrot.lane.b32.xlu0 %v4640, 127
    %v4648 = vpop.permute.xlu0 %4647
    %4649 = vrot.lane.b32.xlu0 %v4644, 127
    %v4650 = vpop.permute.xlu0 %4649
    %4651 = vrot.lane.b32.xlu0 %v4643, 127
    %v4652 = vpop.permute.xlu0 %4651
    %v4657 = vadd.f32 %v4417, %v4646
    %v4658 = vadd.f32 %v4418, %v4648
    %v4659 = vadd.f32 %v4419, %v4650
    %v4660 = vadd.f32 %v4420, %v4652
    %s4661 = sld [smem:[#allocation11 + $0xc3]]
    %v4662 = vstv %s4661
    %v4663 = vmul.f32 %v4662, %v3985
    %v4664 = vmul.f32 %v4662, %v3986
    %v4665 = vmul.f32 %v4662, %v3987
    %v4666 = vmul.f32 %v4662, %v3988
    %v4671 = vrot.slane %v4663, 1
    %v4672 = vrot.slane %v4664, 1
    %v4673 = vsel %vm255, %v4671, %v4672
    %v4674 = vrot.slane %v4665, 1
    %v4675 = vrot.slane %v4666, 1
    %v4676 = vsel %vm255, %v4674, %v4675
    %4677 = vrot.lane.b32.xlu0 %v4673, 127
    %v4678 = vpop.permute.xlu0 %4677
    %4679 = vrot.lane.b32.xlu0 %v4672, 127
    %v4680 = vpop.permute.xlu0 %4679
    %4681 = vrot.lane.b32.xlu0 %v4676, 127
    %v4682 = vpop.permute.xlu0 %4681
    %4683 = vrot.lane.b32.xlu0 %v4675, 127
    %v4684 = vpop.permute.xlu0 %4683
    %v4689 = vadd.f32 %v4441, %v4678
    %v4690 = vadd.f32 %v4442, %v4680
    %v4691 = vadd.f32 %v4443, %v4682
    %v4692 = vadd.f32 %v4444, %v4684
    %s4693 = sld [smem:[#allocation11 + $0xe3]]
    %v4694 = vstv %s4693
    %v4695 = vmul.f32 %v4694, %v3985
    %v4696 = vmul.f32 %v4694, %v3986
    %v4697 = vmul.f32 %v4694, %v3987
    %v4698 = vmul.f32 %v4694, %v3988
    %v4703 = vrot.slane %v4695, 1
    %v4704 = vrot.slane %v4696, 1
    %v4705 = vsel %vm255, %v4703, %v4704
    %v4706 = vrot.slane %v4697, 1
    %v4707 = vrot.slane %v4698, 1
    %v4708 = vsel %vm255, %v4706, %v4707
    %4709 = vrot.lane.b32.xlu0 %v4705, 127
    %v4710 = vpop.permute.xlu0 %4709
    %4711 = vrot.lane.b32.xlu0 %v4704, 127
    %v4712 = vpop.permute.xlu0 %4711
    %4713 = vrot.lane.b32.xlu0 %v4708, 127
    %v4714 = vpop.permute.xlu0 %4713
    %4715 = vrot.lane.b32.xlu0 %v4707, 127
    %v4716 = vpop.permute.xlu0 %4715
    %v4721 = vadd.f32 %v4465, %v4710
    %v4722 = vadd.f32 %v4466, %v4712
    %v4723 = vadd.f32 %v4467, %v4714
    %v4724 = vadd.f32 %v4468, %v4716
    %v4725 = vld [vmem:[%s3890] sm:$0xff]
    %v4726 = vld [vmem:[%s3890 + $0x8] sm:$0x3f]
    %v4727 = vld [vmem:[%s3890 + $0x80] sm:$0xff]
    %v4728 = vld [vmem:[%s3890 + $0x88] sm:$0x3f]
    %s4729 = sld [smem:[#allocation11 + $0x4]]
    %v4730 = vstv %s4729
    %v4731 = vmul.f32 %v4730, %v4725
    %v4732 = vmul.f32 %v4730, %v4726
    %v4733 = vmul.f32 %v4730, %v4727
    %v4734 = vmul.f32 %v4730, %v4728
    %v4735 = vadd.f32 %v4497, %v4731
    %v4736 = vadd.f32 %v4498, %v4732
    %v4737 = vadd.f32 %v4499, %v4733
    %v4738 = vadd.f32 %v4500, %v4734
    %s4739 = sld [smem:[#allocation11 + $0x24]]
    %v4740 = vstv %s4739
    %v4741 = vmul.f32 %v4740, %v4725
    %v4742 = vmul.f32 %v4740, %v4726
    %v4743 = vmul.f32 %v4740, %v4727
    %v4744 = vmul.f32 %v4740, %v4728
    %v4745 = vadd.f32 %v4529, %v4741
    %v4746 = vadd.f32 %v4530, %v4742
    %v4747 = vadd.f32 %v4531, %v4743
    %v4748 = vadd.f32 %v4532, %v4744
    %s4749 = sld [smem:[#allocation11 + $0x44]]
    %v4750 = vstv %s4749
    %v4751 = vmul.f32 %v4750, %v4725
    %v4752 = vmul.f32 %v4750, %v4726
    %v4753 = vmul.f32 %v4750, %v4727
    %v4754 = vmul.f32 %v4750, %v4728
    %v4755 = vadd.f32 %v4561, %v4751
    %v4756 = vadd.f32 %v4562, %v4752
    %v4757 = vadd.f32 %v4563, %v4753
    %v4758 = vadd.f32 %v4564, %v4754
    %s4759 = sld [smem:[#allocation11 + $0x64]]
    %v4760 = vstv %s4759
    %v4761 = vmul.f32 %v4760, %v4725
    %v4762 = vmul.f32 %v4760, %v4726
    %v4763 = vmul.f32 %v4760, %v4727
    %v4764 = vmul.f32 %v4760, %v4728
    %v4765 = vadd.f32 %v4593, %v4761
    %v4766 = vadd.f32 %v4594, %v4762
    %v4767 = vadd.f32 %v4595, %v4763
    %v4768 = vadd.f32 %v4596, %v4764
    %s4769 = sld [smem:[#allocation11 + $0x84]]
    %v4770 = vstv %s4769
    %v4771 = vmul.f32 %v4770, %v4725
    %v4772 = vmul.f32 %v4770, %v4726
    %v4773 = vmul.f32 %v4770, %v4727
    %v4774 = vmul.f32 %v4770, %v4728
    %v4775 = vadd.f32 %v4625, %v4771
    %v4776 = vadd.f32 %v4626, %v4772
    %v4777 = vadd.f32 %v4627, %v4773
    %v4778 = vadd.f32 %v4628, %v4774
    %s4779 = sld [smem:[#allocation11 + $0xa4]]
    %v4780 = vstv %s4779
    %v4781 = vmul.f32 %v4780, %v4725
    %v4782 = vmul.f32 %v4780, %v4726
    %v4783 = vmul.f32 %v4780, %v4727
    %v4784 = vmul.f32 %v4780, %v4728
    %v4785 = vadd.f32 %v4657, %v4781
    %v4786 = vadd.f32 %v4658, %v4782
    %v4787 = vadd.f32 %v4659, %v4783
    %v4788 = vadd.f32 %v4660, %v4784
    %s4789 = sld [smem:[#allocation11 + $0xc4]]
    %v4790 = vstv %s4789
    %v4791 = vmul.f32 %v4790, %v4725
    %v4792 = vmul.f32 %v4790, %v4726
    %v4793 = vmul.f32 %v4790, %v4727
    %v4794 = vmul.f32 %v4790, %v4728
    %v4795 = vadd.f32 %v4689, %v4791
    %v4796 = vadd.f32 %v4690, %v4792
    %v4797 = vadd.f32 %v4691, %v4793
    %v4798 = vadd.f32 %v4692, %v4794
    %s4799 = sld [smem:[#allocation11 + $0xe4]]
    %v4800 = vstv %s4799
    %v4801 = vmul.f32 %v4800, %v4725
    %v4802 = vmul.f32 %v4800, %v4726
    %v4803 = vmul.f32 %v4800, %v4727
    %v4804 = vmul.f32 %v4800, %v4728
    %v4805 = vadd.f32 %v4721, %v4801
    %v4806 = vadd.f32 %v4722, %v4802
    %v4807 = vadd.f32 %v4723, %v4803
    %v4808 = vadd.f32 %v4724, %v4804
    %s4809 = sld [smem:[#allocation11 + $0x5]]
    %v4810 = vstv %s4809
    %v4811 = vmul.f32 %v4810, %v4725
    %v4812 = vmul.f32 %v4810, %v4726
    %v4813 = vmul.f32 %v4810, %v4727
    %v4814 = vmul.f32 %v4810, %v4728
    %4819 = vrot.lane.b32.xlu0 %v4811, 127
    %v4820 = vpop.permute.xlu0 %4819
    %4821 = vrot.lane.b32.xlu0 %v4812, 127
    %v4822 = vpop.permute.xlu0 %4821
    %4823 = vrot.lane.b32.xlu0 %v4813, 127
    %v4824 = vpop.permute.xlu0 %4823
    %4825 = vrot.lane.b32.xlu0 %v4814, 127
    %v4826 = vpop.permute.xlu0 %4825
    %v4831 = vadd.f32 %v4735, %v4820
    %v4832 = vadd.f32 %v4736, %v4822
    %v4833 = vadd.f32 %v4737, %v4824
    %v4834 = vadd.f32 %v4738, %v4826
    %s4835 = sld [smem:[#allocation11 + $0x25]]
    %v4836 = vstv %s4835
    %v4837 = vmul.f32 %v4836, %v4725
    %v4838 = vmul.f32 %v4836, %v4726
    %v4839 = vmul.f32 %v4836, %v4727
    %v4840 = vmul.f32 %v4836, %v4728
    %4845 = vrot.lane.b32.xlu0 %v4837, 127
    %v4846 = vpop.permute.xlu0 %4845
    %4847 = vrot.lane.b32.xlu0 %v4838, 127
    %v4848 = vpop.permute.xlu0 %4847
    %4849 = vrot.lane.b32.xlu0 %v4839, 127
    %v4850 = vpop.permute.xlu0 %4849
    %4851 = vrot.lane.b32.xlu0 %v4840, 127
    %v4852 = vpop.permute.xlu0 %4851
    %v4857 = vadd.f32 %v4745, %v4846
    %v4858 = vadd.f32 %v4746, %v4848
    %v4859 = vadd.f32 %v4747, %v4850
    %v4860 = vadd.f32 %v4748, %v4852
    %s4861 = sld [smem:[#allocation11 + $0x45]]
    %v4862 = vstv %s4861
    %v4863 = vmul.f32 %v4862, %v4725
    %v4864 = vmul.f32 %v4862, %v4726
    %v4865 = vmul.f32 %v4862, %v4727
    %v4866 = vmul.f32 %v4862, %v4728
    %4871 = vrot.lane.b32.xlu0 %v4863, 127
    %v4872 = vpop.permute.xlu0 %4871
    %4873 = vrot.lane.b32.xlu0 %v4864, 127
    %v4874 = vpop.permute.xlu0 %4873
    %4875 = vrot.lane.b32.xlu0 %v4865, 127
    %v4876 = vpop.permute.xlu0 %4875
    %4877 = vrot.lane.b32.xlu0 %v4866, 127
    %v4878 = vpop.permute.xlu0 %4877
    %v4883 = vadd.f32 %v4755, %v4872
    %v4884 = vadd.f32 %v4756, %v4874
    %v4885 = vadd.f32 %v4757, %v4876
    %v4886 = vadd.f32 %v4758, %v4878
    %s4887 = sld [smem:[#allocation11 + $0x65]]
    %v4888 = vstv %s4887
    %v4889 = vmul.f32 %v4888, %v4725
    %v4890 = vmul.f32 %v4888, %v4726
    %v4891 = vmul.f32 %v4888, %v4727
    %v4892 = vmul.f32 %v4888, %v4728
    %4897 = vrot.lane.b32.xlu0 %v4889, 127
    %v4898 = vpop.permute.xlu0 %4897
    %4899 = vrot.lane.b32.xlu0 %v4890, 127
    %v4900 = vpop.permute.xlu0 %4899
    %4901 = vrot.lane.b32.xlu0 %v4891, 127
    %v4902 = vpop.permute.xlu0 %4901
    %4903 = vrot.lane.b32.xlu0 %v4892, 127
    %v4904 = vpop.permute.xlu0 %4903
    %v4909 = vadd.f32 %v4765, %v4898
    %v4910 = vadd.f32 %v4766, %v4900
    %v4911 = vadd.f32 %v4767, %v4902
    %v4912 = vadd.f32 %v4768, %v4904
    %s4913 = sld [smem:[#allocation11 + $0x85]]
    %v4914 = vstv %s4913
    %v4915 = vmul.f32 %v4914, %v4725
    %v4916 = vmul.f32 %v4914, %v4726
    %v4917 = vmul.f32 %v4914, %v4727
    %v4918 = vmul.f32 %v4914, %v4728
    %4923 = vrot.lane.b32.xlu0 %v4915, 127
    %v4924 = vpop.permute.xlu0 %4923
    %4925 = vrot.lane.b32.xlu0 %v4916, 127
    %v4926 = vpop.permute.xlu0 %4925
    %4927 = vrot.lane.b32.xlu0 %v4917, 127
    %v4928 = vpop.permute.xlu0 %4927
    %4929 = vrot.lane.b32.xlu0 %v4918, 127
    %v4930 = vpop.permute.xlu0 %4929
    %v4935 = vadd.f32 %v4775, %v4924
    %v4936 = vadd.f32 %v4776, %v4926
    %v4937 = vadd.f32 %v4777, %v4928
    %v4938 = vadd.f32 %v4778, %v4930
    %s4939 = sld [smem:[#allocation11 + $0xa5]]
    %v4940 = vstv %s4939
    %v4941 = vmul.f32 %v4940, %v4725
    %v4942 = vmul.f32 %v4940, %v4726
    %v4943 = vmul.f32 %v4940, %v4727
    %v4944 = vmul.f32 %v4940, %v4728
    %4949 = vrot.lane.b32.xlu0 %v4941, 127
    %v4950 = vpop.permute.xlu0 %4949
    %4951 = vrot.lane.b32.xlu0 %v4942, 127
    %v4952 = vpop.permute.xlu0 %4951
    %4953 = vrot.lane.b32.xlu0 %v4943, 127
    %v4954 = vpop.permute.xlu0 %4953
    %4955 = vrot.lane.b32.xlu0 %v4944, 127
    %v4956 = vpop.permute.xlu0 %4955
    %v4961 = vadd.f32 %v4785, %v4950
    %v4962 = vadd.f32 %v4786, %v4952
    %v4963 = vadd.f32 %v4787, %v4954
    %v4964 = vadd.f32 %v4788, %v4956
    %s4965 = sld [smem:[#allocation11 + $0xc5]]
    %v4966 = vstv %s4965
    %v4967 = vmul.f32 %v4966, %v4725
    %v4968 = vmul.f32 %v4966, %v4726
    %v4969 = vmul.f32 %v4966, %v4727
    %v4970 = vmul.f32 %v4966, %v4728
    %4975 = vrot.lane.b32.xlu0 %v4967, 127
    %v4976 = vpop.permute.xlu0 %4975
    %4977 = vrot.lane.b32.xlu0 %v4968, 127
    %v4978 = vpop.permute.xlu0 %4977
    %4979 = vrot.lane.b32.xlu0 %v4969, 127
    %v4980 = vpop.permute.xlu0 %4979
    %4981 = vrot.lane.b32.xlu0 %v4970, 127
    %v4982 = vpop.permute.xlu0 %4981
    %v4987 = vadd.f32 %v4795, %v4976
    %v4988 = vadd.f32 %v4796, %v4978
    %v4989 = vadd.f32 %v4797, %v4980
    %v4990 = vadd.f32 %v4798, %v4982
    %s4991 = sld [smem:[#allocation11 + $0xe5]]
    %v4992 = vstv %s4991
    %v4993 = vmul.f32 %v4992, %v4725
    %v4994 = vmul.f32 %v4992, %v4726
    %v4995 = vmul.f32 %v4992, %v4727
    %v4996 = vmul.f32 %v4992, %v4728
    %5001 = vrot.lane.b32.xlu0 %v4993, 127
    %v5002 = vpop.permute.xlu0 %5001
    %5003 = vrot.lane.b32.xlu0 %v4994, 127
    %v5004 = vpop.permute.xlu0 %5003
    %5005 = vrot.lane.b32.xlu0 %v4995, 127
    %v5006 = vpop.permute.xlu0 %5005
    %5007 = vrot.lane.b32.xlu0 %v4996, 127
    %v5008 = vpop.permute.xlu0 %5007
    %v5013 = vadd.f32 %v4805, %v5002
    %v5014 = vadd.f32 %v4806, %v5004
    %v5015 = vadd.f32 %v4807, %v5006
    %v5016 = vadd.f32 %v4808, %v5008
    %s5017 = sld [smem:[#allocation11 + $0x6]]
    %v5018 = vstv %s5017
    %v5019 = vmul.f32 %v5018, %v4725
    %v5020 = vmul.f32 %v5018, %v4726
    %v5021 = vmul.f32 %v5018, %v4727
    %v5022 = vmul.f32 %v5018, %v4728
    %v5027 = vrot.slane %v5019, 1
    %v5028 = vrot.slane %v5020, 1
    %v5029 = vsel %vm255, %v5027, %v5028
    %v5030 = vrot.slane %v5021, 1
    %v5031 = vrot.slane %v5022, 1
    %v5032 = vsel %vm255, %v5030, %v5031
    %v5037 = vadd.f32 %v4831, %v5029
    %v5038 = vadd.f32 %v4832, %v5028
    %v5039 = vadd.f32 %v4833, %v5032
    %v5040 = vadd.f32 %v4834, %v5031
    %s5041 = sld [smem:[#allocation11 + $0x26]]
    %v5042 = vstv %s5041
    %v5043 = vmul.f32 %v5042, %v4725
    %v5044 = vmul.f32 %v5042, %v4726
    %v5045 = vmul.f32 %v5042, %v4727
    %v5046 = vmul.f32 %v5042, %v4728
    %v5051 = vrot.slane %v5043, 1
    %v5052 = vrot.slane %v5044, 1
    %v5053 = vsel %vm255, %v5051, %v5052
    %v5054 = vrot.slane %v5045, 1
    %v5055 = vrot.slane %v5046, 1
    %v5056 = vsel %vm255, %v5054, %v5055
    %v5061 = vadd.f32 %v4857, %v5053
    %v5062 = vadd.f32 %v4858, %v5052
    %v5063 = vadd.f32 %v4859, %v5056
    %v5064 = vadd.f32 %v4860, %v5055
    %s5065 = sld [smem:[#allocation11 + $0x46]]
    %v5066 = vstv %s5065
    %v5067 = vmul.f32 %v5066, %v4725
    %v5068 = vmul.f32 %v5066, %v4726
    %v5069 = vmul.f32 %v5066, %v4727
    %v5070 = vmul.f32 %v5066, %v4728
    %v5075 = vrot.slane %v5067, 1
    %v5076 = vrot.slane %v5068, 1
    %v5077 = vsel %vm255, %v5075, %v5076
    %v5078 = vrot.slane %v5069, 1
    %v5079 = vrot.slane %v5070, 1
    %v5080 = vsel %vm255, %v5078, %v5079
    %v5085 = vadd.f32 %v4883, %v5077
    %v5086 = vadd.f32 %v4884, %v5076
    %v5087 = vadd.f32 %v4885, %v5080
    %v5088 = vadd.f32 %v4886, %v5079
    %s5089 = sld [smem:[#allocation11 + $0x66]]
    %v5090 = vstv %s5089
    %v5091 = vmul.f32 %v5090, %v4725
    %v5092 = vmul.f32 %v5090, %v4726
    %v5093 = vmul.f32 %v5090, %v4727
    %v5094 = vmul.f32 %v5090, %v4728
    %v5099 = vrot.slane %v5091, 1
    %v5100 = vrot.slane %v5092, 1
    %v5101 = vsel %vm255, %v5099, %v5100
    %v5102 = vrot.slane %v5093, 1
    %v5103 = vrot.slane %v5094, 1
    %v5104 = vsel %vm255, %v5102, %v5103
    %v5109 = vadd.f32 %v4909, %v5101
    %v5110 = vadd.f32 %v4910, %v5100
    %v5111 = vadd.f32 %v4911, %v5104
    %v5112 = vadd.f32 %v4912, %v5103
    %s5113 = sld [smem:[#allocation11 + $0x86]]
    %v5114 = vstv %s5113
    %v5115 = vmul.f32 %v5114, %v4725
    %v5116 = vmul.f32 %v5114, %v4726
    %v5117 = vmul.f32 %v5114, %v4727
    %v5118 = vmul.f32 %v5114, %v4728
    %v5123 = vrot.slane %v5115, 1
    %v5124 = vrot.slane %v5116, 1
    %v5125 = vsel %vm255, %v5123, %v5124
    %v5126 = vrot.slane %v5117, 1
    %v5127 = vrot.slane %v5118, 1
    %v5128 = vsel %vm255, %v5126, %v5127
    %v5133 = vadd.f32 %v4935, %v5125
    %v5134 = vadd.f32 %v4936, %v5124
    %v5135 = vadd.f32 %v4937, %v5128
    %v5136 = vadd.f32 %v4938, %v5127
    %s5137 = sld [smem:[#allocation11 + $0xa6]]
    %v5138 = vstv %s5137
    %v5139 = vmul.f32 %v5138, %v4725
    %v5140 = vmul.f32 %v5138, %v4726
    %v5141 = vmul.f32 %v5138, %v4727
    %v5142 = vmul.f32 %v5138, %v4728
    %v5147 = vrot.slane %v5139, 1
    %v5148 = vrot.slane %v5140, 1
    %v5149 = vsel %vm255, %v5147, %v5148
    %v5150 = vrot.slane %v5141, 1
    %v5151 = vrot.slane %v5142, 1
    %v5152 = vsel %vm255, %v5150, %v5151
    %v5157 = vadd.f32 %v4961, %v5149
    %v5158 = vadd.f32 %v4962, %v5148
    %v5159 = vadd.f32 %v4963, %v5152
    %v5160 = vadd.f32 %v4964, %v5151
    %s5161 = sld [smem:[#allocation11 + $0xc6]]
    %v5162 = vstv %s5161
    %v5163 = vmul.f32 %v5162, %v4725
    %v5164 = vmul.f32 %v5162, %v4726
    %v5165 = vmul.f32 %v5162, %v4727
    %v5166 = vmul.f32 %v5162, %v4728
    %v5171 = vrot.slane %v5163, 1
    %v5172 = vrot.slane %v5164, 1
    %v5173 = vsel %vm255, %v5171, %v5172
    %v5174 = vrot.slane %v5165, 1
    %v5175 = vrot.slane %v5166, 1
    %v5176 = vsel %vm255, %v5174, %v5175
    %v5181 = vadd.f32 %v4987, %v5173
    %v5182 = vadd.f32 %v4988, %v5172
    %v5183 = vadd.f32 %v4989, %v5176
    %v5184 = vadd.f32 %v4990, %v5175
    %s5185 = sld [smem:[#allocation11 + $0xe6]]
    %v5186 = vstv %s5185
    %v5187 = vmul.f32 %v5186, %v4725
    %v5188 = vmul.f32 %v5186, %v4726
    %v5189 = vmul.f32 %v5186, %v4727
    %v5190 = vmul.f32 %v5186, %v4728
    %v5195 = vrot.slane %v5187, 1
    %v5196 = vrot.slane %v5188, 1
    %v5197 = vsel %vm255, %v5195, %v5196
    %v5198 = vrot.slane %v5189, 1
    %v5199 = vrot.slane %v5190, 1
    %v5200 = vsel %vm255, %v5198, %v5199
    %v5205 = vadd.f32 %v5013, %v5197
    %v5206 = vadd.f32 %v5014, %v5196
    %v5207 = vadd.f32 %v5015, %v5200
    %v5208 = vadd.f32 %v5016, %v5199
    %s5209 = sld [smem:[#allocation11 + $0x7]]
    %v5210 = vstv %s5209
    %v5211 = vmul.f32 %v5210, %v4725
    %v5212 = vmul.f32 %v5210, %v4726
    %v5213 = vmul.f32 %v5210, %v4727
    %v5214 = vmul.f32 %v5210, %v4728
    %v5219 = vrot.slane %v5211, 1
    %v5220 = vrot.slane %v5212, 1
    %v5221 = vsel %vm255, %v5219, %v5220
    %v5222 = vrot.slane %v5213, 1
    %v5223 = vrot.slane %v5214, 1
    %v5224 = vsel %vm255, %v5222, %v5223
    %5225 = vrot.lane.b32.xlu0 %v5221, 127
    %v5226 = vpop.permute.xlu0 %5225
    %5227 = vrot.lane.b32.xlu0 %v5220, 127
    %v5228 = vpop.permute.xlu0 %5227
    %5229 = vrot.lane.b32.xlu0 %v5224, 127
    %v5230 = vpop.permute.xlu0 %5229
    %5231 = vrot.lane.b32.xlu0 %v5223, 127
    %v5232 = vpop.permute.xlu0 %5231
    %v5237 = vadd.f32 %v5037, %v5226
    %v5238 = vadd.f32 %v5038, %v5228
    %v5239 = vadd.f32 %v5039, %v5230
    %v5240 = vadd.f32 %v5040, %v5232
    %s5241 = sld [smem:[#allocation11 + $0x27]]
    %v5242 = vstv %s5241
    %v5243 = vmul.f32 %v5242, %v4725
    %v5244 = vmul.f32 %v5242, %v4726
    %v5245 = vmul.f32 %v5242, %v4727
    %v5246 = vmul.f32 %v5242, %v4728
    %v5251 = vrot.slane %v5243, 1
    %v5252 = vrot.slane %v5244, 1
    %v5253 = vsel %vm255, %v5251, %v5252
    %v5254 = vrot.slane %v5245, 1
    %v5255 = vrot.slane %v5246, 1
    %v5256 = vsel %vm255, %v5254, %v5255
    %5257 = vrot.lane.b32.xlu0 %v5253, 127
    %v5258 = vpop.permute.xlu0 %5257
    %5259 = vrot.lane.b32.xlu0 %v5252, 127
    %v5260 = vpop.permute.xlu0 %5259
    %5261 = vrot.lane.b32.xlu0 %v5256, 127
    %v5262 = vpop.permute.xlu0 %5261
    %5263 = vrot.lane.b32.xlu0 %v5255, 127
    %v5264 = vpop.permute.xlu0 %5263
    %v5269 = vadd.f32 %v5061, %v5258
    %v5270 = vadd.f32 %v5062, %v5260
    %v5271 = vadd.f32 %v5063, %v5262
    %v5272 = vadd.f32 %v5064, %v5264
    %s5273 = sld [smem:[#allocation11 + $0x47]]
    %v5274 = vstv %s5273
    %v5275 = vmul.f32 %v5274, %v4725
    %v5276 = vmul.f32 %v5274, %v4726
    %v5277 = vmul.f32 %v5274, %v4727
    %v5278 = vmul.f32 %v5274, %v4728
    %v5283 = vrot.slane %v5275, 1
    %v5284 = vrot.slane %v5276, 1
    %v5285 = vsel %vm255, %v5283, %v5284
    %v5286 = vrot.slane %v5277, 1
    %v5287 = vrot.slane %v5278, 1
    %v5288 = vsel %vm255, %v5286, %v5287
    %5289 = vrot.lane.b32.xlu0 %v5285, 127
    %v5290 = vpop.permute.xlu0 %5289
    %5291 = vrot.lane.b32.xlu0 %v5284, 127
    %v5292 = vpop.permute.xlu0 %5291
    %5293 = vrot.lane.b32.xlu0 %v5288, 127
    %v5294 = vpop.permute.xlu0 %5293
    %5295 = vrot.lane.b32.xlu0 %v5287, 127
    %v5296 = vpop.permute.xlu0 %5295
    %v5301 = vadd.f32 %v5085, %v5290
    %v5302 = vadd.f32 %v5086, %v5292
    %v5303 = vadd.f32 %v5087, %v5294
    %v5304 = vadd.f32 %v5088, %v5296
    %s5305 = sld [smem:[#allocation11 + $0x67]]
    %v5306 = vstv %s5305
    %v5307 = vmul.f32 %v5306, %v4725
    %v5308 = vmul.f32 %v5306, %v4726
    %v5309 = vmul.f32 %v5306, %v4727
    %v5310 = vmul.f32 %v5306, %v4728
    %v5315 = vrot.slane %v5307, 1
    %v5316 = vrot.slane %v5308, 1
    %v5317 = vsel %vm255, %v5315, %v5316
    %v5318 = vrot.slane %v5309, 1
    %v5319 = vrot.slane %v5310, 1
    %v5320 = vsel %vm255, %v5318, %v5319
    %5321 = vrot.lane.b32.xlu0 %v5317, 127
    %v5322 = vpop.permute.xlu0 %5321
    %5323 = vrot.lane.b32.xlu0 %v5316, 127
    %v5324 = vpop.permute.xlu0 %5323
    %5325 = vrot.lane.b32.xlu0 %v5320, 127
    %v5326 = vpop.permute.xlu0 %5325
    %5327 = vrot.lane.b32.xlu0 %v5319, 127
    %v5328 = vpop.permute.xlu0 %5327
    %v5333 = vadd.f32 %v5109, %v5322
    %v5334 = vadd.f32 %v5110, %v5324
    %v5335 = vadd.f32 %v5111, %v5326
    %v5336 = vadd.f32 %v5112, %v5328
    %s5337 = sld [smem:[#allocation11 + $0x87]]
    %v5338 = vstv %s5337
    %v5339 = vmul.f32 %v5338, %v4725
    %v5340 = vmul.f32 %v5338, %v4726
    %v5341 = vmul.f32 %v5338, %v4727
    %v5342 = vmul.f32 %v5338, %v4728
    %v5347 = vrot.slane %v5339, 1
    %v5348 = vrot.slane %v5340, 1
    %v5349 = vsel %vm255, %v5347, %v5348
    %v5350 = vrot.slane %v5341, 1
    %v5351 = vrot.slane %v5342, 1
    %v5352 = vsel %vm255, %v5350, %v5351
    %5353 = vrot.lane.b32.xlu0 %v5349, 127
    %v5354 = vpop.permute.xlu0 %5353
    %5355 = vrot.lane.b32.xlu0 %v5348, 127
    %v5356 = vpop.permute.xlu0 %5355
    %5357 = vrot.lane.b32.xlu0 %v5352, 127
    %v5358 = vpop.permute.xlu0 %5357
    %5359 = vrot.lane.b32.xlu0 %v5351, 127
    %v5360 = vpop.permute.xlu0 %5359
    %v5365 = vadd.f32 %v5133, %v5354
    %v5366 = vadd.f32 %v5134, %v5356
    %v5367 = vadd.f32 %v5135, %v5358
    %v5368 = vadd.f32 %v5136, %v5360
    %s5369 = sld [smem:[#allocation11 + $0xa7]]
    %v5370 = vstv %s5369
    %v5371 = vmul.f32 %v5370, %v4725
    %v5372 = vmul.f32 %v5370, %v4726
    %v5373 = vmul.f32 %v5370, %v4727
    %v5374 = vmul.f32 %v5370, %v4728
    %v5379 = vrot.slane %v5371, 1
    %v5380 = vrot.slane %v5372, 1
    %v5381 = vsel %vm255, %v5379, %v5380
    %v5382 = vrot.slane %v5373, 1
    %v5383 = vrot.slane %v5374, 1
    %v5384 = vsel %vm255, %v5382, %v5383
    %5385 = vrot.lane.b32.xlu0 %v5381, 127
    %v5386 = vpop.permute.xlu0 %5385
    %5387 = vrot.lane.b32.xlu0 %v5380, 127
    %v5388 = vpop.permute.xlu0 %5387
    %5389 = vrot.lane.b32.xlu0 %v5384, 127
    %v5390 = vpop.permute.xlu0 %5389
    %5391 = vrot.lane.b32.xlu0 %v5383, 127
    %v5392 = vpop.permute.xlu0 %5391
    %v5397 = vadd.f32 %v5157, %v5386
    %v5398 = vadd.f32 %v5158, %v5388
    %v5399 = vadd.f32 %v5159, %v5390
    %v5400 = vadd.f32 %v5160, %v5392
    %s5401 = sld [smem:[#allocation11 + $0xc7]]
    %v5402 = vstv %s5401
    %v5403 = vmul.f32 %v5402, %v4725
    %v5404 = vmul.f32 %v5402, %v4726
    %v5405 = vmul.f32 %v5402, %v4727
    %v5406 = vmul.f32 %v5402, %v4728
    %v5411 = vrot.slane %v5403, 1
    %v5412 = vrot.slane %v5404, 1
    %v5413 = vsel %vm255, %v5411, %v5412
    %v5414 = vrot.slane %v5405, 1
    %v5415 = vrot.slane %v5406, 1
    %v5416 = vsel %vm255, %v5414, %v5415
    %5417 = vrot.lane.b32.xlu0 %v5413, 127
    %v5418 = vpop.permute.xlu0 %5417
    %5419 = vrot.lane.b32.xlu0 %v5412, 127
    %v5420 = vpop.permute.xlu0 %5419
    %5421 = vrot.lane.b32.xlu0 %v5416, 127
    %v5422 = vpop.permute.xlu0 %5421
    %5423 = vrot.lane.b32.xlu0 %v5415, 127
    %v5424 = vpop.permute.xlu0 %5423
    %v5429 = vadd.f32 %v5181, %v5418
    %v5430 = vadd.f32 %v5182, %v5420
    %v5431 = vadd.f32 %v5183, %v5422
    %v5432 = vadd.f32 %v5184, %v5424
    %s5433 = sld [smem:[#allocation11 + $0xe7]]
    %v5434 = vstv %s5433
    %v5435 = vmul.f32 %v5434, %v4725
    %v5436 = vmul.f32 %v5434, %v4726
    %v5437 = vmul.f32 %v5434, %v4727
    %v5438 = vmul.f32 %v5434, %v4728
    %v5443 = vrot.slane %v5435, 1
    %v5444 = vrot.slane %v5436, 1
    %v5445 = vsel %vm255, %v5443, %v5444
    %v5446 = vrot.slane %v5437, 1
    %v5447 = vrot.slane %v5438, 1
    %v5448 = vsel %vm255, %v5446, %v5447
    %5449 = vrot.lane.b32.xlu0 %v5445, 127
    %v5450 = vpop.permute.xlu0 %5449
    %5451 = vrot.lane.b32.xlu0 %v5444, 127
    %v5452 = vpop.permute.xlu0 %5451
    %5453 = vrot.lane.b32.xlu0 %v5448, 127
    %v5454 = vpop.permute.xlu0 %5453
    %5455 = vrot.lane.b32.xlu0 %v5447, 127
    %v5456 = vpop.permute.xlu0 %5455
    %v5461 = vadd.f32 %v5205, %v5450
    %v5462 = vadd.f32 %v5206, %v5452
    %v5463 = vadd.f32 %v5207, %v5454
    %v5464 = vadd.f32 %v5208, %v5456
    %v5465 = vld [vmem:[%s3905] sm:$0xff]
    %v5466 = vld [vmem:[%s3905 + $0x8] sm:$0x3f]
    %v5467 = vld [vmem:[%s3905 + $0x80] sm:$0xff]
    %v5468 = vld [vmem:[%s3905 + $0x88] sm:$0x3f]
    %s5469 = sld [smem:[#allocation11 + $0x8]]
    %v5470 = vstv %s5469
    %v5471 = vmul.f32 %v5470, %v5465
    %v5472 = vmul.f32 %v5470, %v5466
    %v5473 = vmul.f32 %v5470, %v5467
    %v5474 = vmul.f32 %v5470, %v5468
    %v5475 = vadd.f32 %v5237, %v5471
    %v5476 = vadd.f32 %v5238, %v5472
    %v5477 = vadd.f32 %v5239, %v5473
    %v5478 = vadd.f32 %v5240, %v5474
    %s5479 = sld [smem:[#allocation11 + $0x28]]
    %v5480 = vstv %s5479
    %v5481 = vmul.f32 %v5480, %v5465
    %v5482 = vmul.f32 %v5480, %v5466
    %v5483 = vmul.f32 %v5480, %v5467
    %v5484 = vmul.f32 %v5480, %v5468
    %v5485 = vadd.f32 %v5269, %v5481
    %v5486 = vadd.f32 %v5270, %v5482
    %v5487 = vadd.f32 %v5271, %v5483
    %v5488 = vadd.f32 %v5272, %v5484
    %s5489 = sld [smem:[#allocation11 + $0x48]]
    %v5490 = vstv %s5489
    %v5491 = vmul.f32 %v5490, %v5465
    %v5492 = vmul.f32 %v5490, %v5466
    %v5493 = vmul.f32 %v5490, %v5467
    %v5494 = vmul.f32 %v5490, %v5468
    %v5495 = vadd.f32 %v5301, %v5491
    %v5496 = vadd.f32 %v5302, %v5492
    %v5497 = vadd.f32 %v5303, %v5493
    %v5498 = vadd.f32 %v5304, %v5494
    %s5499 = sld [smem:[#allocation11 + $0x68]]
    %v5500 = vstv %s5499
    %v5501 = vmul.f32 %v5500, %v5465
    %v5502 = vmul.f32 %v5500, %v5466
    %v5503 = vmul.f32 %v5500, %v5467
    %v5504 = vmul.f32 %v5500, %v5468
    %v5505 = vadd.f32 %v5333, %v5501
    %v5506 = vadd.f32 %v5334, %v5502
    %v5507 = vadd.f32 %v5335, %v5503
    %v5508 = vadd.f32 %v5336, %v5504
    %s5509 = sld [smem:[#allocation11 + $0x88]]
    %v5510 = vstv %s5509
    %v5511 = vmul.f32 %v5510, %v5465
    %v5512 = vmul.f32 %v5510, %v5466
    %v5513 = vmul.f32 %v5510, %v5467
    %v5514 = vmul.f32 %v5510, %v5468
    %v5515 = vadd.f32 %v5365, %v5511
    %v5516 = vadd.f32 %v5366, %v5512
    %v5517 = vadd.f32 %v5367, %v5513
    %v5518 = vadd.f32 %v5368, %v5514
    %s5519 = sld [smem:[#allocation11 + $0xa8]]
    %v5520 = vstv %s5519
    %v5521 = vmul.f32 %v5520, %v5465
    %v5522 = vmul.f32 %v5520, %v5466
    %v5523 = vmul.f32 %v5520, %v5467
    %v5524 = vmul.f32 %v5520, %v5468
    %v5525 = vadd.f32 %v5397, %v5521
    %v5526 = vadd.f32 %v5398, %v5522
    %v5527 = vadd.f32 %v5399, %v5523
    %v5528 = vadd.f32 %v5400, %v5524
    %s5529 = sld [smem:[#allocation11 + $0xc8]]
    %v5530 = vstv %s5529
    %v5531 = vmul.f32 %v5530, %v5465
    %v5532 = vmul.f32 %v5530, %v5466
    %v5533 = vmul.f32 %v5530, %v5467
    %v5534 = vmul.f32 %v5530, %v5468
    %v5535 = vadd.f32 %v5429, %v5531
    %v5536 = vadd.f32 %v5430, %v5532
    %v5537 = vadd.f32 %v5431, %v5533
    %v5538 = vadd.f32 %v5432, %v5534
    %s5539 = sld [smem:[#allocation11 + $0xe8]]
    %v5540 = vstv %s5539
    %v5541 = vmul.f32 %v5540, %v5465
    %v5542 = vmul.f32 %v5540, %v5466
    %v5543 = vmul.f32 %v5540, %v5467
    %v5544 = vmul.f32 %v5540, %v5468
    %v5545 = vadd.f32 %v5461, %v5541
    %v5546 = vadd.f32 %v5462, %v5542
    %v5547 = vadd.f32 %v5463, %v5543
    %v5548 = vadd.f32 %v5464, %v5544
    %s5549 = sld [smem:[#allocation11 + $0x9]]
    %v5550 = vstv %s5549
    %v5551 = vmul.f32 %v5550, %v5465
    %v5552 = vmul.f32 %v5550, %v5466
    %v5553 = vmul.f32 %v5550, %v5467
    %v5554 = vmul.f32 %v5550, %v5468
    %5559 = vrot.lane.b32.xlu0 %v5551, 127
    %v5560 = vpop.permute.xlu0 %5559
    %5561 = vrot.lane.b32.xlu0 %v5552, 127
    %v5562 = vpop.permute.xlu0 %5561
    %5563 = vrot.lane.b32.xlu0 %v5553, 127
    %v5564 = vpop.permute.xlu0 %5563
    %5565 = vrot.lane.b32.xlu0 %v5554, 127
    %v5566 = vpop.permute.xlu0 %5565
    %v5571 = vadd.f32 %v5475, %v5560
    %v5572 = vadd.f32 %v5476, %v5562
    %v5573 = vadd.f32 %v5477, %v5564
    %v5574 = vadd.f32 %v5478, %v5566
    %s5575 = sld [smem:[#allocation11 + $0x29]]
    %v5576 = vstv %s5575
    %v5577 = vmul.f32 %v5576, %v5465
    %v5578 = vmul.f32 %v5576, %v5466
    %v5579 = vmul.f32 %v5576, %v5467
    %v5580 = vmul.f32 %v5576, %v5468
    %5585 = vrot.lane.b32.xlu0 %v5577, 127
    %v5586 = vpop.permute.xlu0 %5585
    %5587 = vrot.lane.b32.xlu0 %v5578, 127
    %v5588 = vpop.permute.xlu0 %5587
    %5589 = vrot.lane.b32.xlu0 %v5579, 127
    %v5590 = vpop.permute.xlu0 %5589
    %5591 = vrot.lane.b32.xlu0 %v5580, 127
    %v5592 = vpop.permute.xlu0 %5591
    %v5597 = vadd.f32 %v5485, %v5586
    %v5598 = vadd.f32 %v5486, %v5588
    %v5599 = vadd.f32 %v5487, %v5590
    %v5600 = vadd.f32 %v5488, %v5592
    %s5601 = sld [smem:[#allocation11 + $0x49]]
    %v5602 = vstv %s5601
    %v5603 = vmul.f32 %v5602, %v5465
    %v5604 = vmul.f32 %v5602, %v5466
    %v5605 = vmul.f32 %v5602, %v5467
    %v5606 = vmul.f32 %v5602, %v5468
    %5611 = vrot.lane.b32.xlu0 %v5603, 127
    %v5612 = vpop.permute.xlu0 %5611
    %5613 = vrot.lane.b32.xlu0 %v5604, 127
    %v5614 = vpop.permute.xlu0 %5613
    %5615 = vrot.lane.b32.xlu0 %v5605, 127
    %v5616 = vpop.permute.xlu0 %5615
    %5617 = vrot.lane.b32.xlu0 %v5606, 127
    %v5618 = vpop.permute.xlu0 %5617
    %v5623 = vadd.f32 %v5495, %v5612
    %v5624 = vadd.f32 %v5496, %v5614
    %v5625 = vadd.f32 %v5497, %v5616
    %v5626 = vadd.f32 %v5498, %v5618
    %s5627 = sld [smem:[#allocation11 + $0x69]]
    %v5628 = vstv %s5627
    %v5629 = vmul.f32 %v5628, %v5465
    %v5630 = vmul.f32 %v5628, %v5466
    %v5631 = vmul.f32 %v5628, %v5467
    %v5632 = vmul.f32 %v5628, %v5468
    %5637 = vrot.lane.b32.xlu0 %v5629, 127
    %v5638 = vpop.permute.xlu0 %5637
    %5639 = vrot.lane.b32.xlu0 %v5630, 127
    %v5640 = vpop.permute.xlu0 %5639
    %5641 = vrot.lane.b32.xlu0 %v5631, 127
    %v5642 = vpop.permute.xlu0 %5641
    %5643 = vrot.lane.b32.xlu0 %v5632, 127
    %v5644 = vpop.permute.xlu0 %5643
    %v5649 = vadd.f32 %v5505, %v5638
    %v5650 = vadd.f32 %v5506, %v5640
    %v5651 = vadd.f32 %v5507, %v5642
    %v5652 = vadd.f32 %v5508, %v5644
    %s5653 = sld [smem:[#allocation11 + $0x89]]
    %v5654 = vstv %s5653
    %v5655 = vmul.f32 %v5654, %v5465
    %v5656 = vmul.f32 %v5654, %v5466
    %v5657 = vmul.f32 %v5654, %v5467
    %v5658 = vmul.f32 %v5654, %v5468
    %5663 = vrot.lane.b32.xlu0 %v5655, 127
    %v5664 = vpop.permute.xlu0 %5663
    %5665 = vrot.lane.b32.xlu0 %v5656, 127
    %v5666 = vpop.permute.xlu0 %5665
    %5667 = vrot.lane.b32.xlu0 %v5657, 127
    %v5668 = vpop.permute.xlu0 %5667
    %5669 = vrot.lane.b32.xlu0 %v5658, 127
    %v5670 = vpop.permute.xlu0 %5669
    %v5675 = vadd.f32 %v5515, %v5664
    %v5676 = vadd.f32 %v5516, %v5666
    %v5677 = vadd.f32 %v5517, %v5668
    %v5678 = vadd.f32 %v5518, %v5670
    %s5679 = sld [smem:[#allocation11 + $0xa9]]
    %v5680 = vstv %s5679
    %v5681 = vmul.f32 %v5680, %v5465
    %v5682 = vmul.f32 %v5680, %v5466
    %v5683 = vmul.f32 %v5680, %v5467
    %v5684 = vmul.f32 %v5680, %v5468
    %5689 = vrot.lane.b32.xlu0 %v5681, 127
    %v5690 = vpop.permute.xlu0 %5689
    %5691 = vrot.lane.b32.xlu0 %v5682, 127
    %v5692 = vpop.permute.xlu0 %5691
    %5693 = vrot.lane.b32.xlu0 %v5683, 127
    %v5694 = vpop.permute.xlu0 %5693
    %5695 = vrot.lane.b32.xlu0 %v5684, 127
    %v5696 = vpop.permute.xlu0 %5695
    %v5701 = vadd.f32 %v5525, %v5690
    %v5702 = vadd.f32 %v5526, %v5692
    %v5703 = vadd.f32 %v5527, %v5694
    %v5704 = vadd.f32 %v5528, %v5696
    %s5705 = sld [smem:[#allocation11 + $0xc9]]
    %v5706 = vstv %s5705
    %v5707 = vmul.f32 %v5706, %v5465
    %v5708 = vmul.f32 %v5706, %v5466
    %v5709 = vmul.f32 %v5706, %v5467
    %v5710 = vmul.f32 %v5706, %v5468
    %5715 = vrot.lane.b32.xlu0 %v5707, 127
    %v5716 = vpop.permute.xlu0 %5715
    %5717 = vrot.lane.b32.xlu0 %v5708, 127
    %v5718 = vpop.permute.xlu0 %5717
    %5719 = vrot.lane.b32.xlu0 %v5709, 127
    %v5720 = vpop.permute.xlu0 %5719
    %5721 = vrot.lane.b32.xlu0 %v5710, 127
    %v5722 = vpop.permute.xlu0 %5721
    %v5727 = vadd.f32 %v5535, %v5716
    %v5728 = vadd.f32 %v5536, %v5718
    %v5729 = vadd.f32 %v5537, %v5720
    %v5730 = vadd.f32 %v5538, %v5722
    %s5731 = sld [smem:[#allocation11 + $0xe9]]
    %v5732 = vstv %s5731
    %v5733 = vmul.f32 %v5732, %v5465
    %v5734 = vmul.f32 %v5732, %v5466
    %v5735 = vmul.f32 %v5732, %v5467
    %v5736 = vmul.f32 %v5732, %v5468
    %5741 = vrot.lane.b32.xlu0 %v5733, 127
    %v5742 = vpop.permute.xlu0 %5741
    %5743 = vrot.lane.b32.xlu0 %v5734, 127
    %v5744 = vpop.permute.xlu0 %5743
    %5745 = vrot.lane.b32.xlu0 %v5735, 127
    %v5746 = vpop.permute.xlu0 %5745
    %5747 = vrot.lane.b32.xlu0 %v5736, 127
    %v5748 = vpop.permute.xlu0 %5747
    %v5753 = vadd.f32 %v5545, %v5742
    %v5754 = vadd.f32 %v5546, %v5744
    %v5755 = vadd.f32 %v5547, %v5746
    %v5756 = vadd.f32 %v5548, %v5748
    %s5757 = sld [smem:[#allocation11 + $0xa]]
    %v5758 = vstv %s5757
    %v5759 = vmul.f32 %v5758, %v5465
    %v5760 = vmul.f32 %v5758, %v5466
    %v5761 = vmul.f32 %v5758, %v5467
    %v5762 = vmul.f32 %v5758, %v5468
    %v5767 = vrot.slane %v5759, 1
    %v5768 = vrot.slane %v5760, 1
    %v5769 = vsel %vm255, %v5767, %v5768
    %v5770 = vrot.slane %v5761, 1
    %v5771 = vrot.slane %v5762, 1
    %v5772 = vsel %vm255, %v5770, %v5771
    %v5777 = vadd.f32 %v5571, %v5769
    %v5778 = vadd.f32 %v5572, %v5768
    %v5779 = vadd.f32 %v5573, %v5772
    %v5780 = vadd.f32 %v5574, %v5771
    %s5781 = sld [smem:[#allocation11 + $0x2a]]
    %v5782 = vstv %s5781
    %v5783 = vmul.f32 %v5782, %v5465
    %v5784 = vmul.f32 %v5782, %v5466
    %v5785 = vmul.f32 %v5782, %v5467
    %v5786 = vmul.f32 %v5782, %v5468
    %v5791 = vrot.slane %v5783, 1
    %v5792 = vrot.slane %v5784, 1
    %v5793 = vsel %vm255, %v5791, %v5792
    %v5794 = vrot.slane %v5785, 1
    %v5795 = vrot.slane %v5786, 1
    %v5796 = vsel %vm255, %v5794, %v5795
    %v5801 = vadd.f32 %v5597, %v5793
    %v5802 = vadd.f32 %v5598, %v5792
    %v5803 = vadd.f32 %v5599, %v5796
    %v5804 = vadd.f32 %v5600, %v5795
    %s5805 = sld [smem:[#allocation11 + $0x4a]]
    %v5806 = vstv %s5805
    %v5807 = vmul.f32 %v5806, %v5465
    %v5808 = vmul.f32 %v5806, %v5466
    %v5809 = vmul.f32 %v5806, %v5467
    %v5810 = vmul.f32 %v5806, %v5468
    %v5815 = vrot.slane %v5807, 1
    %v5816 = vrot.slane %v5808, 1
    %v5817 = vsel %vm255, %v5815, %v5816
    %v5818 = vrot.slane %v5809, 1
    %v5819 = vrot.slane %v5810, 1
    %v5820 = vsel %vm255, %v5818, %v5819
    %v5825 = vadd.f32 %v5623, %v5817
    %v5826 = vadd.f32 %v5624, %v5816
    %v5827 = vadd.f32 %v5625, %v5820
    %v5828 = vadd.f32 %v5626, %v5819
    %s5829 = sld [smem:[#allocation11 + $0x6a]]
    %v5830 = vstv %s5829
    %v5831 = vmul.f32 %v5830, %v5465
    %v5832 = vmul.f32 %v5830, %v5466
    %v5833 = vmul.f32 %v5830, %v5467
    %v5834 = vmul.f32 %v5830, %v5468
    %v5839 = vrot.slane %v5831, 1
    %v5840 = vrot.slane %v5832, 1
    %v5841 = vsel %vm255, %v5839, %v5840
    %v5842 = vrot.slane %v5833, 1
    %v5843 = vrot.slane %v5834, 1
    %v5844 = vsel %vm255, %v5842, %v5843
    %v5849 = vadd.f32 %v5649, %v5841
    %v5850 = vadd.f32 %v5650, %v5840
    %v5851 = vadd.f32 %v5651, %v5844
    %v5852 = vadd.f32 %v5652, %v5843
    %s5853 = sld [smem:[#allocation11 + $0x8a]]
    %v5854 = vstv %s5853
    %v5855 = vmul.f32 %v5854, %v5465
    %v5856 = vmul.f32 %v5854, %v5466
    %v5857 = vmul.f32 %v5854, %v5467
    %v5858 = vmul.f32 %v5854, %v5468
    %v5863 = vrot.slane %v5855, 1
    %v5864 = vrot.slane %v5856, 1
    %v5865 = vsel %vm255, %v5863, %v5864
    %v5866 = vrot.slane %v5857, 1
    %v5867 = vrot.slane %v5858, 1
    %v5868 = vsel %vm255, %v5866, %v5867
    %v5873 = vadd.f32 %v5675, %v5865
    %v5874 = vadd.f32 %v5676, %v5864
    %v5875 = vadd.f32 %v5677, %v5868
    %v5876 = vadd.f32 %v5678, %v5867
    %s5877 = sld [smem:[#allocation11 + $0xaa]]
    %v5878 = vstv %s5877
    %v5879 = vmul.f32 %v5878, %v5465
    %v5880 = vmul.f32 %v5878, %v5466
    %v5881 = vmul.f32 %v5878, %v5467
    %v5882 = vmul.f32 %v5878, %v5468
    %v5887 = vrot.slane %v5879, 1
    %v5888 = vrot.slane %v5880, 1
    %v5889 = vsel %vm255, %v5887, %v5888
    %v5890 = vrot.slane %v5881, 1
    %v5891 = vrot.slane %v5882, 1
    %v5892 = vsel %vm255, %v5890, %v5891
    %v5897 = vadd.f32 %v5701, %v5889
    %v5898 = vadd.f32 %v5702, %v5888
    %v5899 = vadd.f32 %v5703, %v5892
    %v5900 = vadd.f32 %v5704, %v5891
    %s5901 = sld [smem:[#allocation11 + $0xca]]
    %v5902 = vstv %s5901
    %v5903 = vmul.f32 %v5902, %v5465
    %v5904 = vmul.f32 %v5902, %v5466
    %v5905 = vmul.f32 %v5902, %v5467
    %v5906 = vmul.f32 %v5902, %v5468
    %v5911 = vrot.slane %v5903, 1
    %v5912 = vrot.slane %v5904, 1
    %v5913 = vsel %vm255, %v5911, %v5912
    %v5914 = vrot.slane %v5905, 1
    %v5915 = vrot.slane %v5906, 1
    %v5916 = vsel %vm255, %v5914, %v5915
    %v5921 = vadd.f32 %v5727, %v5913
    %v5922 = vadd.f32 %v5728, %v5912
    %v5923 = vadd.f32 %v5729, %v5916
    %v5924 = vadd.f32 %v5730, %v5915
    %s5925 = sld [smem:[#allocation11 + $0xea]]
    %v5926 = vstv %s5925
    %v5927 = vmul.f32 %v5926, %v5465
    %v5928 = vmul.f32 %v5926, %v5466
    %v5929 = vmul.f32 %v5926, %v5467
    %v5930 = vmul.f32 %v5926, %v5468
    %v5935 = vrot.slane %v5927, 1
    %v5936 = vrot.slane %v5928, 1
    %v5937 = vsel %vm255, %v5935, %v5936
    %v5938 = vrot.slane %v5929, 1
    %v5939 = vrot.slane %v5930, 1
    %v5940 = vsel %vm255, %v5938, %v5939
    %v5945 = vadd.f32 %v5753, %v5937
    %v5946 = vadd.f32 %v5754, %v5936
    %v5947 = vadd.f32 %v5755, %v5940
    %v5948 = vadd.f32 %v5756, %v5939
    %s5949 = sld [smem:[#allocation11 + $0xb]]
    %v5950 = vstv %s5949
    %v5951 = vmul.f32 %v5950, %v5465
    %v5952 = vmul.f32 %v5950, %v5466
    %v5953 = vmul.f32 %v5950, %v5467
    %v5954 = vmul.f32 %v5950, %v5468
    %v5959 = vrot.slane %v5951, 1
    %v5960 = vrot.slane %v5952, 1
    %v5961 = vsel %vm255, %v5959, %v5960
    %v5962 = vrot.slane %v5953, 1
    %v5963 = vrot.slane %v5954, 1
    %v5964 = vsel %vm255, %v5962, %v5963
    %5965 = vrot.lane.b32.xlu0 %v5961, 127
    %v5966 = vpop.permute.xlu0 %5965
    %5967 = vrot.lane.b32.xlu0 %v5960, 127
    %v5968 = vpop.permute.xlu0 %5967
    %5969 = vrot.lane.b32.xlu0 %v5964, 127
    %v5970 = vpop.permute.xlu0 %5969
    %5971 = vrot.lane.b32.xlu0 %v5963, 127
    %v5972 = vpop.permute.xlu0 %5971
    %v5977 = vadd.f32 %v5777, %v5966
    %v5978 = vadd.f32 %v5778, %v5968
    %v5979 = vadd.f32 %v5779, %v5970
    %v5980 = vadd.f32 %v5780, %v5972
    %s5981 = sld [smem:[#allocation11 + $0x2b]]
    %v5982 = vstv %s5981
    %v5983 = vmul.f32 %v5982, %v5465
    %v5984 = vmul.f32 %v5982, %v5466
    %v5985 = vmul.f32 %v5982, %v5467
    %v5986 = vmul.f32 %v5982, %v5468
    %v5991 = vrot.slane %v5983, 1
    %v5992 = vrot.slane %v5984, 1
    %v5993 = vsel %vm255, %v5991, %v5992
    %v5994 = vrot.slane %v5985, 1
    %v5995 = vrot.slane %v5986, 1
    %v5996 = vsel %vm255, %v5994, %v5995
    %5997 = vrot.lane.b32.xlu0 %v5993, 127
    %v5998 = vpop.permute.xlu0 %5997
    %5999 = vrot.lane.b32.xlu0 %v5992, 127
    %v6000 = vpop.permute.xlu0 %5999
    %6001 = vrot.lane.b32.xlu0 %v5996, 127
    %v6002 = vpop.permute.xlu0 %6001
    %6003 = vrot.lane.b32.xlu0 %v5995, 127
    %v6004 = vpop.permute.xlu0 %6003
    %v6009 = vadd.f32 %v5801, %v5998
    %v6010 = vadd.f32 %v5802, %v6000
    %v6011 = vadd.f32 %v5803, %v6002
    %v6012 = vadd.f32 %v5804, %v6004
    %s6013 = sld [smem:[#allocation11 + $0x4b]]
    %v6014 = vstv %s6013
    %v6015 = vmul.f32 %v6014, %v5465
    %v6016 = vmul.f32 %v6014, %v5466
    %v6017 = vmul.f32 %v6014, %v5467
    %v6018 = vmul.f32 %v6014, %v5468
    %v6023 = vrot.slane %v6015, 1
    %v6024 = vrot.slane %v6016, 1
    %v6025 = vsel %vm255, %v6023, %v6024
    %v6026 = vrot.slane %v6017, 1
    %v6027 = vrot.slane %v6018, 1
    %v6028 = vsel %vm255, %v6026, %v6027
    %6029 = vrot.lane.b32.xlu0 %v6025, 127
    %v6030 = vpop.permute.xlu0 %6029
    %6031 = vrot.lane.b32.xlu0 %v6024, 127
    %v6032 = vpop.permute.xlu0 %6031
    %6033 = vrot.lane.b32.xlu0 %v6028, 127
    %v6034 = vpop.permute.xlu0 %6033
    %6035 = vrot.lane.b32.xlu0 %v6027, 127
    %v6036 = vpop.permute.xlu0 %6035
    %v6041 = vadd.f32 %v5825, %v6030
    %v6042 = vadd.f32 %v5826, %v6032
    %v6043 = vadd.f32 %v5827, %v6034
    %v6044 = vadd.f32 %v5828, %v6036
    %s6045 = sld [smem:[#allocation11 + $0x6b]]
    %v6046 = vstv %s6045
    %v6047 = vmul.f32 %v6046, %v5465
    %v6048 = vmul.f32 %v6046, %v5466
    %v6049 = vmul.f32 %v6046, %v5467
    %v6050 = vmul.f32 %v6046, %v5468
    %v6055 = vrot.slane %v6047, 1
    %v6056 = vrot.slane %v6048, 1
    %v6057 = vsel %vm255, %v6055, %v6056
    %v6058 = vrot.slane %v6049, 1
    %v6059 = vrot.slane %v6050, 1
    %v6060 = vsel %vm255, %v6058, %v6059
    %6061 = vrot.lane.b32.xlu0 %v6057, 127
    %v6062 = vpop.permute.xlu0 %6061
    %6063 = vrot.lane.b32.xlu0 %v6056, 127
    %v6064 = vpop.permute.xlu0 %6063
    %6065 = vrot.lane.b32.xlu0 %v6060, 127
    %v6066 = vpop.permute.xlu0 %6065
    %6067 = vrot.lane.b32.xlu0 %v6059, 127
    %v6068 = vpop.permute.xlu0 %6067
    %v6073 = vadd.f32 %v5849, %v6062
    %v6074 = vadd.f32 %v5850, %v6064
    %v6075 = vadd.f32 %v5851, %v6066
    %v6076 = vadd.f32 %v5852, %v6068
    %s6077 = sld [smem:[#allocation11 + $0x8b]]
    %v6078 = vstv %s6077
    %v6079 = vmul.f32 %v6078, %v5465
    %v6080 = vmul.f32 %v6078, %v5466
    %v6081 = vmul.f32 %v6078, %v5467
    %v6082 = vmul.f32 %v6078, %v5468
    %v6087 = vrot.slane %v6079, 1
    %v6088 = vrot.slane %v6080, 1
    %v6089 = vsel %vm255, %v6087, %v6088
    %v6090 = vrot.slane %v6081, 1
    %v6091 = vrot.slane %v6082, 1
    %v6092 = vsel %vm255, %v6090, %v6091
    %6093 = vrot.lane.b32.xlu0 %v6089, 127
    %v6094 = vpop.permute.xlu0 %6093
    %6095 = vrot.lane.b32.xlu0 %v6088, 127
    %v6096 = vpop.permute.xlu0 %6095
    %6097 = vrot.lane.b32.xlu0 %v6092, 127
    %v6098 = vpop.permute.xlu0 %6097
    %6099 = vrot.lane.b32.xlu0 %v6091, 127
    %v6100 = vpop.permute.xlu0 %6099
    %v6105 = vadd.f32 %v5873, %v6094
    %v6106 = vadd.f32 %v5874, %v6096
    %v6107 = vadd.f32 %v5875, %v6098
    %v6108 = vadd.f32 %v5876, %v6100
    %s6109 = sld [smem:[#allocation11 + $0xab]]
    %v6110 = vstv %s6109
    %v6111 = vmul.f32 %v6110, %v5465
    %v6112 = vmul.f32 %v6110, %v5466
    %v6113 = vmul.f32 %v6110, %v5467
    %v6114 = vmul.f32 %v6110, %v5468
    %v6119 = vrot.slane %v6111, 1
    %v6120 = vrot.slane %v6112, 1
    %v6121 = vsel %vm255, %v6119, %v6120
    %v6122 = vrot.slane %v6113, 1
    %v6123 = vrot.slane %v6114, 1
    %v6124 = vsel %vm255, %v6122, %v6123
    %6125 = vrot.lane.b32.xlu0 %v6121, 127
    %v6126 = vpop.permute.xlu0 %6125
    %6127 = vrot.lane.b32.xlu0 %v6120, 127
    %v6128 = vpop.permute.xlu0 %6127
    %6129 = vrot.lane.b32.xlu0 %v6124, 127
    %v6130 = vpop.permute.xlu0 %6129
    %6131 = vrot.lane.b32.xlu0 %v6123, 127
    %v6132 = vpop.permute.xlu0 %6131
    %v6137 = vadd.f32 %v5897, %v6126
    %v6138 = vadd.f32 %v5898, %v6128
    %v6139 = vadd.f32 %v5899, %v6130
    %v6140 = vadd.f32 %v5900, %v6132
    %s6141 = sld [smem:[#allocation11 + $0xcb]]
    %v6142 = vstv %s6141
    %v6143 = vmul.f32 %v6142, %v5465
    %v6144 = vmul.f32 %v6142, %v5466
    %v6145 = vmul.f32 %v6142, %v5467
    %v6146 = vmul.f32 %v6142, %v5468
    %v6151 = vrot.slane %v6143, 1
    %v6152 = vrot.slane %v6144, 1
    %v6153 = vsel %vm255, %v6151, %v6152
    %v6154 = vrot.slane %v6145, 1
    %v6155 = vrot.slane %v6146, 1
    %v6156 = vsel %vm255, %v6154, %v6155
    %6157 = vrot.lane.b32.xlu0 %v6153, 127
    %v6158 = vpop.permute.xlu0 %6157
    %6159 = vrot.lane.b32.xlu0 %v6152, 127
    %v6160 = vpop.permute.xlu0 %6159
    %6161 = vrot.lane.b32.xlu0 %v6156, 127
    %v6162 = vpop.permute.xlu0 %6161
    %6163 = vrot.lane.b32.xlu0 %v6155, 127
    %v6164 = vpop.permute.xlu0 %6163
    %v6169 = vadd.f32 %v5921, %v6158
    %v6170 = vadd.f32 %v5922, %v6160
    %v6171 = vadd.f32 %v5923, %v6162
    %v6172 = vadd.f32 %v5924, %v6164
    %s6173 = sld [smem:[#allocation11 + $0xeb]]
    %v6174 = vstv %s6173
    %v6175 = vmul.f32 %v6174, %v5465
    %v6176 = vmul.f32 %v6174, %v5466
    %v6177 = vmul.f32 %v6174, %v5467
    %v6178 = vmul.f32 %v6174, %v5468
    %v6183 = vrot.slane %v6175, 1
    %v6184 = vrot.slane %v6176, 1
    %v6185 = vsel %vm255, %v6183, %v6184
    %v6186 = vrot.slane %v6177, 1
    %v6187 = vrot.slane %v6178, 1
    %v6188 = vsel %vm255, %v6186, %v6187
    %6189 = vrot.lane.b32.xlu0 %v6185, 127
    %v6190 = vpop.permute.xlu0 %6189
    %6191 = vrot.lane.b32.xlu0 %v6184, 127
    %v6192 = vpop.permute.xlu0 %6191
    %6193 = vrot.lane.b32.xlu0 %v6188, 127
    %v6194 = vpop.permute.xlu0 %6193
    %6195 = vrot.lane.b32.xlu0 %v6187, 127
    %v6196 = vpop.permute.xlu0 %6195
    %v6201 = vadd.f32 %v5945, %v6190
    %v6202 = vadd.f32 %v5946, %v6192
    %v6203 = vadd.f32 %v5947, %v6194
    %v6204 = vadd.f32 %v5948, %v6196
    %v6205 = vld [vmem:[%s3920] sm:$0xff]
    %v6206 = vld [vmem:[%s3920 + $0x8] sm:$0x3f]
    %v6207 = vld [vmem:[%s3920 + $0x80] sm:$0xff]
    %v6208 = vld [vmem:[%s3920 + $0x88] sm:$0x3f]
    %s6209 = sld [smem:[#allocation11 + $0xc]]
    %v6210 = vstv %s6209
    %v6211 = vmul.f32 %v6210, %v6205
    %v6212 = vmul.f32 %v6210, %v6206
    %v6213 = vmul.f32 %v6210, %v6207
    %v6214 = vmul.f32 %v6210, %v6208
    %v6215 = vadd.f32 %v5977, %v6211
    %v6216 = vadd.f32 %v5978, %v6212
    %v6217 = vadd.f32 %v5979, %v6213
    %v6218 = vadd.f32 %v5980, %v6214
    %s6219 = sld [smem:[#allocation11 + $0x2c]]
    %v6220 = vstv %s6219
    %v6221 = vmul.f32 %v6220, %v6205
    %v6222 = vmul.f32 %v6220, %v6206
    %v6223 = vmul.f32 %v6220, %v6207
    %v6224 = vmul.f32 %v6220, %v6208
    %v6225 = vadd.f32 %v6009, %v6221
    %v6226 = vadd.f32 %v6010, %v6222
    %v6227 = vadd.f32 %v6011, %v6223
    %v6228 = vadd.f32 %v6012, %v6224
    %s6229 = sld [smem:[#allocation11 + $0x4c]]
    %v6230 = vstv %s6229
    %v6231 = vmul.f32 %v6230, %v6205
    %v6232 = vmul.f32 %v6230, %v6206
    %v6233 = vmul.f32 %v6230, %v6207
    %v6234 = vmul.f32 %v6230, %v6208
    %v6235 = vadd.f32 %v6041, %v6231
    %v6236 = vadd.f32 %v6042, %v6232
    %v6237 = vadd.f32 %v6043, %v6233
    %v6238 = vadd.f32 %v6044, %v6234
    %s6239 = sld [smem:[#allocation11 + $0x6c]]
    %v6240 = vstv %s6239
    %v6241 = vmul.f32 %v6240, %v6205
    %v6242 = vmul.f32 %v6240, %v6206
    %v6243 = vmul.f32 %v6240, %v6207
    %v6244 = vmul.f32 %v6240, %v6208
    %v6245 = vadd.f32 %v6073, %v6241
    %v6246 = vadd.f32 %v6074, %v6242
    %v6247 = vadd.f32 %v6075, %v6243
    %v6248 = vadd.f32 %v6076, %v6244
    %s6249 = sld [smem:[#allocation11 + $0x8c]]
    %v6250 = vstv %s6249
    %v6251 = vmul.f32 %v6250, %v6205
    %v6252 = vmul.f32 %v6250, %v6206
    %v6253 = vmul.f32 %v6250, %v6207
    %v6254 = vmul.f32 %v6250, %v6208
    %v6255 = vadd.f32 %v6105, %v6251
    %v6256 = vadd.f32 %v6106, %v6252
    %v6257 = vadd.f32 %v6107, %v6253
    %v6258 = vadd.f32 %v6108, %v6254
    %s6259 = sld [smem:[#allocation11 + $0xac]]
    %v6260 = vstv %s6259
    %v6261 = vmul.f32 %v6260, %v6205
    %v6262 = vmul.f32 %v6260, %v6206
    %v6263 = vmul.f32 %v6260, %v6207
    %v6264 = vmul.f32 %v6260, %v6208
    %v6265 = vadd.f32 %v6137, %v6261
    %v6266 = vadd.f32 %v6138, %v6262
    %v6267 = vadd.f32 %v6139, %v6263
    %v6268 = vadd.f32 %v6140, %v6264
    %s6269 = sld [smem:[#allocation11 + $0xcc]]
    %v6270 = vstv %s6269
    %v6271 = vmul.f32 %v6270, %v6205
    %v6272 = vmul.f32 %v6270, %v6206
    %v6273 = vmul.f32 %v6270, %v6207
    %v6274 = vmul.f32 %v6270, %v6208
    %v6275 = vadd.f32 %v6169, %v6271
    %v6276 = vadd.f32 %v6170, %v6272
    %v6277 = vadd.f32 %v6171, %v6273
    %v6278 = vadd.f32 %v6172, %v6274
    %s6279 = sld [smem:[#allocation11 + $0xec]]
    %v6280 = vstv %s6279
    %v6281 = vmul.f32 %v6280, %v6205
    %v6282 = vmul.f32 %v6280, %v6206
    %v6283 = vmul.f32 %v6280, %v6207
    %v6284 = vmul.f32 %v6280, %v6208
    %v6285 = vadd.f32 %v6201, %v6281
    %v6286 = vadd.f32 %v6202, %v6282
    %v6287 = vadd.f32 %v6203, %v6283
    %v6288 = vadd.f32 %v6204, %v6284
    %s6289 = sld [smem:[#allocation11 + $0xd]]
    %v6290 = vstv %s6289
    %v6291 = vmul.f32 %v6290, %v6205
    %v6292 = vmul.f32 %v6290, %v6206
    %v6293 = vmul.f32 %v6290, %v6207
    %v6294 = vmul.f32 %v6290, %v6208
    %6299 = vrot.lane.b32.xlu0 %v6291, 127
    %v6300 = vpop.permute.xlu0 %6299
    %6301 = vrot.lane.b32.xlu0 %v6292, 127
    %v6302 = vpop.permute.xlu0 %6301
    %6303 = vrot.lane.b32.xlu0 %v6293, 127
    %v6304 = vpop.permute.xlu0 %6303
    %6305 = vrot.lane.b32.xlu0 %v6294, 127
    %v6306 = vpop.permute.xlu0 %6305
    %v6311 = vadd.f32 %v6215, %v6300
    %v6312 = vadd.f32 %v6216, %v6302
    %v6313 = vadd.f32 %v6217, %v6304
    %v6314 = vadd.f32 %v6218, %v6306
    %s6315 = sld [smem:[#allocation11 + $0x2d]]
    %v6316 = vstv %s6315
    %v6317 = vmul.f32 %v6316, %v6205
    %v6318 = vmul.f32 %v6316, %v6206
    %v6319 = vmul.f32 %v6316, %v6207
    %v6320 = vmul.f32 %v6316, %v6208
    %6325 = vrot.lane.b32.xlu0 %v6317, 127
    %v6326 = vpop.permute.xlu0 %6325
    %6327 = vrot.lane.b32.xlu0 %v6318, 127
    %v6328 = vpop.permute.xlu0 %6327
    %6329 = vrot.lane.b32.xlu0 %v6319, 127
    %v6330 = vpop.permute.xlu0 %6329
    %6331 = vrot.lane.b32.xlu0 %v6320, 127
    %v6332 = vpop.permute.xlu0 %6331
    %v6337 = vadd.f32 %v6225, %v6326
    %v6338 = vadd.f32 %v6226, %v6328
    %v6339 = vadd.f32 %v6227, %v6330
    %v6340 = vadd.f32 %v6228, %v6332
    %s6341 = sld [smem:[#allocation11 + $0x4d]]
    %v6342 = vstv %s6341
    %v6343 = vmul.f32 %v6342, %v6205
    %v6344 = vmul.f32 %v6342, %v6206
    %v6345 = vmul.f32 %v6342, %v6207
    %v6346 = vmul.f32 %v6342, %v6208
    %6351 = vrot.lane.b32.xlu0 %v6343, 127
    %v6352 = vpop.permute.xlu0 %6351
    %6353 = vrot.lane.b32.xlu0 %v6344, 127
    %v6354 = vpop.permute.xlu0 %6353
    %6355 = vrot.lane.b32.xlu0 %v6345, 127
    %v6356 = vpop.permute.xlu0 %6355
    %6357 = vrot.lane.b32.xlu0 %v6346, 127
    %v6358 = vpop.permute.xlu0 %6357
    %v6363 = vadd.f32 %v6235, %v6352
    %v6364 = vadd.f32 %v6236, %v6354
    %v6365 = vadd.f32 %v6237, %v6356
    %v6366 = vadd.f32 %v6238, %v6358
    %s6367 = sld [smem:[#allocation11 + $0x6d]]
    %v6368 = vstv %s6367
    %v6369 = vmul.f32 %v6368, %v6205
    %v6370 = vmul.f32 %v6368, %v6206
    %v6371 = vmul.f32 %v6368, %v6207
    %v6372 = vmul.f32 %v6368, %v6208
    %6377 = vrot.lane.b32.xlu0 %v6369, 127
    %v6378 = vpop.permute.xlu0 %6377
    %6379 = vrot.lane.b32.xlu0 %v6370, 127
    %v6380 = vpop.permute.xlu0 %6379
    %6381 = vrot.lane.b32.xlu0 %v6371, 127
    %v6382 = vpop.permute.xlu0 %6381
    %6383 = vrot.lane.b32.xlu0 %v6372, 127
    %v6384 = vpop.permute.xlu0 %6383
    %v6389 = vadd.f32 %v6245, %v6378
    %v6390 = vadd.f32 %v6246, %v6380
    %v6391 = vadd.f32 %v6247, %v6382
    %v6392 = vadd.f32 %v6248, %v6384
    %s6393 = sld [smem:[#allocation11 + $0x8d]]
    %v6394 = vstv %s6393
    %v6395 = vmul.f32 %v6394, %v6205
    %v6396 = vmul.f32 %v6394, %v6206
    %v6397 = vmul.f32 %v6394, %v6207
    %v6398 = vmul.f32 %v6394, %v6208
    %6403 = vrot.lane.b32.xlu0 %v6395, 127
    %v6404 = vpop.permute.xlu0 %6403
    %6405 = vrot.lane.b32.xlu0 %v6396, 127
    %v6406 = vpop.permute.xlu0 %6405
    %6407 = vrot.lane.b32.xlu0 %v6397, 127
    %v6408 = vpop.permute.xlu0 %6407
    %6409 = vrot.lane.b32.xlu0 %v6398, 127
    %v6410 = vpop.permute.xlu0 %6409
    %v6415 = vadd.f32 %v6255, %v6404
    %v6416 = vadd.f32 %v6256, %v6406
    %v6417 = vadd.f32 %v6257, %v6408
    %v6418 = vadd.f32 %v6258, %v6410
    %s6419 = sld [smem:[#allocation11 + $0xad]]
    %v6420 = vstv %s6419
    %v6421 = vmul.f32 %v6420, %v6205
    %v6422 = vmul.f32 %v6420, %v6206
    %v6423 = vmul.f32 %v6420, %v6207
    %v6424 = vmul.f32 %v6420, %v6208
    %6429 = vrot.lane.b32.xlu0 %v6421, 127
    %v6430 = vpop.permute.xlu0 %6429
    %6431 = vrot.lane.b32.xlu0 %v6422, 127
    %v6432 = vpop.permute.xlu0 %6431
    %6433 = vrot.lane.b32.xlu0 %v6423, 127
    %v6434 = vpop.permute.xlu0 %6433
    %6435 = vrot.lane.b32.xlu0 %v6424, 127
    %v6436 = vpop.permute.xlu0 %6435
    %v6441 = vadd.f32 %v6265, %v6430
    %v6442 = vadd.f32 %v6266, %v6432
    %v6443 = vadd.f32 %v6267, %v6434
    %v6444 = vadd.f32 %v6268, %v6436
    %s6445 = sld [smem:[#allocation11 + $0xcd]]
    %v6446 = vstv %s6445
    %v6447 = vmul.f32 %v6446, %v6205
    %v6448 = vmul.f32 %v6446, %v6206
    %v6449 = vmul.f32 %v6446, %v6207
    %v6450 = vmul.f32 %v6446, %v6208
    %6455 = vrot.lane.b32.xlu0 %v6447, 127
    %v6456 = vpop.permute.xlu0 %6455
    %6457 = vrot.lane.b32.xlu0 %v6448, 127
    %v6458 = vpop.permute.xlu0 %6457
    %6459 = vrot.lane.b32.xlu0 %v6449, 127
    %v6460 = vpop.permute.xlu0 %6459
    %6461 = vrot.lane.b32.xlu0 %v6450, 127
    %v6462 = vpop.permute.xlu0 %6461
    %v6467 = vadd.f32 %v6275, %v6456
    %v6468 = vadd.f32 %v6276, %v6458
    %v6469 = vadd.f32 %v6277, %v6460
    %v6470 = vadd.f32 %v6278, %v6462
    %s6471 = sld [smem:[#allocation11 + $0xed]]
    %v6472 = vstv %s6471
    %v6473 = vmul.f32 %v6472, %v6205
    %v6474 = vmul.f32 %v6472, %v6206
    %v6475 = vmul.f32 %v6472, %v6207
    %v6476 = vmul.f32 %v6472, %v6208
    %6481 = vrot.lane.b32.xlu0 %v6473, 127
    %v6482 = vpop.permute.xlu0 %6481
    %6483 = vrot.lane.b32.xlu0 %v6474, 127
    %v6484 = vpop.permute.xlu0 %6483
    %6485 = vrot.lane.b32.xlu0 %v6475, 127
    %v6486 = vpop.permute.xlu0 %6485
    %6487 = vrot.lane.b32.xlu0 %v6476, 127
    %v6488 = vpop.permute.xlu0 %6487
    %v6493 = vadd.f32 %v6285, %v6482
    %v6494 = vadd.f32 %v6286, %v6484
    %v6495 = vadd.f32 %v6287, %v6486
    %v6496 = vadd.f32 %v6288, %v6488
    %s6497 = sld [smem:[#allocation11 + $0xe]]
    %v6498 = vstv %s6497
    %v6499 = vmul.f32 %v6498, %v6205
    %v6500 = vmul.f32 %v6498, %v6206
    %v6501 = vmul.f32 %v6498, %v6207
    %v6502 = vmul.f32 %v6498, %v6208
    %v6507 = vrot.slane %v6499, 1
    %v6508 = vrot.slane %v6500, 1
    %v6509 = vsel %vm255, %v6507, %v6508
    %v6510 = vrot.slane %v6501, 1
    %v6511 = vrot.slane %v6502, 1
    %v6512 = vsel %vm255, %v6510, %v6511
    %v6517 = vadd.f32 %v6311, %v6509
    %v6518 = vadd.f32 %v6312, %v6508
    %v6519 = vadd.f32 %v6313, %v6512
    %v6520 = vadd.f32 %v6314, %v6511
    %s6521 = sld [smem:[#allocation11 + $0x2e]]
    %v6522 = vstv %s6521
    %v6523 = vmul.f32 %v6522, %v6205
    %v6524 = vmul.f32 %v6522, %v6206
    %v6525 = vmul.f32 %v6522, %v6207
    %v6526 = vmul.f32 %v6522, %v6208
    %v6531 = vrot.slane %v6523, 1
    %v6532 = vrot.slane %v6524, 1
    %v6533 = vsel %vm255, %v6531, %v6532
    %v6534 = vrot.slane %v6525, 1
    %v6535 = vrot.slane %v6526, 1
    %v6536 = vsel %vm255, %v6534, %v6535
    %v6541 = vadd.f32 %v6337, %v6533
    %v6542 = vadd.f32 %v6338, %v6532
    %v6543 = vadd.f32 %v6339, %v6536
    %v6544 = vadd.f32 %v6340, %v6535
    %s6545 = sld [smem:[#allocation11 + $0x4e]]
    %v6546 = vstv %s6545
    %v6547 = vmul.f32 %v6546, %v6205
    %v6548 = vmul.f32 %v6546, %v6206
    %v6549 = vmul.f32 %v6546, %v6207
    %v6550 = vmul.f32 %v6546, %v6208
    %v6555 = vrot.slane %v6547, 1
    %v6556 = vrot.slane %v6548, 1
    %v6557 = vsel %vm255, %v6555, %v6556
    %v6558 = vrot.slane %v6549, 1
    %v6559 = vrot.slane %v6550, 1
    %v6560 = vsel %vm255, %v6558, %v6559
    %v6565 = vadd.f32 %v6363, %v6557
    %v6566 = vadd.f32 %v6364, %v6556
    %v6567 = vadd.f32 %v6365, %v6560
    %v6568 = vadd.f32 %v6366, %v6559
    %s6569 = sld [smem:[#allocation11 + $0x6e]]
    %v6570 = vstv %s6569
    %v6571 = vmul.f32 %v6570, %v6205
    %v6572 = vmul.f32 %v6570, %v6206
    %v6573 = vmul.f32 %v6570, %v6207
    %v6574 = vmul.f32 %v6570, %v6208
    %v6579 = vrot.slane %v6571, 1
    %v6580 = vrot.slane %v6572, 1
    %v6581 = vsel %vm255, %v6579, %v6580
    %v6582 = vrot.slane %v6573, 1
    %v6583 = vrot.slane %v6574, 1
    %v6584 = vsel %vm255, %v6582, %v6583
    %v6589 = vadd.f32 %v6389, %v6581
    %v6590 = vadd.f32 %v6390, %v6580
    %v6591 = vadd.f32 %v6391, %v6584
    %v6592 = vadd.f32 %v6392, %v6583
    %s6593 = sld [smem:[#allocation11 + $0x8e]]
    %v6594 = vstv %s6593
    %v6595 = vmul.f32 %v6594, %v6205
    %v6596 = vmul.f32 %v6594, %v6206
    %v6597 = vmul.f32 %v6594, %v6207
    %v6598 = vmul.f32 %v6594, %v6208
    %v6603 = vrot.slane %v6595, 1
    %v6604 = vrot.slane %v6596, 1
    %v6605 = vsel %vm255, %v6603, %v6604
    %v6606 = vrot.slane %v6597, 1
    %v6607 = vrot.slane %v6598, 1
    %v6608 = vsel %vm255, %v6606, %v6607
    %v6613 = vadd.f32 %v6415, %v6605
    %v6614 = vadd.f32 %v6416, %v6604
    %v6615 = vadd.f32 %v6417, %v6608
    %v6616 = vadd.f32 %v6418, %v6607
    %s6617 = sld [smem:[#allocation11 + $0xae]]
    %v6618 = vstv %s6617
    %v6619 = vmul.f32 %v6618, %v6205
    %v6620 = vmul.f32 %v6618, %v6206
    %v6621 = vmul.f32 %v6618, %v6207
    %v6622 = vmul.f32 %v6618, %v6208
    %v6627 = vrot.slane %v6619, 1
    %v6628 = vrot.slane %v6620, 1
    %v6629 = vsel %vm255, %v6627, %v6628
    %v6630 = vrot.slane %v6621, 1
    %v6631 = vrot.slane %v6622, 1
    %v6632 = vsel %vm255, %v6630, %v6631
    %v6637 = vadd.f32 %v6441, %v6629
    %v6638 = vadd.f32 %v6442, %v6628
    %v6639 = vadd.f32 %v6443, %v6632
    %v6640 = vadd.f32 %v6444, %v6631
    %s6641 = sld [smem:[#allocation11 + $0xce]]
    %v6642 = vstv %s6641
    %v6643 = vmul.f32 %v6642, %v6205
    %v6644 = vmul.f32 %v6642, %v6206
    %v6645 = vmul.f32 %v6642, %v6207
    %v6646 = vmul.f32 %v6642, %v6208
    %v6651 = vrot.slane %v6643, 1
    %v6652 = vrot.slane %v6644, 1
    %v6653 = vsel %vm255, %v6651, %v6652
    %v6654 = vrot.slane %v6645, 1
    %v6655 = vrot.slane %v6646, 1
    %v6656 = vsel %vm255, %v6654, %v6655
    %v6661 = vadd.f32 %v6467, %v6653
    %v6662 = vadd.f32 %v6468, %v6652
    %v6663 = vadd.f32 %v6469, %v6656
    %v6664 = vadd.f32 %v6470, %v6655
    %s6665 = sld [smem:[#allocation11 + $0xee]]
    %v6666 = vstv %s6665
    %v6667 = vmul.f32 %v6666, %v6205
    %v6668 = vmul.f32 %v6666, %v6206
    %v6669 = vmul.f32 %v6666, %v6207
    %v6670 = vmul.f32 %v6666, %v6208
    %v6675 = vrot.slane %v6667, 1
    %v6676 = vrot.slane %v6668, 1
    %v6677 = vsel %vm255, %v6675, %v6676
    %v6678 = vrot.slane %v6669, 1
    %v6679 = vrot.slane %v6670, 1
    %v6680 = vsel %vm255, %v6678, %v6679
    %v6685 = vadd.f32 %v6493, %v6677
    %v6686 = vadd.f32 %v6494, %v6676
    %v6687 = vadd.f32 %v6495, %v6680
    %v6688 = vadd.f32 %v6496, %v6679
    %s6689 = sld [smem:[#allocation11 + $0xf]]
    %v6690 = vstv %s6689
    %v6691 = vmul.f32 %v6690, %v6205
    %v6692 = vmul.f32 %v6690, %v6206
    %v6693 = vmul.f32 %v6690, %v6207
    %v6694 = vmul.f32 %v6690, %v6208
    %v6699 = vrot.slane %v6691, 1
    %v6700 = vrot.slane %v6692, 1
    %v6701 = vsel %vm255, %v6699, %v6700
    %v6702 = vrot.slane %v6693, 1
    %v6703 = vrot.slane %v6694, 1
    %v6704 = vsel %vm255, %v6702, %v6703
    %6705 = vrot.lane.b32.xlu0 %v6701, 127
    %v6706 = vpop.permute.xlu0 %6705
    %6707 = vrot.lane.b32.xlu0 %v6700, 127
    %v6708 = vpop.permute.xlu0 %6707
    %6709 = vrot.lane.b32.xlu0 %v6704, 127
    %v6710 = vpop.permute.xlu0 %6709
    %6711 = vrot.lane.b32.xlu0 %v6703, 127
    %v6712 = vpop.permute.xlu0 %6711
    %v6717 = vadd.f32 %v6517, %v6706
    %v6718 = vadd.f32 %v6518, %v6708
    %v6719 = vadd.f32 %v6519, %v6710
    %v6720 = vadd.f32 %v6520, %v6712
    %s6721 = sld [smem:[#allocation11 + $0x2f]]
    %v6722 = vstv %s6721
    %v6723 = vmul.f32 %v6722, %v6205
    %v6724 = vmul.f32 %v6722, %v6206
    %v6725 = vmul.f32 %v6722, %v6207
    %v6726 = vmul.f32 %v6722, %v6208
    %v6731 = vrot.slane %v6723, 1
    %v6732 = vrot.slane %v6724, 1
    %v6733 = vsel %vm255, %v6731, %v6732
    %v6734 = vrot.slane %v6725, 1
    %v6735 = vrot.slane %v6726, 1
    %v6736 = vsel %vm255, %v6734, %v6735
    %6737 = vrot.lane.b32.xlu0 %v6733, 127
    %v6738 = vpop.permute.xlu0 %6737
    %6739 = vrot.lane.b32.xlu0 %v6732, 127
    %v6740 = vpop.permute.xlu0 %6739
    %6741 = vrot.lane.b32.xlu0 %v6736, 127
    %v6742 = vpop.permute.xlu0 %6741
    %6743 = vrot.lane.b32.xlu0 %v6735, 127
    %v6744 = vpop.permute.xlu0 %6743
    %v6749 = vadd.f32 %v6541, %v6738
    %v6750 = vadd.f32 %v6542, %v6740
    %v6751 = vadd.f32 %v6543, %v6742
    %v6752 = vadd.f32 %v6544, %v6744
    %s6753 = sld [smem:[#allocation11 + $0x4f]]
    %v6754 = vstv %s6753
    %v6755 = vmul.f32 %v6754, %v6205
    %v6756 = vmul.f32 %v6754, %v6206
    %v6757 = vmul.f32 %v6754, %v6207
    %v6758 = vmul.f32 %v6754, %v6208
    %v6763 = vrot.slane %v6755, 1
    %v6764 = vrot.slane %v6756, 1
    %v6765 = vsel %vm255, %v6763, %v6764
    %v6766 = vrot.slane %v6757, 1
    %v6767 = vrot.slane %v6758, 1
    %v6768 = vsel %vm255, %v6766, %v6767
    %6769 = vrot.lane.b32.xlu0 %v6765, 127
    %v6770 = vpop.permute.xlu0 %6769
    %6771 = vrot.lane.b32.xlu0 %v6764, 127
    %v6772 = vpop.permute.xlu0 %6771
    %6773 = vrot.lane.b32.xlu0 %v6768, 127
    %v6774 = vpop.permute.xlu0 %6773
    %6775 = vrot.lane.b32.xlu0 %v6767, 127
    %v6776 = vpop.permute.xlu0 %6775
    %v6781 = vadd.f32 %v6565, %v6770
    %v6782 = vadd.f32 %v6566, %v6772
    %v6783 = vadd.f32 %v6567, %v6774
    %v6784 = vadd.f32 %v6568, %v6776
    %s6785 = sld [smem:[#allocation11 + $0x6f]]
    %v6786 = vstv %s6785
    %v6787 = vmul.f32 %v6786, %v6205
    %v6788 = vmul.f32 %v6786, %v6206
    %v6789 = vmul.f32 %v6786, %v6207
    %v6790 = vmul.f32 %v6786, %v6208
    %v6795 = vrot.slane %v6787, 1
    %v6796 = vrot.slane %v6788, 1
    %v6797 = vsel %vm255, %v6795, %v6796
    %v6798 = vrot.slane %v6789, 1
    %v6799 = vrot.slane %v6790, 1
    %v6800 = vsel %vm255, %v6798, %v6799
    %6801 = vrot.lane.b32.xlu0 %v6797, 127
    %v6802 = vpop.permute.xlu0 %6801
    %6803 = vrot.lane.b32.xlu0 %v6796, 127
    %v6804 = vpop.permute.xlu0 %6803
    %6805 = vrot.lane.b32.xlu0 %v6800, 127
    %v6806 = vpop.permute.xlu0 %6805
    %6807 = vrot.lane.b32.xlu0 %v6799, 127
    %v6808 = vpop.permute.xlu0 %6807
    %v6813 = vadd.f32 %v6589, %v6802
    %v6814 = vadd.f32 %v6590, %v6804
    %v6815 = vadd.f32 %v6591, %v6806
    %v6816 = vadd.f32 %v6592, %v6808
    %s6817 = sld [smem:[#allocation11 + $0x8f]]
    %v6818 = vstv %s6817
    %v6819 = vmul.f32 %v6818, %v6205
    %v6820 = vmul.f32 %v6818, %v6206
    %v6821 = vmul.f32 %v6818, %v6207
    %v6822 = vmul.f32 %v6818, %v6208
    %v6827 = vrot.slane %v6819, 1
    %v6828 = vrot.slane %v6820, 1
    %v6829 = vsel %vm255, %v6827, %v6828
    %v6830 = vrot.slane %v6821, 1
    %v6831 = vrot.slane %v6822, 1
    %v6832 = vsel %vm255, %v6830, %v6831
    %6833 = vrot.lane.b32.xlu0 %v6829, 127
    %v6834 = vpop.permute.xlu0 %6833
    %6835 = vrot.lane.b32.xlu0 %v6828, 127
    %v6836 = vpop.permute.xlu0 %6835
    %6837 = vrot.lane.b32.xlu0 %v6832, 127
    %v6838 = vpop.permute.xlu0 %6837
    %6839 = vrot.lane.b32.xlu0 %v6831, 127
    %v6840 = vpop.permute.xlu0 %6839
    %v6845 = vadd.f32 %v6613, %v6834
    %v6846 = vadd.f32 %v6614, %v6836
    %v6847 = vadd.f32 %v6615, %v6838
    %v6848 = vadd.f32 %v6616, %v6840
    %s6849 = sld [smem:[#allocation11 + $0xaf]]
    %v6850 = vstv %s6849
    %v6851 = vmul.f32 %v6850, %v6205
    %v6852 = vmul.f32 %v6850, %v6206
    %v6853 = vmul.f32 %v6850, %v6207
    %v6854 = vmul.f32 %v6850, %v6208
    %v6859 = vrot.slane %v6851, 1
    %v6860 = vrot.slane %v6852, 1
    %v6861 = vsel %vm255, %v6859, %v6860
    %v6862 = vrot.slane %v6853, 1
    %v6863 = vrot.slane %v6854, 1
    %v6864 = vsel %vm255, %v6862, %v6863
    %6865 = vrot.lane.b32.xlu0 %v6861, 127
    %v6866 = vpop.permute.xlu0 %6865
    %6867 = vrot.lane.b32.xlu0 %v6860, 127
    %v6868 = vpop.permute.xlu0 %6867
    %6869 = vrot.lane.b32.xlu0 %v6864, 127
    %v6870 = vpop.permute.xlu0 %6869
    %6871 = vrot.lane.b32.xlu0 %v6863, 127
    %v6872 = vpop.permute.xlu0 %6871
    %v6877 = vadd.f32 %v6637, %v6866
    %v6878 = vadd.f32 %v6638, %v6868
    %v6879 = vadd.f32 %v6639, %v6870
    %v6880 = vadd.f32 %v6640, %v6872
    %s6881 = sld [smem:[#allocation11 + $0xcf]]
    %v6882 = vstv %s6881
    %v6883 = vmul.f32 %v6882, %v6205
    %v6884 = vmul.f32 %v6882, %v6206
    %v6885 = vmul.f32 %v6882, %v6207
    %v6886 = vmul.f32 %v6882, %v6208
    %v6891 = vrot.slane %v6883, 1
    %v6892 = vrot.slane %v6884, 1
    %v6893 = vsel %vm255, %v6891, %v6892
    %v6894 = vrot.slane %v6885, 1
    %v6895 = vrot.slane %v6886, 1
    %v6896 = vsel %vm255, %v6894, %v6895
    %6897 = vrot.lane.b32.xlu0 %v6893, 127
    %v6898 = vpop.permute.xlu0 %6897
    %6899 = vrot.lane.b32.xlu0 %v6892, 127
    %v6900 = vpop.permute.xlu0 %6899
    %6901 = vrot.lane.b32.xlu0 %v6896, 127
    %v6902 = vpop.permute.xlu0 %6901
    %6903 = vrot.lane.b32.xlu0 %v6895, 127
    %v6904 = vpop.permute.xlu0 %6903
    %v6909 = vadd.f32 %v6661, %v6898
    %v6910 = vadd.f32 %v6662, %v6900
    %v6911 = vadd.f32 %v6663, %v6902
    %v6912 = vadd.f32 %v6664, %v6904
    %s6913 = sld [smem:[#allocation11 + $0xef]]
    %v6914 = vstv %s6913
    %v6915 = vmul.f32 %v6914, %v6205
    %v6916 = vmul.f32 %v6914, %v6206
    %v6917 = vmul.f32 %v6914, %v6207
    %v6918 = vmul.f32 %v6914, %v6208
    %v6923 = vrot.slane %v6915, 1
    %v6924 = vrot.slane %v6916, 1
    %v6925 = vsel %vm255, %v6923, %v6924
    %v6926 = vrot.slane %v6917, 1
    %v6927 = vrot.slane %v6918, 1
    %v6928 = vsel %vm255, %v6926, %v6927
    %6929 = vrot.lane.b32.xlu0 %v6925, 127
    %v6930 = vpop.permute.xlu0 %6929
    %6931 = vrot.lane.b32.xlu0 %v6924, 127
    %v6932 = vpop.permute.xlu0 %6931
    %6933 = vrot.lane.b32.xlu0 %v6928, 127
    %v6934 = vpop.permute.xlu0 %6933
    %6935 = vrot.lane.b32.xlu0 %v6927, 127
    %v6936 = vpop.permute.xlu0 %6935
    %v6941 = vadd.f32 %v6685, %v6930
    %v6942 = vadd.f32 %v6686, %v6932
    %v6943 = vadd.f32 %v6687, %v6934
    %v6944 = vadd.f32 %v6688, %v6936
    %v6945 = vld [vmem:[%s3935] sm:$0xff]
    %v6946 = vld [vmem:[%s3935 + $0x8] sm:$0x3f]
    %v6947 = vld [vmem:[%s3935 + $0x80] sm:$0xff]
    %v6948 = vld [vmem:[%s3935 + $0x88] sm:$0x3f]
    %s6949 = sld [smem:[#allocation11 + $0x10]]
    %v6950 = vstv %s6949
    %v6951 = vmul.f32 %v6950, %v6945
    %v6952 = vmul.f32 %v6950, %v6946
    %v6953 = vmul.f32 %v6950, %v6947
    %v6954 = vmul.f32 %v6950, %v6948
    %v6955 = vadd.f32 %v6717, %v6951
    %v6956 = vadd.f32 %v6718, %v6952
    %v6957 = vadd.f32 %v6719, %v6953
    %v6958 = vadd.f32 %v6720, %v6954
    %s6959 = sld [smem:[#allocation11 + $0x30]]
    %v6960 = vstv %s6959
    %v6961 = vmul.f32 %v6960, %v6945
    %v6962 = vmul.f32 %v6960, %v6946
    %v6963 = vmul.f32 %v6960, %v6947
    %v6964 = vmul.f32 %v6960, %v6948
    %v6965 = vadd.f32 %v6749, %v6961
    %v6966 = vadd.f32 %v6750, %v6962
    %v6967 = vadd.f32 %v6751, %v6963
    %v6968 = vadd.f32 %v6752, %v6964
    %s6969 = sld [smem:[#allocation11 + $0x50]]
    %v6970 = vstv %s6969
    %v6971 = vmul.f32 %v6970, %v6945
    %v6972 = vmul.f32 %v6970, %v6946
    %v6973 = vmul.f32 %v6970, %v6947
    %v6974 = vmul.f32 %v6970, %v6948
    %v6975 = vadd.f32 %v6781, %v6971
    %v6976 = vadd.f32 %v6782, %v6972
    %v6977 = vadd.f32 %v6783, %v6973
    %v6978 = vadd.f32 %v6784, %v6974
    %s6979 = sld [smem:[#allocation11 + $0x70]]
    %v6980 = vstv %s6979
    %v6981 = vmul.f32 %v6980, %v6945
    %v6982 = vmul.f32 %v6980, %v6946
    %v6983 = vmul.f32 %v6980, %v6947
    %v6984 = vmul.f32 %v6980, %v6948
    %v6985 = vadd.f32 %v6813, %v6981
    %v6986 = vadd.f32 %v6814, %v6982
    %v6987 = vadd.f32 %v6815, %v6983
    %v6988 = vadd.f32 %v6816, %v6984
    %s6989 = sld [smem:[#allocation11 + $0x90]]
    %v6990 = vstv %s6989
    %v6991 = vmul.f32 %v6990, %v6945
    %v6992 = vmul.f32 %v6990, %v6946
    %v6993 = vmul.f32 %v6990, %v6947
    %v6994 = vmul.f32 %v6990, %v6948
    %v6995 = vadd.f32 %v6845, %v6991
    %v6996 = vadd.f32 %v6846, %v6992
    %v6997 = vadd.f32 %v6847, %v6993
    %v6998 = vadd.f32 %v6848, %v6994
    %s6999 = sld [smem:[#allocation11 + $0xb0]]
    %v7000 = vstv %s6999
    %v7001 = vmul.f32 %v7000, %v6945
    %v7002 = vmul.f32 %v7000, %v6946
    %v7003 = vmul.f32 %v7000, %v6947
    %v7004 = vmul.f32 %v7000, %v6948
    %v7005 = vadd.f32 %v6877, %v7001
    %v7006 = vadd.f32 %v6878, %v7002
    %v7007 = vadd.f32 %v6879, %v7003
    %v7008 = vadd.f32 %v6880, %v7004
    %s7009 = sld [smem:[#allocation11 + $0xd0]]
    %v7010 = vstv %s7009
    %v7011 = vmul.f32 %v7010, %v6945
    %v7012 = vmul.f32 %v7010, %v6946
    %v7013 = vmul.f32 %v7010, %v6947
    %v7014 = vmul.f32 %v7010, %v6948
    %v7015 = vadd.f32 %v6909, %v7011
    %v7016 = vadd.f32 %v6910, %v7012
    %v7017 = vadd.f32 %v6911, %v7013
    %v7018 = vadd.f32 %v6912, %v7014
    %s7019 = sld [smem:[#allocation11 + $0xf0]]
    %v7020 = vstv %s7019
    %v7021 = vmul.f32 %v7020, %v6945
    %v7022 = vmul.f32 %v7020, %v6946
    %v7023 = vmul.f32 %v7020, %v6947
    %v7024 = vmul.f32 %v7020, %v6948
    %v7025 = vadd.f32 %v6941, %v7021
    %v7026 = vadd.f32 %v6942, %v7022
    %v7027 = vadd.f32 %v6943, %v7023
    %v7028 = vadd.f32 %v6944, %v7024
    %s7029 = sld [smem:[#allocation11 + $0x11]]
    %v7030 = vstv %s7029
    %v7031 = vmul.f32 %v7030, %v6945
    %v7032 = vmul.f32 %v7030, %v6946
    %v7033 = vmul.f32 %v7030, %v6947
    %v7034 = vmul.f32 %v7030, %v6948
    %7039 = vrot.lane.b32.xlu0 %v7031, 127
    %v7040 = vpop.permute.xlu0 %7039
    %7041 = vrot.lane.b32.xlu0 %v7032, 127
    %v7042 = vpop.permute.xlu0 %7041
    %7043 = vrot.lane.b32.xlu0 %v7033, 127
    %v7044 = vpop.permute.xlu0 %7043
    %7045 = vrot.lane.b32.xlu0 %v7034, 127
    %v7046 = vpop.permute.xlu0 %7045
    %v7051 = vadd.f32 %v6955, %v7040
    %v7052 = vadd.f32 %v6956, %v7042
    %v7053 = vadd.f32 %v6957, %v7044
    %v7054 = vadd.f32 %v6958, %v7046
    %s7055 = sld [smem:[#allocation11 + $0x31]]
    %v7056 = vstv %s7055
    %v7057 = vmul.f32 %v7056, %v6945
    %v7058 = vmul.f32 %v7056, %v6946
    %v7059 = vmul.f32 %v7056, %v6947
    %v7060 = vmul.f32 %v7056, %v6948
    %7065 = vrot.lane.b32.xlu0 %v7057, 127
    %v7066 = vpop.permute.xlu0 %7065
    %7067 = vrot.lane.b32.xlu0 %v7058, 127
    %v7068 = vpop.permute.xlu0 %7067
    %7069 = vrot.lane.b32.xlu0 %v7059, 127
    %v7070 = vpop.permute.xlu0 %7069
    %7071 = vrot.lane.b32.xlu0 %v7060, 127
    %v7072 = vpop.permute.xlu0 %7071
    %v7077 = vadd.f32 %v6965, %v7066
    %v7078 = vadd.f32 %v6966, %v7068
    %v7079 = vadd.f32 %v6967, %v7070
    %v7080 = vadd.f32 %v6968, %v7072
    %s7081 = sld [smem:[#allocation11 + $0x51]]
    %v7082 = vstv %s7081
    %v7083 = vmul.f32 %v7082, %v6945
    %v7084 = vmul.f32 %v7082, %v6946
    %v7085 = vmul.f32 %v7082, %v6947
    %v7086 = vmul.f32 %v7082, %v6948
    %7091 = vrot.lane.b32.xlu0 %v7083, 127
    %v7092 = vpop.permute.xlu0 %7091
    %7093 = vrot.lane.b32.xlu0 %v7084, 127
    %v7094 = vpop.permute.xlu0 %7093
    %7095 = vrot.lane.b32.xlu0 %v7085, 127
    %v7096 = vpop.permute.xlu0 %7095
    %7097 = vrot.lane.b32.xlu0 %v7086, 127
    %v7098 = vpop.permute.xlu0 %7097
    %v7103 = vadd.f32 %v6975, %v7092
    %v7104 = vadd.f32 %v6976, %v7094
    %v7105 = vadd.f32 %v6977, %v7096
    %v7106 = vadd.f32 %v6978, %v7098
    %s7107 = sld [smem:[#allocation11 + $0x71]]
    %v7108 = vstv %s7107
    %v7109 = vmul.f32 %v7108, %v6945
    %v7110 = vmul.f32 %v7108, %v6946
    %v7111 = vmul.f32 %v7108, %v6947
    %v7112 = vmul.f32 %v7108, %v6948
    %7117 = vrot.lane.b32.xlu0 %v7109, 127
    %v7118 = vpop.permute.xlu0 %7117
    %7119 = vrot.lane.b32.xlu0 %v7110, 127
    %v7120 = vpop.permute.xlu0 %7119
    %7121 = vrot.lane.b32.xlu0 %v7111, 127
    %v7122 = vpop.permute.xlu0 %7121
    %7123 = vrot.lane.b32.xlu0 %v7112, 127
    %v7124 = vpop.permute.xlu0 %7123
    %v7129 = vadd.f32 %v6985, %v7118
    %v7130 = vadd.f32 %v6986, %v7120
    %v7131 = vadd.f32 %v6987, %v7122
    %v7132 = vadd.f32 %v6988, %v7124
    %s7133 = sld [smem:[#allocation11 + $0x91]]
    %v7134 = vstv %s7133
    %v7135 = vmul.f32 %v7134, %v6945
    %v7136 = vmul.f32 %v7134, %v6946
    %v7137 = vmul.f32 %v7134, %v6947
    %v7138 = vmul.f32 %v7134, %v6948
    %7143 = vrot.lane.b32.xlu0 %v7135, 127
    %v7144 = vpop.permute.xlu0 %7143
    %7145 = vrot.lane.b32.xlu0 %v7136, 127
    %v7146 = vpop.permute.xlu0 %7145
    %7147 = vrot.lane.b32.xlu0 %v7137, 127
    %v7148 = vpop.permute.xlu0 %7147
    %7149 = vrot.lane.b32.xlu0 %v7138, 127
    %v7150 = vpop.permute.xlu0 %7149
    %v7155 = vadd.f32 %v6995, %v7144
    %v7156 = vadd.f32 %v6996, %v7146
    %v7157 = vadd.f32 %v6997, %v7148
    %v7158 = vadd.f32 %v6998, %v7150
    %s7159 = sld [smem:[#allocation11 + $0xb1]]
    %v7160 = vstv %s7159
    %v7161 = vmul.f32 %v7160, %v6945
    %v7162 = vmul.f32 %v7160, %v6946
    %v7163 = vmul.f32 %v7160, %v6947
    %v7164 = vmul.f32 %v7160, %v6948
    %7169 = vrot.lane.b32.xlu0 %v7161, 127
    %v7170 = vpop.permute.xlu0 %7169
    %7171 = vrot.lane.b32.xlu0 %v7162, 127
    %v7172 = vpop.permute.xlu0 %7171
    %7173 = vrot.lane.b32.xlu0 %v7163, 127
    %v7174 = vpop.permute.xlu0 %7173
    %7175 = vrot.lane.b32.xlu0 %v7164, 127
    %v7176 = vpop.permute.xlu0 %7175
    %v7181 = vadd.f32 %v7005, %v7170
    %v7182 = vadd.f32 %v7006, %v7172
    %v7183 = vadd.f32 %v7007, %v7174
    %v7184 = vadd.f32 %v7008, %v7176
    %s7185 = sld [smem:[#allocation11 + $0xd1]]
    %v7186 = vstv %s7185
    %v7187 = vmul.f32 %v7186, %v6945
    %v7188 = vmul.f32 %v7186, %v6946
    %v7189 = vmul.f32 %v7186, %v6947
    %v7190 = vmul.f32 %v7186, %v6948
    %7195 = vrot.lane.b32.xlu0 %v7187, 127
    %v7196 = vpop.permute.xlu0 %7195
    %7197 = vrot.lane.b32.xlu0 %v7188, 127
    %v7198 = vpop.permute.xlu0 %7197
    %7199 = vrot.lane.b32.xlu0 %v7189, 127
    %v7200 = vpop.permute.xlu0 %7199
    %7201 = vrot.lane.b32.xlu0 %v7190, 127
    %v7202 = vpop.permute.xlu0 %7201
    %v7207 = vadd.f32 %v7015, %v7196
    %v7208 = vadd.f32 %v7016, %v7198
    %v7209 = vadd.f32 %v7017, %v7200
    %v7210 = vadd.f32 %v7018, %v7202
    %s7211 = sld [smem:[#allocation11 + $0xf1]]
    %v7212 = vstv %s7211
    %v7213 = vmul.f32 %v7212, %v6945
    %v7214 = vmul.f32 %v7212, %v6946
    %v7215 = vmul.f32 %v7212, %v6947
    %v7216 = vmul.f32 %v7212, %v6948
    %7221 = vrot.lane.b32.xlu0 %v7213, 127
    %v7222 = vpop.permute.xlu0 %7221
    %7223 = vrot.lane.b32.xlu0 %v7214, 127
    %v7224 = vpop.permute.xlu0 %7223
    %7225 = vrot.lane.b32.xlu0 %v7215, 127
    %v7226 = vpop.permute.xlu0 %7225
    %7227 = vrot.lane.b32.xlu0 %v7216, 127
    %v7228 = vpop.permute.xlu0 %7227
    %v7233 = vadd.f32 %v7025, %v7222
    %v7234 = vadd.f32 %v7026, %v7224
    %v7235 = vadd.f32 %v7027, %v7226
    %v7236 = vadd.f32 %v7028, %v7228
    %s7237 = sld [smem:[#allocation11 + $0x12]]
    %v7238 = vstv %s7237
    %v7239 = vmul.f32 %v7238, %v6945
    %v7240 = vmul.f32 %v7238, %v6946
    %v7241 = vmul.f32 %v7238, %v6947
    %v7242 = vmul.f32 %v7238, %v6948
    %v7247 = vrot.slane %v7239, 1
    %v7248 = vrot.slane %v7240, 1
    %v7249 = vsel %vm255, %v7247, %v7248
    %v7250 = vrot.slane %v7241, 1
    %v7251 = vrot.slane %v7242, 1
    %v7252 = vsel %vm255, %v7250, %v7251
    %v7257 = vadd.f32 %v7051, %v7249
    %v7258 = vadd.f32 %v7052, %v7248
    %v7259 = vadd.f32 %v7053, %v7252
    %v7260 = vadd.f32 %v7054, %v7251
    %s7261 = sld [smem:[#allocation11 + $0x32]]
    %v7262 = vstv %s7261
    %v7263 = vmul.f32 %v7262, %v6945
    %v7264 = vmul.f32 %v7262, %v6946
    %v7265 = vmul.f32 %v7262, %v6947
    %v7266 = vmul.f32 %v7262, %v6948
    %v7271 = vrot.slane %v7263, 1
    %v7272 = vrot.slane %v7264, 1
    %v7273 = vsel %vm255, %v7271, %v7272
    %v7274 = vrot.slane %v7265, 1
    %v7275 = vrot.slane %v7266, 1
    %v7276 = vsel %vm255, %v7274, %v7275
    %v7281 = vadd.f32 %v7077, %v7273
    %v7282 = vadd.f32 %v7078, %v7272
    %v7283 = vadd.f32 %v7079, %v7276
    %v7284 = vadd.f32 %v7080, %v7275
    %s7285 = sld [smem:[#allocation11 + $0x52]]
    %v7286 = vstv %s7285
    %v7287 = vmul.f32 %v7286, %v6945
    %v7288 = vmul.f32 %v7286, %v6946
    %v7289 = vmul.f32 %v7286, %v6947
    %v7290 = vmul.f32 %v7286, %v6948
    %v7295 = vrot.slane %v7287, 1
    %v7296 = vrot.slane %v7288, 1
    %v7297 = vsel %vm255, %v7295, %v7296
    %v7298 = vrot.slane %v7289, 1
    %v7299 = vrot.slane %v7290, 1
    %v7300 = vsel %vm255, %v7298, %v7299
    %v7305 = vadd.f32 %v7103, %v7297
    %v7306 = vadd.f32 %v7104, %v7296
    %v7307 = vadd.f32 %v7105, %v7300
    %v7308 = vadd.f32 %v7106, %v7299
    %s7309 = sld [smem:[#allocation11 + $0x72]]
    %v7310 = vstv %s7309
    %v7311 = vmul.f32 %v7310, %v6945
    %v7312 = vmul.f32 %v7310, %v6946
    %v7313 = vmul.f32 %v7310, %v6947
    %v7314 = vmul.f32 %v7310, %v6948
    %v7319 = vrot.slane %v7311, 1
    %v7320 = vrot.slane %v7312, 1
    %v7321 = vsel %vm255, %v7319, %v7320
    %v7322 = vrot.slane %v7313, 1
    %v7323 = vrot.slane %v7314, 1
    %v7324 = vsel %vm255, %v7322, %v7323
    %v7329 = vadd.f32 %v7129, %v7321
    %v7330 = vadd.f32 %v7130, %v7320
    %v7331 = vadd.f32 %v7131, %v7324
    %v7332 = vadd.f32 %v7132, %v7323
    %s7333 = sld [smem:[#allocation11 + $0x92]]
    %v7334 = vstv %s7333
    %v7335 = vmul.f32 %v7334, %v6945
    %v7336 = vmul.f32 %v7334, %v6946
    %v7337 = vmul.f32 %v7334, %v6947
    %v7338 = vmul.f32 %v7334, %v6948
    %v7343 = vrot.slane %v7335, 1
    %v7344 = vrot.slane %v7336, 1
    %v7345 = vsel %vm255, %v7343, %v7344
    %v7346 = vrot.slane %v7337, 1
    %v7347 = vrot.slane %v7338, 1
    %v7348 = vsel %vm255, %v7346, %v7347
    %v7353 = vadd.f32 %v7155, %v7345
    %v7354 = vadd.f32 %v7156, %v7344
    %v7355 = vadd.f32 %v7157, %v7348
    %v7356 = vadd.f32 %v7158, %v7347
    %s7357 = sld [smem:[#allocation11 + $0xb2]]
    %v7358 = vstv %s7357
    %v7359 = vmul.f32 %v7358, %v6945
    %v7360 = vmul.f32 %v7358, %v6946
    %v7361 = vmul.f32 %v7358, %v6947
    %v7362 = vmul.f32 %v7358, %v6948
    %v7367 = vrot.slane %v7359, 1
    %v7368 = vrot.slane %v7360, 1
    %v7369 = vsel %vm255, %v7367, %v7368
    %v7370 = vrot.slane %v7361, 1
    %v7371 = vrot.slane %v7362, 1
    %v7372 = vsel %vm255, %v7370, %v7371
    %v7377 = vadd.f32 %v7181, %v7369
    %v7378 = vadd.f32 %v7182, %v7368
    %v7379 = vadd.f32 %v7183, %v7372
    %v7380 = vadd.f32 %v7184, %v7371
    %s7381 = sld [smem:[#allocation11 + $0xd2]]
    %v7382 = vstv %s7381
    %v7383 = vmul.f32 %v7382, %v6945
    %v7384 = vmul.f32 %v7382, %v6946
    %v7385 = vmul.f32 %v7382, %v6947
    %v7386 = vmul.f32 %v7382, %v6948
    %v7391 = vrot.slane %v7383, 1
    %v7392 = vrot.slane %v7384, 1
    %v7393 = vsel %vm255, %v7391, %v7392
    %v7394 = vrot.slane %v7385, 1
    %v7395 = vrot.slane %v7386, 1
    %v7396 = vsel %vm255, %v7394, %v7395
    %v7401 = vadd.f32 %v7207, %v7393
    %v7402 = vadd.f32 %v7208, %v7392
    %v7403 = vadd.f32 %v7209, %v7396
    %v7404 = vadd.f32 %v7210, %v7395
    %s7405 = sld [smem:[#allocation11 + $0xf2]]
    %v7406 = vstv %s7405
    %v7407 = vmul.f32 %v7406, %v6945
    %v7408 = vmul.f32 %v7406, %v6946
    %v7409 = vmul.f32 %v7406, %v6947
    %v7410 = vmul.f32 %v7406, %v6948
    %v7415 = vrot.slane %v7407, 1
    %v7416 = vrot.slane %v7408, 1
    %v7417 = vsel %vm255, %v7415, %v7416
    %v7418 = vrot.slane %v7409, 1
    %v7419 = vrot.slane %v7410, 1
    %v7420 = vsel %vm255, %v7418, %v7419
    %v7425 = vadd.f32 %v7233, %v7417
    %v7426 = vadd.f32 %v7234, %v7416
    %v7427 = vadd.f32 %v7235, %v7420
    %v7428 = vadd.f32 %v7236, %v7419
    %s7429 = sld [smem:[#allocation11 + $0x13]]
    %v7430 = vstv %s7429
    %v7431 = vmul.f32 %v7430, %v6945
    %v7432 = vmul.f32 %v7430, %v6946
    %v7433 = vmul.f32 %v7430, %v6947
    %v7434 = vmul.f32 %v7430, %v6948
    %v7439 = vrot.slane %v7431, 1
    %v7440 = vrot.slane %v7432, 1
    %v7441 = vsel %vm255, %v7439, %v7440
    %v7442 = vrot.slane %v7433, 1
    %v7443 = vrot.slane %v7434, 1
    %v7444 = vsel %vm255, %v7442, %v7443
    %7445 = vrot.lane.b32.xlu0 %v7441, 127
    %v7446 = vpop.permute.xlu0 %7445
    %7447 = vrot.lane.b32.xlu0 %v7440, 127
    %v7448 = vpop.permute.xlu0 %7447
    %7449 = vrot.lane.b32.xlu0 %v7444, 127
    %v7450 = vpop.permute.xlu0 %7449
    %7451 = vrot.lane.b32.xlu0 %v7443, 127
    %v7452 = vpop.permute.xlu0 %7451
    %v7457 = vadd.f32 %v7257, %v7446
    %v7458 = vadd.f32 %v7258, %v7448
    %v7459 = vadd.f32 %v7259, %v7450
    %v7460 = vadd.f32 %v7260, %v7452
    %s7461 = sld [smem:[#allocation11 + $0x33]]
    %v7462 = vstv %s7461
    %v7463 = vmul.f32 %v7462, %v6945
    %v7464 = vmul.f32 %v7462, %v6946
    %v7465 = vmul.f32 %v7462, %v6947
    %v7466 = vmul.f32 %v7462, %v6948
    %v7471 = vrot.slane %v7463, 1
    %v7472 = vrot.slane %v7464, 1
    %v7473 = vsel %vm255, %v7471, %v7472
    %v7474 = vrot.slane %v7465, 1
    %v7475 = vrot.slane %v7466, 1
    %v7476 = vsel %vm255, %v7474, %v7475
    %7477 = vrot.lane.b32.xlu0 %v7473, 127
    %v7478 = vpop.permute.xlu0 %7477
    %7479 = vrot.lane.b32.xlu0 %v7472, 127
    %v7480 = vpop.permute.xlu0 %7479
    %7481 = vrot.lane.b32.xlu0 %v7476, 127
    %v7482 = vpop.permute.xlu0 %7481
    %7483 = vrot.lane.b32.xlu0 %v7475, 127
    %v7484 = vpop.permute.xlu0 %7483
    %v7489 = vadd.f32 %v7281, %v7478
    %v7490 = vadd.f32 %v7282, %v7480
    %v7491 = vadd.f32 %v7283, %v7482
    %v7492 = vadd.f32 %v7284, %v7484
    %s7493 = sld [smem:[#allocation11 + $0x53]]
    %v7494 = vstv %s7493
    %v7495 = vmul.f32 %v7494, %v6945
    %v7496 = vmul.f32 %v7494, %v6946
    %v7497 = vmul.f32 %v7494, %v6947
    %v7498 = vmul.f32 %v7494, %v6948
    %v7503 = vrot.slane %v7495, 1
    %v7504 = vrot.slane %v7496, 1
    %v7505 = vsel %vm255, %v7503, %v7504
    %v7506 = vrot.slane %v7497, 1
    %v7507 = vrot.slane %v7498, 1
    %v7508 = vsel %vm255, %v7506, %v7507
    %7509 = vrot.lane.b32.xlu0 %v7505, 127
    %v7510 = vpop.permute.xlu0 %7509
    %7511 = vrot.lane.b32.xlu0 %v7504, 127
    %v7512 = vpop.permute.xlu0 %7511
    %7513 = vrot.lane.b32.xlu0 %v7508, 127
    %v7514 = vpop.permute.xlu0 %7513
    %7515 = vrot.lane.b32.xlu0 %v7507, 127
    %v7516 = vpop.permute.xlu0 %7515
    %v7521 = vadd.f32 %v7305, %v7510
    %v7522 = vadd.f32 %v7306, %v7512
    %v7523 = vadd.f32 %v7307, %v7514
    %v7524 = vadd.f32 %v7308, %v7516
    %s7525 = sld [smem:[#allocation11 + $0x73]]
    %v7526 = vstv %s7525
    %v7527 = vmul.f32 %v7526, %v6945
    %v7528 = vmul.f32 %v7526, %v6946
    %v7529 = vmul.f32 %v7526, %v6947
    %v7530 = vmul.f32 %v7526, %v6948
    %v7535 = vrot.slane %v7527, 1
    %v7536 = vrot.slane %v7528, 1
    %v7537 = vsel %vm255, %v7535, %v7536
    %v7538 = vrot.slane %v7529, 1
    %v7539 = vrot.slane %v7530, 1
    %v7540 = vsel %vm255, %v7538, %v7539
    %7541 = vrot.lane.b32.xlu0 %v7537, 127
    %v7542 = vpop.permute.xlu0 %7541
    %7543 = vrot.lane.b32.xlu0 %v7536, 127
    %v7544 = vpop.permute.xlu0 %7543
    %7545 = vrot.lane.b32.xlu0 %v7540, 127
    %v7546 = vpop.permute.xlu0 %7545
    %7547 = vrot.lane.b32.xlu0 %v7539, 127
    %v7548 = vpop.permute.xlu0 %7547
    %v7553 = vadd.f32 %v7329, %v7542
    %v7554 = vadd.f32 %v7330, %v7544
    %v7555 = vadd.f32 %v7331, %v7546
    %v7556 = vadd.f32 %v7332, %v7548
    %s7557 = sld [smem:[#allocation11 + $0x93]]
    %v7558 = vstv %s7557
    %v7559 = vmul.f32 %v7558, %v6945
    %v7560 = vmul.f32 %v7558, %v6946
    %v7561 = vmul.f32 %v7558, %v6947
    %v7562 = vmul.f32 %v7558, %v6948
    %v7567 = vrot.slane %v7559, 1
    %v7568 = vrot.slane %v7560, 1
    %v7569 = vsel %vm255, %v7567, %v7568
    %v7570 = vrot.slane %v7561, 1
    %v7571 = vrot.slane %v7562, 1
    %v7572 = vsel %vm255, %v7570, %v7571
    %7573 = vrot.lane.b32.xlu0 %v7569, 127
    %v7574 = vpop.permute.xlu0 %7573
    %7575 = vrot.lane.b32.xlu0 %v7568, 127
    %v7576 = vpop.permute.xlu0 %7575
    %7577 = vrot.lane.b32.xlu0 %v7572, 127
    %v7578 = vpop.permute.xlu0 %7577
    %7579 = vrot.lane.b32.xlu0 %v7571, 127
    %v7580 = vpop.permute.xlu0 %7579
    %v7585 = vadd.f32 %v7353, %v7574
    %v7586 = vadd.f32 %v7354, %v7576
    %v7587 = vadd.f32 %v7355, %v7578
    %v7588 = vadd.f32 %v7356, %v7580
    %s7589 = sld [smem:[#allocation11 + $0xb3]]
    %v7590 = vstv %s7589
    %v7591 = vmul.f32 %v7590, %v6945
    %v7592 = vmul.f32 %v7590, %v6946
    %v7593 = vmul.f32 %v7590, %v6947
    %v7594 = vmul.f32 %v7590, %v6948
    %v7599 = vrot.slane %v7591, 1
    %v7600 = vrot.slane %v7592, 1
    %v7601 = vsel %vm255, %v7599, %v7600
    %v7602 = vrot.slane %v7593, 1
    %v7603 = vrot.slane %v7594, 1
    %v7604 = vsel %vm255, %v7602, %v7603
    %7605 = vrot.lane.b32.xlu0 %v7601, 127
    %v7606 = vpop.permute.xlu0 %7605
    %7607 = vrot.lane.b32.xlu0 %v7600, 127
    %v7608 = vpop.permute.xlu0 %7607
    %7609 = vrot.lane.b32.xlu0 %v7604, 127
    %v7610 = vpop.permute.xlu0 %7609
    %7611 = vrot.lane.b32.xlu0 %v7603, 127
    %v7612 = vpop.permute.xlu0 %7611
    %v7617 = vadd.f32 %v7377, %v7606
    %v7618 = vadd.f32 %v7378, %v7608
    %v7619 = vadd.f32 %v7379, %v7610
    %v7620 = vadd.f32 %v7380, %v7612
    %s7621 = sld [smem:[#allocation11 + $0xd3]]
    %v7622 = vstv %s7621
    %v7623 = vmul.f32 %v7622, %v6945
    %v7624 = vmul.f32 %v7622, %v6946
    %v7625 = vmul.f32 %v7622, %v6947
    %v7626 = vmul.f32 %v7622, %v6948
    %v7631 = vrot.slane %v7623, 1
    %v7632 = vrot.slane %v7624, 1
    %v7633 = vsel %vm255, %v7631, %v7632
    %v7634 = vrot.slane %v7625, 1
    %v7635 = vrot.slane %v7626, 1
    %v7636 = vsel %vm255, %v7634, %v7635
    %7637 = vrot.lane.b32.xlu0 %v7633, 127
    %v7638 = vpop.permute.xlu0 %7637
    %7639 = vrot.lane.b32.xlu0 %v7632, 127
    %v7640 = vpop.permute.xlu0 %7639
    %7641 = vrot.lane.b32.xlu0 %v7636, 127
    %v7642 = vpop.permute.xlu0 %7641
    %7643 = vrot.lane.b32.xlu0 %v7635, 127
    %v7644 = vpop.permute.xlu0 %7643
    %v7649 = vadd.f32 %v7401, %v7638
    %v7650 = vadd.f32 %v7402, %v7640
    %v7651 = vadd.f32 %v7403, %v7642
    %v7652 = vadd.f32 %v7404, %v7644
    %s7653 = sld [smem:[#allocation11 + $0xf3]]
    %v7654 = vstv %s7653
    %v7655 = vmul.f32 %v7654, %v6945
    %v7656 = vmul.f32 %v7654, %v6946
    %v7657 = vmul.f32 %v7654, %v6947
    %v7658 = vmul.f32 %v7654, %v6948
    %v7663 = vrot.slane %v7655, 1
    %v7664 = vrot.slane %v7656, 1
    %v7665 = vsel %vm255, %v7663, %v7664
    %v7666 = vrot.slane %v7657, 1
    %v7667 = vrot.slane %v7658, 1
    %v7668 = vsel %vm255, %v7666, %v7667
    %7669 = vrot.lane.b32.xlu0 %v7665, 127
    %v7670 = vpop.permute.xlu0 %7669
    %7671 = vrot.lane.b32.xlu0 %v7664, 127
    %v7672 = vpop.permute.xlu0 %7671
    %7673 = vrot.lane.b32.xlu0 %v7668, 127
    %v7674 = vpop.permute.xlu0 %7673
    %7675 = vrot.lane.b32.xlu0 %v7667, 127
    %v7676 = vpop.permute.xlu0 %7675
    %v7681 = vadd.f32 %v7425, %v7670
    %v7682 = vadd.f32 %v7426, %v7672
    %v7683 = vadd.f32 %v7427, %v7674
    %v7684 = vadd.f32 %v7428, %v7676
    %v7685 = vld [vmem:[%s3950] sm:$0xff]
    %v7686 = vld [vmem:[%s3950 + $0x8] sm:$0x3f]
    %v7687 = vld [vmem:[%s3950 + $0x80] sm:$0xff]
    %v7688 = vld [vmem:[%s3950 + $0x88] sm:$0x3f]
    %s7689 = sld [smem:[#allocation11 + $0x14]]
    %v7690 = vstv %s7689
    %v7691 = vmul.f32 %v7690, %v7685
    %v7692 = vmul.f32 %v7690, %v7686
    %v7693 = vmul.f32 %v7690, %v7687
    %v7694 = vmul.f32 %v7690, %v7688
    %v7695 = vadd.f32 %v7457, %v7691
    %v7696 = vadd.f32 %v7458, %v7692
    %v7697 = vadd.f32 %v7459, %v7693
    %v7698 = vadd.f32 %v7460, %v7694
    %s7699 = sld [smem:[#allocation11 + $0x34]]
    %v7700 = vstv %s7699
    %v7701 = vmul.f32 %v7700, %v7685
    %v7702 = vmul.f32 %v7700, %v7686
    %v7703 = vmul.f32 %v7700, %v7687
    %v7704 = vmul.f32 %v7700, %v7688
    %v7705 = vadd.f32 %v7489, %v7701
    %v7706 = vadd.f32 %v7490, %v7702
    %v7707 = vadd.f32 %v7491, %v7703
    %v7708 = vadd.f32 %v7492, %v7704
    %s7709 = sld [smem:[#allocation11 + $0x54]]
    %v7710 = vstv %s7709
    %v7711 = vmul.f32 %v7710, %v7685
    %v7712 = vmul.f32 %v7710, %v7686
    %v7713 = vmul.f32 %v7710, %v7687
    %v7714 = vmul.f32 %v7710, %v7688
    %v7715 = vadd.f32 %v7521, %v7711
    %v7716 = vadd.f32 %v7522, %v7712
    %v7717 = vadd.f32 %v7523, %v7713
    %v7718 = vadd.f32 %v7524, %v7714
    %s7719 = sld [smem:[#allocation11 + $0x74]]
    %v7720 = vstv %s7719
    %v7721 = vmul.f32 %v7720, %v7685
    %v7722 = vmul.f32 %v7720, %v7686
    %v7723 = vmul.f32 %v7720, %v7687
    %v7724 = vmul.f32 %v7720, %v7688
    %v7725 = vadd.f32 %v7553, %v7721
    %v7726 = vadd.f32 %v7554, %v7722
    %v7727 = vadd.f32 %v7555, %v7723
    %v7728 = vadd.f32 %v7556, %v7724
    %s7729 = sld [smem:[#allocation11 + $0x94]]
    %v7730 = vstv %s7729
    %v7731 = vmul.f32 %v7730, %v7685
    %v7732 = vmul.f32 %v7730, %v7686
    %v7733 = vmul.f32 %v7730, %v7687
    %v7734 = vmul.f32 %v7730, %v7688
    %v7735 = vadd.f32 %v7585, %v7731
    %v7736 = vadd.f32 %v7586, %v7732
    %v7737 = vadd.f32 %v7587, %v7733
    %v7738 = vadd.f32 %v7588, %v7734
    %s7739 = sld [smem:[#allocation11 + $0xb4]]
    %v7740 = vstv %s7739
    %v7741 = vmul.f32 %v7740, %v7685
    %v7742 = vmul.f32 %v7740, %v7686
    %v7743 = vmul.f32 %v7740, %v7687
    %v7744 = vmul.f32 %v7740, %v7688
    %v7745 = vadd.f32 %v7617, %v7741
    %v7746 = vadd.f32 %v7618, %v7742
    %v7747 = vadd.f32 %v7619, %v7743
    %v7748 = vadd.f32 %v7620, %v7744
    %s7749 = sld [smem:[#allocation11 + $0xd4]]
    %v7750 = vstv %s7749
    %v7751 = vmul.f32 %v7750, %v7685
    %v7752 = vmul.f32 %v7750, %v7686
    %v7753 = vmul.f32 %v7750, %v7687
    %v7754 = vmul.f32 %v7750, %v7688
    %v7755 = vadd.f32 %v7649, %v7751
    %v7756 = vadd.f32 %v7650, %v7752
    %v7757 = vadd.f32 %v7651, %v7753
    %v7758 = vadd.f32 %v7652, %v7754
    %s7759 = sld [smem:[#allocation11 + $0xf4]]
    %v7760 = vstv %s7759
    %v7761 = vmul.f32 %v7760, %v7685
    %v7762 = vmul.f32 %v7760, %v7686
    %v7763 = vmul.f32 %v7760, %v7687
    %v7764 = vmul.f32 %v7760, %v7688
    %v7765 = vadd.f32 %v7681, %v7761
    %v7766 = vadd.f32 %v7682, %v7762
    %v7767 = vadd.f32 %v7683, %v7763
    %v7768 = vadd.f32 %v7684, %v7764
    %s7769 = sld [smem:[#allocation11 + $0x15]]
    %v7770 = vstv %s7769
    %v7771 = vmul.f32 %v7770, %v7685
    %v7772 = vmul.f32 %v7770, %v7686
    %v7773 = vmul.f32 %v7770, %v7687
    %v7774 = vmul.f32 %v7770, %v7688
    %7779 = vrot.lane.b32.xlu0 %v7771, 127
    %v7780 = vpop.permute.xlu0 %7779
    %7781 = vrot.lane.b32.xlu0 %v7772, 127
    %v7782 = vpop.permute.xlu0 %7781
    %7783 = vrot.lane.b32.xlu0 %v7773, 127
    %v7784 = vpop.permute.xlu0 %7783
    %7785 = vrot.lane.b32.xlu0 %v7774, 127
    %v7786 = vpop.permute.xlu0 %7785
    %v7791 = vadd.f32 %v7695, %v7780
    %v7792 = vadd.f32 %v7696, %v7782
    %v7793 = vadd.f32 %v7697, %v7784
    %v7794 = vadd.f32 %v7698, %v7786
    %s7795 = sld [smem:[#allocation11 + $0x35]]
    %v7796 = vstv %s7795
    %v7797 = vmul.f32 %v7796, %v7685
    %v7798 = vmul.f32 %v7796, %v7686
    %v7799 = vmul.f32 %v7796, %v7687
    %v7800 = vmul.f32 %v7796, %v7688
    %7805 = vrot.lane.b32.xlu0 %v7797, 127
    %v7806 = vpop.permute.xlu0 %7805
    %7807 = vrot.lane.b32.xlu0 %v7798, 127
    %v7808 = vpop.permute.xlu0 %7807
    %7809 = vrot.lane.b32.xlu0 %v7799, 127
    %v7810 = vpop.permute.xlu0 %7809
    %7811 = vrot.lane.b32.xlu0 %v7800, 127
    %v7812 = vpop.permute.xlu0 %7811
    %v7817 = vadd.f32 %v7705, %v7806
    %v7818 = vadd.f32 %v7706, %v7808
    %v7819 = vadd.f32 %v7707, %v7810
    %v7820 = vadd.f32 %v7708, %v7812
    %s7821 = sld [smem:[#allocation11 + $0x55]]
    %v7822 = vstv %s7821
    %v7823 = vmul.f32 %v7822, %v7685
    %v7824 = vmul.f32 %v7822, %v7686
    %v7825 = vmul.f32 %v7822, %v7687
    %v7826 = vmul.f32 %v7822, %v7688
    %7831 = vrot.lane.b32.xlu0 %v7823, 127
    %v7832 = vpop.permute.xlu0 %7831
    %7833 = vrot.lane.b32.xlu0 %v7824, 127
    %v7834 = vpop.permute.xlu0 %7833
    %7835 = vrot.lane.b32.xlu0 %v7825, 127
    %v7836 = vpop.permute.xlu0 %7835
    %7837 = vrot.lane.b32.xlu0 %v7826, 127
    %v7838 = vpop.permute.xlu0 %7837
    %v7843 = vadd.f32 %v7715, %v7832
    %v7844 = vadd.f32 %v7716, %v7834
    %v7845 = vadd.f32 %v7717, %v7836
    %v7846 = vadd.f32 %v7718, %v7838
    %s7847 = sld [smem:[#allocation11 + $0x75]]
    %v7848 = vstv %s7847
    %v7849 = vmul.f32 %v7848, %v7685
    %v7850 = vmul.f32 %v7848, %v7686
    %v7851 = vmul.f32 %v7848, %v7687
    %v7852 = vmul.f32 %v7848, %v7688
    %7857 = vrot.lane.b32.xlu0 %v7849, 127
    %v7858 = vpop.permute.xlu0 %7857
    %7859 = vrot.lane.b32.xlu0 %v7850, 127
    %v7860 = vpop.permute.xlu0 %7859
    %7861 = vrot.lane.b32.xlu0 %v7851, 127
    %v7862 = vpop.permute.xlu0 %7861
    %7863 = vrot.lane.b32.xlu0 %v7852, 127
    %v7864 = vpop.permute.xlu0 %7863
    %v7869 = vadd.f32 %v7725, %v7858
    %v7870 = vadd.f32 %v7726, %v7860
    %v7871 = vadd.f32 %v7727, %v7862
    %v7872 = vadd.f32 %v7728, %v7864
    %s7873 = sld [smem:[#allocation11 + $0x95]]
    %v7874 = vstv %s7873
    %v7875 = vmul.f32 %v7874, %v7685
    %v7876 = vmul.f32 %v7874, %v7686
    %v7877 = vmul.f32 %v7874, %v7687
    %v7878 = vmul.f32 %v7874, %v7688
    %7883 = vrot.lane.b32.xlu0 %v7875, 127
    %v7884 = vpop.permute.xlu0 %7883
    %7885 = vrot.lane.b32.xlu0 %v7876, 127
    %v7886 = vpop.permute.xlu0 %7885
    %7887 = vrot.lane.b32.xlu0 %v7877, 127
    %v7888 = vpop.permute.xlu0 %7887
    %7889 = vrot.lane.b32.xlu0 %v7878, 127
    %v7890 = vpop.permute.xlu0 %7889
    %v7895 = vadd.f32 %v7735, %v7884
    %v7896 = vadd.f32 %v7736, %v7886
    %v7897 = vadd.f32 %v7737, %v7888
    %v7898 = vadd.f32 %v7738, %v7890
    %s7899 = sld [smem:[#allocation11 + $0xb5]]
    %v7900 = vstv %s7899
    %v7901 = vmul.f32 %v7900, %v7685
    %v7902 = vmul.f32 %v7900, %v7686
    %v7903 = vmul.f32 %v7900, %v7687
    %v7904 = vmul.f32 %v7900, %v7688
    %7909 = vrot.lane.b32.xlu0 %v7901, 127
    %v7910 = vpop.permute.xlu0 %7909
    %7911 = vrot.lane.b32.xlu0 %v7902, 127
    %v7912 = vpop.permute.xlu0 %7911
    %7913 = vrot.lane.b32.xlu0 %v7903, 127
    %v7914 = vpop.permute.xlu0 %7913
    %7915 = vrot.lane.b32.xlu0 %v7904, 127
    %v7916 = vpop.permute.xlu0 %7915
    %v7921 = vadd.f32 %v7745, %v7910
    %v7922 = vadd.f32 %v7746, %v7912
    %v7923 = vadd.f32 %v7747, %v7914
    %v7924 = vadd.f32 %v7748, %v7916
    %s7925 = sld [smem:[#allocation11 + $0xd5]]
    %v7926 = vstv %s7925
    %v7927 = vmul.f32 %v7926, %v7685
    %v7928 = vmul.f32 %v7926, %v7686
    %v7929 = vmul.f32 %v7926, %v7687
    %v7930 = vmul.f32 %v7926, %v7688
    %7935 = vrot.lane.b32.xlu0 %v7927, 127
    %v7936 = vpop.permute.xlu0 %7935
    %7937 = vrot.lane.b32.xlu0 %v7928, 127
    %v7938 = vpop.permute.xlu0 %7937
    %7939 = vrot.lane.b32.xlu0 %v7929, 127
    %v7940 = vpop.permute.xlu0 %7939
    %7941 = vrot.lane.b32.xlu0 %v7930, 127
    %v7942 = vpop.permute.xlu0 %7941
    %v7947 = vadd.f32 %v7755, %v7936
    %v7948 = vadd.f32 %v7756, %v7938
    %v7949 = vadd.f32 %v7757, %v7940
    %v7950 = vadd.f32 %v7758, %v7942
    %s7951 = sld [smem:[#allocation11 + $0xf5]]
    %v7952 = vstv %s7951
    %v7953 = vmul.f32 %v7952, %v7685
    %v7954 = vmul.f32 %v7952, %v7686
    %v7955 = vmul.f32 %v7952, %v7687
    %v7956 = vmul.f32 %v7952, %v7688
    %7961 = vrot.lane.b32.xlu0 %v7953, 127
    %v7962 = vpop.permute.xlu0 %7961
    %7963 = vrot.lane.b32.xlu0 %v7954, 127
    %v7964 = vpop.permute.xlu0 %7963
    %7965 = vrot.lane.b32.xlu0 %v7955, 127
    %v7966 = vpop.permute.xlu0 %7965
    %7967 = vrot.lane.b32.xlu0 %v7956, 127
    %v7968 = vpop.permute.xlu0 %7967
    %v7973 = vadd.f32 %v7765, %v7962
    %v7974 = vadd.f32 %v7766, %v7964
    %v7975 = vadd.f32 %v7767, %v7966
    %v7976 = vadd.f32 %v7768, %v7968
    %s7977 = sld [smem:[#allocation11 + $0x16]]
    %v7978 = vstv %s7977
    %v7979 = vmul.f32 %v7978, %v7685
    %v7980 = vmul.f32 %v7978, %v7686
    %v7981 = vmul.f32 %v7978, %v7687
    %v7982 = vmul.f32 %v7978, %v7688
    %v7987 = vrot.slane %v7979, 1
    %v7988 = vrot.slane %v7980, 1
    %v7989 = vsel %vm255, %v7987, %v7988
    %v7990 = vrot.slane %v7981, 1
    %v7991 = vrot.slane %v7982, 1
    %v7992 = vsel %vm255, %v7990, %v7991
    %v7997 = vadd.f32 %v7791, %v7989
    %v7998 = vadd.f32 %v7792, %v7988
    %v7999 = vadd.f32 %v7793, %v7992
    %v8000 = vadd.f32 %v7794, %v7991
    %s8001 = sld [smem:[#allocation11 + $0x36]]
    %v8002 = vstv %s8001
    %v8003 = vmul.f32 %v8002, %v7685
    %v8004 = vmul.f32 %v8002, %v7686
    %v8005 = vmul.f32 %v8002, %v7687
    %v8006 = vmul.f32 %v8002, %v7688
    %v8011 = vrot.slane %v8003, 1
    %v8012 = vrot.slane %v8004, 1
    %v8013 = vsel %vm255, %v8011, %v8012
    %v8014 = vrot.slane %v8005, 1
    %v8015 = vrot.slane %v8006, 1
    %v8016 = vsel %vm255, %v8014, %v8015
    %v8021 = vadd.f32 %v7817, %v8013
    %v8022 = vadd.f32 %v7818, %v8012
    %v8023 = vadd.f32 %v7819, %v8016
    %v8024 = vadd.f32 %v7820, %v8015
    %s8025 = sld [smem:[#allocation11 + $0x56]]
    %v8026 = vstv %s8025
    %v8027 = vmul.f32 %v8026, %v7685
    %v8028 = vmul.f32 %v8026, %v7686
    %v8029 = vmul.f32 %v8026, %v7687
    %v8030 = vmul.f32 %v8026, %v7688
    %v8035 = vrot.slane %v8027, 1
    %v8036 = vrot.slane %v8028, 1
    %v8037 = vsel %vm255, %v8035, %v8036
    %v8038 = vrot.slane %v8029, 1
    %v8039 = vrot.slane %v8030, 1
    %v8040 = vsel %vm255, %v8038, %v8039
    %v8045 = vadd.f32 %v7843, %v8037
    %v8046 = vadd.f32 %v7844, %v8036
    %v8047 = vadd.f32 %v7845, %v8040
    %v8048 = vadd.f32 %v7846, %v8039
    %s8049 = sld [smem:[#allocation11 + $0x76]]
    %v8050 = vstv %s8049
    %v8051 = vmul.f32 %v8050, %v7685
    %v8052 = vmul.f32 %v8050, %v7686
    %v8053 = vmul.f32 %v8050, %v7687
    %v8054 = vmul.f32 %v8050, %v7688
    %v8059 = vrot.slane %v8051, 1
    %v8060 = vrot.slane %v8052, 1
    %v8061 = vsel %vm255, %v8059, %v8060
    %v8062 = vrot.slane %v8053, 1
    %v8063 = vrot.slane %v8054, 1
    %v8064 = vsel %vm255, %v8062, %v8063
    %v8069 = vadd.f32 %v7869, %v8061
    %v8070 = vadd.f32 %v7870, %v8060
    %v8071 = vadd.f32 %v7871, %v8064
    %v8072 = vadd.f32 %v7872, %v8063
    %s8073 = sld [smem:[#allocation11 + $0x96]]
    %v8074 = vstv %s8073
    %v8075 = vmul.f32 %v8074, %v7685
    %v8076 = vmul.f32 %v8074, %v7686
    %v8077 = vmul.f32 %v8074, %v7687
    %v8078 = vmul.f32 %v8074, %v7688
    %v8083 = vrot.slane %v8075, 1
    %v8084 = vrot.slane %v8076, 1
    %v8085 = vsel %vm255, %v8083, %v8084
    %v8086 = vrot.slane %v8077, 1
    %v8087 = vrot.slane %v8078, 1
    %v8088 = vsel %vm255, %v8086, %v8087
    %v8093 = vadd.f32 %v7895, %v8085
    %v8094 = vadd.f32 %v7896, %v8084
    %v8095 = vadd.f32 %v7897, %v8088
    %v8096 = vadd.f32 %v7898, %v8087
    %s8097 = sld [smem:[#allocation11 + $0xb6]]
    %v8098 = vstv %s8097
    %v8099 = vmul.f32 %v8098, %v7685
    %v8100 = vmul.f32 %v8098, %v7686
    %v8101 = vmul.f32 %v8098, %v7687
    %v8102 = vmul.f32 %v8098, %v7688
    %v8107 = vrot.slane %v8099, 1
    %v8108 = vrot.slane %v8100, 1
    %v8109 = vsel %vm255, %v8107, %v8108
    %v8110 = vrot.slane %v8101, 1
    %v8111 = vrot.slane %v8102, 1
    %v8112 = vsel %vm255, %v8110, %v8111
    %v8117 = vadd.f32 %v7921, %v8109
    %v8118 = vadd.f32 %v7922, %v8108
    %v8119 = vadd.f32 %v7923, %v8112
    %v8120 = vadd.f32 %v7924, %v8111
    %s8121 = sld [smem:[#allocation11 + $0xd6]]
    %v8122 = vstv %s8121
    %v8123 = vmul.f32 %v8122, %v7685
    %v8124 = vmul.f32 %v8122, %v7686
    %v8125 = vmul.f32 %v8122, %v7687
    %v8126 = vmul.f32 %v8122, %v7688
    %v8131 = vrot.slane %v8123, 1
    %v8132 = vrot.slane %v8124, 1
    %v8133 = vsel %vm255, %v8131, %v8132
    %v8134 = vrot.slane %v8125, 1
    %v8135 = vrot.slane %v8126, 1
    %v8136 = vsel %vm255, %v8134, %v8135
    %v8141 = vadd.f32 %v7947, %v8133
    %v8142 = vadd.f32 %v7948, %v8132
    %v8143 = vadd.f32 %v7949, %v8136
    %v8144 = vadd.f32 %v7950, %v8135
    %s8145 = sld [smem:[#allocation11 + $0xf6]]
    %v8146 = vstv %s8145
    %v8147 = vmul.f32 %v8146, %v7685
    %v8148 = vmul.f32 %v8146, %v7686
    %v8149 = vmul.f32 %v8146, %v7687
    %v8150 = vmul.f32 %v8146, %v7688
    %v8155 = vrot.slane %v8147, 1
    %v8156 = vrot.slane %v8148, 1
    %v8157 = vsel %vm255, %v8155, %v8156
    %v8158 = vrot.slane %v8149, 1
    %v8159 = vrot.slane %v8150, 1
    %v8160 = vsel %vm255, %v8158, %v8159
    %v8165 = vadd.f32 %v7973, %v8157
    %v8166 = vadd.f32 %v7974, %v8156
    %v8167 = vadd.f32 %v7975, %v8160
    %v8168 = vadd.f32 %v7976, %v8159
    %s8169 = sld [smem:[#allocation11 + $0x17]]
    %v8170 = vstv %s8169
    %v8171 = vmul.f32 %v8170, %v7685
    %v8172 = vmul.f32 %v8170, %v7686
    %v8173 = vmul.f32 %v8170, %v7687
    %v8174 = vmul.f32 %v8170, %v7688
    %v8179 = vrot.slane %v8171, 1
    %v8180 = vrot.slane %v8172, 1
    %v8181 = vsel %vm255, %v8179, %v8180
    %v8182 = vrot.slane %v8173, 1
    %v8183 = vrot.slane %v8174, 1
    %v8184 = vsel %vm255, %v8182, %v8183
    %8185 = vrot.lane.b32.xlu0 %v8181, 127
    %v8186 = vpop.permute.xlu0 %8185
    %8187 = vrot.lane.b32.xlu0 %v8180, 127
    %v8188 = vpop.permute.xlu0 %8187
    %8189 = vrot.lane.b32.xlu0 %v8184, 127
    %v8190 = vpop.permute.xlu0 %8189
    %8191 = vrot.lane.b32.xlu0 %v8183, 127
    %v8192 = vpop.permute.xlu0 %8191
    %v8197 = vadd.f32 %v7997, %v8186
    %v8198 = vadd.f32 %v7998, %v8188
    %v8199 = vadd.f32 %v7999, %v8190
    %v8200 = vadd.f32 %v8000, %v8192
    %s8201 = sld [smem:[#allocation11 + $0x37]]
    %v8202 = vstv %s8201
    %v8203 = vmul.f32 %v8202, %v7685
    %v8204 = vmul.f32 %v8202, %v7686
    %v8205 = vmul.f32 %v8202, %v7687
    %v8206 = vmul.f32 %v8202, %v7688
    %v8211 = vrot.slane %v8203, 1
    %v8212 = vrot.slane %v8204, 1
    %v8213 = vsel %vm255, %v8211, %v8212
    %v8214 = vrot.slane %v8205, 1
    %v8215 = vrot.slane %v8206, 1
    %v8216 = vsel %vm255, %v8214, %v8215
    %8217 = vrot.lane.b32.xlu0 %v8213, 127
    %v8218 = vpop.permute.xlu0 %8217
    %8219 = vrot.lane.b32.xlu0 %v8212, 127
    %v8220 = vpop.permute.xlu0 %8219
    %8221 = vrot.lane.b32.xlu0 %v8216, 127
    %v8222 = vpop.permute.xlu0 %8221
    %8223 = vrot.lane.b32.xlu0 %v8215, 127
    %v8224 = vpop.permute.xlu0 %8223
    %v8229 = vadd.f32 %v8021, %v8218
    %v8230 = vadd.f32 %v8022, %v8220
    %v8231 = vadd.f32 %v8023, %v8222
    %v8232 = vadd.f32 %v8024, %v8224
    %s8233 = sld [smem:[#allocation11 + $0x57]]
    %v8234 = vstv %s8233
    %v8235 = vmul.f32 %v8234, %v7685
    %v8236 = vmul.f32 %v8234, %v7686
    %v8237 = vmul.f32 %v8234, %v7687
    %v8238 = vmul.f32 %v8234, %v7688
    %v8243 = vrot.slane %v8235, 1
    %v8244 = vrot.slane %v8236, 1
    %v8245 = vsel %vm255, %v8243, %v8244
    %v8246 = vrot.slane %v8237, 1
    %v8247 = vrot.slane %v8238, 1
    %v8248 = vsel %vm255, %v8246, %v8247
    %8249 = vrot.lane.b32.xlu0 %v8245, 127
    %v8250 = vpop.permute.xlu0 %8249
    %8251 = vrot.lane.b32.xlu0 %v8244, 127
    %v8252 = vpop.permute.xlu0 %8251
    %8253 = vrot.lane.b32.xlu0 %v8248, 127
    %v8254 = vpop.permute.xlu0 %8253
    %8255 = vrot.lane.b32.xlu0 %v8247, 127
    %v8256 = vpop.permute.xlu0 %8255
    %v8261 = vadd.f32 %v8045, %v8250
    %v8262 = vadd.f32 %v8046, %v8252
    %v8263 = vadd.f32 %v8047, %v8254
    %v8264 = vadd.f32 %v8048, %v8256
    %s8265 = sld [smem:[#allocation11 + $0x77]]
    %v8266 = vstv %s8265
    %v8267 = vmul.f32 %v8266, %v7685
    %v8268 = vmul.f32 %v8266, %v7686
    %v8269 = vmul.f32 %v8266, %v7687
    %v8270 = vmul.f32 %v8266, %v7688
    %v8275 = vrot.slane %v8267, 1
    %v8276 = vrot.slane %v8268, 1
    %v8277 = vsel %vm255, %v8275, %v8276
    %v8278 = vrot.slane %v8269, 1
    %v8279 = vrot.slane %v8270, 1
    %v8280 = vsel %vm255, %v8278, %v8279
    %8281 = vrot.lane.b32.xlu0 %v8277, 127
    %v8282 = vpop.permute.xlu0 %8281
    %8283 = vrot.lane.b32.xlu0 %v8276, 127
    %v8284 = vpop.permute.xlu0 %8283
    %8285 = vrot.lane.b32.xlu0 %v8280, 127
    %v8286 = vpop.permute.xlu0 %8285
    %8287 = vrot.lane.b32.xlu0 %v8279, 127
    %v8288 = vpop.permute.xlu0 %8287
    %v8293 = vadd.f32 %v8069, %v8282
    %v8294 = vadd.f32 %v8070, %v8284
    %v8295 = vadd.f32 %v8071, %v8286
    %v8296 = vadd.f32 %v8072, %v8288
    %s8297 = sld [smem:[#allocation11 + $0x97]]
    %v8298 = vstv %s8297
    %v8299 = vmul.f32 %v8298, %v7685
    %v8300 = vmul.f32 %v8298, %v7686
    %v8301 = vmul.f32 %v8298, %v7687
    %v8302 = vmul.f32 %v8298, %v7688
    %v8307 = vrot.slane %v8299, 1
    %v8308 = vrot.slane %v8300, 1
    %v8309 = vsel %vm255, %v8307, %v8308
    %v8310 = vrot.slane %v8301, 1
    %v8311 = vrot.slane %v8302, 1
    %v8312 = vsel %vm255, %v8310, %v8311
    %8313 = vrot.lane.b32.xlu0 %v8309, 127
    %v8314 = vpop.permute.xlu0 %8313
    %8315 = vrot.lane.b32.xlu0 %v8308, 127
    %v8316 = vpop.permute.xlu0 %8315
    %8317 = vrot.lane.b32.xlu0 %v8312, 127
    %v8318 = vpop.permute.xlu0 %8317
    %8319 = vrot.lane.b32.xlu0 %v8311, 127
    %v8320 = vpop.permute.xlu0 %8319
    %v8325 = vadd.f32 %v8093, %v8314
    %v8326 = vadd.f32 %v8094, %v8316
    %v8327 = vadd.f32 %v8095, %v8318
    %v8328 = vadd.f32 %v8096, %v8320
    %s8329 = sld [smem:[#allocation11 + $0xb7]]
    %v8330 = vstv %s8329
    %v8331 = vmul.f32 %v8330, %v7685
    %v8332 = vmul.f32 %v8330, %v7686
    %v8333 = vmul.f32 %v8330, %v7687
    %v8334 = vmul.f32 %v8330, %v7688
    %v8339 = vrot.slane %v8331, 1
    %v8340 = vrot.slane %v8332, 1
    %v8341 = vsel %vm255, %v8339, %v8340
    %v8342 = vrot.slane %v8333, 1
    %v8343 = vrot.slane %v8334, 1
    %v8344 = vsel %vm255, %v8342, %v8343
    %8345 = vrot.lane.b32.xlu0 %v8341, 127
    %v8346 = vpop.permute.xlu0 %8345
    %8347 = vrot.lane.b32.xlu0 %v8340, 127
    %v8348 = vpop.permute.xlu0 %8347
    %8349 = vrot.lane.b32.xlu0 %v8344, 127
    %v8350 = vpop.permute.xlu0 %8349
    %8351 = vrot.lane.b32.xlu0 %v8343, 127
    %v8352 = vpop.permute.xlu0 %8351
    %v8357 = vadd.f32 %v8117, %v8346
    %v8358 = vadd.f32 %v8118, %v8348
    %v8359 = vadd.f32 %v8119, %v8350
    %v8360 = vadd.f32 %v8120, %v8352
    %s8361 = sld [smem:[#allocation11 + $0xd7]]
    %v8362 = vstv %s8361
    %v8363 = vmul.f32 %v8362, %v7685
    %v8364 = vmul.f32 %v8362, %v7686
    %v8365 = vmul.f32 %v8362, %v7687
    %v8366 = vmul.f32 %v8362, %v7688
    %v8371 = vrot.slane %v8363, 1
    %v8372 = vrot.slane %v8364, 1
    %v8373 = vsel %vm255, %v8371, %v8372
    %v8374 = vrot.slane %v8365, 1
    %v8375 = vrot.slane %v8366, 1
    %v8376 = vsel %vm255, %v8374, %v8375
    %8377 = vrot.lane.b32.xlu0 %v8373, 127
    %v8378 = vpop.permute.xlu0 %8377
    %8379 = vrot.lane.b32.xlu0 %v8372, 127
    %v8380 = vpop.permute.xlu0 %8379
    %8381 = vrot.lane.b32.xlu0 %v8376, 127
    %v8382 = vpop.permute.xlu0 %8381
    %8383 = vrot.lane.b32.xlu0 %v8375, 127
    %v8384 = vpop.permute.xlu0 %8383
    %v8389 = vadd.f32 %v8141, %v8378
    %v8390 = vadd.f32 %v8142, %v8380
    %v8391 = vadd.f32 %v8143, %v8382
    %v8392 = vadd.f32 %v8144, %v8384
    %s8393 = sld [smem:[#allocation11 + $0xf7]]
    %v8394 = vstv %s8393
    %v8395 = vmul.f32 %v8394, %v7685
    %v8396 = vmul.f32 %v8394, %v7686
    %v8397 = vmul.f32 %v8394, %v7687
    %v8398 = vmul.f32 %v8394, %v7688
    %v8403 = vrot.slane %v8395, 1
    %v8404 = vrot.slane %v8396, 1
    %v8405 = vsel %vm255, %v8403, %v8404
    %v8406 = vrot.slane %v8397, 1
    %v8407 = vrot.slane %v8398, 1
    %v8408 = vsel %vm255, %v8406, %v8407
    %8409 = vrot.lane.b32.xlu0 %v8405, 127
    %v8410 = vpop.permute.xlu0 %8409
    %8411 = vrot.lane.b32.xlu0 %v8404, 127
    %v8412 = vpop.permute.xlu0 %8411
    %8413 = vrot.lane.b32.xlu0 %v8408, 127
    %v8414 = vpop.permute.xlu0 %8413
    %8415 = vrot.lane.b32.xlu0 %v8407, 127
    %v8416 = vpop.permute.xlu0 %8415
    %v8421 = vadd.f32 %v8165, %v8410
    %v8422 = vadd.f32 %v8166, %v8412
    %v8423 = vadd.f32 %v8167, %v8414
    %v8424 = vadd.f32 %v8168, %v8416
    %v8425 = vld [vmem:[%s3965] sm:$0xff]
    %v8426 = vld [vmem:[%s3965 + $0x8] sm:$0x3f]
    %v8427 = vld [vmem:[%s3965 + $0x80] sm:$0xff]
    %v8428 = vld [vmem:[%s3965 + $0x88] sm:$0x3f]
    %s8429 = sld [smem:[#allocation11 + $0x18]]
    %v8430 = vstv %s8429
    %v8431 = vmul.f32 %v8430, %v8425
    %v8432 = vmul.f32 %v8430, %v8426
    %v8433 = vmul.f32 %v8430, %v8427
    %v8434 = vmul.f32 %v8430, %v8428
    %v8435 = vadd.f32 %v8197, %v8431
    %v8436 = vadd.f32 %v8198, %v8432
    %v8437 = vadd.f32 %v8199, %v8433
    %v8438 = vadd.f32 %v8200, %v8434
    %s8439 = sld [smem:[#allocation11 + $0x38]]
    %v8440 = vstv %s8439
    %v8441 = vmul.f32 %v8440, %v8425
    %v8442 = vmul.f32 %v8440, %v8426
    %v8443 = vmul.f32 %v8440, %v8427
    %v8444 = vmul.f32 %v8440, %v8428
    %v8445 = vadd.f32 %v8229, %v8441
    %v8446 = vadd.f32 %v8230, %v8442
    %v8447 = vadd.f32 %v8231, %v8443
    %v8448 = vadd.f32 %v8232, %v8444
    %s8449 = sld [smem:[#allocation11 + $0x58]]
    %v8450 = vstv %s8449
    %v8451 = vmul.f32 %v8450, %v8425
    %v8452 = vmul.f32 %v8450, %v8426
    %v8453 = vmul.f32 %v8450, %v8427
    %v8454 = vmul.f32 %v8450, %v8428
    %v8455 = vadd.f32 %v8261, %v8451
    %v8456 = vadd.f32 %v8262, %v8452
    %v8457 = vadd.f32 %v8263, %v8453
    %v8458 = vadd.f32 %v8264, %v8454
    %s8459 = sld [smem:[#allocation11 + $0x78]]
    %v8460 = vstv %s8459
    %v8461 = vmul.f32 %v8460, %v8425
    %v8462 = vmul.f32 %v8460, %v8426
    %v8463 = vmul.f32 %v8460, %v8427
    %v8464 = vmul.f32 %v8460, %v8428
    %v8465 = vadd.f32 %v8293, %v8461
    %v8466 = vadd.f32 %v8294, %v8462
    %v8467 = vadd.f32 %v8295, %v8463
    %v8468 = vadd.f32 %v8296, %v8464
    %s8469 = sld [smem:[#allocation11 + $0x98]]
    %v8470 = vstv %s8469
    %v8471 = vmul.f32 %v8470, %v8425
    %v8472 = vmul.f32 %v8470, %v8426
    %v8473 = vmul.f32 %v8470, %v8427
    %v8474 = vmul.f32 %v8470, %v8428
    %v8475 = vadd.f32 %v8325, %v8471
    %v8476 = vadd.f32 %v8326, %v8472
    %v8477 = vadd.f32 %v8327, %v8473
    %v8478 = vadd.f32 %v8328, %v8474
    %s8479 = sld [smem:[#allocation11 + $0xb8]]
    %v8480 = vstv %s8479
    %v8481 = vmul.f32 %v8480, %v8425
    %v8482 = vmul.f32 %v8480, %v8426
    %v8483 = vmul.f32 %v8480, %v8427
    %v8484 = vmul.f32 %v8480, %v8428
    %v8485 = vadd.f32 %v8357, %v8481
    %v8486 = vadd.f32 %v8358, %v8482
    %v8487 = vadd.f32 %v8359, %v8483
    %v8488 = vadd.f32 %v8360, %v8484
    %s8489 = sld [smem:[#allocation11 + $0xd8]]
    %v8490 = vstv %s8489
    %v8491 = vmul.f32 %v8490, %v8425
    %v8492 = vmul.f32 %v8490, %v8426
    %v8493 = vmul.f32 %v8490, %v8427
    %v8494 = vmul.f32 %v8490, %v8428
    %v8495 = vadd.f32 %v8389, %v8491
    %v8496 = vadd.f32 %v8390, %v8492
    %v8497 = vadd.f32 %v8391, %v8493
    %v8498 = vadd.f32 %v8392, %v8494
    %s8499 = sld [smem:[#allocation11 + $0xf8]]
    %v8500 = vstv %s8499
    %v8501 = vmul.f32 %v8500, %v8425
    %v8502 = vmul.f32 %v8500, %v8426
    %v8503 = vmul.f32 %v8500, %v8427
    %v8504 = vmul.f32 %v8500, %v8428
    %v8505 = vadd.f32 %v8421, %v8501
    %v8506 = vadd.f32 %v8422, %v8502
    %v8507 = vadd.f32 %v8423, %v8503
    %v8508 = vadd.f32 %v8424, %v8504
    %s8509 = sld [smem:[#allocation11 + $0x19]]
    %v8510 = vstv %s8509
    %v8511 = vmul.f32 %v8510, %v8425
    %v8512 = vmul.f32 %v8510, %v8426
    %v8513 = vmul.f32 %v8510, %v8427
    %v8514 = vmul.f32 %v8510, %v8428
    %8519 = vrot.lane.b32.xlu0 %v8511, 127
    %v8520 = vpop.permute.xlu0 %8519
    %8521 = vrot.lane.b32.xlu0 %v8512, 127
    %v8522 = vpop.permute.xlu0 %8521
    %8523 = vrot.lane.b32.xlu0 %v8513, 127
    %v8524 = vpop.permute.xlu0 %8523
    %8525 = vrot.lane.b32.xlu0 %v8514, 127
    %v8526 = vpop.permute.xlu0 %8525
    %v8531 = vadd.f32 %v8435, %v8520
    %v8532 = vadd.f32 %v8436, %v8522
    %v8533 = vadd.f32 %v8437, %v8524
    %v8534 = vadd.f32 %v8438, %v8526
    %s8535 = sld [smem:[#allocation11 + $0x39]]
    %v8536 = vstv %s8535
    %v8537 = vmul.f32 %v8536, %v8425
    %v8538 = vmul.f32 %v8536, %v8426
    %v8539 = vmul.f32 %v8536, %v8427
    %v8540 = vmul.f32 %v8536, %v8428
    %8545 = vrot.lane.b32.xlu0 %v8537, 127
    %v8546 = vpop.permute.xlu0 %8545
    %8547 = vrot.lane.b32.xlu0 %v8538, 127
    %v8548 = vpop.permute.xlu0 %8547
    %8549 = vrot.lane.b32.xlu0 %v8539, 127
    %v8550 = vpop.permute.xlu0 %8549
    %8551 = vrot.lane.b32.xlu0 %v8540, 127
    %v8552 = vpop.permute.xlu0 %8551
    %v8557 = vadd.f32 %v8445, %v8546
    %v8558 = vadd.f32 %v8446, %v8548
    %v8559 = vadd.f32 %v8447, %v8550
    %v8560 = vadd.f32 %v8448, %v8552
    %s8561 = sld [smem:[#allocation11 + $0x59]]
    %v8562 = vstv %s8561
    %v8563 = vmul.f32 %v8562, %v8425
    %v8564 = vmul.f32 %v8562, %v8426
    %v8565 = vmul.f32 %v8562, %v8427
    %v8566 = vmul.f32 %v8562, %v8428
    %8571 = vrot.lane.b32.xlu0 %v8563, 127
    %v8572 = vpop.permute.xlu0 %8571
    %8573 = vrot.lane.b32.xlu0 %v8564, 127
    %v8574 = vpop.permute.xlu0 %8573
    %8575 = vrot.lane.b32.xlu0 %v8565, 127
    %v8576 = vpop.permute.xlu0 %8575
    %8577 = vrot.lane.b32.xlu0 %v8566, 127
    %v8578 = vpop.permute.xlu0 %8577
    %v8583 = vadd.f32 %v8455, %v8572
    %v8584 = vadd.f32 %v8456, %v8574
    %v8585 = vadd.f32 %v8457, %v8576
    %v8586 = vadd.f32 %v8458, %v8578
    %s8587 = sld [smem:[#allocation11 + $0x79]]
    %v8588 = vstv %s8587
    %v8589 = vmul.f32 %v8588, %v8425
    %v8590 = vmul.f32 %v8588, %v8426
    %v8591 = vmul.f32 %v8588, %v8427
    %v8592 = vmul.f32 %v8588, %v8428
    %8597 = vrot.lane.b32.xlu0 %v8589, 127
    %v8598 = vpop.permute.xlu0 %8597
    %8599 = vrot.lane.b32.xlu0 %v8590, 127
    %v8600 = vpop.permute.xlu0 %8599
    %8601 = vrot.lane.b32.xlu0 %v8591, 127
    %v8602 = vpop.permute.xlu0 %8601
    %8603 = vrot.lane.b32.xlu0 %v8592, 127
    %v8604 = vpop.permute.xlu0 %8603
    %v8609 = vadd.f32 %v8465, %v8598
    %v8610 = vadd.f32 %v8466, %v8600
    %v8611 = vadd.f32 %v8467, %v8602
    %v8612 = vadd.f32 %v8468, %v8604
    %s8613 = sld [smem:[#allocation11 + $0x99]]
    %v8614 = vstv %s8613
    %v8615 = vmul.f32 %v8614, %v8425
    %v8616 = vmul.f32 %v8614, %v8426
    %v8617 = vmul.f32 %v8614, %v8427
    %v8618 = vmul.f32 %v8614, %v8428
    %8623 = vrot.lane.b32.xlu0 %v8615, 127
    %v8624 = vpop.permute.xlu0 %8623
    %8625 = vrot.lane.b32.xlu0 %v8616, 127
    %v8626 = vpop.permute.xlu0 %8625
    %8627 = vrot.lane.b32.xlu0 %v8617, 127
    %v8628 = vpop.permute.xlu0 %8627
    %8629 = vrot.lane.b32.xlu0 %v8618, 127
    %v8630 = vpop.permute.xlu0 %8629
    %v8635 = vadd.f32 %v8475, %v8624
    %v8636 = vadd.f32 %v8476, %v8626
    %v8637 = vadd.f32 %v8477, %v8628
    %v8638 = vadd.f32 %v8478, %v8630
    %s8639 = sld [smem:[#allocation11 + $0xb9]]
    %v8640 = vstv %s8639
    %v8641 = vmul.f32 %v8640, %v8425
    %v8642 = vmul.f32 %v8640, %v8426
    %v8643 = vmul.f32 %v8640, %v8427
    %v8644 = vmul.f32 %v8640, %v8428
    %8649 = vrot.lane.b32.xlu0 %v8641, 127
    %v8650 = vpop.permute.xlu0 %8649
    %8651 = vrot.lane.b32.xlu0 %v8642, 127
    %v8652 = vpop.permute.xlu0 %8651
    %8653 = vrot.lane.b32.xlu0 %v8643, 127
    %v8654 = vpop.permute.xlu0 %8653
    %8655 = vrot.lane.b32.xlu0 %v8644, 127
    %v8656 = vpop.permute.xlu0 %8655
    %v8661 = vadd.f32 %v8485, %v8650
    %v8662 = vadd.f32 %v8486, %v8652
    %v8663 = vadd.f32 %v8487, %v8654
    %v8664 = vadd.f32 %v8488, %v8656
    %s8665 = sld [smem:[#allocation11 + $0xd9]]
    %v8666 = vstv %s8665
    %v8667 = vmul.f32 %v8666, %v8425
    %v8668 = vmul.f32 %v8666, %v8426
    %v8669 = vmul.f32 %v8666, %v8427
    %v8670 = vmul.f32 %v8666, %v8428
    %8675 = vrot.lane.b32.xlu0 %v8667, 127
    %v8676 = vpop.permute.xlu0 %8675
    %8677 = vrot.lane.b32.xlu0 %v8668, 127
    %v8678 = vpop.permute.xlu0 %8677
    %8679 = vrot.lane.b32.xlu0 %v8669, 127
    %v8680 = vpop.permute.xlu0 %8679
    %8681 = vrot.lane.b32.xlu0 %v8670, 127
    %v8682 = vpop.permute.xlu0 %8681
    %v8687 = vadd.f32 %v8495, %v8676
    %v8688 = vadd.f32 %v8496, %v8678
    %v8689 = vadd.f32 %v8497, %v8680
    %v8690 = vadd.f32 %v8498, %v8682
    %s8691 = sld [smem:[#allocation11 + $0xf9]]
    %v8692 = vstv %s8691
    %v8693 = vmul.f32 %v8692, %v8425
    %v8694 = vmul.f32 %v8692, %v8426
    %v8695 = vmul.f32 %v8692, %v8427
    %v8696 = vmul.f32 %v8692, %v8428
    %8701 = vrot.lane.b32.xlu0 %v8693, 127
    %v8702 = vpop.permute.xlu0 %8701
    %8703 = vrot.lane.b32.xlu0 %v8694, 127
    %v8704 = vpop.permute.xlu0 %8703
    %8705 = vrot.lane.b32.xlu0 %v8695, 127
    %v8706 = vpop.permute.xlu0 %8705
    %8707 = vrot.lane.b32.xlu0 %v8696, 127
    %v8708 = vpop.permute.xlu0 %8707
    %v8713 = vadd.f32 %v8505, %v8702
    %v8714 = vadd.f32 %v8506, %v8704
    %v8715 = vadd.f32 %v8507, %v8706
    %v8716 = vadd.f32 %v8508, %v8708
    %s8717 = sld [smem:[#allocation11 + $0x1a]]
    %v8718 = vstv %s8717
    %v8719 = vmul.f32 %v8718, %v8425
    %v8720 = vmul.f32 %v8718, %v8426
    %v8721 = vmul.f32 %v8718, %v8427
    %v8722 = vmul.f32 %v8718, %v8428
    %v8727 = vrot.slane %v8719, 1
    %v8728 = vrot.slane %v8720, 1
    %v8729 = vsel %vm255, %v8727, %v8728
    %v8730 = vrot.slane %v8721, 1
    %v8731 = vrot.slane %v8722, 1
    %v8732 = vsel %vm255, %v8730, %v8731
    %v8737 = vadd.f32 %v8531, %v8729
    %v8738 = vadd.f32 %v8532, %v8728
    %v8739 = vadd.f32 %v8533, %v8732
    %v8740 = vadd.f32 %v8534, %v8731
    %s8741 = sld [smem:[#allocation11 + $0x3a]]
    %v8742 = vstv %s8741
    %v8743 = vmul.f32 %v8742, %v8425
    %v8744 = vmul.f32 %v8742, %v8426
    %v8745 = vmul.f32 %v8742, %v8427
    %v8746 = vmul.f32 %v8742, %v8428
    %v8751 = vrot.slane %v8743, 1
    %v8752 = vrot.slane %v8744, 1
    %v8753 = vsel %vm255, %v8751, %v8752
    %v8754 = vrot.slane %v8745, 1
    %v8755 = vrot.slane %v8746, 1
    %v8756 = vsel %vm255, %v8754, %v8755
    %v8761 = vadd.f32 %v8557, %v8753
    %v8762 = vadd.f32 %v8558, %v8752
    %v8763 = vadd.f32 %v8559, %v8756
    %v8764 = vadd.f32 %v8560, %v8755
    %s8765 = sld [smem:[#allocation11 + $0x5a]]
    %v8766 = vstv %s8765
    %v8767 = vmul.f32 %v8766, %v8425
    %v8768 = vmul.f32 %v8766, %v8426
    %v8769 = vmul.f32 %v8766, %v8427
    %v8770 = vmul.f32 %v8766, %v8428
    %v8775 = vrot.slane %v8767, 1
    %v8776 = vrot.slane %v8768, 1
    %v8777 = vsel %vm255, %v8775, %v8776
    %v8778 = vrot.slane %v8769, 1
    %v8779 = vrot.slane %v8770, 1
    %v8780 = vsel %vm255, %v8778, %v8779
    %v8785 = vadd.f32 %v8583, %v8777
    %v8786 = vadd.f32 %v8584, %v8776
    %v8787 = vadd.f32 %v8585, %v8780
    %v8788 = vadd.f32 %v8586, %v8779
    %s8789 = sld [smem:[#allocation11 + $0x7a]]
    %v8790 = vstv %s8789
    %v8791 = vmul.f32 %v8790, %v8425
    %v8792 = vmul.f32 %v8790, %v8426
    %v8793 = vmul.f32 %v8790, %v8427
    %v8794 = vmul.f32 %v8790, %v8428
    %v8799 = vrot.slane %v8791, 1
    %v8800 = vrot.slane %v8792, 1
    %v8801 = vsel %vm255, %v8799, %v8800
    %v8802 = vrot.slane %v8793, 1
    %v8803 = vrot.slane %v8794, 1
    %v8804 = vsel %vm255, %v8802, %v8803
    %v8809 = vadd.f32 %v8609, %v8801
    %v8810 = vadd.f32 %v8610, %v8800
    %v8811 = vadd.f32 %v8611, %v8804
    %v8812 = vadd.f32 %v8612, %v8803
    %s8813 = sld [smem:[#allocation11 + $0x9a]]
    %v8814 = vstv %s8813
    %v8815 = vmul.f32 %v8814, %v8425
    %v8816 = vmul.f32 %v8814, %v8426
    %v8817 = vmul.f32 %v8814, %v8427
    %v8818 = vmul.f32 %v8814, %v8428
    %v8823 = vrot.slane %v8815, 1
    %v8824 = vrot.slane %v8816, 1
    %v8825 = vsel %vm255, %v8823, %v8824
    %v8826 = vrot.slane %v8817, 1
    %v8827 = vrot.slane %v8818, 1
    %v8828 = vsel %vm255, %v8826, %v8827
    %v8833 = vadd.f32 %v8635, %v8825
    %v8834 = vadd.f32 %v8636, %v8824
    %v8835 = vadd.f32 %v8637, %v8828
    %v8836 = vadd.f32 %v8638, %v8827
    %s8837 = sld [smem:[#allocation11 + $0xba]]
    %v8838 = vstv %s8837
    %v8839 = vmul.f32 %v8838, %v8425
    %v8840 = vmul.f32 %v8838, %v8426
    %v8841 = vmul.f32 %v8838, %v8427
    %v8842 = vmul.f32 %v8838, %v8428
    %v8847 = vrot.slane %v8839, 1
    %v8848 = vrot.slane %v8840, 1
    %v8849 = vsel %vm255, %v8847, %v8848
    %v8850 = vrot.slane %v8841, 1
    %v8851 = vrot.slane %v8842, 1
    %v8852 = vsel %vm255, %v8850, %v8851
    %v8857 = vadd.f32 %v8661, %v8849
    %v8858 = vadd.f32 %v8662, %v8848
    %v8859 = vadd.f32 %v8663, %v8852
    %v8860 = vadd.f32 %v8664, %v8851
    %s8861 = sld [smem:[#allocation11 + $0xda]]
    %v8862 = vstv %s8861
    %v8863 = vmul.f32 %v8862, %v8425
    %v8864 = vmul.f32 %v8862, %v8426
    %v8865 = vmul.f32 %v8862, %v8427
    %v8866 = vmul.f32 %v8862, %v8428
    %v8871 = vrot.slane %v8863, 1
    %v8872 = vrot.slane %v8864, 1
    %v8873 = vsel %vm255, %v8871, %v8872
    %v8874 = vrot.slane %v8865, 1
    %v8875 = vrot.slane %v8866, 1
    %v8876 = vsel %vm255, %v8874, %v8875
    %v8881 = vadd.f32 %v8687, %v8873
    %v8882 = vadd.f32 %v8688, %v8872
    %v8883 = vadd.f32 %v8689, %v8876
    %v8884 = vadd.f32 %v8690, %v8875
    %s8885 = sld [smem:[#allocation11 + $0xfa]]
    %v8886 = vstv %s8885
    %v8887 = vmul.f32 %v8886, %v8425
    %v8888 = vmul.f32 %v8886, %v8426
    %v8889 = vmul.f32 %v8886, %v8427
    %v8890 = vmul.f32 %v8886, %v8428
    %v8895 = vrot.slane %v8887, 1
    %v8896 = vrot.slane %v8888, 1
    %v8897 = vsel %vm255, %v8895, %v8896
    %v8898 = vrot.slane %v8889, 1
    %v8899 = vrot.slane %v8890, 1
    %v8900 = vsel %vm255, %v8898, %v8899
    %v8905 = vadd.f32 %v8713, %v8897
    %v8906 = vadd.f32 %v8714, %v8896
    %v8907 = vadd.f32 %v8715, %v8900
    %v8908 = vadd.f32 %v8716, %v8899
    %s8909 = sld [smem:[#allocation11 + $0x1b]]
    %v8910 = vstv %s8909
    %v8911 = vmul.f32 %v8910, %v8425
    %v8912 = vmul.f32 %v8910, %v8426
    %v8913 = vmul.f32 %v8910, %v8427
    %v8914 = vmul.f32 %v8910, %v8428
    %v8919 = vrot.slane %v8911, 1
    %v8920 = vrot.slane %v8912, 1
    %v8921 = vsel %vm255, %v8919, %v8920
    %v8922 = vrot.slane %v8913, 1
    %v8923 = vrot.slane %v8914, 1
    %v8924 = vsel %vm255, %v8922, %v8923
    %8925 = vrot.lane.b32.xlu0 %v8921, 127
    %v8926 = vpop.permute.xlu0 %8925
    %8927 = vrot.lane.b32.xlu0 %v8920, 127
    %v8928 = vpop.permute.xlu0 %8927
    %8929 = vrot.lane.b32.xlu0 %v8924, 127
    %v8930 = vpop.permute.xlu0 %8929
    %8931 = vrot.lane.b32.xlu0 %v8923, 127
    %v8932 = vpop.permute.xlu0 %8931
    %v8937 = vadd.f32 %v8737, %v8926
    %v8938 = vadd.f32 %v8738, %v8928
    %v8939 = vadd.f32 %v8739, %v8930
    %v8940 = vadd.f32 %v8740, %v8932
    %s8941 = sld [smem:[#allocation11 + $0x3b]]
    %v8942 = vstv %s8941
    %v8943 = vmul.f32 %v8942, %v8425
    %v8944 = vmul.f32 %v8942, %v8426
    %v8945 = vmul.f32 %v8942, %v8427
    %v8946 = vmul.f32 %v8942, %v8428
    %v8951 = vrot.slane %v8943, 1
    %v8952 = vrot.slane %v8944, 1
    %v8953 = vsel %vm255, %v8951, %v8952
    %v8954 = vrot.slane %v8945, 1
    %v8955 = vrot.slane %v8946, 1
    %v8956 = vsel %vm255, %v8954, %v8955
    %8957 = vrot.lane.b32.xlu0 %v8953, 127
    %v8958 = vpop.permute.xlu0 %8957
    %8959 = vrot.lane.b32.xlu0 %v8952, 127
    %v8960 = vpop.permute.xlu0 %8959
    %8961 = vrot.lane.b32.xlu0 %v8956, 127
    %v8962 = vpop.permute.xlu0 %8961
    %8963 = vrot.lane.b32.xlu0 %v8955, 127
    %v8964 = vpop.permute.xlu0 %8963
    %v8969 = vadd.f32 %v8761, %v8958
    %v8970 = vadd.f32 %v8762, %v8960
    %v8971 = vadd.f32 %v8763, %v8962
    %v8972 = vadd.f32 %v8764, %v8964
    %s8973 = sld [smem:[#allocation11 + $0x5b]]
    %v8974 = vstv %s8973
    %v8975 = vmul.f32 %v8974, %v8425
    %v8976 = vmul.f32 %v8974, %v8426
    %v8977 = vmul.f32 %v8974, %v8427
    %v8978 = vmul.f32 %v8974, %v8428
    %v8983 = vrot.slane %v8975, 1
    %v8984 = vrot.slane %v8976, 1
    %v8985 = vsel %vm255, %v8983, %v8984
    %v8986 = vrot.slane %v8977, 1
    %v8987 = vrot.slane %v8978, 1
    %v8988 = vsel %vm255, %v8986, %v8987
    %8989 = vrot.lane.b32.xlu0 %v8985, 127
    %v8990 = vpop.permute.xlu0 %8989
    %8991 = vrot.lane.b32.xlu0 %v8984, 127
    %v8992 = vpop.permute.xlu0 %8991
    %8993 = vrot.lane.b32.xlu0 %v8988, 127
    %v8994 = vpop.permute.xlu0 %8993
    %8995 = vrot.lane.b32.xlu0 %v8987, 127
    %v8996 = vpop.permute.xlu0 %8995
    %v9001 = vadd.f32 %v8785, %v8990
    %v9002 = vadd.f32 %v8786, %v8992
    %v9003 = vadd.f32 %v8787, %v8994
    %v9004 = vadd.f32 %v8788, %v8996
    %s9005 = sld [smem:[#allocation11 + $0x7b]]
    %v9006 = vstv %s9005
    %v9007 = vmul.f32 %v9006, %v8425
    %v9008 = vmul.f32 %v9006, %v8426
    %v9009 = vmul.f32 %v9006, %v8427
    %v9010 = vmul.f32 %v9006, %v8428
    %v9015 = vrot.slane %v9007, 1
    %v9016 = vrot.slane %v9008, 1
    %v9017 = vsel %vm255, %v9015, %v9016
    %v9018 = vrot.slane %v9009, 1
    %v9019 = vrot.slane %v9010, 1
    %v9020 = vsel %vm255, %v9018, %v9019
    %9021 = vrot.lane.b32.xlu0 %v9017, 127
    %v9022 = vpop.permute.xlu0 %9021
    %9023 = vrot.lane.b32.xlu0 %v9016, 127
    %v9024 = vpop.permute.xlu0 %9023
    %9025 = vrot.lane.b32.xlu0 %v9020, 127
    %v9026 = vpop.permute.xlu0 %9025
    %9027 = vrot.lane.b32.xlu0 %v9019, 127
    %v9028 = vpop.permute.xlu0 %9027
    %v9033 = vadd.f32 %v8809, %v9022
    %v9034 = vadd.f32 %v8810, %v9024
    %v9035 = vadd.f32 %v8811, %v9026
    %v9036 = vadd.f32 %v8812, %v9028
    %s9037 = sld [smem:[#allocation11 + $0x9b]]
    %v9038 = vstv %s9037
    %v9039 = vmul.f32 %v9038, %v8425
    %v9040 = vmul.f32 %v9038, %v8426
    %v9041 = vmul.f32 %v9038, %v8427
    %v9042 = vmul.f32 %v9038, %v8428
    %v9047 = vrot.slane %v9039, 1
    %v9048 = vrot.slane %v9040, 1
    %v9049 = vsel %vm255, %v9047, %v9048
    %v9050 = vrot.slane %v9041, 1
    %v9051 = vrot.slane %v9042, 1
    %v9052 = vsel %vm255, %v9050, %v9051
    %9053 = vrot.lane.b32.xlu0 %v9049, 127
    %v9054 = vpop.permute.xlu0 %9053
    %9055 = vrot.lane.b32.xlu0 %v9048, 127
    %v9056 = vpop.permute.xlu0 %9055
    %9057 = vrot.lane.b32.xlu0 %v9052, 127
    %v9058 = vpop.permute.xlu0 %9057
    %9059 = vrot.lane.b32.xlu0 %v9051, 127
    %v9060 = vpop.permute.xlu0 %9059
    %v9065 = vadd.f32 %v8833, %v9054
    %v9066 = vadd.f32 %v8834, %v9056
    %v9067 = vadd.f32 %v8835, %v9058
    %v9068 = vadd.f32 %v8836, %v9060
    %s9069 = sld [smem:[#allocation11 + $0xbb]]
    %v9070 = vstv %s9069
    %v9071 = vmul.f32 %v9070, %v8425
    %v9072 = vmul.f32 %v9070, %v8426
    %v9073 = vmul.f32 %v9070, %v8427
    %v9074 = vmul.f32 %v9070, %v8428
    %v9079 = vrot.slane %v9071, 1
    %v9080 = vrot.slane %v9072, 1
    %v9081 = vsel %vm255, %v9079, %v9080
    %v9082 = vrot.slane %v9073, 1
    %v9083 = vrot.slane %v9074, 1
    %v9084 = vsel %vm255, %v9082, %v9083
    %9085 = vrot.lane.b32.xlu0 %v9081, 127
    %v9086 = vpop.permute.xlu0 %9085
    %9087 = vrot.lane.b32.xlu0 %v9080, 127
    %v9088 = vpop.permute.xlu0 %9087
    %9089 = vrot.lane.b32.xlu0 %v9084, 127
    %v9090 = vpop.permute.xlu0 %9089
    %9091 = vrot.lane.b32.xlu0 %v9083, 127
    %v9092 = vpop.permute.xlu0 %9091
    %v9097 = vadd.f32 %v8857, %v9086
    %v9098 = vadd.f32 %v8858, %v9088
    %v9099 = vadd.f32 %v8859, %v9090
    %v9100 = vadd.f32 %v8860, %v9092
    %s9101 = sld [smem:[#allocation11 + $0xdb]]
    %v9102 = vstv %s9101
    %v9103 = vmul.f32 %v9102, %v8425
    %v9104 = vmul.f32 %v9102, %v8426
    %v9105 = vmul.f32 %v9102, %v8427
    %v9106 = vmul.f32 %v9102, %v8428
    %v9111 = vrot.slane %v9103, 1
    %v9112 = vrot.slane %v9104, 1
    %v9113 = vsel %vm255, %v9111, %v9112
    %v9114 = vrot.slane %v9105, 1
    %v9115 = vrot.slane %v9106, 1
    %v9116 = vsel %vm255, %v9114, %v9115
    %9117 = vrot.lane.b32.xlu0 %v9113, 127
    %v9118 = vpop.permute.xlu0 %9117
    %9119 = vrot.lane.b32.xlu0 %v9112, 127
    %v9120 = vpop.permute.xlu0 %9119
    %9121 = vrot.lane.b32.xlu0 %v9116, 127
    %v9122 = vpop.permute.xlu0 %9121
    %9123 = vrot.lane.b32.xlu0 %v9115, 127
    %v9124 = vpop.permute.xlu0 %9123
    %v9129 = vadd.f32 %v8881, %v9118
    %v9130 = vadd.f32 %v8882, %v9120
    %v9131 = vadd.f32 %v8883, %v9122
    %v9132 = vadd.f32 %v8884, %v9124
    %s9133 = sld [smem:[#allocation11 + $0xfb]]
    %v9134 = vstv %s9133
    %v9135 = vmul.f32 %v9134, %v8425
    %v9136 = vmul.f32 %v9134, %v8426
    %v9137 = vmul.f32 %v9134, %v8427
    %v9138 = vmul.f32 %v9134, %v8428
    %v9143 = vrot.slane %v9135, 1
    %v9144 = vrot.slane %v9136, 1
    %v9145 = vsel %vm255, %v9143, %v9144
    %v9146 = vrot.slane %v9137, 1
    %v9147 = vrot.slane %v9138, 1
    %v9148 = vsel %vm255, %v9146, %v9147
    %9149 = vrot.lane.b32.xlu0 %v9145, 127
    %v9150 = vpop.permute.xlu0 %9149
    %9151 = vrot.lane.b32.xlu0 %v9144, 127
    %v9152 = vpop.permute.xlu0 %9151
    %9153 = vrot.lane.b32.xlu0 %v9148, 127
    %v9154 = vpop.permute.xlu0 %9153
    %9155 = vrot.lane.b32.xlu0 %v9147, 127
    %v9156 = vpop.permute.xlu0 %9155
    %v9161 = vadd.f32 %v8905, %v9150
    %v9162 = vadd.f32 %v8906, %v9152
    %v9163 = vadd.f32 %v8907, %v9154
    %v9164 = vadd.f32 %v8908, %v9156
    %v9165 = vld [vmem:[%s3980] sm:$0xff]
    %v9166 = vld [vmem:[%s3980 + $0x8] sm:$0x3f]
    %v9167 = vld [vmem:[%s3980 + $0x80] sm:$0xff]
    %v9168 = vld [vmem:[%s3980 + $0x88] sm:$0x3f]
    %s9169 = sld [smem:[#allocation11 + $0x1c]]
    %v9170 = vstv %s9169
    %v9171 = vmul.f32 %v9170, %v9165
    %v9172 = vmul.f32 %v9170, %v9166
    %v9173 = vmul.f32 %v9170, %v9167
    %v9174 = vmul.f32 %v9170, %v9168
    %v9175 = vadd.f32 %v8937, %v9171
    %v9176 = vadd.f32 %v8938, %v9172
    %v9177 = vadd.f32 %v8939, %v9173
    %v9178 = vadd.f32 %v8940, %v9174
    %s9179 = sld [smem:[#allocation11 + $0x3c]]
    %v9180 = vstv %s9179
    %v9181 = vmul.f32 %v9180, %v9165
    %v9182 = vmul.f32 %v9180, %v9166
    %v9183 = vmul.f32 %v9180, %v9167
    %v9184 = vmul.f32 %v9180, %v9168
    %v9185 = vadd.f32 %v8969, %v9181
    %v9186 = vadd.f32 %v8970, %v9182
    %v9187 = vadd.f32 %v8971, %v9183
    %v9188 = vadd.f32 %v8972, %v9184
    %s9189 = sld [smem:[#allocation11 + $0x5c]]
    %v9190 = vstv %s9189
    %v9191 = vmul.f32 %v9190, %v9165
    %v9192 = vmul.f32 %v9190, %v9166
    %v9193 = vmul.f32 %v9190, %v9167
    %v9194 = vmul.f32 %v9190, %v9168
    %v9195 = vadd.f32 %v9001, %v9191
    %v9196 = vadd.f32 %v9002, %v9192
    %v9197 = vadd.f32 %v9003, %v9193
    %v9198 = vadd.f32 %v9004, %v9194
    %s9199 = sld [smem:[#allocation11 + $0x7c]]
    %v9200 = vstv %s9199
    %v9201 = vmul.f32 %v9200, %v9165
    %v9202 = vmul.f32 %v9200, %v9166
    %v9203 = vmul.f32 %v9200, %v9167
    %v9204 = vmul.f32 %v9200, %v9168
    %v9205 = vadd.f32 %v9033, %v9201
    %v9206 = vadd.f32 %v9034, %v9202
    %v9207 = vadd.f32 %v9035, %v9203
    %v9208 = vadd.f32 %v9036, %v9204
    %s9209 = sld [smem:[#allocation11 + $0x9c]]
    %v9210 = vstv %s9209
    %v9211 = vmul.f32 %v9210, %v9165
    %v9212 = vmul.f32 %v9210, %v9166
    %v9213 = vmul.f32 %v9210, %v9167
    %v9214 = vmul.f32 %v9210, %v9168
    %v9215 = vadd.f32 %v9065, %v9211
    %v9216 = vadd.f32 %v9066, %v9212
    %v9217 = vadd.f32 %v9067, %v9213
    %v9218 = vadd.f32 %v9068, %v9214
    %s9219 = sld [smem:[#allocation11 + $0xbc]]
    %v9220 = vstv %s9219
    %v9221 = vmul.f32 %v9220, %v9165
    %v9222 = vmul.f32 %v9220, %v9166
    %v9223 = vmul.f32 %v9220, %v9167
    %v9224 = vmul.f32 %v9220, %v9168
    %v9225 = vadd.f32 %v9097, %v9221
    %v9226 = vadd.f32 %v9098, %v9222
    %v9227 = vadd.f32 %v9099, %v9223
    %v9228 = vadd.f32 %v9100, %v9224
    %s9229 = sld [smem:[#allocation11 + $0xdc]]
    %v9230 = vstv %s9229
    %v9231 = vmul.f32 %v9230, %v9165
    %v9232 = vmul.f32 %v9230, %v9166
    %v9233 = vmul.f32 %v9230, %v9167
    %v9234 = vmul.f32 %v9230, %v9168
    %v9235 = vadd.f32 %v9129, %v9231
    %v9236 = vadd.f32 %v9130, %v9232
    %v9237 = vadd.f32 %v9131, %v9233
    %v9238 = vadd.f32 %v9132, %v9234
    %s9239 = sld [smem:[#allocation11 + $0xfc]]
    %v9240 = vstv %s9239
    %v9241 = vmul.f32 %v9240, %v9165
    %v9242 = vmul.f32 %v9240, %v9166
    %v9243 = vmul.f32 %v9240, %v9167
    %v9244 = vmul.f32 %v9240, %v9168
    %v9245 = vadd.f32 %v9161, %v9241
    %v9246 = vadd.f32 %v9162, %v9242
    %v9247 = vadd.f32 %v9163, %v9243
    %v9248 = vadd.f32 %v9164, %v9244
    %s9249 = sld [smem:[#allocation11 + $0x1d]]
    %v9250 = vstv %s9249
    %v9251 = vmul.f32 %v9250, %v9165
    %v9252 = vmul.f32 %v9250, %v9166
    %v9253 = vmul.f32 %v9250, %v9167
    %v9254 = vmul.f32 %v9250, %v9168
    %9259 = vrot.lane.b32.xlu0 %v9251, 127
    %v9260 = vpop.permute.xlu0 %9259
    %9261 = vrot.lane.b32.xlu0 %v9252, 127
    %v9262 = vpop.permute.xlu0 %9261
    %9263 = vrot.lane.b32.xlu0 %v9253, 127
    %v9264 = vpop.permute.xlu0 %9263
    %9265 = vrot.lane.b32.xlu0 %v9254, 127
    %v9266 = vpop.permute.xlu0 %9265
    %v9271 = vadd.f32 %v9175, %v9260
    %v9272 = vadd.f32 %v9176, %v9262
    %v9273 = vadd.f32 %v9177, %v9264
    %v9274 = vadd.f32 %v9178, %v9266
    %s9275 = sld [smem:[#allocation11 + $0x3d]]
    %v9276 = vstv %s9275
    %v9277 = vmul.f32 %v9276, %v9165
    %v9278 = vmul.f32 %v9276, %v9166
    %v9279 = vmul.f32 %v9276, %v9167
    %v9280 = vmul.f32 %v9276, %v9168
    %9285 = vrot.lane.b32.xlu0 %v9277, 127
    %v9286 = vpop.permute.xlu0 %9285
    %9287 = vrot.lane.b32.xlu0 %v9278, 127
    %v9288 = vpop.permute.xlu0 %9287
    %9289 = vrot.lane.b32.xlu0 %v9279, 127
    %v9290 = vpop.permute.xlu0 %9289
    %9291 = vrot.lane.b32.xlu0 %v9280, 127
    %v9292 = vpop.permute.xlu0 %9291
    %v9297 = vadd.f32 %v9185, %v9286
    %v9298 = vadd.f32 %v9186, %v9288
    %v9299 = vadd.f32 %v9187, %v9290
    %v9300 = vadd.f32 %v9188, %v9292
    %s9301 = sld [smem:[#allocation11 + $0x5d]]
    %v9302 = vstv %s9301
    %v9303 = vmul.f32 %v9302, %v9165
    %v9304 = vmul.f32 %v9302, %v9166
    %v9305 = vmul.f32 %v9302, %v9167
    %v9306 = vmul.f32 %v9302, %v9168
    %9311 = vrot.lane.b32.xlu0 %v9303, 127
    %v9312 = vpop.permute.xlu0 %9311
    %9313 = vrot.lane.b32.xlu0 %v9304, 127
    %v9314 = vpop.permute.xlu0 %9313
    %9315 = vrot.lane.b32.xlu0 %v9305, 127
    %v9316 = vpop.permute.xlu0 %9315
    %9317 = vrot.lane.b32.xlu0 %v9306, 127
    %v9318 = vpop.permute.xlu0 %9317
    %v9323 = vadd.f32 %v9195, %v9312
    %v9324 = vadd.f32 %v9196, %v9314
    %v9325 = vadd.f32 %v9197, %v9316
    %v9326 = vadd.f32 %v9198, %v9318
    %s9327 = sld [smem:[#allocation11 + $0x7d]]
    %v9328 = vstv %s9327
    %v9329 = vmul.f32 %v9328, %v9165
    %v9330 = vmul.f32 %v9328, %v9166
    %v9331 = vmul.f32 %v9328, %v9167
    %v9332 = vmul.f32 %v9328, %v9168
    %9337 = vrot.lane.b32.xlu0 %v9329, 127
    %v9338 = vpop.permute.xlu0 %9337
    %9339 = vrot.lane.b32.xlu0 %v9330, 127
    %v9340 = vpop.permute.xlu0 %9339
    %9341 = vrot.lane.b32.xlu0 %v9331, 127
    %v9342 = vpop.permute.xlu0 %9341
    %9343 = vrot.lane.b32.xlu0 %v9332, 127
    %v9344 = vpop.permute.xlu0 %9343
    %v9349 = vadd.f32 %v9205, %v9338
    %v9350 = vadd.f32 %v9206, %v9340
    %v9351 = vadd.f32 %v9207, %v9342
    %v9352 = vadd.f32 %v9208, %v9344
    %s9353 = sld [smem:[#allocation11 + $0x9d]]
    %v9354 = vstv %s9353
    %v9355 = vmul.f32 %v9354, %v9165
    %v9356 = vmul.f32 %v9354, %v9166
    %v9357 = vmul.f32 %v9354, %v9167
    %v9358 = vmul.f32 %v9354, %v9168
    %9363 = vrot.lane.b32.xlu0 %v9355, 127
    %v9364 = vpop.permute.xlu0 %9363
    %9365 = vrot.lane.b32.xlu0 %v9356, 127
    %v9366 = vpop.permute.xlu0 %9365
    %9367 = vrot.lane.b32.xlu0 %v9357, 127
    %v9368 = vpop.permute.xlu0 %9367
    %9369 = vrot.lane.b32.xlu0 %v9358, 127
    %v9370 = vpop.permute.xlu0 %9369
    %v9375 = vadd.f32 %v9215, %v9364
    %v9376 = vadd.f32 %v9216, %v9366
    %v9377 = vadd.f32 %v9217, %v9368
    %v9378 = vadd.f32 %v9218, %v9370
    %s9379 = sld [smem:[#allocation11 + $0xbd]]
    %v9380 = vstv %s9379
    %v9381 = vmul.f32 %v9380, %v9165
    %v9382 = vmul.f32 %v9380, %v9166
    %v9383 = vmul.f32 %v9380, %v9167
    %v9384 = vmul.f32 %v9380, %v9168
    %9389 = vrot.lane.b32.xlu0 %v9381, 127
    %v9390 = vpop.permute.xlu0 %9389
    %9391 = vrot.lane.b32.xlu0 %v9382, 127
    %v9392 = vpop.permute.xlu0 %9391
    %9393 = vrot.lane.b32.xlu0 %v9383, 127
    %v9394 = vpop.permute.xlu0 %9393
    %9395 = vrot.lane.b32.xlu0 %v9384, 127
    %v9396 = vpop.permute.xlu0 %9395
    %v9401 = vadd.f32 %v9225, %v9390
    %v9402 = vadd.f32 %v9226, %v9392
    %v9403 = vadd.f32 %v9227, %v9394
    %v9404 = vadd.f32 %v9228, %v9396
    %s9405 = sld [smem:[#allocation11 + $0xdd]]
    %v9406 = vstv %s9405
    %v9407 = vmul.f32 %v9406, %v9165
    %v9408 = vmul.f32 %v9406, %v9166
    %v9409 = vmul.f32 %v9406, %v9167
    %v9410 = vmul.f32 %v9406, %v9168
    %9415 = vrot.lane.b32.xlu0 %v9407, 127
    %v9416 = vpop.permute.xlu0 %9415
    %9417 = vrot.lane.b32.xlu0 %v9408, 127
    %v9418 = vpop.permute.xlu0 %9417
    %9419 = vrot.lane.b32.xlu0 %v9409, 127
    %v9420 = vpop.permute.xlu0 %9419
    %9421 = vrot.lane.b32.xlu0 %v9410, 127
    %v9422 = vpop.permute.xlu0 %9421
    %v9427 = vadd.f32 %v9235, %v9416
    %v9428 = vadd.f32 %v9236, %v9418
    %v9429 = vadd.f32 %v9237, %v9420
    %v9430 = vadd.f32 %v9238, %v9422
    %s9431 = sld [smem:[#allocation11 + $0xfd]]
    %v9432 = vstv %s9431
    %v9433 = vmul.f32 %v9432, %v9165
    %v9434 = vmul.f32 %v9432, %v9166
    %v9435 = vmul.f32 %v9432, %v9167
    %v9436 = vmul.f32 %v9432, %v9168
    %9441 = vrot.lane.b32.xlu0 %v9433, 127
    %v9442 = vpop.permute.xlu0 %9441
    %9443 = vrot.lane.b32.xlu0 %v9434, 127
    %v9444 = vpop.permute.xlu0 %9443
    %9445 = vrot.lane.b32.xlu0 %v9435, 127
    %v9446 = vpop.permute.xlu0 %9445
    %9447 = vrot.lane.b32.xlu0 %v9436, 127
    %v9448 = vpop.permute.xlu0 %9447
    %v9453 = vadd.f32 %v9245, %v9442
    %v9454 = vadd.f32 %v9246, %v9444
    %v9455 = vadd.f32 %v9247, %v9446
    %v9456 = vadd.f32 %v9248, %v9448
    %s9457 = sld [smem:[#allocation11 + $0x1e]]
    %v9458 = vstv %s9457
    %v9459 = vmul.f32 %v9458, %v9165
    %v9460 = vmul.f32 %v9458, %v9166
    %v9461 = vmul.f32 %v9458, %v9167
    %v9462 = vmul.f32 %v9458, %v9168
    %v9467 = vrot.slane %v9459, 1
    %v9468 = vrot.slane %v9460, 1
    %v9469 = vsel %vm255, %v9467, %v9468
    %v9470 = vrot.slane %v9461, 1
    %v9471 = vrot.slane %v9462, 1
    %v9472 = vsel %vm255, %v9470, %v9471
    %v9477 = vadd.f32 %v9271, %v9469
    %v9478 = vadd.f32 %v9272, %v9468
    %v9479 = vadd.f32 %v9273, %v9472
    %v9480 = vadd.f32 %v9274, %v9471
    %s9481 = sld [smem:[#allocation11 + $0x3e]]
    %v9482 = vstv %s9481
    %v9483 = vmul.f32 %v9482, %v9165
    %v9484 = vmul.f32 %v9482, %v9166
    %v9485 = vmul.f32 %v9482, %v9167
    %v9486 = vmul.f32 %v9482, %v9168
    %v9491 = vrot.slane %v9483, 1
    %v9492 = vrot.slane %v9484, 1
    %v9493 = vsel %vm255, %v9491, %v9492
    %v9494 = vrot.slane %v9485, 1
    %v9495 = vrot.slane %v9486, 1
    %v9496 = vsel %vm255, %v9494, %v9495
    %v9501 = vadd.f32 %v9297, %v9493
    %v9502 = vadd.f32 %v9298, %v9492
    %v9503 = vadd.f32 %v9299, %v9496
    %v9504 = vadd.f32 %v9300, %v9495
    %s9505 = sld [smem:[#allocation11 + $0x5e]]
    %v9506 = vstv %s9505
    %v9507 = vmul.f32 %v9506, %v9165
    %v9508 = vmul.f32 %v9506, %v9166
    %v9509 = vmul.f32 %v9506, %v9167
    %v9510 = vmul.f32 %v9506, %v9168
    %v9515 = vrot.slane %v9507, 1
    %v9516 = vrot.slane %v9508, 1
    %v9517 = vsel %vm255, %v9515, %v9516
    %v9518 = vrot.slane %v9509, 1
    %v9519 = vrot.slane %v9510, 1
    %v9520 = vsel %vm255, %v9518, %v9519
    %v9525 = vadd.f32 %v9323, %v9517
    %v9526 = vadd.f32 %v9324, %v9516
    %v9527 = vadd.f32 %v9325, %v9520
    %v9528 = vadd.f32 %v9326, %v9519
    %s9529 = sld [smem:[#allocation11 + $0x7e]]
    %v9530 = vstv %s9529
    %v9531 = vmul.f32 %v9530, %v9165
    %v9532 = vmul.f32 %v9530, %v9166
    %v9533 = vmul.f32 %v9530, %v9167
    %v9534 = vmul.f32 %v9530, %v9168
    %v9539 = vrot.slane %v9531, 1
    %v9540 = vrot.slane %v9532, 1
    %v9541 = vsel %vm255, %v9539, %v9540
    %v9542 = vrot.slane %v9533, 1
    %v9543 = vrot.slane %v9534, 1
    %v9544 = vsel %vm255, %v9542, %v9543
    %v9549 = vadd.f32 %v9349, %v9541
    %v9550 = vadd.f32 %v9350, %v9540
    %v9551 = vadd.f32 %v9351, %v9544
    %v9552 = vadd.f32 %v9352, %v9543
    %s9553 = sld [smem:[#allocation11 + $0x9e]]
    %v9554 = vstv %s9553
    %v9555 = vmul.f32 %v9554, %v9165
    %v9556 = vmul.f32 %v9554, %v9166
    %v9557 = vmul.f32 %v9554, %v9167
    %v9558 = vmul.f32 %v9554, %v9168
    %v9563 = vrot.slane %v9555, 1
    %v9564 = vrot.slane %v9556, 1
    %v9565 = vsel %vm255, %v9563, %v9564
    %v9566 = vrot.slane %v9557, 1
    %v9567 = vrot.slane %v9558, 1
    %v9568 = vsel %vm255, %v9566, %v9567
    %v9573 = vadd.f32 %v9375, %v9565
    %v9574 = vadd.f32 %v9376, %v9564
    %v9575 = vadd.f32 %v9377, %v9568
    %v9576 = vadd.f32 %v9378, %v9567
    %s9577 = sld [smem:[#allocation11 + $0xbe]]
    %v9578 = vstv %s9577
    %v9579 = vmul.f32 %v9578, %v9165
    %v9580 = vmul.f32 %v9578, %v9166
    %v9581 = vmul.f32 %v9578, %v9167
    %v9582 = vmul.f32 %v9578, %v9168
    %v9587 = vrot.slane %v9579, 1
    %v9588 = vrot.slane %v9580, 1
    %v9589 = vsel %vm255, %v9587, %v9588
    %v9590 = vrot.slane %v9581, 1
    %v9591 = vrot.slane %v9582, 1
    %v9592 = vsel %vm255, %v9590, %v9591
    %v9597 = vadd.f32 %v9401, %v9589
    %v9598 = vadd.f32 %v9402, %v9588
    %v9599 = vadd.f32 %v9403, %v9592
    %v9600 = vadd.f32 %v9404, %v9591
    %s9601 = sld [smem:[#allocation11 + $0xde]]
    %v9602 = vstv %s9601
    %v9603 = vmul.f32 %v9602, %v9165
    %v9604 = vmul.f32 %v9602, %v9166
    %v9605 = vmul.f32 %v9602, %v9167
    %v9606 = vmul.f32 %v9602, %v9168
    %v9611 = vrot.slane %v9603, 1
    %v9612 = vrot.slane %v9604, 1
    %v9613 = vsel %vm255, %v9611, %v9612
    %v9614 = vrot.slane %v9605, 1
    %v9615 = vrot.slane %v9606, 1
    %v9616 = vsel %vm255, %v9614, %v9615
    %v9621 = vadd.f32 %v9427, %v9613
    %v9622 = vadd.f32 %v9428, %v9612
    %v9623 = vadd.f32 %v9429, %v9616
    %v9624 = vadd.f32 %v9430, %v9615
    %s9625 = sld [smem:[#allocation11 + $0xfe]]
    %v9626 = vstv %s9625
    %v9627 = vmul.f32 %v9626, %v9165
    %v9628 = vmul.f32 %v9626, %v9166
    %v9629 = vmul.f32 %v9626, %v9167
    %v9630 = vmul.f32 %v9626, %v9168
    %v9635 = vrot.slane %v9627, 1
    %v9636 = vrot.slane %v9628, 1
    %v9637 = vsel %vm255, %v9635, %v9636
    %v9638 = vrot.slane %v9629, 1
    %v9639 = vrot.slane %v9630, 1
    %v9640 = vsel %vm255, %v9638, %v9639
    %v9645 = vadd.f32 %v9453, %v9637
    %v9646 = vadd.f32 %v9454, %v9636
    %v9647 = vadd.f32 %v9455, %v9640
    %v9648 = vadd.f32 %v9456, %v9639
    %s9649 = sld [smem:[#allocation11 + $0x1f]]
    %v9650 = vstv %s9649
    %v9651 = vmul.f32 %v9650, %v9165
    %v9652 = vmul.f32 %v9650, %v9166
    %v9653 = vmul.f32 %v9650, %v9167
    %v9654 = vmul.f32 %v9650, %v9168
    %v9659 = vrot.slane %v9651, 1
    %v9660 = vrot.slane %v9652, 1
    %v9661 = vsel %vm255, %v9659, %v9660
    %v9662 = vrot.slane %v9653, 1
    %v9663 = vrot.slane %v9654, 1
    %v9664 = vsel %vm255, %v9662, %v9663
    %9665 = vrot.lane.b32.xlu0 %v9661, 127
    %v9666 = vpop.permute.xlu0 %9665
    %9667 = vrot.lane.b32.xlu0 %v9660, 127
    %v9668 = vpop.permute.xlu0 %9667
    %9669 = vrot.lane.b32.xlu0 %v9664, 127
    %v9670 = vpop.permute.xlu0 %9669
    %9671 = vrot.lane.b32.xlu0 %v9663, 127
    %v9672 = vpop.permute.xlu0 %9671
    %v9677 = vadd.f32 %v9477, %v9666
    %v9678 = vadd.f32 %v9478, %v9668
    %v9679 = vadd.f32 %v9479, %v9670
    %v9680 = vadd.f32 %v9480, %v9672
    %s9681 = sld [smem:[#allocation11 + $0x3f]]
    %v9682 = vstv %s9681
    %v9683 = vmul.f32 %v9682, %v9165
    %v9684 = vmul.f32 %v9682, %v9166
    %v9685 = vmul.f32 %v9682, %v9167
    %v9686 = vmul.f32 %v9682, %v9168
    %v9691 = vrot.slane %v9683, 1
    %v9692 = vrot.slane %v9684, 1
    %v9693 = vsel %vm255, %v9691, %v9692
    %v9694 = vrot.slane %v9685, 1
    %v9695 = vrot.slane %v9686, 1
    %v9696 = vsel %vm255, %v9694, %v9695
    %9697 = vrot.lane.b32.xlu0 %v9693, 127
    %v9698 = vpop.permute.xlu0 %9697
    %9699 = vrot.lane.b32.xlu0 %v9692, 127
    %v9700 = vpop.permute.xlu0 %9699
    %9701 = vrot.lane.b32.xlu0 %v9696, 127
    %v9702 = vpop.permute.xlu0 %9701
    %9703 = vrot.lane.b32.xlu0 %v9695, 127
    %v9704 = vpop.permute.xlu0 %9703
    %v9709 = vadd.f32 %v9501, %v9698
    %v9710 = vadd.f32 %v9502, %v9700
    %v9711 = vadd.f32 %v9503, %v9702
    %v9712 = vadd.f32 %v9504, %v9704
    %s9713 = sld [smem:[#allocation11 + $0x5f]]
    %v9714 = vstv %s9713
    %v9715 = vmul.f32 %v9714, %v9165
    %v9716 = vmul.f32 %v9714, %v9166
    %v9717 = vmul.f32 %v9714, %v9167
    %v9718 = vmul.f32 %v9714, %v9168
    %v9723 = vrot.slane %v9715, 1
    %v9724 = vrot.slane %v9716, 1
    %v9725 = vsel %vm255, %v9723, %v9724
    %v9726 = vrot.slane %v9717, 1
    %v9727 = vrot.slane %v9718, 1
    %v9728 = vsel %vm255, %v9726, %v9727
    %9729 = vrot.lane.b32.xlu0 %v9725, 127
    %v9730 = vpop.permute.xlu0 %9729
    %9731 = vrot.lane.b32.xlu0 %v9724, 127
    %v9732 = vpop.permute.xlu0 %9731
    %9733 = vrot.lane.b32.xlu0 %v9728, 127
    %v9734 = vpop.permute.xlu0 %9733
    %9735 = vrot.lane.b32.xlu0 %v9727, 127
    %v9736 = vpop.permute.xlu0 %9735
    %v9741 = vadd.f32 %v9525, %v9730
    %v9742 = vadd.f32 %v9526, %v9732
    %v9743 = vadd.f32 %v9527, %v9734
    %v9744 = vadd.f32 %v9528, %v9736
    %s9745 = sld [smem:[#allocation11 + $0x7f]]
    %v9746 = vstv %s9745
    %v9747 = vmul.f32 %v9746, %v9165
    %v9748 = vmul.f32 %v9746, %v9166
    %v9749 = vmul.f32 %v9746, %v9167
    %v9750 = vmul.f32 %v9746, %v9168
    %v9755 = vrot.slane %v9747, 1
    %v9756 = vrot.slane %v9748, 1
    %v9757 = vsel %vm255, %v9755, %v9756
    %v9758 = vrot.slane %v9749, 1
    %v9759 = vrot.slane %v9750, 1
    %v9760 = vsel %vm255, %v9758, %v9759
    %9761 = vrot.lane.b32.xlu0 %v9757, 127
    %v9762 = vpop.permute.xlu0 %9761
    %9763 = vrot.lane.b32.xlu0 %v9756, 127
    %v9764 = vpop.permute.xlu0 %9763
    %9765 = vrot.lane.b32.xlu0 %v9760, 127
    %v9766 = vpop.permute.xlu0 %9765
    %9767 = vrot.lane.b32.xlu0 %v9759, 127
    %v9768 = vpop.permute.xlu0 %9767
    %v9773 = vadd.f32 %v9549, %v9762
    %v9774 = vadd.f32 %v9550, %v9764
    %v9775 = vadd.f32 %v9551, %v9766
    %v9776 = vadd.f32 %v9552, %v9768
    %s9777 = sld [smem:[#allocation11 + $0x9f]]
    %v9778 = vstv %s9777
    %v9779 = vmul.f32 %v9778, %v9165
    %v9780 = vmul.f32 %v9778, %v9166
    %v9781 = vmul.f32 %v9778, %v9167
    %v9782 = vmul.f32 %v9778, %v9168
    %v9787 = vrot.slane %v9779, 1
    %v9788 = vrot.slane %v9780, 1
    %v9789 = vsel %vm255, %v9787, %v9788
    %v9790 = vrot.slane %v9781, 1
    %v9791 = vrot.slane %v9782, 1
    %v9792 = vsel %vm255, %v9790, %v9791
    %9793 = vrot.lane.b32.xlu0 %v9789, 127
    %v9794 = vpop.permute.xlu0 %9793
    %9795 = vrot.lane.b32.xlu0 %v9788, 127
    %v9796 = vpop.permute.xlu0 %9795
    %9797 = vrot.lane.b32.xlu0 %v9792, 127
    %v9798 = vpop.permute.xlu0 %9797
    %9799 = vrot.lane.b32.xlu0 %v9791, 127
    %v9800 = vpop.permute.xlu0 %9799
    %v9805 = vadd.f32 %v9573, %v9794
    %v9806 = vadd.f32 %v9574, %v9796
    %v9807 = vadd.f32 %v9575, %v9798
    %v9808 = vadd.f32 %v9576, %v9800
    %s9809 = sld [smem:[#allocation11 + $0xbf]]
    %v9810 = vstv %s9809
    %v9811 = vmul.f32 %v9810, %v9165
    %v9812 = vmul.f32 %v9810, %v9166
    %v9813 = vmul.f32 %v9810, %v9167
    %v9814 = vmul.f32 %v9810, %v9168
    %v9819 = vrot.slane %v9811, 1
    %v9820 = vrot.slane %v9812, 1
    %v9821 = vsel %vm255, %v9819, %v9820
    %v9822 = vrot.slane %v9813, 1
    %v9823 = vrot.slane %v9814, 1
    %v9824 = vsel %vm255, %v9822, %v9823
    %9825 = vrot.lane.b32.xlu0 %v9821, 127
    %v9826 = vpop.permute.xlu0 %9825
    %9827 = vrot.lane.b32.xlu0 %v9820, 127
    %v9828 = vpop.permute.xlu0 %9827
    %9829 = vrot.lane.b32.xlu0 %v9824, 127
    %v9830 = vpop.permute.xlu0 %9829
    %9831 = vrot.lane.b32.xlu0 %v9823, 127
    %v9832 = vpop.permute.xlu0 %9831
    %v9837 = vadd.f32 %v9597, %v9826
    %v9838 = vadd.f32 %v9598, %v9828
    %v9839 = vadd.f32 %v9599, %v9830
    %v9840 = vadd.f32 %v9600, %v9832
    %s9841 = sld [smem:[#allocation11 + $0xdf]]
    %v9842 = vstv %s9841
    %v9843 = vmul.f32 %v9842, %v9165
    %v9844 = vmul.f32 %v9842, %v9166
    %v9845 = vmul.f32 %v9842, %v9167
    %v9846 = vmul.f32 %v9842, %v9168
    %v9851 = vrot.slane %v9843, 1
    %v9852 = vrot.slane %v9844, 1
    %v9853 = vsel %vm255, %v9851, %v9852
    %v9854 = vrot.slane %v9845, 1
    %v9855 = vrot.slane %v9846, 1
    %v9856 = vsel %vm255, %v9854, %v9855
    %9857 = vrot.lane.b32.xlu0 %v9853, 127
    %v9858 = vpop.permute.xlu0 %9857
    %9859 = vrot.lane.b32.xlu0 %v9852, 127
    %v9860 = vpop.permute.xlu0 %9859
    %9861 = vrot.lane.b32.xlu0 %v9856, 127
    %v9862 = vpop.permute.xlu0 %9861
    %9863 = vrot.lane.b32.xlu0 %v9855, 127
    %v9864 = vpop.permute.xlu0 %9863
    %v9869 = vadd.f32 %v9621, %v9858
    %v9870 = vadd.f32 %v9622, %v9860
    %v9871 = vadd.f32 %v9623, %v9862
    %v9872 = vadd.f32 %v9624, %v9864
    %s9873 = sld [smem:[#allocation11 + $0xff]]
    %v9874 = vstv %s9873
    %v9875 = vmul.f32 %v9874, %v9165
    %v9876 = vmul.f32 %v9874, %v9166
    %v9877 = vmul.f32 %v9874, %v9167
    %v9878 = vmul.f32 %v9874, %v9168
    %v9883 = vrot.slane %v9875, 1
    %v9884 = vrot.slane %v9876, 1
    %v9885 = vsel %vm255, %v9883, %v9884
    %v9886 = vrot.slane %v9877, 1
    %v9887 = vrot.slane %v9878, 1
    %v9888 = vsel %vm255, %v9886, %v9887
    %9889 = vrot.lane.b32.xlu0 %v9885, 127
    %v9890 = vpop.permute.xlu0 %9889
    %9891 = vrot.lane.b32.xlu0 %v9884, 127
    %v9892 = vpop.permute.xlu0 %9891
    %9893 = vrot.lane.b32.xlu0 %v9888, 127
    %v9894 = vpop.permute.xlu0 %9893
    %9895 = vrot.lane.b32.xlu0 %v9887, 127
    %v9896 = vpop.permute.xlu0 %9895
    %v9901 = vadd.f32 %v9645, %v9890
    %v9902 = vadd.f32 %v9646, %v9892
    %v9903 = vadd.f32 %v9647, %v9894
    %v9904 = vadd.f32 %v9648, %v9896
    %s9905 = sld [smem:[#allocation12]]
    %v9906 = vstv %s9905
    %v9907 = vadd.f32 %v9677, %v9906
    %v9908 = vadd.f32 %v9678, %v9906
    %v9909 = vadd.f32 %v9679, %v9906
    %v9910 = vadd.f32 %v9680, %v9906
    %v9911 = vmax.f32 %v9907, 0.0
    %v9912 = vmax.f32 %v9908, 0.0
    %v9913 = vmax.f32 %v9909, 0.0
    %v9914 = vmax.f32 %v9910, 0.0
    %vm9915 = vcmask 105472
    %9916 = vst.msk [vmem:[%s7] sm:$0xff] %vm9915, %v9911
    %vm9917 = vcmask 102400
    %9918 = vst.msk [vmem:[%s7 + $0x8] sm:$0x1f] %vm9917, %v9912
    %9919 = vst.msk [vmem:[%s7 + $0x80] sm:$0xff] %vm9915, %v9913
    %9920 = vst.msk [vmem:[%s7 + $0x88] sm:$0x1f] %vm9917, %v9914
    %s9921 = sld [smem:[#allocation12 + $0x1]]
    %v9922 = vstv %s9921
    %v9923 = vadd.f32 %v9709, %v9922
    %v9924 = vadd.f32 %v9710, %v9922
    %v9925 = vadd.f32 %v9711, %v9922
    %v9926 = vadd.f32 %v9712, %v9922
    %v9927 = vmax.f32 %v9923, 0.0
    %v9928 = vmax.f32 %v9924, 0.0
    %v9929 = vmax.f32 %v9925, 0.0
    %v9930 = vmax.f32 %v9926, 0.0
    %s9931 = scalar_lea.vmem %s7, 16
    %9932 = vst.msk [vmem:[%s9931] sm:$0xff] %vm9915, %v9927
    %9933 = vst.msk [vmem:[%s9931 + $0x8] sm:$0x1f] %vm9917, %v9928
    %9934 = vst.msk [vmem:[%s9931 + $0x80] sm:$0xff] %vm9915, %v9929
    %9935 = vst.msk [vmem:[%s9931 + $0x88] sm:$0x1f] %vm9917, %v9930
    %s9936 = sld [smem:[#allocation12 + $0x2]]
    %v9937 = vstv %s9936
    %v9938 = vadd.f32 %v9741, %v9937
    %v9939 = vadd.f32 %v9742, %v9937
    %v9940 = vadd.f32 %v9743, %v9937
    %v9941 = vadd.f32 %v9744, %v9937
    %v9942 = vmax.f32 %v9938, 0.0
    %v9943 = vmax.f32 %v9939, 0.0
    %v9944 = vmax.f32 %v9940, 0.0
    %v9945 = vmax.f32 %v9941, 0.0
    %s9946 = scalar_lea.vmem %s7, 32
    %9947 = vst.msk [vmem:[%s9946] sm:$0xff] %vm9915, %v9942
    %9948 = vst.msk [vmem:[%s9946 + $0x8] sm:$0x1f] %vm9917, %v9943
    %9949 = vst.msk [vmem:[%s9946 + $0x80] sm:$0xff] %vm9915, %v9944
    %9950 = vst.msk [vmem:[%s9946 + $0x88] sm:$0x1f] %vm9917, %v9945
    %s9951 = sld [smem:[#allocation12 + $0x3]]
    %v9952 = vstv %s9951
    %v9953 = vadd.f32 %v9773, %v9952
    %v9954 = vadd.f32 %v9774, %v9952
    %v9955 = vadd.f32 %v9775, %v9952
    %v9956 = vadd.f32 %v9776, %v9952
    %v9957 = vmax.f32 %v9953, 0.0
    %v9958 = vmax.f32 %v9954, 0.0
    %v9959 = vmax.f32 %v9955, 0.0
    %v9960 = vmax.f32 %v9956, 0.0
    %s9961 = scalar_lea.vmem %s7, 48
    %9962 = vst.msk [vmem:[%s9961] sm:$0xff] %vm9915, %v9957
    %9963 = vst.msk [vmem:[%s9961 + $0x8] sm:$0x1f] %vm9917, %v9958
    %9964 = vst.msk [vmem:[%s9961 + $0x80] sm:$0xff] %vm9915, %v9959
    %9965 = vst.msk [vmem:[%s9961 + $0x88] sm:$0x1f] %vm9917, %v9960
    %s9966 = sld [smem:[#allocation12 + $0x4]]
    %v9967 = vstv %s9966
    %v9968 = vadd.f32 %v9805, %v9967
    %v9969 = vadd.f32 %v9806, %v9967
    %v9970 = vadd.f32 %v9807, %v9967
    %v9971 = vadd.f32 %v9808, %v9967
    %v9972 = vmax.f32 %v9968, 0.0
    %v9973 = vmax.f32 %v9969, 0.0
    %v9974 = vmax.f32 %v9970, 0.0
    %v9975 = vmax.f32 %v9971, 0.0
    %s9976 = scalar_lea.vmem %s7, 64
    %9977 = vst.msk [vmem:[%s9976] sm:$0xff] %vm9915, %v9972
    %9978 = vst.msk [vmem:[%s9976 + $0x8] sm:$0x1f] %vm9917, %v9973
    %9979 = vst.msk [vmem:[%s9976 + $0x80] sm:$0xff] %vm9915, %v9974
    %9980 = vst.msk [vmem:[%s9976 + $0x88] sm:$0x1f] %vm9917, %v9975
    %s9981 = sld [smem:[#allocation12 + $0x5]]
    %v9982 = vstv %s9981
    %v9983 = vadd.f32 %v9837, %v9982
    %v9984 = vadd.f32 %v9838, %v9982
    %v9985 = vadd.f32 %v9839, %v9982
    %v9986 = vadd.f32 %v9840, %v9982
    %v9987 = vmax.f32 %v9983, 0.0
    %v9988 = vmax.f32 %v9984, 0.0
    %v9989 = vmax.f32 %v9985, 0.0
    %v9990 = vmax.f32 %v9986, 0.0
    %s9991 = scalar_lea.vmem %s7, 80
    %9992 = vst.msk [vmem:[%s9991] sm:$0xff] %vm9915, %v9987
    %9993 = vst.msk [vmem:[%s9991 + $0x8] sm:$0x1f] %vm9917, %v9988
    %9994 = vst.msk [vmem:[%s9991 + $0x80] sm:$0xff] %vm9915, %v9989
    %9995 = vst.msk [vmem:[%s9991 + $0x88] sm:$0x1f] %vm9917, %v9990
    %s9996 = sld [smem:[#allocation12 + $0x6]]
    %v9997 = vstv %s9996
    %v9998 = vadd.f32 %v9869, %v9997
    %v9999 = vadd.f32 %v9870, %v9997
    %v10000 = vadd.f32 %v9871, %v9997
    %v10001 = vadd.f32 %v9872, %v9997
    %v10002 = vmax.f32 %v9998, 0.0
    %v10003 = vmax.f32 %v9999, 0.0
    %v10004 = vmax.f32 %v10000, 0.0
    %v10005 = vmax.f32 %v10001, 0.0
    %s10006 = scalar_lea.vmem %s7, 96
    %10007 = vst.msk [vmem:[%s10006] sm:$0xff] %vm9915, %v10002
    %10008 = vst.msk [vmem:[%s10006 + $0x8] sm:$0x1f] %vm9917, %v10003
    %10009 = vst.msk [vmem:[%s10006 + $0x80] sm:$0xff] %vm9915, %v10004
    %10010 = vst.msk [vmem:[%s10006 + $0x88] sm:$0x1f] %vm9917, %v10005
    %s10011 = sld [smem:[#allocation12 + $0x7]]
    %v10012 = vstv %s10011
    %v10013 = vadd.f32 %v9901, %v10012
    %v10014 = vadd.f32 %v9902, %v10012
    %v10015 = vadd.f32 %v9903, %v10012
    %v10016 = vadd.f32 %v9904, %v10012
    %v10017 = vmax.f32 %v10013, 0.0
    %v10018 = vmax.f32 %v10014, 0.0
    %v10019 = vmax.f32 %v10015, 0.0
    %v10020 = vmax.f32 %v10016, 0.0
    %s10021 = scalar_lea.vmem %s7, 112
    %10022 = vst.msk [vmem:[%s10021] sm:$0xff] %vm9915, %v10017
    %10023 = vst.msk [vmem:[%s10021 + $0x8] sm:$0x1f] %vm9917, %v10018
    %10024 = vst.msk [vmem:[%s10021 + $0x80] sm:$0xff] %vm9915, %v10019
    %10025 = vst.msk [vmem:[%s10021 + $0x88] sm:$0x1f] %vm9917, %v10020
    // Predicated region
    $region54: #{net_conv2d_forward.1} parent=1 // pred_check
      _
    $region55: #{net_conv2d_forward.1} parent=1 // pred_check_branch
      %10027 = sbr.rel (0) target = $region57
    $region56: #{net_conv2d_forward.1} parent=1 // pred_region
      _
    $region57: #{net_conv2d_forward.1} parent=1 // pred_fallthru
      _
    // Predicated region
    $region58: #{net_conv2d_forward.1} parent=1 // pred_check
      _
    $region59: #{net_conv2d_forward.1} parent=1 // pred_check_branch
      %10029 = sbr.rel (0) target = $region61
    $region60: #{net_conv2d_forward.1} parent=1 // pred_region
      _
    $region61: #{net_conv2d_forward.1} parent=1 // pred_fallthru
      _
    %10030 = vsyncpa [#allocation5], 1
    %10031 = vsyncpa [#allocation7], 1
    %10032 = vsyncpa [#allocation10], 1
    %10033 = vsyncpa [#allocation13], 1

</llo_original>
